<compile_context>
chip_gen: v5e
topology: v5e:2x2
jax: 0.10.0
libtpu: 0.0.40
codegen_flags: <defaults>
</compile_context>

<pallas_src>
import functools

import numpy as np
import jax
import jax.numpy as jnp
from jax.experimental import pallas as pl
from jax.experimental.pallas import tpu as pltpu


def _round_up(n, m):
    return ((n + m - 1) // m) * m


def _vmem_capacity_bytes():
    try:
        cap = getattr(pltpu.get_tpu_info(), "vmem_capacity_bytes", None)
        if cap:
            return int(cap)
    except Exception:
        pass
    return 64 * 1024 * 1024  # conservative default (v7x per-TensorCore)


# ----------------------------------------------------------------------------
# Kernel 1: fused 1x1 conv  (x|y rows) @ (wq|wk cols) + bias, tiled over rows.
# Cout (=2C) stays the full array extent; masked stores are acceptable here —
# this op is dominated by the surrounding transpose/concat HBM traffic anyway.
# ----------------------------------------------------------------------------
def _proj_kernel(x_ref, w_ref, b_ref, o_ref):
    # x_ref: (TN, Cin)  w_ref: (Cin, Cout)  b_ref: (1, Cout)  o_ref: (TN, Cout)
    o_ref[...] = (
        jnp.dot(x_ref[...], w_ref[...], preferred_element_type=jnp.float32)
        + b_ref[...]
    ).astype(o_ref.dtype)


def fused_projection(xy_flat, w_cat, b_cat):
    # xy_flat: (N, Cin), w_cat: (Cin, Cout), b_cat: (1, Cout)
    n, cin = xy_flat.shape
    cout = w_cat.shape[1]
    if n >= 2048:
        tn = 2048
    elif n >= 1024:
        tn = 1024
    else:
        tn = _round_up(n, 8)
    n_pad = _round_up(n, tn)
    if n_pad != n:
        xy_flat = jnp.pad(xy_flat, ((0, n_pad - n), (0, 0)))
    out = pl.pallas_call(
        _proj_kernel,
        out_shape=jax.ShapeDtypeStruct((n_pad, cout), jnp.float32),
        grid=(n_pad // tn,),
        in_specs=[
            pl.BlockSpec((tn, cin), lambda i: (i, 0)),
            pl.BlockSpec((cin, cout), lambda i: (0, 0)),
            pl.BlockSpec((1, cout), lambda i: (0, 0)),
        ],
        out_specs=pl.BlockSpec((tn, cout), lambda i: (i, 0)),
        compiler_params=pltpu.CompilerParams(dimension_semantics=("parallel",)),
    )(xy_flat, w_cat, b_cat)
    return out[:n]


# ----------------------------------------------------------------------------
# Kernel 2: static row (y-axis) bilinear mix of K (with 1/C folded in)
#           Kmix[b] = ymat_t @ K[b]      (ymat_t is [h_out, h_src] / C)
# ----------------------------------------------------------------------------
def _rowmix_kernel(ymt_ref, k_ref, o_ref):
    # ymt_ref: (H, H)   k_ref, o_ref: (1, H, COLT)
    o_ref[0] = jnp.dot(
        ymt_ref[...], k_ref[0], preferred_element_type=jnp.float32
    ).astype(o_ref.dtype)


def rowmix(k_flat, ymat_t):
    # k_flat: (NB, H, W*C), ymat_t: (H, H)
    nb, h, wc = k_flat.shape
    wc_pad = _round_up(wc, 128)          # lane-dense blocks / stores
    if wc_pad != wc:
        k_flat = jnp.pad(k_flat, ((0, 0), (0, 0), (0, wc_pad - wc)))
    colt = 128
    for t in (1024, 512, 256, 128):
        if wc_pad % t == 0:
            colt = t
            break
    out = pl.pallas_call(
        _rowmix_kernel,
        out_shape=jax.ShapeDtypeStruct((nb, h, wc_pad), jnp.float32),
        grid=(nb, wc_pad // colt),
        in_specs=[
            pl.BlockSpec((h, h), lambda b, c: (0, 0)),
            pl.BlockSpec((1, h, colt), lambda b, c: (b, 0, c)),
        ],
        out_specs=pl.BlockSpec((1, h, colt), lambda b, c: (b, 0, c)),
        compiler_params=pltpu.CompilerParams(
            dimension_semantics=("parallel", "parallel")
        ),
    )(ymat_t, k_flat)
    return out[:, :, :wc]


# ----------------------------------------------------------------------------
# Kernel 3: cost volume.  Per (batch, row-band) the per-row correlation
#   QK[h, w_out, w_src] = sum_c Q[h,w_out,c] * Kmix[h,w_src,c]      (1/C folded)
# is computed once on the MXU and cached in VMEM scratch; each disparity
# sample is a single hat-weight tap out of QK (zeros padding for free), and
# the disparity group is processed one sample at a time (pl.loop) so the live
# temporary set stays at (TH, W, W).
# ----------------------------------------------------------------------------
def _cost_kernel(q_ref, kmix_ref, d_ref, o_ref, qk_ref, *, w_orig):
    # q_ref, kmix_ref: (1, TH, Wp, C); d_ref, o_ref: (1, Td, TH, Wp)
    # qk_ref: (TH, Wp, Wp) f32 scratch, cached across the disparity-group axis.
    Wp = q_ref.shape[2]
    Td = d_ref.shape[1]

    @pl.when(pl.program_id(2) == 0)
    def _():
        qk_ref[...] = jnp.einsum(
            "hoc,hsc->hos", q_ref[0], kmix_ref[0],
            preferred_element_type=jnp.float32,
        )

    # grid_sample align_corners=False unnormalization (uses the ORIGINAL W):
    #   coords_x = d / ((W-1)/2) - 1   ==>   ix = d * W/(W-1) - 0.5
    scale = float(w_orig) / (float(w_orig) - 1.0)
    # Single hoisted lane iota (one vreg row), broadcast in the subtract.
    src = jax.lax.broadcasted_iota(jnp.int32, (1, 1, Wp), 2).astype(jnp.float32)

    @pl.loop(0, Td)
    def _(dl):
        ix = d_ref[0, dl] * scale - 0.5                       # (TH, Wp)
        # Hat weight == (1-fx)*tap(ix0) + fx*tap(ix0+1), incl. zeros padding
        # (out-of-range source columns hold zero / never get weight).
        w = jnp.maximum(0.0, 1.0 - jnp.abs(ix[:, :, None] - src))  # (TH,Wp,Wp)
        o_ref[0, dl] = jnp.sum(w * qk_ref[...], axis=-1).astype(o_ref.dtype)


def _cost_vmem_bytes(th, wp, c, td):
    qk_scratch = th * wp * wp * 4                   # single-buffered scratch
    temps = 2 * th * wp * wp * 4                    # hat weight + product (1 disp live)
    io_blocks = 2 * (2 * th * wp * c * 4) + 2 * (2 * td * th * wp * 4)
    return qk_scratch + temps + io_blocks


def cost_volume(q, kmix, disp, *, ndisp, w_orig):
    # q, kmix: (B, Hp, Wp, C) zero-padded;  disp: (B, ndisp, Hp, Wp)
    B, Hp, Wp, C = q.shape
    td = next(t for t in (8, 4, 2, 1) if ndisp % t == 0)

    cap = _vmem_capacity_bytes()
    budget = int(cap * 0.6)
    th = 8
    for cand in (32, 16, 8):
        if Hp % cand == 0 and _cost_vmem_bytes(cand, Wp, C, td) <= budget:
            th = cand
            break
    # Keep >=2 parallel grid cells so both v7x TensorCores get work.
    while th > 8 and B * (Hp // th) < 2:
        th //= 2
    need = _cost_vmem_bytes(th, Wp, C, td)
    vmem_limit = int(min(cap * 0.9, max(need + (8 << 20), 32 << 20)))

    kernel = functools.partial(_cost_kernel, w_orig=w_orig)
    return pl.pallas_call(
        kernel,
        out_shape=jax.ShapeDtypeStruct((B, ndisp, Hp, Wp), jnp.float32),
        grid=(B, Hp // th, ndisp // td),
        in_specs=[
            pl.BlockSpec((1, th, Wp, C), lambda b, h, d: (b, h, 0, 0)),
            pl.BlockSpec((1, th, Wp, C), lambda b, h, d: (b, h, 0, 0)),
            pl.BlockSpec((1, td, th, Wp), lambda b, h, d: (b, d, h, 0)),
        ],
        out_specs=pl.BlockSpec((1, td, th, Wp), lambda b, h, d: (b, d, h, 0)),
        scratch_shapes=[pltpu.VMEM((th, Wp, Wp), jnp.float32)],
        compiler_params=pltpu.CompilerParams(
            dimension_semantics=("parallel", "parallel", "arbitrary"),
            vmem_limit_bytes=vmem_limit,
        ),
    )(q, kmix, disp)


# ----------------------------------------------------------------------------
# Glue
# ----------------------------------------------------------------------------
def _build_ymat_t(H, scale):
    # Static bilinear row-mixing matrix [h_out, h_src] (scaled by 1/C) for
    # coords_y = h / ((H-1)/2) - 1, align_corners=False, zeros padding.
    h = np.arange(H, dtype=np.float64)
    iy = h * (H / (H - 1.0)) - 0.5
    iy0 = np.floor(iy).astype(np.int64)
    fy = (iy - iy0).astype(np.float64)
    m = np.zeros((H, H), dtype=np.float64)
    for ho in range(H):
        if 0 <= iy0[ho] < H:
            m[ho, iy0[ho]] += 1.0 - fy[ho]
        if 0 <= iy0[ho] + 1 < H:
            m[ho, iy0[ho] + 1] += fy[ho]
    return jnp.asarray(m * scale, dtype=jnp.float32)


@functools.partial(jax.jit, static_argnames=("ndisp",))
def get_cost_volume(x, y, disp1, disp2, wq, bq, wk, bk, *, ndisp):
    """x, y: (B, C, H, W); disp1, disp2: (B, ndisp, H, W).  Returns the two
    (B, ndisp, H, W) cost volumes, matching the PyTorch module."""
    del disp2  # NOTE: reproduces original bug — coords_x never recomputed, so
    #            both cost volumes sample with disp_range_samples1.
    B, C, H, W = x.shape
    xf = jnp.transpose(x, (0, 2, 3, 1)).reshape(B * H * W, C)
    yf = jnp.transpose(y, (0, 2, 3, 1)).reshape(B * H * W, C)

    # One GEMM for all four projections: rows = x|y, cols = wq|wk.
    xy = jnp.concatenate([xf, yf], axis=0)
    w_cat = jnp.concatenate([wq, wk], axis=1)            # (C, 2C)
    b_cat = jnp.concatenate([bq, bk]).reshape(1, 2 * C)
    proj = fused_projection(xy, w_cat, b_cat)            # (2BHW, 2C)

    n = B * H * W
    Qx = proj[:n, :C].reshape(B, H, W, C)   # query(x)
    Kx = proj[:n, C:].reshape(B, H, W, C)   # key(x)
    Qy = proj[n:, :C].reshape(B, H, W, C)   # query(y)
    Ky = proj[n:, C:].reshape(B, H, W, C)   # key(y)

    # Row (y-axis) bilinear mix of both key maps, hoisted out of the disparity
    # loop: one MXU matmul per (batch, key); 1/C mean fold is free here.
    ymat_t = _build_ymat_t(H, scale=1.0 / C)                    # (H_out, H_src)
    k_stack = jnp.concatenate([Ky, Kx], axis=0).reshape(2 * B, H, W * C)
    kmix = rowmix(k_stack, ymat_t).reshape(2 * B, H, W, C)
    kmix_y, kmix_x = kmix[:B], kmix[B:]

    # Pad AFTER the projections/rowmix so padded K columns/rows are exactly
    # zero (keeps padding_mode='zeros' semantics) and cost-output stores are
    # 128-lane dense, row bands (8,·)-aligned.
    Hp = _round_up(H, 8)
    Wp = _round_up(W, 128)

    def pad_feat(a):   # (B, H, W, C) -> (B, Hp, Wp, C)
        return jnp.pad(a, ((0, 0), (0, Hp - H), (0, Wp - W), (0, 0)))

    def pad_disp(d):   # (B, ndisp, H, W) -> (B, ndisp, Hp, Wp)
        return jnp.pad(d, ((0, 0), (0, 0), (0, Hp - H), (0, Wp - W)))

    d1p = pad_disp(disp1)
    cost1 = cost_volume(pad_feat(Qx), pad_feat(kmix_y), d1p, ndisp=ndisp, w_orig=W)
    cost2 = cost_volume(pad_feat(Qy), pad_feat(kmix_x), d1p, ndisp=ndisp, w_orig=W)
    return cost1[:, :, :H, :W], cost2[:, :, :H, :W]


# ----------------------------------------------------------------------------
# Pure-JAX reference (mirrors PyTorch semantics) for verification
# ----------------------------------------------------------------------------
def ref_forward(x, y, d1, d2, ndisp, wq, bq, wk, bk):
    del d2  # same bug as the original module
    B, C, H, W = x.shape

    def conv(inp, w, b):
        return jnp.einsum(
            "bchw,cd->bdhw", inp, w, precision=jax.lax.Precision.HIGHEST
        ) + b.reshape(1, -1, 1, 1)

    Qx, Ky = conv(x, wq, bq), conv(y, wk, bk)
    Qy, Kx = conv(y, wq, bq), conv(x, wk, bk)

    mh = jnp.broadcast_to(
        jnp.arange(H, dtype=jnp.float32).reshape(1, 1, H, 1), (B, ndisp, H, W)
    )
    coords_x = d1 / ((W - 1.0) / 2.0) - 1.0
    coords_y = mh / ((H - 1.0) / 2.0) - 1.0
    ix = ((coords_x + 1.0) * W - 1.0) / 2.0
    iy = ((coords_y + 1.0) * H - 1.0) / 2.0
    ix0, iy0 = jnp.floor(ix), jnp.floor(iy)
    fx, fy = ix - ix0, iy - iy0

    def sample_cost(Q, K):
        def corner(iyc, ixc, w):
            valid = (ixc >= 0) & (ixc <= W - 1) & (iyc >= 0) & (iyc <= H - 1)
            ixi = jnp.clip(ixc, 0, W - 1).astype(jnp.int32)
            iyi = jnp.clip(iyc, 0, H - 1).astype(jnp.int32)
            b_idx = jnp.arange(B).reshape(B, 1, 1, 1, 1)
            c_idx = jnp.arange(C).reshape(1, C, 1, 1, 1)
            vals = K[b_idx, c_idx, iyi[:, None], ixi[:, None]]
            return vals * (valid[:, None].astype(jnp.float32) * w[:, None])

        v = (
            corner(iy0, ix0, (1 - fy) * (1 - fx))
            + corner(iy0, ix0 + 1, (1 - fy) * fx)
            + corner(iy0 + 1, ix0, fy * (1 - fx))
            + corner(iy0 + 1, ix0 + 1, fy * fx)
        )  # (B, C, ndisp, H, W)
        return jnp.mean(Q[:, :, None] * v, axis=1)  # (B, ndisp, H, W)

    return sample_cost(Qx, Ky), sample_cost(Qy, Kx)


if __name__ == "__main__":
    B, C, H, W, ndisp = 2, 4, 16, 16, 8
    key = jax.random.PRNGKey(0)
    k1, k2, k3, k4, k5, k6, k7, k8 = jax.random.split(key, 8)

    x = jax.random.normal(k1, (B, C, H, W), jnp.float32)
    y = jax.random.normal(k2, (B, C, H, W), jnp.float32)
    # Disparity samples in pixel units; some fall outside the image so the
    # zeros padding path is exercised.
    d1 = jax.random.uniform(k3, (B, ndisp, H, W), jnp.float32, -2.0, W + 1.0)
    d2 = jax.random.uniform(k4, (B, ndisp, H, W), jnp.float32, -2.0, W + 1.0)

    # Deterministic synthetic conv params (w stored as [Cin, Cout]).
    wq = 0.1 * jax.random.normal(k5, (C, C), jnp.float32)
    bq = 0.1 * jax.random.normal(k6, (C,), jnp.float32)
    wk = 0.1 * jax.random.normal(k7, (C, C), jnp.float32)
    bk = 0.1 * jax.random.normal(k8, (C,), jnp.float32)

    cost1, cost2 = get_cost_volume(x, y, d1, d2, wq, bq, wk, bk, ndisp=ndisp)
    jax.block_until_ready((cost1, cost2))

    r1, r2 = ref_forward(x, y, d1, d2, ndisp, wq, bq, wk, bk)
    assert cost1.shape == (B, ndisp, H, W) and cost2.shape == (B, ndisp, H, W)
    assert jnp.allclose(cost1, r1, atol=2e-4, rtol=2e-4), float(
        jnp.max(jnp.abs(cost1 - r1))
    )
    assert jnp.allclose(cost2, r2, atol=2e-4, rtol=2e-4), float(
        jnp.max(jnp.abs(cost2 - r2))
    )
    print("KERNEL_OK")
</pallas_src>

<mosaic_0001>
module attributes {stable_mosaic.version = 11 : i64} {
  func.func @_proj_kernel(%arg0: i32, %arg1: memref<1024x4xf32, #tpu.memory_space<vmem>>, %arg2: memref<4x8xf32, #tpu.memory_space<vmem>>, %arg3: memref<1x8xf32, #tpu.memory_space<vmem>>, %arg4: memref<1024x8xf32, #tpu.memory_space<vmem>>) attributes {dimension_semantics = [#tpu.dimension_semantics<parallel>], iteration_bounds = array<i64: 1>, scalar_prefetch = 0 : i64, scratch_operands = 0 : i64, tpu.core_type = #tpu.core_type<tc>, window_params = [{transform_indices = @transform_0, window_bounds = array<i64: 1024, 4>}, {pipeline_mode = #tpu.pipeline_mode<synchronous>, transform_indices = @transform_1, window_bounds = array<i64: 4, 8>}, {pipeline_mode = #tpu.pipeline_mode<synchronous>, transform_indices = @transform_2, window_bounds = array<i64: 1, 8>}, {transform_indices = @transform_3, window_bounds = array<i64: 1024, 8>}]} {
    %c0 = arith.constant 0 : index
    %c0_0 = arith.constant 0 : index
    %0 = vector.load %arg1[%c0, %c0_0] : memref<1024x4xf32, #tpu.memory_space<vmem>>, vector<1024x4xf32>
    %c0_1 = arith.constant 0 : index
    %c0_2 = arith.constant 0 : index
    %1 = vector.load %arg2[%c0_1, %c0_2] : memref<4x8xf32, #tpu.memory_space<vmem>>, vector<4x8xf32>
    %cst = arith.constant dense<0.000000e+00> : vector<1024x8xf32>
    %2 = tpu.matmul %0, %1, %cst {dimension_numbers = #tpu.dot_dimension_numbers<[1], [0], [0], [1], [0, 0, 1, 1], [], []>} : vector<1024x4xf32>, vector<4x8xf32>, vector<1024x8xf32> -> vector<1024x8xf32>
    %c0_3 = arith.constant 0 : index
    %c0_4 = arith.constant 0 : index
    %3 = vector.load %arg3[%c0_3, %c0_4] : memref<1x8xf32, #tpu.memory_space<vmem>>, vector<1x8xf32>
    %4 = vector.broadcast %3 : vector<1x8xf32> to vector<1024x8xf32>
    %5 = arith.addf %2, %4 : vector<1024x8xf32>
    %c0_5 = arith.constant 0 : index
    %c0_6 = arith.constant 0 : index
    %6 = vector.load %arg4[%c0_5, %c0_6] : memref<1024x8xf32, #tpu.memory_space<vmem>>, vector<1024x8xf32>
    tpu.vector_store %arg4[%c0_5, %c0_6], %5 {strides = array<i32>} : memref<1024x8xf32, #tpu.memory_space<vmem>>, vector<1024x8xf32>,
    return
  }
  func.func @transform_0(%arg0: i32) -> (i32, i32) {
    %c0_i32 = arith.constant 0 : i32
    %c0_i32_0 = arith.constant 0 : i32
    return %arg0, %c0_i32 : i32, i32
  }
  func.func @transform_1(%arg0: i32) -> (i32, i32) {
    %c0_i32 = arith.constant 0 : i32
    %c0_i32_0 = arith.constant 0 : i32
    %c0_i32_1 = arith.constant 0 : i32
    return %c0_i32, %c0_i32_0 : i32, i32
  }
  func.func @transform_2(%arg0: i32) -> (i32, i32) {
    %c0_i32 = arith.constant 0 : i32
    %c0_i32_0 = arith.constant 0 : i32
    %c0_i32_1 = arith.constant 0 : i32
    return %c0_i32, %c0_i32_0 : i32, i32
  }
  func.func @transform_3(%arg0: i32) -> (i32, i32) {
    %c0_i32 = arith.constant 0 : i32
    %c0_i32_0 = arith.constant 0 : i32
    return %arg0, %c0_i32 : i32, i32
  }
}

module attributes {stable_mosaic.version = 11 : i64} {
  func.func @_rowmix_kernel(%arg0: i32, %arg1: i32, %arg2: memref<16x16xf32, #tpu.memory_space<vmem>>, %arg3: memref<1x16x128xf32, #tpu.memory_space<vmem>>, %arg4: memref<1x16x128xf32, #tpu.memory_space<vmem>>) attributes {dimension_semantics = [#tpu.dimension_semantics<parallel>, #tpu.dimension_semantics<parallel>], iteration_bounds = array<i64: 4, 1>, scalar_prefetch = 0 : i64, scratch_operands = 0 : i64, tpu.core_type = #tpu.core_type<tc>, window_params = [{pipeline_mode = #tpu.pipeline_mode<synchronous>, transform_indices = @transform_0, window_bounds = array<i64: 16, 16>}, {transform_indices = @transform_1, window_bounds = array<i64: 1, 16, 128>}, {transform_indices = @transform_2, window_bounds = array<i64: 1, 16, 128>}]} {
    %c0 = arith.constant 0 : index
    %c0_0 = arith.constant 0 : index
    %0 = vector.load %arg2[%c0, %c0_0] : memref<16x16xf32, #tpu.memory_space<vmem>>, vector<16x16xf32>
    %c0_1 = arith.constant 0 : index
    %c0_2 = arith.constant 0 : index
    %c0_3 = arith.constant 0 : index
    %1 = vector.load %arg3[%c0_1, %c0_2, %c0_3] : memref<1x16x128xf32, #tpu.memory_space<vmem>>, vector<1x16x128xf32>
    %2 = vector.shape_cast %1 : vector<1x16x128xf32> to vector<16x128xf32>
    %cst = arith.constant dense<0.000000e+00> : vector<16x128xf32>
    %3 = tpu.matmul %0, %2, %cst {dimension_numbers = #tpu.dot_dimension_numbers<[1], [0], [0], [1], [0, 0, 1, 1], [], []>} : vector<16x16xf32>, vector<16x128xf32>, vector<16x128xf32> -> vector<16x128xf32>
    %c0_4 = arith.constant 0 : index
    %c0_5 = arith.constant 0 : index
    %c0_6 = arith.constant 0 : index
    %4 = vector.load %arg4[%c0_4, %c0_5, %c0_6] : memref<1x16x128xf32, #tpu.memory_space<vmem>>, vector<1x16x128xf32>
    %5 = vector.shape_cast %4 : vector<1x16x128xf32> to vector<16x128xf32>
    %6 = vector.shape_cast %3 : vector<16x128xf32> to vector<1x16x128xf32>
    tpu.vector_store %arg4[%c0_4, %c0_5, %c0_6], %6 {strides = array<i32>} : memref<1x16x128xf32, #tpu.memory_space<vmem>>, vector<1x16x128xf32>,
    return
  }
  func.func @transform_0(%arg0: i32, %arg1: i32) -> (i32, i32) {
    %c0_i32 = arith.constant 0 : i32
    %c0_i32_0 = arith.constant 0 : i32
    %c0_i32_1 = arith.constant 0 : i32
    return %c0_i32, %c0_i32_0 : i32, i32
  }
  func.func @transform_1(%arg0: i32, %arg1: i32) -> (i32, i32, i32) {
    %c0_i32 = arith.constant 0 : i32
    %c0_i32_0 = arith.constant 0 : i32
    return %arg0, %c0_i32, %arg1 : i32, i32, i32
  }
  func.func @transform_2(%arg0: i32, %arg1: i32) -> (i32, i32, i32) {
    %c0_i32 = arith.constant 0 : i32
    %c0_i32_0 = arith.constant 0 : i32
    return %arg0, %c0_i32, %arg1 : i32, i32, i32
  }
}

module attributes {stable_mosaic.version = 11 : i64} {
  func.func @_cost_kernel(%arg0: i32, %arg1: i32, %arg2: i32, %arg3: memref<1x16x128x4xf32, #tpu.memory_space<vmem>>, %arg4: memref<1x16x128x4xf32, #tpu.memory_space<vmem>>, %arg5: memref<1x8x16x128xf32, #tpu.memory_space<vmem>>, %arg6: memref<1x8x16x128xf32, #tpu.memory_space<vmem>>, %arg7: memref<16x128x128xf32, #tpu.memory_space<vmem>>) attributes {dimension_semantics = [#tpu.dimension_semantics<parallel>, #tpu.dimension_semantics<parallel>, #tpu.dimension_semantics<arbitrary>], iteration_bounds = array<i64: 2, 1, 1>, scalar_prefetch = 0 : i64, scratch_operands = 1 : i64, tpu.core_type = #tpu.core_type<tc>, window_params = [{transform_indices = @transform_0, window_bounds = array<i64: 1, 16, 128, 4>}, {transform_indices = @transform_1, window_bounds = array<i64: 1, 16, 128, 4>}, {transform_indices = @transform_2, window_bounds = array<i64: 1, 8, 16, 128>}, {transform_indices = @transform_3, window_bounds = array<i64: 1, 8, 16, 128>}]} {
    %c0_i32 = arith.constant 0 : i32
    %0 = arith.cmpi eq, %arg2, %c0_i32 : i32
    %1 = arith.extui %0 : i1 to i32
    %c0_i32_0 = arith.constant 0 : i32
    %2 = arith.cmpi ne, %1, %c0_i32_0 : i32
    scf.if %2 {
      %c0 = arith.constant 0 : index
      %c0_3 = arith.constant 0 : index
      %c0_4 = arith.constant 0 : index
      %c0_5 = arith.constant 0 : index
      %6 = vector.load %arg3[%c0, %c0_3, %c0_4, %c0_5] : memref<1x16x128x4xf32, #tpu.memory_space<vmem>>, vector<1x16x128x4xf32>
      %7 = vector.shape_cast %6 : vector<1x16x128x4xf32> to vector<16x128x4xf32>
      %c0_6 = arith.constant 0 : index
      %c0_7 = arith.constant 0 : index
      %c0_8 = arith.constant 0 : index
      %c0_9 = arith.constant 0 : index
      %8 = vector.load %arg4[%c0_6, %c0_7, %c0_8, %c0_9] : memref<1x16x128x4xf32, #tpu.memory_space<vmem>>, vector<1x16x128x4xf32>
      %9 = vector.shape_cast %8 : vector<1x16x128x4xf32> to vector<16x128x4xf32>
      "tpu.trace_start"() <{level = 10 : i32, message = "hoc,hsc->hos"}> : () -> ()
      %cst = arith.constant dense<0.000000e+00> : vector<16x128x128xf32>
      %10 = tpu.matmul %7, %9, %cst {dimension_numbers = #tpu.dot_dimension_numbers<[2], [2], [1], [1], [0, 0, 0, 1, 1, 1], [0], [0]>} : vector<16x128x4xf32>, vector<16x128x4xf32>, vector<16x128x128xf32> -> vector<16x128x128xf32>
      "tpu.trace_stop"() : () -> ()
      %c0_10 = arith.constant 0 : index
      %c0_11 = arith.constant 0 : index
      %c0_12 = arith.constant 0 : index
      %11 = vector.load %arg7[%c0_10, %c0_11, %c0_12] : memref<16x128x128xf32, #tpu.memory_space<vmem>>, vector<16x128x128xf32>
      tpu.vector_store %arg7[%c0_10, %c0_11, %c0_12], %10 {strides = array<i32>} : memref<16x128x128xf32, #tpu.memory_space<vmem>>, vector<16x128x128xf32>,
    } else {
    }
    %3 = tpu.iota {dimensions = array<i32: 2>} : vector<1x1x128xi32>
    %4 = arith.sitofp %3 : vector<1x1x128xi32> to vector<1x1x128xf32>
    %c0_i32_1 = arith.constant 0 : i32
    %c8_i32 = arith.constant 8 : i32
    %5 = arith.addi %c0_i32_1, %c8_i32 : i32
    %c1_i32 = arith.constant 1 : i32
    scf.for %arg8 = %c0_i32_1 to %5 step %c1_i32  : i32 {
      %c1_i32_3 = arith.constant 1 : i32
      %6 = arith.muli %arg8, %c1_i32_3 : i32
      %c0_i32_4 = arith.constant 0 : i32
      %7 = arith.addi %c0_i32_4, %6 : i32
      %c0 = arith.constant 0 : index
      %8 = arith.index_cast %7 : i32 to index
      %c0_5 = arith.constant 0 : index
      %c0_6 = arith.constant 0 : index
      %9 = vector.load %arg5[%c0, %8, %c0_5, %c0_6] : memref<1x8x16x128xf32, #tpu.memory_space<vmem>>, vector<1x1x16x128xf32>
      %10 = vector.shape_cast %9 : vector<1x1x16x128xf32> to vector<16x128xf32>
      %cst = arith.constant 1.06666672 : f32
      %11 = vector.broadcast %cst : f32 to vector<16x128xf32>
      %12 = arith.mulf %10, %11 : vector<16x128xf32>
      %cst_7 = arith.constant 5.000000e-01 : f32
      %13 = vector.broadcast %cst_7 : f32 to vector<16x128xf32>
      %14 = arith.subf %12, %13 : vector<16x128xf32>
      %15 = vector.shape_cast %14 : vector<16x128xf32> to vector<16x128x1xf32>
      %16 = vector.broadcast %15 : vector<16x128x1xf32> to vector<16x128x128xf32>
      %17 = vector.broadcast %4 : vector<1x1x128xf32> to vector<16x128x128xf32>
      %18 = arith.subf %16, %17 : vector<16x128x128xf32>
      %19 = math.absf %18 : vector<16x128x128xf32>
      %cst_8 = arith.constant 1.000000e+00 : f32
      %20 = vector.broadcast %cst_8 : f32 to vector<16x128x128xf32>
      %21 = arith.subf %20, %19 : vector<16x128x128xf32>
      %cst_9 = arith.constant 0.000000e+00 : f32
      %22 = vector.broadcast %cst_9 : f32 to vector<16x128x128xf32>
      %23 = arith.maximumf %22, %21 : vector<16x128x128xf32>
      %c0_10 = arith.constant 0 : index
      %c0_11 = arith.constant 0 : index
      %c0_12 = arith.constant 0 : index
      %24 = vector.load %arg7[%c0_10, %c0_11, %c0_12] : memref<16x128x128xf32, #tpu.memory_space<vmem>>, vector<16x128x128xf32>
      %25 = arith.mulf %23, %24 : vector<16x128x128xf32>
      %cst_13 = arith.constant dense<0.000000e+00> : vector<16x128xf32>
      %26 = vector.multi_reduction <add>, %25, %cst_13 [2] : vector<16x128x128xf32> to vector<16x128xf32>
      %c0_14 = arith.constant 0 : index
      %27 = arith.index_cast %7 : i32 to index
      %c0_15 = arith.constant 0 : index
      %c0_16 = arith.constant 0 : index
      %28 = vector.load %arg6[%c0_14, %27, %c0_15, %c0_16] : memref<1x8x16x128xf32, #tpu.memory_space<vmem>>, vector<1x1x16x128xf32>
      %29 = vector.shape_cast %28 : vector<1x1x16x128xf32> to vector<16x128xf32>
      %30 = vector.shape_cast %26 : vector<16x128xf32> to vector<1x1x16x128xf32>
      tpu.vector_store %arg6[%c0_14, %27, %c0_15, %c0_16], %30 {strides = array<i32>} : memref<1x8x16x128xf32, #tpu.memory_space<vmem>>, vector<1x1x16x128xf32>,
    }
    %c8_i32_2 = arith.constant 8 : i32
    return
  }
  func.func @transform_0(%arg0: i32, %arg1: i32, %arg2: i32) -> (i32, i32, i32, i32) {
    %c0_i32 = arith.constant 0 : i32
    %c0_i32_0 = arith.constant 0 : i32
    %c0_i32_1 = arith.constant 0 : i32
    return %arg0, %arg1, %c0_i32, %c0_i32_0 : i32, i32, i32, i32
  }
  func.func @transform_1(%arg0: i32, %arg1: i32, %arg2: i32) -> (i32, i32, i32, i32) {
    %c0_i32 = arith.constant 0 : i32
    %c0_i32_0 = arith.constant 0 : i32
    %c0_i32_1 = arith.constant 0 : i32
    return %arg0, %arg1, %c0_i32, %c0_i32_0 : i32, i32, i32, i32
  }
  func.func @transform_2(%arg0: i32, %arg1: i32, %arg2: i32) -> (i32, i32, i32, i32) {
    %c0_i32 = arith.constant 0 : i32
    %c0_i32_0 = arith.constant 0 : i32
    return %arg0, %arg2, %arg1, %c0_i32 : i32, i32, i32, i32
  }
  func.func @transform_3(%arg0: i32, %arg1: i32, %arg2: i32) -> (i32, i32, i32, i32) {
    %c0_i32 = arith.constant 0 : i32
    %c0_i32_0 = arith.constant 0 : i32
    return %arg0, %arg2, %arg1, %c0_i32 : i32, i32, i32, i32
  }
}

</mosaic_0001>

<llo_original>
// kernel: get_cost_volume.5
$region0: #{get_cost_volume.5}
  #allocation0 [shape = 'u32[]', space=smem, size = 0x4, offset = 0x4, fixed_abs, tag = 'smem constant byte address 0x4 - core index']
  #allocation1 [shape = 'u32[72,128]{1,0:T(1,128)}', space=vmem, size = 0x9000, scoped, tag = 'internal scratch']
  %s0 = inlined_call_operand.vmem [shape: f32[16,16], index: 0, kind: input, shape index: {}]
  %s1 = inlined_call_operand.vmem [shape: f32[4,16,128], index: 1, kind: input, shape index: {}]
  %s2 = inlined_call_operand.vmem [shape: f32[4,16,128], index: 2, kind: output, shape index: {}]
  %s3 = sld [smem:[#allocation0]]
  $region41: #{get_cost_volume.5} parent=0
    _
  %s5 = ssub.s32 1, %s3
  %s6 = scalar_select 0, %s5, %s3
  loop: start=0, step=1, limit=6
  $region2: #{get_cost_volume.5} parent=0 // loop_pre_header
    _
  $region3: #{get_cost_volume.5} parent=0 // loop_header
    %s8 = sphi 0, %s12
    %p9 = scmp.ge.s32.totalorder %s8, 6
    %s15 = sphi 0, %s27
    %s16 = sphi 0, %s23
    %s17 = sphi 0, %s15
    %s18 = sphi 0, %s16
    %s19 = sphi 0, %s17
    %s20 = sphi 0, %s18
    %s28 = sphi 0, %s28
    %s30 = sphi 0, %s28
    %s31 = sphi 0, %s30
    %s45 = sphi 0, %s31
    %s53 = sphi 0, %s55
    %s56 = sphi 0, %s53
    %s57 = sphi 0, %s56
    %s73 = sphi 0, %s57
    %s81 = sphi 0, %s83
    %s84 = sphi 0, %s81
    %s85 = sphi 0, %s84
    %s101 = sphi 0, %s85
  $region4: #{get_cost_volume.5} parent=0 // loop_header_branch
    %11 = sbr.rel (%p9) target = $region8
  $region5: #{get_cost_volume.5} parent=0 // loop_body
    %s13 = ssub.s32 %s8, 1
    %s14 = ssub.s32 %s8, 2
    %s21 = sadd.s32 1, %s16
    %p22 = scmp.ge.s32.totalorder %s21, 1
    %s23 = scalar_select %p22, 0, %s21
    %s24 = sadd.s32 1, %s15
    %s25 = scalar_select %p22, %s24, %s15
    %p26 = scmp.ge.s32.totalorder %s25, 4
    %s27 = scalar_select %p26, 0, %s25
    %s29 = sadd.s32 %s28, 1
    %p32 = scmp.eq.s32.totalorder %s8, 3
    %p33 = scmp.ne.s32.totalorder %s28, %s30
    %p34 = scmp.eq.s32.totalorder %s8, 0
    %p35 = por %p33, %p34
    %p36 = scmp.ne.s32.totalorder %s28, %s30
    %p37 = scmp.eq.s32.totalorder %s13, 3
    %p38 = por %p36, %p37
    %p39 = scmp.ne.s32.totalorder %s30, %s31
    %p40 = scmp.eq.s32.totalorder %s13, 0
    %p41 = por %p39, %p40
    %p42 = scmp.ne.s32.totalorder %s30, %s31
    %p43 = scmp.eq.s32.totalorder %s14, 3
    %p44 = por %p42, %p43
    %p46 = scmp.ne.s32.totalorder %s31, %s45
    %p47 = scmp.eq.s32.totalorder %s14, 0
    %p48 = por %p46, %p47
    %s49 = ssub.s32 %s15, %s27
    %s50 = ssub.s32 %s16, %s23
    %s51 = sor.u32 %s49, %s50
    %p52 = scmp.eq.s32.totalorder %s51, 0
    %s54 = sadd.s32 %s53, 1
    %s55 = scalar_select %p52, %s53, %s54
    %p58 = pneg %p52
    %p59 = scmp.eq.s32.totalorder %s8, 3
    %p60 = por %p58, %p59
    %p61 = scmp.ne.s32.totalorder %s53, %s56
    %p62 = scmp.eq.s32.totalorder %s8, 0
    %p63 = por %p61, %p62
    %p64 = scmp.ne.s32.totalorder %s53, %s56
    %p65 = scmp.eq.s32.totalorder %s13, 3
    %p66 = por %p64, %p65
    %p67 = scmp.ne.s32.totalorder %s56, %s57
    %p68 = scmp.eq.s32.totalorder %s13, 0
    %p69 = por %p67, %p68
    %p70 = scmp.ne.s32.totalorder %s56, %s57
    %p71 = scmp.eq.s32.totalorder %s14, 3
    %p72 = por %p70, %p71
    %p74 = scmp.ne.s32.totalorder %s57, %s73
    %p75 = scmp.eq.s32.totalorder %s14, 0
    %p76 = por %p74, %p75
    %s77 = ssub.s32 %s15, %s27
    %s78 = ssub.s32 %s16, %s23
    %s79 = sor.u32 %s77, %s78
    %p80 = scmp.eq.s32.totalorder %s79, 0
    %s82 = sadd.s32 %s81, 1
    %s83 = scalar_select %p80, %s81, %s82
    %p86 = pneg %p80
    %p87 = scmp.eq.s32.totalorder %s8, 3
    %p88 = por %p86, %p87
    %p89 = scmp.ne.s32.totalorder %s81, %s84
    %p90 = scmp.eq.s32.totalorder %s8, 0
    %p91 = por %p89, %p90
    %p92 = scmp.ne.s32.totalorder %s81, %s84
    %p93 = scmp.eq.s32.totalorder %s13, 3
    %p94 = por %p92, %p93
    %p95 = scmp.ne.s32.totalorder %s84, %s85
    %p96 = scmp.eq.s32.totalorder %s13, 0
    %p97 = por %p95, %p96
    %p98 = scmp.ne.s32.totalorder %s84, %s85
    %p99 = scmp.eq.s32.totalorder %s14, 3
    %p100 = por %p98, %p99
    %p102 = scmp.ne.s32.totalorder %s85, %s101
    %p103 = scmp.eq.s32.totalorder %s14, 0
    %p104 = por %p102, %p103
    %p105 = scmp.le.s32.totalorder 1, %s8
    %p106 = scmp.lt.s32.totalorder %s8, 5
    %p107 = pnand %p105, %p106
    %p108 = pneg %p107
    // Predicated region
    $region9: #{get_cost_volume.5} parent=5 // pred_check
      _
    $region10: #{get_cost_volume.5} parent=5 // pred_check_branch
      %110 = sbr.rel (%p107) target = $region12
    $region11: #{get_cost_volume.5} parent=5 // pred_region
      %s111 = ssub.s32 %s8, 1
      // Predicated region
      $region13: #{get_cost_volume.5} parent=11 // pred_check
        %p112 = pneg %p41
      $region14: #{get_cost_volume.5} parent=11 // pred_check_branch
        %114 = sbr.rel (%p112) target = $region16
      $region15: #{get_cost_volume.5} parent=11 // pred_region
        _
      $region16: #{get_cost_volume.5} parent=11 // pred_fallthru
        _
    $region12: #{get_cost_volume.5} parent=5 // pred_fallthru
      _
    %p115 = scmp.lt.s32.totalorder %s8, 4
    // Predicated region
    $region17: #{get_cost_volume.5} parent=5 // pred_check
      %p116 = pneg %p115
    $region18: #{get_cost_volume.5} parent=5 // pred_check_branch
      %118 = sbr.rel (%p116) target = $region20
    $region19: #{get_cost_volume.5} parent=5 // pred_region
      // Predicated region
      $region21: #{get_cost_volume.5} parent=19 // pred_check
        %p119 = pneg %p63
      $region22: #{get_cost_volume.5} parent=19 // pred_check_branch
        %121 = sbr.rel (%p119) target = $region24
      $region23: #{get_cost_volume.5} parent=19 // pred_region
        %p122 = scmp.lt.s32.totalorder %s15, 3
        %s123 = scalar_select %p122, %s15, 3
        %p124 = scmp.lt.s32.totalorder %s16, 0
        %s125 = scalar_select %p124, %s16, 0
        %s126 = smul.addr %s123, 2
        %s127 = sadd.s32 %s125, %s126
        %s128 = smul.addr %s127, 8
        %s129 = scalar_lea.vmem %s1, %s128
      $region24: #{get_cost_volume.5} parent=19 // pred_fallthru
        _
    $region20: #{get_cost_volume.5} parent=5 // pred_fallthru
      _
    %p130 = scmp.le.s32.totalorder 1, %s8
    %p131 = scmp.lt.s32.totalorder %s8, 5
    %p132 = pnand %p130, %p131
    %p133 = pneg %p132
    // Predicated region
    $region25: #{get_cost_volume.5} parent=5 // pred_check
      _
    $region26: #{get_cost_volume.5} parent=5 // pred_check_branch
      %135 = sbr.rel (%p132) target = $region28
    $region27: #{get_cost_volume.5} parent=5 // pred_region
      %s136 = ssub.s32 %s8, 1
      %p137 = pneg %p41
      %p138 = pneg %p38
      %p139 = scmp.lt.s32.totalorder %s17, 3
      %s140 = scalar_select %p139, %s17, 3
      %p141 = scmp.lt.s32.totalorder %s18, 0
      %s142 = scalar_select %p141, %s18, 0
      %s143 = smul.addr %s140, 2
      %s144 = sadd.s32 %s142, %s143
      %s145 = smul.addr %s144, 8
      %s146 = scalar_lea.vmem %s1, %s145
      %p147 = pneg %p69
      %p148 = pneg %p66
      %p149 = pneg %p97
      %p150 = pneg %p94
      %p151 = scmp.lt.s32.totalorder %s17, 3
      %s152 = scalar_select %p151, %s17, 3
      %p153 = scmp.lt.s32.totalorder %s18, 0
      %s154 = scalar_select %p153, %s18, 0
      %s155 = smul.addr %s152, 2
      %s156 = sadd.s32 %s154, %s155
      %s157 = smul.addr %s156, 8
      %s158 = scalar_lea.vmem %s2, %s157
      %p159 = scmp.lt.s32.totalorder %s17, 3
      %s160 = scalar_select %p159, %s17, 3
      %p161 = scmp.lt.s32.totalorder %s18, 0
      %s162 = scalar_select %p161, %s18, 0
      %s163 = smul.addr %s160, 2
      %s164 = sadd.s32 %s162, %s163
      %s165 = smul.addr %s164, 8
      %s166 = scalar_lea.vmem %s1, %s165
      %p167 = scmp.lt.s32.totalorder %s17, 3
      %s168 = scalar_select %p167, %s17, 3
      %p169 = scmp.lt.s32.totalorder %s18, 0
      %s170 = scalar_select %p169, %s18, 0
      %s171 = smul.addr %s168, 2
      %s172 = sadd.s32 %s170, %s171
      %s173 = smul.addr %s172, 8
      %s174 = scalar_lea.vmem %s2, %s173
      %v175 = vld [vmem:[%s0] sm:$0xff]
      %v176 = vld [vmem:[%s0 + $0x8] sm:$0xff]
      %v177 = vld [vmem:[%s166] sm:$0xff]
      %v178 = vld [vmem:[%s166 + $0x8] sm:$0xff]
      %vm179 = vcmask 130048
      %v181 = vsel %vm179, %v175, 0
      %v184 = vsel %vm179, %v176, 0
      %186 = vmatpush.msra.mxu0 0.0
      %187 = vmatpush.msra.mxu0 0.0
      %188 = vmatpush.msra.mxu0 0.0
      %189 = vmatpush.msra.mxu0 0.0
      %190 = vmatpush.msra.mxu0 0.0
      %191 = vmatpush.msra.mxu0 0.0
      %192 = vmatpush.msra.mxu0 0.0
      %193 = vmatpush.msra.mxu0 0.0
      %194 = vmatpush.msra.mxu0 0.0
      %195 = vmatpush.msra.mxu0 0.0
      %196 = vmatpush.msra.mxu0 0.0
      %197 = vmatpush.msra.mxu0 0.0
      %198 = vmatpush.msra.mxu0 0.0
      %199 = vmatpush.msra.mxu0 0.0
      %200 = vmatpush.msra.mxu0 %v178
      %201 = vmatpush.msra.mxu0 %v177
      %202 = vmatmul.f32.gmra.mxu0 %v181
      %v203 = vpop.f32.mrf.mxu0
      %v204 = vadd.f32 0.0, %v203
      %205 = vmatmul.f32.gmra.mxu0 %v184
      %v206 = vpop.f32.mrf.mxu0
      %v207 = vadd.f32 0.0, %v206
      %208 = vdwg.mxu0
      %209 = vst [vmem:[%s174] sm:$0xff] %v204
      %210 = vst [vmem:[%s174 + $0x8] sm:$0xff] %v207
      %p211 = scmp.lt.s32.totalorder %s17, 3
      %s212 = scalar_select %p211, %s17, 3
      %p213 = scmp.lt.s32.totalorder %s18, 0
      %s214 = scalar_select %p213, %s18, 0
      %s215 = smul.addr %s212, 2
      %s216 = sadd.s32 %s214, %s215
      %s217 = smul.addr %s216, 8
      %s218 = scalar_lea.vmem %s2, %s217
      // Predicated region
      $region29: #{get_cost_volume.5} parent=27 // pred_check
        %p219 = pneg %p94
      $region30: #{get_cost_volume.5} parent=27 // pred_check_branch
        %221 = sbr.rel (%p219) target = $region32
      $region31: #{get_cost_volume.5} parent=27 // pred_region
        _
      $region32: #{get_cost_volume.5} parent=27 // pred_fallthru
        _
    $region28: #{get_cost_volume.5} parent=5 // pred_fallthru
      _
    %p222 = scmp.le.s32.totalorder 2, %s8
    // Predicated region
    $region33: #{get_cost_volume.5} parent=5 // pred_check
      %p223 = pneg %p222
    $region34: #{get_cost_volume.5} parent=5 // pred_check_branch
      %225 = sbr.rel (%p223) target = $region36
    $region35: #{get_cost_volume.5} parent=5 // pred_region
      %s226 = ssub.s32 %s8, 2
      // Predicated region
      $region37: #{get_cost_volume.5} parent=35 // pred_check
        %p227 = pneg %p100
      $region38: #{get_cost_volume.5} parent=35 // pred_check_branch
        %229 = sbr.rel (%p227) target = $region40
      $region39: #{get_cost_volume.5} parent=35 // pred_region
        %p230 = scmp.lt.s32.totalorder %s19, 3
        %s231 = scalar_select %p230, %s19, 3
        %p232 = scmp.lt.s32.totalorder %s20, 0
        %s233 = scalar_select %p232, %s20, 0
        %s234 = smul.addr %s231, 2
        %s235 = sadd.s32 %s233, %s234
        %s236 = smul.addr %s235, 8
        %s237 = scalar_lea.vmem %s2, %s236
      $region40: #{get_cost_volume.5} parent=35 // pred_fallthru
        _
    $region36: #{get_cost_volume.5} parent=5 // pred_fallthru
      _
  $region6: #{get_cost_volume.5} parent=0 // loop_footer
    %s12 = sadd.s32 1, %s8
  $region7: #{get_cost_volume.5} parent=0 // loop_footer_branch
    %7 = sbr.rel target = $region3
  $region8: #{get_cost_volume.5} parent=0 // loop_exit
    _

// kernel: get_cost_volume.4
$region0: #{get_cost_volume.4}
  #allocation0 [shape = 'u32[]', space=smem, size = 0x4, offset = 0x4, fixed_abs, tag = 'smem constant byte address 0x4 - core index']
  #allocation1 [shape = 'u32[72,128]{1,0:T(1,128)}', space=vmem, size = 0x9000, scoped, tag = 'internal scratch']
  %s0 = inlined_call_operand.vmem [shape: f32[1024,4], index: 0, kind: input, shape index: {}]
  %s1 = inlined_call_operand.vmem [shape: f32[4,8], index: 1, kind: input, shape index: {}]
  %s2 = inlined_call_operand.vmem [shape: f32[1,8], index: 2, kind: input, shape index: {}]
  %s3 = inlined_call_operand.vmem [shape: f32[1024,8], index: 3, kind: output, shape index: {}]
  %s4 = sld [smem:[#allocation0]]
  $region22: #{get_cost_volume.4} parent=0
    _
  %s6 = ssub.s32 1, %s4
  %s7 = scalar_select 0, %s6, %s4
  // Predicated region
  $region2: #{get_cost_volume.4} parent=0 // pred_check
    _
  $region3: #{get_cost_volume.4} parent=0 // pred_check_branch
    %9 = sbr.rel (0) target = $region5
  $region4: #{get_cost_volume.4} parent=0 // pred_region
    _
  $region5: #{get_cost_volume.4} parent=0 // pred_fallthru
    _
  // Predicated region
  $region6: #{get_cost_volume.4} parent=0 // pred_check
    _
  $region7: #{get_cost_volume.4} parent=0 // pred_check_branch
    %11 = sbr.rel (0) target = $region9
  $region8: #{get_cost_volume.4} parent=0 // pred_region
    _
  $region9: #{get_cost_volume.4} parent=0 // pred_fallthru
    _
  // Predicated region
  $region10: #{get_cost_volume.4} parent=0 // pred_check
    _
  $region11: #{get_cost_volume.4} parent=0 // pred_check_branch
    %13 = sbr.rel (0) target = $region13
  $region12: #{get_cost_volume.4} parent=0 // pred_region
    _
  $region13: #{get_cost_volume.4} parent=0 // pred_fallthru
    _
  %v14 = vld [vmem:[%s0] sm:$0xff]
  %v15 = vld [vmem:[%s0 + $0x8] sm:$0xff]
  %v16 = vld [vmem:[%s0 + $0x10] sm:$0xff]
  %v17 = vld [vmem:[%s0 + $0x18] sm:$0xff]
  %v18 = vld [vmem:[%s0 + $0x20] sm:$0xff]
  %v19 = vld [vmem:[%s0 + $0x28] sm:$0xff]
  %v20 = vld [vmem:[%s0 + $0x30] sm:$0xff]
  %v21 = vld [vmem:[%s0 + $0x38] sm:$0xff]
  %v22 = vld [vmem:[%s0 + $0x40] sm:$0xff]
  %v23 = vld [vmem:[%s0 + $0x48] sm:$0xff]
  %v24 = vld [vmem:[%s0 + $0x50] sm:$0xff]
  %v25 = vld [vmem:[%s0 + $0x58] sm:$0xff]
  %v26 = vld [vmem:[%s0 + $0x60] sm:$0xff]
  %v27 = vld [vmem:[%s0 + $0x68] sm:$0xff]
  %v28 = vld [vmem:[%s0 + $0x70] sm:$0xff]
  %v29 = vld [vmem:[%s0 + $0x78] sm:$0xff]
  %v30 = vld [vmem:[%s0 + $0x80] sm:$0xff]
  %v31 = vld [vmem:[%s0 + $0x88] sm:$0xff]
  %v32 = vld [vmem:[%s0 + $0x90] sm:$0xff]
  %v33 = vld [vmem:[%s0 + $0x98] sm:$0xff]
  %v34 = vld [vmem:[%s0 + $0xa0] sm:$0xff]
  %v35 = vld [vmem:[%s0 + $0xa8] sm:$0xff]
  %v36 = vld [vmem:[%s0 + $0xb0] sm:$0xff]
  %v37 = vld [vmem:[%s0 + $0xb8] sm:$0xff]
  %v38 = vld [vmem:[%s0 + $0xc0] sm:$0xff]
  %v39 = vld [vmem:[%s0 + $0xc8] sm:$0xff]
  %v40 = vld [vmem:[%s0 + $0xd0] sm:$0xff]
  %v41 = vld [vmem:[%s0 + $0xd8] sm:$0xff]
  %v42 = vld [vmem:[%s0 + $0xe0] sm:$0xff]
  %v43 = vld [vmem:[%s0 + $0xe8] sm:$0xff]
  %v44 = vld [vmem:[%s0 + $0xf0] sm:$0xff]
  %v45 = vld [vmem:[%s0 + $0xf8] sm:$0xff]
  %v46 = vld [vmem:[%s0 + $0x100] sm:$0xff]
  %v47 = vld [vmem:[%s0 + $0x108] sm:$0xff]
  %v48 = vld [vmem:[%s0 + $0x110] sm:$0xff]
  %v49 = vld [vmem:[%s0 + $0x118] sm:$0xff]
  %v50 = vld [vmem:[%s0 + $0x120] sm:$0xff]
  %v51 = vld [vmem:[%s0 + $0x128] sm:$0xff]
  %v52 = vld [vmem:[%s0 + $0x130] sm:$0xff]
  %v53 = vld [vmem:[%s0 + $0x138] sm:$0xff]
  %v54 = vld [vmem:[%s0 + $0x140] sm:$0xff]
  %v55 = vld [vmem:[%s0 + $0x148] sm:$0xff]
  %v56 = vld [vmem:[%s0 + $0x150] sm:$0xff]
  %v57 = vld [vmem:[%s0 + $0x158] sm:$0xff]
  %v58 = vld [vmem:[%s0 + $0x160] sm:$0xff]
  %v59 = vld [vmem:[%s0 + $0x168] sm:$0xff]
  %v60 = vld [vmem:[%s0 + $0x170] sm:$0xff]
  %v61 = vld [vmem:[%s0 + $0x178] sm:$0xff]
  %v62 = vld [vmem:[%s0 + $0x180] sm:$0xff]
  %v63 = vld [vmem:[%s0 + $0x188] sm:$0xff]
  %v64 = vld [vmem:[%s0 + $0x190] sm:$0xff]
  %v65 = vld [vmem:[%s0 + $0x198] sm:$0xff]
  %v66 = vld [vmem:[%s0 + $0x1a0] sm:$0xff]
  %v67 = vld [vmem:[%s0 + $0x1a8] sm:$0xff]
  %v68 = vld [vmem:[%s0 + $0x1b0] sm:$0xff]
  %v69 = vld [vmem:[%s0 + $0x1b8] sm:$0xff]
  %v70 = vld [vmem:[%s0 + $0x1c0] sm:$0xff]
  %v71 = vld [vmem:[%s0 + $0x1c8] sm:$0xff]
  %v72 = vld [vmem:[%s0 + $0x1d0] sm:$0xff]
  %v73 = vld [vmem:[%s0 + $0x1d8] sm:$0xff]
  %v74 = vld [vmem:[%s0 + $0x1e0] sm:$0xff]
  %v75 = vld [vmem:[%s0 + $0x1e8] sm:$0xff]
  %v76 = vld [vmem:[%s0 + $0x1f0] sm:$0xff]
  %v77 = vld [vmem:[%s0 + $0x1f8] sm:$0xff]
  %v78 = vld [vmem:[%s0 + $0x200] sm:$0xff]
  %v79 = vld [vmem:[%s0 + $0x208] sm:$0xff]
  %v80 = vld [vmem:[%s0 + $0x210] sm:$0xff]
  %v81 = vld [vmem:[%s0 + $0x218] sm:$0xff]
  %v82 = vld [vmem:[%s0 + $0x220] sm:$0xff]
  %v83 = vld [vmem:[%s0 + $0x228] sm:$0xff]
  %v84 = vld [vmem:[%s0 + $0x230] sm:$0xff]
  %v85 = vld [vmem:[%s0 + $0x238] sm:$0xff]
  %v86 = vld [vmem:[%s0 + $0x240] sm:$0xff]
  %v87 = vld [vmem:[%s0 + $0x248] sm:$0xff]
  %v88 = vld [vmem:[%s0 + $0x250] sm:$0xff]
  %v89 = vld [vmem:[%s0 + $0x258] sm:$0xff]
  %v90 = vld [vmem:[%s0 + $0x260] sm:$0xff]
  %v91 = vld [vmem:[%s0 + $0x268] sm:$0xff]
  %v92 = vld [vmem:[%s0 + $0x270] sm:$0xff]
  %v93 = vld [vmem:[%s0 + $0x278] sm:$0xff]
  %v94 = vld [vmem:[%s0 + $0x280] sm:$0xff]
  %v95 = vld [vmem:[%s0 + $0x288] sm:$0xff]
  %v96 = vld [vmem:[%s0 + $0x290] sm:$0xff]
  %v97 = vld [vmem:[%s0 + $0x298] sm:$0xff]
  %v98 = vld [vmem:[%s0 + $0x2a0] sm:$0xff]
  %v99 = vld [vmem:[%s0 + $0x2a8] sm:$0xff]
  %v100 = vld [vmem:[%s0 + $0x2b0] sm:$0xff]
  %v101 = vld [vmem:[%s0 + $0x2b8] sm:$0xff]
  %v102 = vld [vmem:[%s0 + $0x2c0] sm:$0xff]
  %v103 = vld [vmem:[%s0 + $0x2c8] sm:$0xff]
  %v104 = vld [vmem:[%s0 + $0x2d0] sm:$0xff]
  %v105 = vld [vmem:[%s0 + $0x2d8] sm:$0xff]
  %v106 = vld [vmem:[%s0 + $0x2e0] sm:$0xff]
  %v107 = vld [vmem:[%s0 + $0x2e8] sm:$0xff]
  %v108 = vld [vmem:[%s0 + $0x2f0] sm:$0xff]
  %v109 = vld [vmem:[%s0 + $0x2f8] sm:$0xff]
  %v110 = vld [vmem:[%s0 + $0x300] sm:$0xff]
  %v111 = vld [vmem:[%s0 + $0x308] sm:$0xff]
  %v112 = vld [vmem:[%s0 + $0x310] sm:$0xff]
  %v113 = vld [vmem:[%s0 + $0x318] sm:$0xff]
  %v114 = vld [vmem:[%s0 + $0x320] sm:$0xff]
  %v115 = vld [vmem:[%s0 + $0x328] sm:$0xff]
  %v116 = vld [vmem:[%s0 + $0x330] sm:$0xff]
  %v117 = vld [vmem:[%s0 + $0x338] sm:$0xff]
  %v118 = vld [vmem:[%s0 + $0x340] sm:$0xff]
  %v119 = vld [vmem:[%s0 + $0x348] sm:$0xff]
  %v120 = vld [vmem:[%s0 + $0x350] sm:$0xff]
  %v121 = vld [vmem:[%s0 + $0x358] sm:$0xff]
  %v122 = vld [vmem:[%s0 + $0x360] sm:$0xff]
  %v123 = vld [vmem:[%s0 + $0x368] sm:$0xff]
  %v124 = vld [vmem:[%s0 + $0x370] sm:$0xff]
  %v125 = vld [vmem:[%s0 + $0x378] sm:$0xff]
  %v126 = vld [vmem:[%s0 + $0x380] sm:$0xff]
  %v127 = vld [vmem:[%s0 + $0x388] sm:$0xff]
  %v128 = vld [vmem:[%s0 + $0x390] sm:$0xff]
  %v129 = vld [vmem:[%s0 + $0x398] sm:$0xff]
  %v130 = vld [vmem:[%s0 + $0x3a0] sm:$0xff]
  %v131 = vld [vmem:[%s0 + $0x3a8] sm:$0xff]
  %v132 = vld [vmem:[%s0 + $0x3b0] sm:$0xff]
  %v133 = vld [vmem:[%s0 + $0x3b8] sm:$0xff]
  %v134 = vld [vmem:[%s0 + $0x3c0] sm:$0xff]
  %v135 = vld [vmem:[%s0 + $0x3c8] sm:$0xff]
  %v136 = vld [vmem:[%s0 + $0x3d0] sm:$0xff]
  %v137 = vld [vmem:[%s0 + $0x3d8] sm:$0xff]
  %v138 = vld [vmem:[%s0 + $0x3e0] sm:$0xff]
  %v139 = vld [vmem:[%s0 + $0x3e8] sm:$0xff]
  %v140 = vld [vmem:[%s0 + $0x3f0] sm:$0xff]
  %v141 = vld [vmem:[%s0 + $0x3f8] sm:$0xff]
  %v142 = vld [vmem:[%s1] sm:$0xf]
  %v143 = vld [vmem:[%s2] sm:$0x1]
  %v145 = vperm.slane %v143, 0
  %vm147 = vcmask 31744
  %v149 = vsel %vm147, %v14, 0
  %v152 = vsel %vm147, %v15, 0
  %v155 = vsel %vm147, %v16, 0
  %v158 = vsel %vm147, %v17, 0
  %v161 = vsel %vm147, %v18, 0
  %v164 = vsel %vm147, %v19, 0
  %v167 = vsel %vm147, %v20, 0
  %v170 = vsel %vm147, %v21, 0
  %v173 = vsel %vm147, %v22, 0
  %v176 = vsel %vm147, %v23, 0
  %v179 = vsel %vm147, %v24, 0
  %v182 = vsel %vm147, %v25, 0
  %v185 = vsel %vm147, %v26, 0
  %v188 = vsel %vm147, %v27, 0
  %v191 = vsel %vm147, %v28, 0
  %v194 = vsel %vm147, %v29, 0
  %v197 = vsel %vm147, %v30, 0
  %v200 = vsel %vm147, %v31, 0
  %v203 = vsel %vm147, %v32, 0
  %v206 = vsel %vm147, %v33, 0
  %v209 = vsel %vm147, %v34, 0
  %v212 = vsel %vm147, %v35, 0
  %v215 = vsel %vm147, %v36, 0
  %v218 = vsel %vm147, %v37, 0
  %v221 = vsel %vm147, %v38, 0
  %v224 = vsel %vm147, %v39, 0
  %v227 = vsel %vm147, %v40, 0
  %v230 = vsel %vm147, %v41, 0
  %v233 = vsel %vm147, %v42, 0
  %v236 = vsel %vm147, %v43, 0
  %v239 = vsel %vm147, %v44, 0
  %v242 = vsel %vm147, %v45, 0
  %v245 = vsel %vm147, %v46, 0
  %v248 = vsel %vm147, %v47, 0
  %v251 = vsel %vm147, %v48, 0
  %v254 = vsel %vm147, %v49, 0
  %v257 = vsel %vm147, %v50, 0
  %v260 = vsel %vm147, %v51, 0
  %v263 = vsel %vm147, %v52, 0
  %v266 = vsel %vm147, %v53, 0
  %v269 = vsel %vm147, %v54, 0
  %v272 = vsel %vm147, %v55, 0
  %v275 = vsel %vm147, %v56, 0
  %v278 = vsel %vm147, %v57, 0
  %v281 = vsel %vm147, %v58, 0
  %v284 = vsel %vm147, %v59, 0
  %v287 = vsel %vm147, %v60, 0
  %v290 = vsel %vm147, %v61, 0
  %v293 = vsel %vm147, %v62, 0
  %v296 = vsel %vm147, %v63, 0
  %v299 = vsel %vm147, %v64, 0
  %v302 = vsel %vm147, %v65, 0
  %v305 = vsel %vm147, %v66, 0
  %v308 = vsel %vm147, %v67, 0
  %v311 = vsel %vm147, %v68, 0
  %v314 = vsel %vm147, %v69, 0
  %v317 = vsel %vm147, %v70, 0
  %v320 = vsel %vm147, %v71, 0
  %v323 = vsel %vm147, %v72, 0
  %v326 = vsel %vm147, %v73, 0
  %v329 = vsel %vm147, %v74, 0
  %v332 = vsel %vm147, %v75, 0
  %v335 = vsel %vm147, %v76, 0
  %v338 = vsel %vm147, %v77, 0
  %v341 = vsel %vm147, %v78, 0
  %v344 = vsel %vm147, %v79, 0
  %v347 = vsel %vm147, %v80, 0
  %v350 = vsel %vm147, %v81, 0
  %v353 = vsel %vm147, %v82, 0
  %v356 = vsel %vm147, %v83, 0
  %v359 = vsel %vm147, %v84, 0
  %v362 = vsel %vm147, %v85, 0
  %v365 = vsel %vm147, %v86, 0
  %v368 = vsel %vm147, %v87, 0
  %v371 = vsel %vm147, %v88, 0
  %v374 = vsel %vm147, %v89, 0
  %v377 = vsel %vm147, %v90, 0
  %v380 = vsel %vm147, %v91, 0
  %v383 = vsel %vm147, %v92, 0
  %v386 = vsel %vm147, %v93, 0
  %v389 = vsel %vm147, %v94, 0
  %v392 = vsel %vm147, %v95, 0
  %v395 = vsel %vm147, %v96, 0
  %v398 = vsel %vm147, %v97, 0
  %v401 = vsel %vm147, %v98, 0
  %v404 = vsel %vm147, %v99, 0
  %v407 = vsel %vm147, %v100, 0
  %v410 = vsel %vm147, %v101, 0
  %v413 = vsel %vm147, %v102, 0
  %v416 = vsel %vm147, %v103, 0
  %v419 = vsel %vm147, %v104, 0
  %v422 = vsel %vm147, %v105, 0
  %v425 = vsel %vm147, %v106, 0
  %v428 = vsel %vm147, %v107, 0
  %v431 = vsel %vm147, %v108, 0
  %v434 = vsel %vm147, %v109, 0
  %v437 = vsel %vm147, %v110, 0
  %v440 = vsel %vm147, %v111, 0
  %v443 = vsel %vm147, %v112, 0
  %v446 = vsel %vm147, %v113, 0
  %v449 = vsel %vm147, %v114, 0
  %v452 = vsel %vm147, %v115, 0
  %v455 = vsel %vm147, %v116, 0
  %v458 = vsel %vm147, %v117, 0
  %v461 = vsel %vm147, %v118, 0
  %v464 = vsel %vm147, %v119, 0
  %v467 = vsel %vm147, %v120, 0
  %v470 = vsel %vm147, %v121, 0
  %v473 = vsel %vm147, %v122, 0
  %v476 = vsel %vm147, %v123, 0
  %v479 = vsel %vm147, %v124, 0
  %v482 = vsel %vm147, %v125, 0
  %v485 = vsel %vm147, %v126, 0
  %v488 = vsel %vm147, %v127, 0
  %v491 = vsel %vm147, %v128, 0
  %v494 = vsel %vm147, %v129, 0
  %v497 = vsel %vm147, %v130, 0
  %v500 = vsel %vm147, %v131, 0
  %v503 = vsel %vm147, %v132, 0
  %v506 = vsel %vm147, %v133, 0
  %v509 = vsel %vm147, %v134, 0
  %v512 = vsel %vm147, %v135, 0
  %v515 = vsel %vm147, %v136, 0
  %v518 = vsel %vm147, %v137, 0
  %v521 = vsel %vm147, %v138, 0
  %v524 = vsel %vm147, %v139, 0
  %v527 = vsel %vm147, %v140, 0
  %v530 = vsel %vm147, %v141, 0
  %vm532 = vcmask 1043456
  %v534 = vsel %vm532, %v142, 0
  %536 = vmatpush.msra.mxu0 0.0
  %537 = vmatpush.msra.mxu0 0.0
  %538 = vmatpush.msra.mxu0 0.0
  %539 = vmatpush.msra.mxu0 0.0
  %540 = vmatpush.msra.mxu0 0.0
  %541 = vmatpush.msra.mxu0 0.0
  %542 = vmatpush.msra.mxu0 0.0
  %543 = vmatpush.msra.mxu0 0.0
  %544 = vmatpush.msra.mxu0 0.0
  %545 = vmatpush.msra.mxu0 0.0
  %546 = vmatpush.msra.mxu0 0.0
  %547 = vmatpush.msra.mxu0 0.0
  %548 = vmatpush.msra.mxu0 0.0
  %549 = vmatpush.msra.mxu0 0.0
  %550 = vmatpush.msra.mxu0 0.0
  %551 = vmatpush.msra.mxu0 %v534
  %552 = vmatmul.f32.gmra.mxu0 %v149
  %v553 = vpop.f32.mrf.mxu0
  %v554 = vadd.f32 %v145, %v553
  %555 = vmatmul.f32.gmra.mxu0 %v152
  %v556 = vpop.f32.mrf.mxu0
  %v557 = vadd.f32 %v145, %v556
  %558 = vmatmul.f32.gmra.mxu0 %v155
  %v559 = vpop.f32.mrf.mxu0
  %v560 = vadd.f32 %v145, %v559
  %561 = vmatmul.f32.gmra.mxu0 %v158
  %v562 = vpop.f32.mrf.mxu0
  %v563 = vadd.f32 %v145, %v562
  %564 = vmatmul.f32.gmra.mxu0 %v161
  %v565 = vpop.f32.mrf.mxu0
  %v566 = vadd.f32 %v145, %v565
  %567 = vmatmul.f32.gmra.mxu0 %v164
  %v568 = vpop.f32.mrf.mxu0
  %v569 = vadd.f32 %v145, %v568
  %570 = vmatmul.f32.gmra.mxu0 %v167
  %v571 = vpop.f32.mrf.mxu0
  %v572 = vadd.f32 %v145, %v571
  %573 = vmatmul.f32.gmra.mxu0 %v170
  %v574 = vpop.f32.mrf.mxu0
  %v575 = vadd.f32 %v145, %v574
  %576 = vmatmul.f32.gmra.mxu0 %v173
  %v577 = vpop.f32.mrf.mxu0
  %v578 = vadd.f32 %v145, %v577
  %579 = vmatmul.f32.gmra.mxu0 %v176
  %v580 = vpop.f32.mrf.mxu0
  %v581 = vadd.f32 %v145, %v580
  %582 = vmatmul.f32.gmra.mxu0 %v179
  %v583 = vpop.f32.mrf.mxu0
  %v584 = vadd.f32 %v145, %v583
  %585 = vmatmul.f32.gmra.mxu0 %v182
  %v586 = vpop.f32.mrf.mxu0
  %v587 = vadd.f32 %v145, %v586
  %588 = vmatmul.f32.gmra.mxu0 %v185
  %v589 = vpop.f32.mrf.mxu0
  %v590 = vadd.f32 %v145, %v589
  %591 = vmatmul.f32.gmra.mxu0 %v188
  %v592 = vpop.f32.mrf.mxu0
  %v593 = vadd.f32 %v145, %v592
  %594 = vmatmul.f32.gmra.mxu0 %v191
  %v595 = vpop.f32.mrf.mxu0
  %v596 = vadd.f32 %v145, %v595
  %597 = vmatmul.f32.gmra.mxu0 %v194
  %v598 = vpop.f32.mrf.mxu0
  %v599 = vadd.f32 %v145, %v598
  %600 = vmatmul.f32.gmra.mxu0 %v197
  %v601 = vpop.f32.mrf.mxu0
  %v602 = vadd.f32 %v145, %v601
  %603 = vmatmul.f32.gmra.mxu0 %v200
  %v604 = vpop.f32.mrf.mxu0
  %v605 = vadd.f32 %v145, %v604
  %606 = vmatmul.f32.gmra.mxu0 %v203
  %v607 = vpop.f32.mrf.mxu0
  %v608 = vadd.f32 %v145, %v607
  %609 = vmatmul.f32.gmra.mxu0 %v206
  %v610 = vpop.f32.mrf.mxu0
  %v611 = vadd.f32 %v145, %v610
  %612 = vmatmul.f32.gmra.mxu0 %v209
  %v613 = vpop.f32.mrf.mxu0
  %v614 = vadd.f32 %v145, %v613
  %615 = vmatmul.f32.gmra.mxu0 %v212
  %v616 = vpop.f32.mrf.mxu0
  %v617 = vadd.f32 %v145, %v616
  %618 = vmatmul.f32.gmra.mxu0 %v215
  %v619 = vpop.f32.mrf.mxu0
  %v620 = vadd.f32 %v145, %v619
  %621 = vmatmul.f32.gmra.mxu0 %v218
  %v622 = vpop.f32.mrf.mxu0
  %v623 = vadd.f32 %v145, %v622
  %624 = vmatmul.f32.gmra.mxu0 %v221
  %v625 = vpop.f32.mrf.mxu0
  %v626 = vadd.f32 %v145, %v625
  %627 = vmatmul.f32.gmra.mxu0 %v224
  %v628 = vpop.f32.mrf.mxu0
  %v629 = vadd.f32 %v145, %v628
  %630 = vmatmul.f32.gmra.mxu0 %v227
  %v631 = vpop.f32.mrf.mxu0
  %v632 = vadd.f32 %v145, %v631
  %633 = vmatmul.f32.gmra.mxu0 %v230
  %v634 = vpop.f32.mrf.mxu0
  %v635 = vadd.f32 %v145, %v634
  %636 = vmatmul.f32.gmra.mxu0 %v233
  %v637 = vpop.f32.mrf.mxu0
  %v638 = vadd.f32 %v145, %v637
  %639 = vmatmul.f32.gmra.mxu0 %v236
  %v640 = vpop.f32.mrf.mxu0
  %v641 = vadd.f32 %v145, %v640
  %642 = vmatmul.f32.gmra.mxu0 %v239
  %v643 = vpop.f32.mrf.mxu0
  %v644 = vadd.f32 %v145, %v643
  %645 = vmatmul.f32.gmra.mxu0 %v242
  %v646 = vpop.f32.mrf.mxu0
  %v647 = vadd.f32 %v145, %v646
  %648 = vmatmul.f32.gmra.mxu0 %v245
  %v649 = vpop.f32.mrf.mxu0
  %v650 = vadd.f32 %v145, %v649
  %651 = vmatmul.f32.gmra.mxu0 %v248
  %v652 = vpop.f32.mrf.mxu0
  %v653 = vadd.f32 %v145, %v652
  %654 = vmatmul.f32.gmra.mxu0 %v251
  %v655 = vpop.f32.mrf.mxu0
  %v656 = vadd.f32 %v145, %v655
  %657 = vmatmul.f32.gmra.mxu0 %v254
  %v658 = vpop.f32.mrf.mxu0
  %v659 = vadd.f32 %v145, %v658
  %660 = vmatmul.f32.gmra.mxu0 %v257
  %v661 = vpop.f32.mrf.mxu0
  %v662 = vadd.f32 %v145, %v661
  %663 = vmatmul.f32.gmra.mxu0 %v260
  %v664 = vpop.f32.mrf.mxu0
  %v665 = vadd.f32 %v145, %v664
  %666 = vmatmul.f32.gmra.mxu0 %v263
  %v667 = vpop.f32.mrf.mxu0
  %v668 = vadd.f32 %v145, %v667
  %669 = vmatmul.f32.gmra.mxu0 %v266
  %v670 = vpop.f32.mrf.mxu0
  %v671 = vadd.f32 %v145, %v670
  %672 = vmatmul.f32.gmra.mxu0 %v269
  %v673 = vpop.f32.mrf.mxu0
  %v674 = vadd.f32 %v145, %v673
  %675 = vmatmul.f32.gmra.mxu0 %v272
  %v676 = vpop.f32.mrf.mxu0
  %v677 = vadd.f32 %v145, %v676
  %678 = vmatmul.f32.gmra.mxu0 %v275
  %v679 = vpop.f32.mrf.mxu0
  %v680 = vadd.f32 %v145, %v679
  %681 = vmatmul.f32.gmra.mxu0 %v278
  %v682 = vpop.f32.mrf.mxu0
  %v683 = vadd.f32 %v145, %v682
  %684 = vmatmul.f32.gmra.mxu0 %v281
  %v685 = vpop.f32.mrf.mxu0
  %v686 = vadd.f32 %v145, %v685
  %687 = vmatmul.f32.gmra.mxu0 %v284
  %v688 = vpop.f32.mrf.mxu0
  %v689 = vadd.f32 %v145, %v688
  %690 = vmatmul.f32.gmra.mxu0 %v287
  %v691 = vpop.f32.mrf.mxu0
  %v692 = vadd.f32 %v145, %v691
  %693 = vmatmul.f32.gmra.mxu0 %v290
  %v694 = vpop.f32.mrf.mxu0
  %v695 = vadd.f32 %v145, %v694
  %696 = vmatmul.f32.gmra.mxu0 %v293
  %v697 = vpop.f32.mrf.mxu0
  %v698 = vadd.f32 %v145, %v697
  %699 = vmatmul.f32.gmra.mxu0 %v296
  %v700 = vpop.f32.mrf.mxu0
  %v701 = vadd.f32 %v145, %v700
  %702 = vmatmul.f32.gmra.mxu0 %v299
  %v703 = vpop.f32.mrf.mxu0
  %v704 = vadd.f32 %v145, %v703
  %705 = vmatmul.f32.gmra.mxu0 %v302
  %v706 = vpop.f32.mrf.mxu0
  %v707 = vadd.f32 %v145, %v706
  %708 = vmatmul.f32.gmra.mxu0 %v305
  %v709 = vpop.f32.mrf.mxu0
  %v710 = vadd.f32 %v145, %v709
  %711 = vmatmul.f32.gmra.mxu0 %v308
  %v712 = vpop.f32.mrf.mxu0
  %v713 = vadd.f32 %v145, %v712
  %714 = vmatmul.f32.gmra.mxu0 %v311
  %v715 = vpop.f32.mrf.mxu0
  %v716 = vadd.f32 %v145, %v715
  %717 = vmatmul.f32.gmra.mxu0 %v314
  %v718 = vpop.f32.mrf.mxu0
  %v719 = vadd.f32 %v145, %v718
  %720 = vmatmul.f32.gmra.mxu0 %v317
  %v721 = vpop.f32.mrf.mxu0
  %v722 = vadd.f32 %v145, %v721
  %723 = vmatmul.f32.gmra.mxu0 %v320
  %v724 = vpop.f32.mrf.mxu0
  %v725 = vadd.f32 %v145, %v724
  %726 = vmatmul.f32.gmra.mxu0 %v323
  %v727 = vpop.f32.mrf.mxu0
  %v728 = vadd.f32 %v145, %v727
  %729 = vmatmul.f32.gmra.mxu0 %v326
  %v730 = vpop.f32.mrf.mxu0
  %v731 = vadd.f32 %v145, %v730
  %732 = vmatmul.f32.gmra.mxu0 %v329
  %v733 = vpop.f32.mrf.mxu0
  %v734 = vadd.f32 %v145, %v733
  %735 = vmatmul.f32.gmra.mxu0 %v332
  %v736 = vpop.f32.mrf.mxu0
  %v737 = vadd.f32 %v145, %v736
  %738 = vmatmul.f32.gmra.mxu0 %v335
  %v739 = vpop.f32.mrf.mxu0
  %v740 = vadd.f32 %v145, %v739
  %741 = vmatmul.f32.gmra.mxu0 %v338
  %v742 = vpop.f32.mrf.mxu0
  %v743 = vadd.f32 %v145, %v742
  %744 = vmatmul.f32.gmra.mxu0 %v341
  %v745 = vpop.f32.mrf.mxu0
  %v746 = vadd.f32 %v145, %v745
  %747 = vmatmul.f32.gmra.mxu0 %v344
  %v748 = vpop.f32.mrf.mxu0
  %v749 = vadd.f32 %v145, %v748
  %750 = vmatmul.f32.gmra.mxu0 %v347
  %v751 = vpop.f32.mrf.mxu0
  %v752 = vadd.f32 %v145, %v751
  %753 = vmatmul.f32.gmra.mxu0 %v350
  %v754 = vpop.f32.mrf.mxu0
  %v755 = vadd.f32 %v145, %v754
  %756 = vmatmul.f32.gmra.mxu0 %v353
  %v757 = vpop.f32.mrf.mxu0
  %v758 = vadd.f32 %v145, %v757
  %759 = vmatmul.f32.gmra.mxu0 %v356
  %v760 = vpop.f32.mrf.mxu0
  %v761 = vadd.f32 %v145, %v760
  %762 = vmatmul.f32.gmra.mxu0 %v359
  %v763 = vpop.f32.mrf.mxu0
  %v764 = vadd.f32 %v145, %v763
  %765 = vmatmul.f32.gmra.mxu0 %v362
  %v766 = vpop.f32.mrf.mxu0
  %v767 = vadd.f32 %v145, %v766
  %768 = vmatmul.f32.gmra.mxu0 %v365
  %v769 = vpop.f32.mrf.mxu0
  %v770 = vadd.f32 %v145, %v769
  %771 = vmatmul.f32.gmra.mxu0 %v368
  %v772 = vpop.f32.mrf.mxu0
  %v773 = vadd.f32 %v145, %v772
  %774 = vmatmul.f32.gmra.mxu0 %v371
  %v775 = vpop.f32.mrf.mxu0
  %v776 = vadd.f32 %v145, %v775
  %777 = vmatmul.f32.gmra.mxu0 %v374
  %v778 = vpop.f32.mrf.mxu0
  %v779 = vadd.f32 %v145, %v778
  %780 = vmatmul.f32.gmra.mxu0 %v377
  %v781 = vpop.f32.mrf.mxu0
  %v782 = vadd.f32 %v145, %v781
  %783 = vmatmul.f32.gmra.mxu0 %v380
  %v784 = vpop.f32.mrf.mxu0
  %v785 = vadd.f32 %v145, %v784
  %786 = vmatmul.f32.gmra.mxu0 %v383
  %v787 = vpop.f32.mrf.mxu0
  %v788 = vadd.f32 %v145, %v787
  %789 = vmatmul.f32.gmra.mxu0 %v386
  %v790 = vpop.f32.mrf.mxu0
  %v791 = vadd.f32 %v145, %v790
  %792 = vmatmul.f32.gmra.mxu0 %v389
  %v793 = vpop.f32.mrf.mxu0
  %v794 = vadd.f32 %v145, %v793
  %795 = vmatmul.f32.gmra.mxu0 %v392
  %v796 = vpop.f32.mrf.mxu0
  %v797 = vadd.f32 %v145, %v796
  %798 = vmatmul.f32.gmra.mxu0 %v395
  %v799 = vpop.f32.mrf.mxu0
  %v800 = vadd.f32 %v145, %v799
  %801 = vmatmul.f32.gmra.mxu0 %v398
  %v802 = vpop.f32.mrf.mxu0
  %v803 = vadd.f32 %v145, %v802
  %804 = vmatmul.f32.gmra.mxu0 %v401
  %v805 = vpop.f32.mrf.mxu0
  %v806 = vadd.f32 %v145, %v805
  %807 = vmatmul.f32.gmra.mxu0 %v404
  %v808 = vpop.f32.mrf.mxu0
  %v809 = vadd.f32 %v145, %v808
  %810 = vmatmul.f32.gmra.mxu0 %v407
  %v811 = vpop.f32.mrf.mxu0
  %v812 = vadd.f32 %v145, %v811
  %813 = vmatmul.f32.gmra.mxu0 %v410
  %v814 = vpop.f32.mrf.mxu0
  %v815 = vadd.f32 %v145, %v814
  %816 = vmatmul.f32.gmra.mxu0 %v413
  %v817 = vpop.f32.mrf.mxu0
  %v818 = vadd.f32 %v145, %v817
  %819 = vmatmul.f32.gmra.mxu0 %v416
  %v820 = vpop.f32.mrf.mxu0
  %v821 = vadd.f32 %v145, %v820
  %822 = vmatmul.f32.gmra.mxu0 %v419
  %v823 = vpop.f32.mrf.mxu0
  %v824 = vadd.f32 %v145, %v823
  %825 = vmatmul.f32.gmra.mxu0 %v422
  %v826 = vpop.f32.mrf.mxu0
  %v827 = vadd.f32 %v145, %v826
  %828 = vmatmul.f32.gmra.mxu0 %v425
  %v829 = vpop.f32.mrf.mxu0
  %v830 = vadd.f32 %v145, %v829
  %831 = vmatmul.f32.gmra.mxu0 %v428
  %v832 = vpop.f32.mrf.mxu0
  %v833 = vadd.f32 %v145, %v832
  %834 = vmatmul.f32.gmra.mxu0 %v431
  %v835 = vpop.f32.mrf.mxu0
  %v836 = vadd.f32 %v145, %v835
  %837 = vmatmul.f32.gmra.mxu0 %v434
  %v838 = vpop.f32.mrf.mxu0
  %v839 = vadd.f32 %v145, %v838
  %840 = vmatmul.f32.gmra.mxu0 %v437
  %v841 = vpop.f32.mrf.mxu0
  %v842 = vadd.f32 %v145, %v841
  %843 = vmatmul.f32.gmra.mxu0 %v440
  %v844 = vpop.f32.mrf.mxu0
  %v845 = vadd.f32 %v145, %v844
  %846 = vmatmul.f32.gmra.mxu0 %v443
  %v847 = vpop.f32.mrf.mxu0
  %v848 = vadd.f32 %v145, %v847
  %849 = vmatmul.f32.gmra.mxu0 %v446
  %v850 = vpop.f32.mrf.mxu0
  %v851 = vadd.f32 %v145, %v850
  %852 = vmatmul.f32.gmra.mxu0 %v449
  %v853 = vpop.f32.mrf.mxu0
  %v854 = vadd.f32 %v145, %v853
  %855 = vmatmul.f32.gmra.mxu0 %v452
  %v856 = vpop.f32.mrf.mxu0
  %v857 = vadd.f32 %v145, %v856
  %858 = vmatmul.f32.gmra.mxu0 %v455
  %v859 = vpop.f32.mrf.mxu0
  %v860 = vadd.f32 %v145, %v859
  %861 = vmatmul.f32.gmra.mxu0 %v458
  %v862 = vpop.f32.mrf.mxu0
  %v863 = vadd.f32 %v145, %v862
  %864 = vmatmul.f32.gmra.mxu0 %v461
  %v865 = vpop.f32.mrf.mxu0
  %v866 = vadd.f32 %v145, %v865
  %867 = vmatmul.f32.gmra.mxu0 %v464
  %v868 = vpop.f32.mrf.mxu0
  %v869 = vadd.f32 %v145, %v868
  %870 = vmatmul.f32.gmra.mxu0 %v467
  %v871 = vpop.f32.mrf.mxu0
  %v872 = vadd.f32 %v145, %v871
  %873 = vmatmul.f32.gmra.mxu0 %v470
  %v874 = vpop.f32.mrf.mxu0
  %v875 = vadd.f32 %v145, %v874
  %876 = vmatmul.f32.gmra.mxu0 %v473
  %v877 = vpop.f32.mrf.mxu0
  %v878 = vadd.f32 %v145, %v877
  %879 = vmatmul.f32.gmra.mxu0 %v476
  %v880 = vpop.f32.mrf.mxu0
  %v881 = vadd.f32 %v145, %v880
  %882 = vmatmul.f32.gmra.mxu0 %v479
  %v883 = vpop.f32.mrf.mxu0
  %v884 = vadd.f32 %v145, %v883
  %885 = vmatmul.f32.gmra.mxu0 %v482
  %v886 = vpop.f32.mrf.mxu0
  %v887 = vadd.f32 %v145, %v886
  %888 = vmatmul.f32.gmra.mxu0 %v485
  %v889 = vpop.f32.mrf.mxu0
  %v890 = vadd.f32 %v145, %v889
  %891 = vmatmul.f32.gmra.mxu0 %v488
  %v892 = vpop.f32.mrf.mxu0
  %v893 = vadd.f32 %v145, %v892
  %894 = vmatmul.f32.gmra.mxu0 %v491
  %v895 = vpop.f32.mrf.mxu0
  %v896 = vadd.f32 %v145, %v895
  %897 = vmatmul.f32.gmra.mxu0 %v494
  %v898 = vpop.f32.mrf.mxu0
  %v899 = vadd.f32 %v145, %v898
  %900 = vmatmul.f32.gmra.mxu0 %v497
  %v901 = vpop.f32.mrf.mxu0
  %v902 = vadd.f32 %v145, %v901
  %903 = vmatmul.f32.gmra.mxu0 %v500
  %v904 = vpop.f32.mrf.mxu0
  %v905 = vadd.f32 %v145, %v904
  %906 = vmatmul.f32.gmra.mxu0 %v503
  %v907 = vpop.f32.mrf.mxu0
  %v908 = vadd.f32 %v145, %v907
  %909 = vmatmul.f32.gmra.mxu0 %v506
  %v910 = vpop.f32.mrf.mxu0
  %v911 = vadd.f32 %v145, %v910
  %912 = vmatmul.f32.gmra.mxu0 %v509
  %v913 = vpop.f32.mrf.mxu0
  %v914 = vadd.f32 %v145, %v913
  %915 = vmatmul.f32.gmra.mxu0 %v512
  %v916 = vpop.f32.mrf.mxu0
  %v917 = vadd.f32 %v145, %v916
  %918 = vmatmul.f32.gmra.mxu0 %v515
  %v919 = vpop.f32.mrf.mxu0
  %v920 = vadd.f32 %v145, %v919
  %921 = vmatmul.f32.gmra.mxu0 %v518
  %v922 = vpop.f32.mrf.mxu0
  %v923 = vadd.f32 %v145, %v922
  %924 = vmatmul.f32.gmra.mxu0 %v521
  %v925 = vpop.f32.mrf.mxu0
  %v926 = vadd.f32 %v145, %v925
  %927 = vmatmul.f32.gmra.mxu0 %v524
  %v928 = vpop.f32.mrf.mxu0
  %v929 = vadd.f32 %v145, %v928
  %930 = vmatmul.f32.gmra.mxu0 %v527
  %v931 = vpop.f32.mrf.mxu0
  %v932 = vadd.f32 %v145, %v931
  %933 = vmatmul.f32.gmra.mxu0 %v530
  %v934 = vpop.f32.mrf.mxu0
  %v935 = vadd.f32 %v145, %v934
  %936 = vdwg.mxu0
  %vm937 = vcmask 64512
  %938 = vst.msk [vmem:[%s3] sm:$0xff] %vm937, %v554
  %939 = vst.msk [vmem:[%s3 + $0x8] sm:$0xff] %vm937, %v557
  %940 = vst.msk [vmem:[%s3 + $0x10] sm:$0xff] %vm937, %v560
  %941 = vst.msk [vmem:[%s3 + $0x18] sm:$0xff] %vm937, %v563
  %942 = vst.msk [vmem:[%s3 + $0x20] sm:$0xff] %vm937, %v566
  %943 = vst.msk [vmem:[%s3 + $0x28] sm:$0xff] %vm937, %v569
  %944 = vst.msk [vmem:[%s3 + $0x30] sm:$0xff] %vm937, %v572
  %945 = vst.msk [vmem:[%s3 + $0x38] sm:$0xff] %vm937, %v575
  %946 = vst.msk [vmem:[%s3 + $0x40] sm:$0xff] %vm937, %v578
  %947 = vst.msk [vmem:[%s3 + $0x48] sm:$0xff] %vm937, %v581
  %948 = vst.msk [vmem:[%s3 + $0x50] sm:$0xff] %vm937, %v584
  %949 = vst.msk [vmem:[%s3 + $0x58] sm:$0xff] %vm937, %v587
  %950 = vst.msk [vmem:[%s3 + $0x60] sm:$0xff] %vm937, %v590
  %951 = vst.msk [vmem:[%s3 + $0x68] sm:$0xff] %vm937, %v593
  %952 = vst.msk [vmem:[%s3 + $0x70] sm:$0xff] %vm937, %v596
  %953 = vst.msk [vmem:[%s3 + $0x78] sm:$0xff] %vm937, %v599
  %954 = vst.msk [vmem:[%s3 + $0x80] sm:$0xff] %vm937, %v602
  %955 = vst.msk [vmem:[%s3 + $0x88] sm:$0xff] %vm937, %v605
  %956 = vst.msk [vmem:[%s3 + $0x90] sm:$0xff] %vm937, %v608
  %957 = vst.msk [vmem:[%s3 + $0x98] sm:$0xff] %vm937, %v611
  %958 = vst.msk [vmem:[%s3 + $0xa0] sm:$0xff] %vm937, %v614
  %959 = vst.msk [vmem:[%s3 + $0xa8] sm:$0xff] %vm937, %v617
  %960 = vst.msk [vmem:[%s3 + $0xb0] sm:$0xff] %vm937, %v620
  %961 = vst.msk [vmem:[%s3 + $0xb8] sm:$0xff] %vm937, %v623
  %962 = vst.msk [vmem:[%s3 + $0xc0] sm:$0xff] %vm937, %v626
  %963 = vst.msk [vmem:[%s3 + $0xc8] sm:$0xff] %vm937, %v629
  %964 = vst.msk [vmem:[%s3 + $0xd0] sm:$0xff] %vm937, %v632
  %965 = vst.msk [vmem:[%s3 + $0xd8] sm:$0xff] %vm937, %v635
  %966 = vst.msk [vmem:[%s3 + $0xe0] sm:$0xff] %vm937, %v638
  %967 = vst.msk [vmem:[%s3 + $0xe8] sm:$0xff] %vm937, %v641
  %968 = vst.msk [vmem:[%s3 + $0xf0] sm:$0xff] %vm937, %v644
  %969 = vst.msk [vmem:[%s3 + $0xf8] sm:$0xff] %vm937, %v647
  %970 = vst.msk [vmem:[%s3 + $0x100] sm:$0xff] %vm937, %v650
  %971 = vst.msk [vmem:[%s3 + $0x108] sm:$0xff] %vm937, %v653
  %972 = vst.msk [vmem:[%s3 + $0x110] sm:$0xff] %vm937, %v656
  %973 = vst.msk [vmem:[%s3 + $0x118] sm:$0xff] %vm937, %v659
  %974 = vst.msk [vmem:[%s3 + $0x120] sm:$0xff] %vm937, %v662
  %975 = vst.msk [vmem:[%s3 + $0x128] sm:$0xff] %vm937, %v665
  %976 = vst.msk [vmem:[%s3 + $0x130] sm:$0xff] %vm937, %v668
  %977 = vst.msk [vmem:[%s3 + $0x138] sm:$0xff] %vm937, %v671
  %978 = vst.msk [vmem:[%s3 + $0x140] sm:$0xff] %vm937, %v674
  %979 = vst.msk [vmem:[%s3 + $0x148] sm:$0xff] %vm937, %v677
  %980 = vst.msk [vmem:[%s3 + $0x150] sm:$0xff] %vm937, %v680
  %981 = vst.msk [vmem:[%s3 + $0x158] sm:$0xff] %vm937, %v683
  %982 = vst.msk [vmem:[%s3 + $0x160] sm:$0xff] %vm937, %v686
  %983 = vst.msk [vmem:[%s3 + $0x168] sm:$0xff] %vm937, %v689
  %984 = vst.msk [vmem:[%s3 + $0x170] sm:$0xff] %vm937, %v692
  %985 = vst.msk [vmem:[%s3 + $0x178] sm:$0xff] %vm937, %v695
  %986 = vst.msk [vmem:[%s3 + $0x180] sm:$0xff] %vm937, %v698
  %987 = vst.msk [vmem:[%s3 + $0x188] sm:$0xff] %vm937, %v701
  %988 = vst.msk [vmem:[%s3 + $0x190] sm:$0xff] %vm937, %v704
  %989 = vst.msk [vmem:[%s3 + $0x198] sm:$0xff] %vm937, %v707
  %990 = vst.msk [vmem:[%s3 + $0x1a0] sm:$0xff] %vm937, %v710
  %991 = vst.msk [vmem:[%s3 + $0x1a8] sm:$0xff] %vm937, %v713
  %992 = vst.msk [vmem:[%s3 + $0x1b0] sm:$0xff] %vm937, %v716
  %993 = vst.msk [vmem:[%s3 + $0x1b8] sm:$0xff] %vm937, %v719
  %994 = vst.msk [vmem:[%s3 + $0x1c0] sm:$0xff] %vm937, %v722
  %995 = vst.msk [vmem:[%s3 + $0x1c8] sm:$0xff] %vm937, %v725
  %996 = vst.msk [vmem:[%s3 + $0x1d0] sm:$0xff] %vm937, %v728
  %997 = vst.msk [vmem:[%s3 + $0x1d8] sm:$0xff] %vm937, %v731
  %998 = vst.msk [vmem:[%s3 + $0x1e0] sm:$0xff] %vm937, %v734
  %999 = vst.msk [vmem:[%s3 + $0x1e8] sm:$0xff] %vm937, %v737
  %1000 = vst.msk [vmem:[%s3 + $0x1f0] sm:$0xff] %vm937, %v740
  %1001 = vst.msk [vmem:[%s3 + $0x1f8] sm:$0xff] %vm937, %v743
  %1002 = vst.msk [vmem:[%s3 + $0x200] sm:$0xff] %vm937, %v746
  %1003 = vst.msk [vmem:[%s3 + $0x208] sm:$0xff] %vm937, %v749
  %1004 = vst.msk [vmem:[%s3 + $0x210] sm:$0xff] %vm937, %v752
  %1005 = vst.msk [vmem:[%s3 + $0x218] sm:$0xff] %vm937, %v755
  %1006 = vst.msk [vmem:[%s3 + $0x220] sm:$0xff] %vm937, %v758
  %1007 = vst.msk [vmem:[%s3 + $0x228] sm:$0xff] %vm937, %v761
  %1008 = vst.msk [vmem:[%s3 + $0x230] sm:$0xff] %vm937, %v764
  %1009 = vst.msk [vmem:[%s3 + $0x238] sm:$0xff] %vm937, %v767
  %1010 = vst.msk [vmem:[%s3 + $0x240] sm:$0xff] %vm937, %v770
  %1011 = vst.msk [vmem:[%s3 + $0x248] sm:$0xff] %vm937, %v773
  %1012 = vst.msk [vmem:[%s3 + $0x250] sm:$0xff] %vm937, %v776
  %1013 = vst.msk [vmem:[%s3 + $0x258] sm:$0xff] %vm937, %v779
  %1014 = vst.msk [vmem:[%s3 + $0x260] sm:$0xff] %vm937, %v782
  %1015 = vst.msk [vmem:[%s3 + $0x268] sm:$0xff] %vm937, %v785
  %1016 = vst.msk [vmem:[%s3 + $0x270] sm:$0xff] %vm937, %v788
  %1017 = vst.msk [vmem:[%s3 + $0x278] sm:$0xff] %vm937, %v791
  %1018 = vst.msk [vmem:[%s3 + $0x280] sm:$0xff] %vm937, %v794
  %1019 = vst.msk [vmem:[%s3 + $0x288] sm:$0xff] %vm937, %v797
  %1020 = vst.msk [vmem:[%s3 + $0x290] sm:$0xff] %vm937, %v800
  %1021 = vst.msk [vmem:[%s3 + $0x298] sm:$0xff] %vm937, %v803
  %1022 = vst.msk [vmem:[%s3 + $0x2a0] sm:$0xff] %vm937, %v806
  %1023 = vst.msk [vmem:[%s3 + $0x2a8] sm:$0xff] %vm937, %v809
  %1024 = vst.msk [vmem:[%s3 + $0x2b0] sm:$0xff] %vm937, %v812
  %1025 = vst.msk [vmem:[%s3 + $0x2b8] sm:$0xff] %vm937, %v815
  %1026 = vst.msk [vmem:[%s3 + $0x2c0] sm:$0xff] %vm937, %v818
  %1027 = vst.msk [vmem:[%s3 + $0x2c8] sm:$0xff] %vm937, %v821
  %1028 = vst.msk [vmem:[%s3 + $0x2d0] sm:$0xff] %vm937, %v824
  %1029 = vst.msk [vmem:[%s3 + $0x2d8] sm:$0xff] %vm937, %v827
  %1030 = vst.msk [vmem:[%s3 + $0x2e0] sm:$0xff] %vm937, %v830
  %1031 = vst.msk [vmem:[%s3 + $0x2e8] sm:$0xff] %vm937, %v833
  %1032 = vst.msk [vmem:[%s3 + $0x2f0] sm:$0xff] %vm937, %v836
  %1033 = vst.msk [vmem:[%s3 + $0x2f8] sm:$0xff] %vm937, %v839
  %1034 = vst.msk [vmem:[%s3 + $0x300] sm:$0xff] %vm937, %v842
  %1035 = vst.msk [vmem:[%s3 + $0x308] sm:$0xff] %vm937, %v845
  %1036 = vst.msk [vmem:[%s3 + $0x310] sm:$0xff] %vm937, %v848
  %1037 = vst.msk [vmem:[%s3 + $0x318] sm:$0xff] %vm937, %v851
  %1038 = vst.msk [vmem:[%s3 + $0x320] sm:$0xff] %vm937, %v854
  %1039 = vst.msk [vmem:[%s3 + $0x328] sm:$0xff] %vm937, %v857
  %1040 = vst.msk [vmem:[%s3 + $0x330] sm:$0xff] %vm937, %v860
  %1041 = vst.msk [vmem:[%s3 + $0x338] sm:$0xff] %vm937, %v863
  %1042 = vst.msk [vmem:[%s3 + $0x340] sm:$0xff] %vm937, %v866
  %1043 = vst.msk [vmem:[%s3 + $0x348] sm:$0xff] %vm937, %v869
  %1044 = vst.msk [vmem:[%s3 + $0x350] sm:$0xff] %vm937, %v872
  %1045 = vst.msk [vmem:[%s3 + $0x358] sm:$0xff] %vm937, %v875
  %1046 = vst.msk [vmem:[%s3 + $0x360] sm:$0xff] %vm937, %v878
  %1047 = vst.msk [vmem:[%s3 + $0x368] sm:$0xff] %vm937, %v881
  %1048 = vst.msk [vmem:[%s3 + $0x370] sm:$0xff] %vm937, %v884
  %1049 = vst.msk [vmem:[%s3 + $0x378] sm:$0xff] %vm937, %v887
  %1050 = vst.msk [vmem:[%s3 + $0x380] sm:$0xff] %vm937, %v890
  %1051 = vst.msk [vmem:[%s3 + $0x388] sm:$0xff] %vm937, %v893
  %1052 = vst.msk [vmem:[%s3 + $0x390] sm:$0xff] %vm937, %v896
  %1053 = vst.msk [vmem:[%s3 + $0x398] sm:$0xff] %vm937, %v899
  %1054 = vst.msk [vmem:[%s3 + $0x3a0] sm:$0xff] %vm937, %v902
  %1055 = vst.msk [vmem:[%s3 + $0x3a8] sm:$0xff] %vm937, %v905
  %1056 = vst.msk [vmem:[%s3 + $0x3b0] sm:$0xff] %vm937, %v908
  %1057 = vst.msk [vmem:[%s3 + $0x3b8] sm:$0xff] %vm937, %v911
  %1058 = vst.msk [vmem:[%s3 + $0x3c0] sm:$0xff] %vm937, %v914
  %1059 = vst.msk [vmem:[%s3 + $0x3c8] sm:$0xff] %vm937, %v917
  %1060 = vst.msk [vmem:[%s3 + $0x3d0] sm:$0xff] %vm937, %v920
  %1061 = vst.msk [vmem:[%s3 + $0x3d8] sm:$0xff] %vm937, %v923
  %1062 = vst.msk [vmem:[%s3 + $0x3e0] sm:$0xff] %vm937, %v926
  %1063 = vst.msk [vmem:[%s3 + $0x3e8] sm:$0xff] %vm937, %v929
  %1064 = vst.msk [vmem:[%s3 + $0x3f0] sm:$0xff] %vm937, %v932
  %1065 = vst.msk [vmem:[%s3 + $0x3f8] sm:$0xff] %vm937, %v935
  // Predicated region
  $region14: #{get_cost_volume.4} parent=0 // pred_check
    _
  $region15: #{get_cost_volume.4} parent=0 // pred_check_branch
    %1067 = sbr.rel (0) target = $region17
  $region16: #{get_cost_volume.4} parent=0 // pred_region
    _
  $region17: #{get_cost_volume.4} parent=0 // pred_fallthru
    _
  // Predicated region
  $region18: #{get_cost_volume.4} parent=0 // pred_check
    _
  $region19: #{get_cost_volume.4} parent=0 // pred_check_branch
    %1069 = sbr.rel (0) target = $region21
  $region20: #{get_cost_volume.4} parent=0 // pred_region
    _
  $region21: #{get_cost_volume.4} parent=0 // pred_fallthru
    _

// kernel: get_cost_volume.7
$region0: #{get_cost_volume.7}
  #allocation0 [shape = 'u32[]', space=smem, size = 0x4, offset = 0x4, fixed_abs, tag = 'smem constant byte address 0x4 - core index']
  #allocation1 [shape = 'u32[72,128]{1,0:T(1,128)}', space=vmem, size = 0x9000, scoped, tag = 'internal scratch']
  #allocation2 [shape = 'f32[16,128,128]{2,1,0:T(8,128)}', space=vmem, size = 0x100000, scoped, tag = 'scratch operand']
  %s0 = inlined_call_operand.vmem [shape: f32[2,16,128,4], index: 0, kind: input, shape index: {}]
  %s1 = inlined_call_operand.vmem [shape: f32[2,16,128,4], index: 1, kind: input, shape index: {}]
  %s2 = inlined_call_operand.vmem [shape: f32[2,8,16,128], index: 2, kind: input, shape index: {}]
  %s3 = inlined_call_operand.hbm [shape: f32[2,8,16,128], index: 3, kind: output, shape index: {}]
  %s4 = sld [smem:[#allocation0]]
  $region56: #{get_cost_volume.7} parent=0
    _
  %s6 = ssub.s32 1, %s4
  %s7 = scalar_select 0, %s6, %s4
  $region1: #{get_cost_volume.7} parent=0
    #allocation3 [shape = 'u8[131072]{0}', space=vmem, size = 0x20000, scoped, tag = 'output window, operand 0']
    #allocation4 [shape = 's32[2]{0}', space=sflag, size = 0x8, scoped, tag = 'scoped memory for get_cost_volume.7']
    %8 = vsyncpa [#allocation4], 0
    %s9 = scalar_lea.sflag [#allocation4], 1
    %10 = vsyncpa %s9, 0
    loop: start=0, step=1, limit=4
    $region2: #{get_cost_volume.7} parent=1 // loop_pre_header
      _
    $region3: #{get_cost_volume.7} parent=1 // loop_header
      %s12 = sphi 0, %s16
      %p13 = scmp.ge.s32.totalorder %s12, 4
      %s19 = sphi 0, %s38
      %s20 = sphi 0, %s34
      %s21 = sphi 0, %s30
      %s22 = sphi 0, %s19
      %s23 = sphi 0, %s20
      %s24 = sphi 0, %s21
      %s25 = sphi 0, %s22
      %s26 = sphi 0, %s23
      %s27 = sphi 0, %s24
      %s43 = sphi 0, %s45
      %s46 = sphi 0, %s43
      %s47 = sphi 0, %s46
      %s63 = sphi 0, %s47
      %s71 = sphi 0, %s73
      %s74 = sphi 0, %s71
      %s75 = sphi 0, %s74
      %s91 = sphi 0, %s75
      %s101 = sphi 0, %s103
      %s104 = sphi 0, %s101
      %s105 = sphi 0, %s104
      %s121 = sphi 0, %s105
      %s131 = sphi 0, %s133
      %s134 = sphi 0, %s131
      %s135 = sphi 0, %s134
      %s151 = sphi 0, %s135
    $region4: #{get_cost_volume.7} parent=1 // loop_header_branch
      %15 = sbr.rel (%p13) target = $region8
    $region5: #{get_cost_volume.7} parent=1 // loop_body
      %s17 = ssub.s32 %s12, 1
      %s18 = ssub.s32 %s12, 2
      %s28 = sadd.s32 1, %s21
      %p29 = scmp.ge.s32.totalorder %s28, 1
      %s30 = scalar_select %p29, 0, %s28
      %s31 = sadd.s32 1, %s20
      %s32 = scalar_select %p29, %s31, %s20
      %p33 = scmp.ge.s32.totalorder %s32, 1
      %s34 = scalar_select %p33, 0, %s32
      %s35 = sadd.s32 1, %s19
      %s36 = scalar_select %p33, %s35, %s19
      %p37 = scmp.ge.s32.totalorder %s36, 2
      %s38 = scalar_select %p37, 0, %s36
      %s39 = ssub.s32 %s19, %s38
      %s40 = ssub.s32 %s20, %s34
      %s41 = sor.u32 %s39, %s40
      %p42 = scmp.eq.s32.totalorder %s41, 0
      %s44 = sadd.s32 %s43, 1
      %s45 = scalar_select %p42, %s43, %s44
      %p48 = pneg %p42
      %p49 = scmp.eq.s32.totalorder %s12, 1
      %p50 = por %p48, %p49
      %p51 = scmp.ne.s32.totalorder %s43, %s46
      %p52 = scmp.eq.s32.totalorder %s12, 0
      %p53 = por %p51, %p52
      %p54 = scmp.ne.s32.totalorder %s43, %s46
      %p55 = scmp.eq.s32.totalorder %s17, 1
      %p56 = por %p54, %p55
      %p57 = scmp.ne.s32.totalorder %s46, %s47
      %p58 = scmp.eq.s32.totalorder %s17, 0
      %p59 = por %p57, %p58
      %p60 = scmp.ne.s32.totalorder %s46, %s47
      %p61 = scmp.eq.s32.totalorder %s18, 1
      %p62 = por %p60, %p61
      %p64 = scmp.ne.s32.totalorder %s47, %s63
      %p65 = scmp.eq.s32.totalorder %s18, 0
      %p66 = por %p64, %p65
      %s67 = ssub.s32 %s19, %s38
      %s68 = ssub.s32 %s20, %s34
      %s69 = sor.u32 %s67, %s68
      %p70 = scmp.eq.s32.totalorder %s69, 0
      %s72 = sadd.s32 %s71, 1
      %s73 = scalar_select %p70, %s71, %s72
      %p76 = pneg %p70
      %p77 = scmp.eq.s32.totalorder %s12, 1
      %p78 = por %p76, %p77
      %p79 = scmp.ne.s32.totalorder %s71, %s74
      %p80 = scmp.eq.s32.totalorder %s12, 0
      %p81 = por %p79, %p80
      %p82 = scmp.ne.s32.totalorder %s71, %s74
      %p83 = scmp.eq.s32.totalorder %s17, 1
      %p84 = por %p82, %p83
      %p85 = scmp.ne.s32.totalorder %s74, %s75
      %p86 = scmp.eq.s32.totalorder %s17, 0
      %p87 = por %p85, %p86
      %p88 = scmp.ne.s32.totalorder %s74, %s75
      %p89 = scmp.eq.s32.totalorder %s18, 1
      %p90 = por %p88, %p89
      %p92 = scmp.ne.s32.totalorder %s75, %s91
      %p93 = scmp.eq.s32.totalorder %s18, 0
      %p94 = por %p92, %p93
      %s95 = ssub.s32 %s19, %s38
      %s96 = ssub.s32 %s21, %s30
      %s97 = sor.u32 %s95, %s96
      %s98 = ssub.s32 %s20, %s34
      %s99 = sor.u32 %s97, %s98
      %p100 = scmp.eq.s32.totalorder %s99, 0
      %s102 = sadd.s32 %s101, 1
      %s103 = scalar_select %p100, %s101, %s102
      %p106 = pneg %p100
      %p107 = scmp.eq.s32.totalorder %s12, 1
      %p108 = por %p106, %p107
      %p109 = scmp.ne.s32.totalorder %s101, %s104
      %p110 = scmp.eq.s32.totalorder %s12, 0
      %p111 = por %p109, %p110
      %p112 = scmp.ne.s32.totalorder %s101, %s104
      %p113 = scmp.eq.s32.totalorder %s17, 1
      %p114 = por %p112, %p113
      %p115 = scmp.ne.s32.totalorder %s104, %s105
      %p116 = scmp.eq.s32.totalorder %s17, 0
      %p117 = por %p115, %p116
      %p118 = scmp.ne.s32.totalorder %s104, %s105
      %p119 = scmp.eq.s32.totalorder %s18, 1
      %p120 = por %p118, %p119
      %p122 = scmp.ne.s32.totalorder %s105, %s121
      %p123 = scmp.eq.s32.totalorder %s18, 0
      %p124 = por %p122, %p123
      %s125 = ssub.s32 %s19, %s38
      %s126 = ssub.s32 %s21, %s30
      %s127 = sor.u32 %s125, %s126
      %s128 = ssub.s32 %s20, %s34
      %s129 = sor.u32 %s127, %s128
      %p130 = scmp.eq.s32.totalorder %s129, 0
      %s132 = sadd.s32 %s131, 1
      %s133 = scalar_select %p130, %s131, %s132
      %p136 = pneg %p130
      %p137 = scmp.eq.s32.totalorder %s12, 1
      %p138 = por %p136, %p137
      %p139 = scmp.ne.s32.totalorder %s131, %s134
      %p140 = scmp.eq.s32.totalorder %s12, 0
      %p141 = por %p139, %p140
      %p142 = scmp.ne.s32.totalorder %s131, %s134
      %p143 = scmp.eq.s32.totalorder %s17, 1
      %p144 = por %p142, %p143
      %p145 = scmp.ne.s32.totalorder %s134, %s135
      %p146 = scmp.eq.s32.totalorder %s17, 0
      %p147 = por %p145, %p146
      %p148 = scmp.ne.s32.totalorder %s134, %s135
      %p149 = scmp.eq.s32.totalorder %s18, 1
      %p150 = por %p148, %p149
      %p152 = scmp.ne.s32.totalorder %s135, %s151
      %p153 = scmp.eq.s32.totalorder %s18, 0
      %p154 = por %p152, %p153
      %p155 = scmp.le.s32.totalorder 1, %s12
      %p156 = scmp.lt.s32.totalorder %s12, 3
      %p157 = pnand %p155, %p156
      %p158 = pneg %p157
      // Predicated region
      $region9: #{get_cost_volume.7} parent=5 // pred_check
        _
      $region10: #{get_cost_volume.7} parent=5 // pred_check_branch
        %160 = sbr.rel (%p157) target = $region12
      $region11: #{get_cost_volume.7} parent=5 // pred_region
        %s161 = ssub.s32 %s12, 1
      $region12: #{get_cost_volume.7} parent=5 // pred_fallthru
        _
      %p162 = scmp.lt.s32.totalorder %s12, 2
      // Predicated region
      $region13: #{get_cost_volume.7} parent=5 // pred_check
        %p163 = pneg %p162
      $region14: #{get_cost_volume.7} parent=5 // pred_check_branch
        %165 = sbr.rel (%p163) target = $region16
      $region15: #{get_cost_volume.7} parent=5 // pred_region
        // Predicated region
        $region17: #{get_cost_volume.7} parent=15 // pred_check
          %p166 = pneg %p53
        $region18: #{get_cost_volume.7} parent=15 // pred_check_branch
          %168 = sbr.rel (%p166) target = $region20
        $region19: #{get_cost_volume.7} parent=15 // pred_region
          %s169 = smul.u32 16, %s20
          %p170 = scmp.lt.s32.totalorder %s19, 1
          %s171 = scalar_select %p170, %s19, 1
          %p172 = scmp.lt.s32.totalorder %s169, 15
          %s173 = scalar_select %p172, %s169, 15
          %s174 = smul.addr %s173, 16
          %s175 = smul.addr %s171, 256
          %s176 = sadd.s32 %s174, %s175
          %s177 = smul.addr %s176, 8
          %s178 = scalar_lea.vmem %s0, %s177
          %s179 = smul.u32 16, %s20
        $region20: #{get_cost_volume.7} parent=15 // pred_fallthru
          _
        // Predicated region
        $region21: #{get_cost_volume.7} parent=15 // pred_check
          %p180 = pneg %p81
        $region22: #{get_cost_volume.7} parent=15 // pred_check_branch
          %182 = sbr.rel (%p180) target = $region24
        $region23: #{get_cost_volume.7} parent=15 // pred_region
          %s183 = smul.u32 16, %s20
          %p184 = scmp.lt.s32.totalorder %s19, 1
          %s185 = scalar_select %p184, %s19, 1
          %p186 = scmp.lt.s32.totalorder %s183, 15
          %s187 = scalar_select %p186, %s183, 15
          %s188 = smul.addr %s187, 16
          %s189 = smul.addr %s185, 256
          %s190 = sadd.s32 %s188, %s189
          %s191 = smul.addr %s190, 8
          %s192 = scalar_lea.vmem %s1, %s191
          %s193 = smul.u32 16, %s20
        $region24: #{get_cost_volume.7} parent=15 // pred_fallthru
          _
        // Predicated region
        $region25: #{get_cost_volume.7} parent=15 // pred_check
          %p194 = pneg %p111
        $region26: #{get_cost_volume.7} parent=15 // pred_check_branch
          %196 = sbr.rel (%p194) target = $region28
        $region27: #{get_cost_volume.7} parent=15 // pred_region
          %s197 = smul.u32 8, %s21
          %s198 = smul.u32 2, %s20
          %p199 = scmp.lt.s32.totalorder %s19, 1
          %s200 = scalar_select %p199, %s19, 1
          %p201 = scmp.lt.s32.totalorder %s197, 7
          %s202 = scalar_select %p201, %s197, 7
          %p203 = scmp.lt.s32.totalorder %s198, 1
          %s204 = scalar_select %p203, %s198, 1
          %s205 = smul.addr %s202, 2
          %s206 = sadd.s32 %s204, %s205
          %s207 = smul.addr %s200, 16
          %s208 = sadd.s32 %s206, %s207
          %s209 = smul.addr %s208, 8
          %s210 = scalar_lea.vmem %s2, %s209
          %s211 = smul.u32 8, %s21
          %s212 = smul.u32 2, %s20
        $region28: #{get_cost_volume.7} parent=15 // pred_fallthru
          _
      $region16: #{get_cost_volume.7} parent=5 // pred_fallthru
        _
      %p213 = scmp.le.s32.totalorder 1, %s12
      %p214 = scmp.lt.s32.totalorder %s12, 3
      %p215 = pnand %p213, %p214
      %p216 = pneg %p215
      // Predicated region
      $region29: #{get_cost_volume.7} parent=5 // pred_check
        _
      $region30: #{get_cost_volume.7} parent=5 // pred_check_branch
        %218 = sbr.rel (%p215) target = $region32
      $region31: #{get_cost_volume.7} parent=5 // pred_region
        %s219 = ssub.s32 %s12, 1
        %s220 = smul.u32 16, %s23
        %p221 = scmp.lt.s32.totalorder %s22, 1
        %s222 = scalar_select %p221, %s22, 1
        %p223 = scmp.lt.s32.totalorder %s220, 15
        %s224 = scalar_select %p223, %s220, 15
        %s225 = smul.addr %s224, 16
        %s226 = smul.addr %s222, 256
        %s227 = sadd.s32 %s225, %s226
        %s228 = smul.addr %s227, 8
        %s229 = scalar_lea.vmem %s0, %s228
        %p230 = pneg %p59
        %p231 = pneg %p56
        %s232 = smul.u32 16, %s23
        %p233 = scmp.lt.s32.totalorder %s22, 1
        %s234 = scalar_select %p233, %s22, 1
        %p235 = scmp.lt.s32.totalorder %s232, 15
        %s236 = scalar_select %p235, %s232, 15
        %s237 = smul.addr %s236, 16
        %s238 = smul.addr %s234, 256
        %s239 = sadd.s32 %s237, %s238
        %s240 = smul.addr %s239, 8
        %s241 = scalar_lea.vmem %s1, %s240
        %p242 = pneg %p87
        %p243 = pneg %p84
        %s244 = smul.u32 8, %s24
        %s245 = smul.u32 2, %s23
        %p246 = scmp.lt.s32.totalorder %s22, 1
        %s247 = scalar_select %p246, %s22, 1
        %p248 = scmp.lt.s32.totalorder %s244, 7
        %s249 = scalar_select %p248, %s244, 7
        %p250 = scmp.lt.s32.totalorder %s245, 1
        %s251 = scalar_select %p250, %s245, 1
        %s252 = smul.addr %s249, 2
        %s253 = sadd.s32 %s251, %s252
        %s254 = smul.addr %s247, 16
        %s255 = sadd.s32 %s253, %s254
        %s256 = smul.addr %s255, 8
        %s257 = scalar_lea.vmem %s2, %s256
        %p258 = pneg %p117
        %p259 = pneg %p114
        %p260 = pneg %p147
        %p261 = pneg %p144
        %s262 = sand.u32 %s134, 1
        %s263 = scalar_lea.sflag [#allocation4], %s262
        %s264 = sand.u32 %s134, 1
        %s265 = smul.addr %s264, 128
        %s266 = scalar_lea.vmem [#allocation3], %s265
        %s267 = smul.u32 16, %s23
        %p268 = scmp.lt.s32.totalorder %s22, 1
        %s269 = scalar_select %p268, %s22, 1
        %p270 = scmp.lt.s32.totalorder %s267, 15
        %s271 = scalar_select %p270, %s267, 15
        %s272 = smul.addr %s271, 16
        %s273 = smul.addr %s269, 256
        %s274 = sadd.s32 %s272, %s273
        %s275 = smul.addr %s274, 8
        %s276 = scalar_lea.vmem %s0, %s275
        %s277 = smul.u32 16, %s23
        %s278 = smul.u32 16, %s23
        %p279 = scmp.lt.s32.totalorder %s22, 1
        %s280 = scalar_select %p279, %s22, 1
        %p281 = scmp.lt.s32.totalorder %s278, 15
        %s282 = scalar_select %p281, %s278, 15
        %s283 = smul.addr %s282, 16
        %s284 = smul.addr %s280, 256
        %s285 = sadd.s32 %s283, %s284
        %s286 = smul.addr %s285, 8
        %s287 = scalar_lea.vmem %s1, %s286
        %s288 = smul.u32 16, %s23
        %s289 = smul.u32 8, %s24
        %s290 = smul.u32 2, %s23
        %p291 = scmp.lt.s32.totalorder %s22, 1
        %s292 = scalar_select %p291, %s22, 1
        %p293 = scmp.lt.s32.totalorder %s289, 7
        %s294 = scalar_select %p293, %s289, 7
        %p295 = scmp.lt.s32.totalorder %s290, 1
        %s296 = scalar_select %p295, %s290, 1
        %s297 = smul.addr %s294, 2
        %s298 = sadd.s32 %s296, %s297
        %s299 = smul.addr %s292, 16
        %s300 = sadd.s32 %s298, %s299
        %s301 = smul.addr %s300, 8
        %s302 = scalar_lea.vmem %s2, %s301
        %s303 = smul.u32 8, %s24
        %s304 = smul.u32 2, %s23
        %s305 = smul.u32 8, %s24
        %s306 = smul.u32 2, %s23
        %p307 = scmp.eq.s32.totalorder %s24, 0
        // Predicated region
        $region33: #{get_cost_volume.7} parent=31 // pred_check
          %p308 = pneg %p307
        $region34: #{get_cost_volume.7} parent=31 // pred_check_branch
          %310 = sbr.rel (%p308) target = $region36
        $region35: #{get_cost_volume.7} parent=31 // pred_region
          %v311 = vld [vmem:[%s276] sm:$0xff]
          %v312 = vld [vmem:[%s276 + $0x8] sm:$0xff]
          %v313 = vld [vmem:[%s276 + $0x10] sm:$0xff]
          %v314 = vld [vmem:[%s276 + $0x18] sm:$0xff]
          %v315 = vld [vmem:[%s276 + $0x20] sm:$0xff]
          %v316 = vld [vmem:[%s276 + $0x28] sm:$0xff]
          %v317 = vld [vmem:[%s276 + $0x30] sm:$0xff]
          %v318 = vld [vmem:[%s276 + $0x38] sm:$0xff]
          %v319 = vld [vmem:[%s276 + $0x40] sm:$0xff]
          %v320 = vld [vmem:[%s276 + $0x48] sm:$0xff]
          %v321 = vld [vmem:[%s276 + $0x50] sm:$0xff]
          %v322 = vld [vmem:[%s276 + $0x58] sm:$0xff]
          %v323 = vld [vmem:[%s276 + $0x60] sm:$0xff]
          %v324 = vld [vmem:[%s276 + $0x68] sm:$0xff]
          %v325 = vld [vmem:[%s276 + $0x70] sm:$0xff]
          %v326 = vld [vmem:[%s276 + $0x78] sm:$0xff]
          %v327 = vld [vmem:[%s276 + $0x80] sm:$0xff]
          %v328 = vld [vmem:[%s276 + $0x88] sm:$0xff]
          %v329 = vld [vmem:[%s276 + $0x90] sm:$0xff]
          %v330 = vld [vmem:[%s276 + $0x98] sm:$0xff]
          %v331 = vld [vmem:[%s276 + $0xa0] sm:$0xff]
          %v332 = vld [vmem:[%s276 + $0xa8] sm:$0xff]
          %v333 = vld [vmem:[%s276 + $0xb0] sm:$0xff]
          %v334 = vld [vmem:[%s276 + $0xb8] sm:$0xff]
          %v335 = vld [vmem:[%s276 + $0xc0] sm:$0xff]
          %v336 = vld [vmem:[%s276 + $0xc8] sm:$0xff]
          %v337 = vld [vmem:[%s276 + $0xd0] sm:$0xff]
          %v338 = vld [vmem:[%s276 + $0xd8] sm:$0xff]
          %v339 = vld [vmem:[%s276 + $0xe0] sm:$0xff]
          %v340 = vld [vmem:[%s276 + $0xe8] sm:$0xff]
          %v341 = vld [vmem:[%s276 + $0xf0] sm:$0xff]
          %v342 = vld [vmem:[%s276 + $0xf8] sm:$0xff]
          %v343 = vld [vmem:[%s276 + $0x100] sm:$0xff]
          %v344 = vld [vmem:[%s276 + $0x108] sm:$0xff]
          %v345 = vld [vmem:[%s276 + $0x110] sm:$0xff]
          %v346 = vld [vmem:[%s276 + $0x118] sm:$0xff]
          %v347 = vld [vmem:[%s276 + $0x120] sm:$0xff]
          %v348 = vld [vmem:[%s276 + $0x128] sm:$0xff]
          %v349 = vld [vmem:[%s276 + $0x130] sm:$0xff]
          %v350 = vld [vmem:[%s276 + $0x138] sm:$0xff]
          %v351 = vld [vmem:[%s276 + $0x140] sm:$0xff]
          %v352 = vld [vmem:[%s276 + $0x148] sm:$0xff]
          %v353 = vld [vmem:[%s276 + $0x150] sm:$0xff]
          %v354 = vld [vmem:[%s276 + $0x158] sm:$0xff]
          %v355 = vld [vmem:[%s276 + $0x160] sm:$0xff]
          %v356 = vld [vmem:[%s276 + $0x168] sm:$0xff]
          %v357 = vld [vmem:[%s276 + $0x170] sm:$0xff]
          %v358 = vld [vmem:[%s276 + $0x178] sm:$0xff]
          %v359 = vld [vmem:[%s276 + $0x180] sm:$0xff]
          %v360 = vld [vmem:[%s276 + $0x188] sm:$0xff]
          %v361 = vld [vmem:[%s276 + $0x190] sm:$0xff]
          %v362 = vld [vmem:[%s276 + $0x198] sm:$0xff]
          %v363 = vld [vmem:[%s276 + $0x1a0] sm:$0xff]
          %v364 = vld [vmem:[%s276 + $0x1a8] sm:$0xff]
          %v365 = vld [vmem:[%s276 + $0x1b0] sm:$0xff]
          %v366 = vld [vmem:[%s276 + $0x1b8] sm:$0xff]
          %v367 = vld [vmem:[%s276 + $0x1c0] sm:$0xff]
          %v368 = vld [vmem:[%s276 + $0x1c8] sm:$0xff]
          %v369 = vld [vmem:[%s276 + $0x1d0] sm:$0xff]
          %v370 = vld [vmem:[%s276 + $0x1d8] sm:$0xff]
          %v371 = vld [vmem:[%s276 + $0x1e0] sm:$0xff]
          %v372 = vld [vmem:[%s276 + $0x1e8] sm:$0xff]
          %v373 = vld [vmem:[%s276 + $0x1f0] sm:$0xff]
          %v374 = vld [vmem:[%s276 + $0x1f8] sm:$0xff]
          %v375 = vld [vmem:[%s276 + $0x200] sm:$0xff]
          %v376 = vld [vmem:[%s276 + $0x208] sm:$0xff]
          %v377 = vld [vmem:[%s276 + $0x210] sm:$0xff]
          %v378 = vld [vmem:[%s276 + $0x218] sm:$0xff]
          %v379 = vld [vmem:[%s276 + $0x220] sm:$0xff]
          %v380 = vld [vmem:[%s276 + $0x228] sm:$0xff]
          %v381 = vld [vmem:[%s276 + $0x230] sm:$0xff]
          %v382 = vld [vmem:[%s276 + $0x238] sm:$0xff]
          %v383 = vld [vmem:[%s276 + $0x240] sm:$0xff]
          %v384 = vld [vmem:[%s276 + $0x248] sm:$0xff]
          %v385 = vld [vmem:[%s276 + $0x250] sm:$0xff]
          %v386 = vld [vmem:[%s276 + $0x258] sm:$0xff]
          %v387 = vld [vmem:[%s276 + $0x260] sm:$0xff]
          %v388 = vld [vmem:[%s276 + $0x268] sm:$0xff]
          %v389 = vld [vmem:[%s276 + $0x270] sm:$0xff]
          %v390 = vld [vmem:[%s276 + $0x278] sm:$0xff]
          %v391 = vld [vmem:[%s276 + $0x280] sm:$0xff]
          %v392 = vld [vmem:[%s276 + $0x288] sm:$0xff]
          %v393 = vld [vmem:[%s276 + $0x290] sm:$0xff]
          %v394 = vld [vmem:[%s276 + $0x298] sm:$0xff]
          %v395 = vld [vmem:[%s276 + $0x2a0] sm:$0xff]
          %v396 = vld [vmem:[%s276 + $0x2a8] sm:$0xff]
          %v397 = vld [vmem:[%s276 + $0x2b0] sm:$0xff]
          %v398 = vld [vmem:[%s276 + $0x2b8] sm:$0xff]
          %v399 = vld [vmem:[%s276 + $0x2c0] sm:$0xff]
          %v400 = vld [vmem:[%s276 + $0x2c8] sm:$0xff]
          %v401 = vld [vmem:[%s276 + $0x2d0] sm:$0xff]
          %v402 = vld [vmem:[%s276 + $0x2d8] sm:$0xff]
          %v403 = vld [vmem:[%s276 + $0x2e0] sm:$0xff]
          %v404 = vld [vmem:[%s276 + $0x2e8] sm:$0xff]
          %v405 = vld [vmem:[%s276 + $0x2f0] sm:$0xff]
          %v406 = vld [vmem:[%s276 + $0x2f8] sm:$0xff]
          %v407 = vld [vmem:[%s276 + $0x300] sm:$0xff]
          %v408 = vld [vmem:[%s276 + $0x308] sm:$0xff]
          %v409 = vld [vmem:[%s276 + $0x310] sm:$0xff]
          %v410 = vld [vmem:[%s276 + $0x318] sm:$0xff]
          %v411 = vld [vmem:[%s276 + $0x320] sm:$0xff]
          %v412 = vld [vmem:[%s276 + $0x328] sm:$0xff]
          %v413 = vld [vmem:[%s276 + $0x330] sm:$0xff]
          %v414 = vld [vmem:[%s276 + $0x338] sm:$0xff]
          %v415 = vld [vmem:[%s276 + $0x340] sm:$0xff]
          %v416 = vld [vmem:[%s276 + $0x348] sm:$0xff]
          %v417 = vld [vmem:[%s276 + $0x350] sm:$0xff]
          %v418 = vld [vmem:[%s276 + $0x358] sm:$0xff]
          %v419 = vld [vmem:[%s276 + $0x360] sm:$0xff]
          %v420 = vld [vmem:[%s276 + $0x368] sm:$0xff]
          %v421 = vld [vmem:[%s276 + $0x370] sm:$0xff]
          %v422 = vld [vmem:[%s276 + $0x378] sm:$0xff]
          %v423 = vld [vmem:[%s276 + $0x380] sm:$0xff]
          %v424 = vld [vmem:[%s276 + $0x388] sm:$0xff]
          %v425 = vld [vmem:[%s276 + $0x390] sm:$0xff]
          %v426 = vld [vmem:[%s276 + $0x398] sm:$0xff]
          %v427 = vld [vmem:[%s276 + $0x3a0] sm:$0xff]
          %v428 = vld [vmem:[%s276 + $0x3a8] sm:$0xff]
          %v429 = vld [vmem:[%s276 + $0x3b0] sm:$0xff]
          %v430 = vld [vmem:[%s276 + $0x3b8] sm:$0xff]
          %v431 = vld [vmem:[%s276 + $0x3c0] sm:$0xff]
          %v432 = vld [vmem:[%s276 + $0x3c8] sm:$0xff]
          %v433 = vld [vmem:[%s276 + $0x3d0] sm:$0xff]
          %v434 = vld [vmem:[%s276 + $0x3d8] sm:$0xff]
          %v435 = vld [vmem:[%s276 + $0x3e0] sm:$0xff]
          %v436 = vld [vmem:[%s276 + $0x3e8] sm:$0xff]
          %v437 = vld [vmem:[%s276 + $0x3f0] sm:$0xff]
          %v438 = vld [vmem:[%s276 + $0x3f8] sm:$0xff]
          %v439 = vld [vmem:[%s276 + $0x400] sm:$0xff]
          %v440 = vld [vmem:[%s276 + $0x408] sm:$0xff]
          %v441 = vld [vmem:[%s276 + $0x410] sm:$0xff]
          %v442 = vld [vmem:[%s276 + $0x418] sm:$0xff]
          %v443 = vld [vmem:[%s276 + $0x420] sm:$0xff]
          %v444 = vld [vmem:[%s276 + $0x428] sm:$0xff]
          %v445 = vld [vmem:[%s276 + $0x430] sm:$0xff]
          %v446 = vld [vmem:[%s276 + $0x438] sm:$0xff]
          %v447 = vld [vmem:[%s276 + $0x440] sm:$0xff]
          %v448 = vld [vmem:[%s276 + $0x448] sm:$0xff]
          %v449 = vld [vmem:[%s276 + $0x450] sm:$0xff]
          %v450 = vld [vmem:[%s276 + $0x458] sm:$0xff]
          %v451 = vld [vmem:[%s276 + $0x460] sm:$0xff]
          %v452 = vld [vmem:[%s276 + $0x468] sm:$0xff]
          %v453 = vld [vmem:[%s276 + $0x470] sm:$0xff]
          %v454 = vld [vmem:[%s276 + $0x478] sm:$0xff]
          %v455 = vld [vmem:[%s276 + $0x480] sm:$0xff]
          %v456 = vld [vmem:[%s276 + $0x488] sm:$0xff]
          %v457 = vld [vmem:[%s276 + $0x490] sm:$0xff]
          %v458 = vld [vmem:[%s276 + $0x498] sm:$0xff]
          %v459 = vld [vmem:[%s276 + $0x4a0] sm:$0xff]
          %v460 = vld [vmem:[%s276 + $0x4a8] sm:$0xff]
          %v461 = vld [vmem:[%s276 + $0x4b0] sm:$0xff]
          %v462 = vld [vmem:[%s276 + $0x4b8] sm:$0xff]
          %v463 = vld [vmem:[%s276 + $0x4c0] sm:$0xff]
          %v464 = vld [vmem:[%s276 + $0x4c8] sm:$0xff]
          %v465 = vld [vmem:[%s276 + $0x4d0] sm:$0xff]
          %v466 = vld [vmem:[%s276 + $0x4d8] sm:$0xff]
          %v467 = vld [vmem:[%s276 + $0x4e0] sm:$0xff]
          %v468 = vld [vmem:[%s276 + $0x4e8] sm:$0xff]
          %v469 = vld [vmem:[%s276 + $0x4f0] sm:$0xff]
          %v470 = vld [vmem:[%s276 + $0x4f8] sm:$0xff]
          %v471 = vld [vmem:[%s276 + $0x500] sm:$0xff]
          %v472 = vld [vmem:[%s276 + $0x508] sm:$0xff]
          %v473 = vld [vmem:[%s276 + $0x510] sm:$0xff]
          %v474 = vld [vmem:[%s276 + $0x518] sm:$0xff]
          %v475 = vld [vmem:[%s276 + $0x520] sm:$0xff]
          %v476 = vld [vmem:[%s276 + $0x528] sm:$0xff]
          %v477 = vld [vmem:[%s276 + $0x530] sm:$0xff]
          %v478 = vld [vmem:[%s276 + $0x538] sm:$0xff]
          %v479 = vld [vmem:[%s276 + $0x540] sm:$0xff]
          %v480 = vld [vmem:[%s276 + $0x548] sm:$0xff]
          %v481 = vld [vmem:[%s276 + $0x550] sm:$0xff]
          %v482 = vld [vmem:[%s276 + $0x558] sm:$0xff]
          %v483 = vld [vmem:[%s276 + $0x560] sm:$0xff]
          %v484 = vld [vmem:[%s276 + $0x568] sm:$0xff]
          %v485 = vld [vmem:[%s276 + $0x570] sm:$0xff]
          %v486 = vld [vmem:[%s276 + $0x578] sm:$0xff]
          %v487 = vld [vmem:[%s276 + $0x580] sm:$0xff]
          %v488 = vld [vmem:[%s276 + $0x588] sm:$0xff]
          %v489 = vld [vmem:[%s276 + $0x590] sm:$0xff]
          %v490 = vld [vmem:[%s276 + $0x598] sm:$0xff]
          %v491 = vld [vmem:[%s276 + $0x5a0] sm:$0xff]
          %v492 = vld [vmem:[%s276 + $0x5a8] sm:$0xff]
          %v493 = vld [vmem:[%s276 + $0x5b0] sm:$0xff]
          %v494 = vld [vmem:[%s276 + $0x5b8] sm:$0xff]
          %v495 = vld [vmem:[%s276 + $0x5c0] sm:$0xff]
          %v496 = vld [vmem:[%s276 + $0x5c8] sm:$0xff]
          %v497 = vld [vmem:[%s276 + $0x5d0] sm:$0xff]
          %v498 = vld [vmem:[%s276 + $0x5d8] sm:$0xff]
          %v499 = vld [vmem:[%s276 + $0x5e0] sm:$0xff]
          %v500 = vld [vmem:[%s276 + $0x5e8] sm:$0xff]
          %v501 = vld [vmem:[%s276 + $0x5f0] sm:$0xff]
          %v502 = vld [vmem:[%s276 + $0x5f8] sm:$0xff]
          %v503 = vld [vmem:[%s276 + $0x600] sm:$0xff]
          %v504 = vld [vmem:[%s276 + $0x608] sm:$0xff]
          %v505 = vld [vmem:[%s276 + $0x610] sm:$0xff]
          %v506 = vld [vmem:[%s276 + $0x618] sm:$0xff]
          %v507 = vld [vmem:[%s276 + $0x620] sm:$0xff]
          %v508 = vld [vmem:[%s276 + $0x628] sm:$0xff]
          %v509 = vld [vmem:[%s276 + $0x630] sm:$0xff]
          %v510 = vld [vmem:[%s276 + $0x638] sm:$0xff]
          %v511 = vld [vmem:[%s276 + $0x640] sm:$0xff]
          %v512 = vld [vmem:[%s276 + $0x648] sm:$0xff]
          %v513 = vld [vmem:[%s276 + $0x650] sm:$0xff]
          %v514 = vld [vmem:[%s276 + $0x658] sm:$0xff]
          %v515 = vld [vmem:[%s276 + $0x660] sm:$0xff]
          %v516 = vld [vmem:[%s276 + $0x668] sm:$0xff]
          %v517 = vld [vmem:[%s276 + $0x670] sm:$0xff]
          %v518 = vld [vmem:[%s276 + $0x678] sm:$0xff]
          %v519 = vld [vmem:[%s276 + $0x680] sm:$0xff]
          %v520 = vld [vmem:[%s276 + $0x688] sm:$0xff]
          %v521 = vld [vmem:[%s276 + $0x690] sm:$0xff]
          %v522 = vld [vmem:[%s276 + $0x698] sm:$0xff]
          %v523 = vld [vmem:[%s276 + $0x6a0] sm:$0xff]
          %v524 = vld [vmem:[%s276 + $0x6a8] sm:$0xff]
          %v525 = vld [vmem:[%s276 + $0x6b0] sm:$0xff]
          %v526 = vld [vmem:[%s276 + $0x6b8] sm:$0xff]
          %v527 = vld [vmem:[%s276 + $0x6c0] sm:$0xff]
          %v528 = vld [vmem:[%s276 + $0x6c8] sm:$0xff]
          %v529 = vld [vmem:[%s276 + $0x6d0] sm:$0xff]
          %v530 = vld [vmem:[%s276 + $0x6d8] sm:$0xff]
          %v531 = vld [vmem:[%s276 + $0x6e0] sm:$0xff]
          %v532 = vld [vmem:[%s276 + $0x6e8] sm:$0xff]
          %v533 = vld [vmem:[%s276 + $0x6f0] sm:$0xff]
          %v534 = vld [vmem:[%s276 + $0x6f8] sm:$0xff]
          %v535 = vld [vmem:[%s276 + $0x700] sm:$0xff]
          %v536 = vld [vmem:[%s276 + $0x708] sm:$0xff]
          %v537 = vld [vmem:[%s276 + $0x710] sm:$0xff]
          %v538 = vld [vmem:[%s276 + $0x718] sm:$0xff]
          %v539 = vld [vmem:[%s276 + $0x720] sm:$0xff]
          %v540 = vld [vmem:[%s276 + $0x728] sm:$0xff]
          %v541 = vld [vmem:[%s276 + $0x730] sm:$0xff]
          %v542 = vld [vmem:[%s276 + $0x738] sm:$0xff]
          %v543 = vld [vmem:[%s276 + $0x740] sm:$0xff]
          %v544 = vld [vmem:[%s276 + $0x748] sm:$0xff]
          %v545 = vld [vmem:[%s276 + $0x750] sm:$0xff]
          %v546 = vld [vmem:[%s276 + $0x758] sm:$0xff]
          %v547 = vld [vmem:[%s276 + $0x760] sm:$0xff]
          %v548 = vld [vmem:[%s276 + $0x768] sm:$0xff]
          %v549 = vld [vmem:[%s276 + $0x770] sm:$0xff]
          %v550 = vld [vmem:[%s276 + $0x778] sm:$0xff]
          %v551 = vld [vmem:[%s276 + $0x780] sm:$0xff]
          %v552 = vld [vmem:[%s276 + $0x788] sm:$0xff]
          %v553 = vld [vmem:[%s276 + $0x790] sm:$0xff]
          %v554 = vld [vmem:[%s276 + $0x798] sm:$0xff]
          %v555 = vld [vmem:[%s276 + $0x7a0] sm:$0xff]
          %v556 = vld [vmem:[%s276 + $0x7a8] sm:$0xff]
          %v557 = vld [vmem:[%s276 + $0x7b0] sm:$0xff]
          %v558 = vld [vmem:[%s276 + $0x7b8] sm:$0xff]
          %v559 = vld [vmem:[%s276 + $0x7c0] sm:$0xff]
          %v560 = vld [vmem:[%s276 + $0x7c8] sm:$0xff]
          %v561 = vld [vmem:[%s276 + $0x7d0] sm:$0xff]
          %v562 = vld [vmem:[%s276 + $0x7d8] sm:$0xff]
          %v563 = vld [vmem:[%s276 + $0x7e0] sm:$0xff]
          %v564 = vld [vmem:[%s276 + $0x7e8] sm:$0xff]
          %v565 = vld [vmem:[%s276 + $0x7f0] sm:$0xff]
          %v566 = vld [vmem:[%s276 + $0x7f8] sm:$0xff]
          %v567 = vld [vmem:[%s287] sm:$0xff]
          %v568 = vld [vmem:[%s287 + $0x8] sm:$0xff]
          %v569 = vld [vmem:[%s287 + $0x10] sm:$0xff]
          %v570 = vld [vmem:[%s287 + $0x18] sm:$0xff]
          %v571 = vld [vmem:[%s287 + $0x20] sm:$0xff]
          %v572 = vld [vmem:[%s287 + $0x28] sm:$0xff]
          %v573 = vld [vmem:[%s287 + $0x30] sm:$0xff]
          %v574 = vld [vmem:[%s287 + $0x38] sm:$0xff]
          %v575 = vld [vmem:[%s287 + $0x40] sm:$0xff]
          %v576 = vld [vmem:[%s287 + $0x48] sm:$0xff]
          %v577 = vld [vmem:[%s287 + $0x50] sm:$0xff]
          %v578 = vld [vmem:[%s287 + $0x58] sm:$0xff]
          %v579 = vld [vmem:[%s287 + $0x60] sm:$0xff]
          %v580 = vld [vmem:[%s287 + $0x68] sm:$0xff]
          %v581 = vld [vmem:[%s287 + $0x70] sm:$0xff]
          %v582 = vld [vmem:[%s287 + $0x78] sm:$0xff]
          %v583 = vld [vmem:[%s287 + $0x80] sm:$0xff]
          %v584 = vld [vmem:[%s287 + $0x88] sm:$0xff]
          %v585 = vld [vmem:[%s287 + $0x90] sm:$0xff]
          %v586 = vld [vmem:[%s287 + $0x98] sm:$0xff]
          %v587 = vld [vmem:[%s287 + $0xa0] sm:$0xff]
          %v588 = vld [vmem:[%s287 + $0xa8] sm:$0xff]
          %v589 = vld [vmem:[%s287 + $0xb0] sm:$0xff]
          %v590 = vld [vmem:[%s287 + $0xb8] sm:$0xff]
          %v591 = vld [vmem:[%s287 + $0xc0] sm:$0xff]
          %v592 = vld [vmem:[%s287 + $0xc8] sm:$0xff]
          %v593 = vld [vmem:[%s287 + $0xd0] sm:$0xff]
          %v594 = vld [vmem:[%s287 + $0xd8] sm:$0xff]
          %v595 = vld [vmem:[%s287 + $0xe0] sm:$0xff]
          %v596 = vld [vmem:[%s287 + $0xe8] sm:$0xff]
          %v597 = vld [vmem:[%s287 + $0xf0] sm:$0xff]
          %v598 = vld [vmem:[%s287 + $0xf8] sm:$0xff]
          %v599 = vld [vmem:[%s287 + $0x100] sm:$0xff]
          %v600 = vld [vmem:[%s287 + $0x108] sm:$0xff]
          %v601 = vld [vmem:[%s287 + $0x110] sm:$0xff]
          %v602 = vld [vmem:[%s287 + $0x118] sm:$0xff]
          %v603 = vld [vmem:[%s287 + $0x120] sm:$0xff]
          %v604 = vld [vmem:[%s287 + $0x128] sm:$0xff]
          %v605 = vld [vmem:[%s287 + $0x130] sm:$0xff]
          %v606 = vld [vmem:[%s287 + $0x138] sm:$0xff]
          %v607 = vld [vmem:[%s287 + $0x140] sm:$0xff]
          %v608 = vld [vmem:[%s287 + $0x148] sm:$0xff]
          %v609 = vld [vmem:[%s287 + $0x150] sm:$0xff]
          %v610 = vld [vmem:[%s287 + $0x158] sm:$0xff]
          %v611 = vld [vmem:[%s287 + $0x160] sm:$0xff]
          %v612 = vld [vmem:[%s287 + $0x168] sm:$0xff]
          %v613 = vld [vmem:[%s287 + $0x170] sm:$0xff]
          %v614 = vld [vmem:[%s287 + $0x178] sm:$0xff]
          %v615 = vld [vmem:[%s287 + $0x180] sm:$0xff]
          %v616 = vld [vmem:[%s287 + $0x188] sm:$0xff]
          %v617 = vld [vmem:[%s287 + $0x190] sm:$0xff]
          %v618 = vld [vmem:[%s287 + $0x198] sm:$0xff]
          %v619 = vld [vmem:[%s287 + $0x1a0] sm:$0xff]
          %v620 = vld [vmem:[%s287 + $0x1a8] sm:$0xff]
          %v621 = vld [vmem:[%s287 + $0x1b0] sm:$0xff]
          %v622 = vld [vmem:[%s287 + $0x1b8] sm:$0xff]
          %v623 = vld [vmem:[%s287 + $0x1c0] sm:$0xff]
          %v624 = vld [vmem:[%s287 + $0x1c8] sm:$0xff]
          %v625 = vld [vmem:[%s287 + $0x1d0] sm:$0xff]
          %v626 = vld [vmem:[%s287 + $0x1d8] sm:$0xff]
          %v627 = vld [vmem:[%s287 + $0x1e0] sm:$0xff]
          %v628 = vld [vmem:[%s287 + $0x1e8] sm:$0xff]
          %v629 = vld [vmem:[%s287 + $0x1f0] sm:$0xff]
          %v630 = vld [vmem:[%s287 + $0x1f8] sm:$0xff]
          %v631 = vld [vmem:[%s287 + $0x200] sm:$0xff]
          %v632 = vld [vmem:[%s287 + $0x208] sm:$0xff]
          %v633 = vld [vmem:[%s287 + $0x210] sm:$0xff]
          %v634 = vld [vmem:[%s287 + $0x218] sm:$0xff]
          %v635 = vld [vmem:[%s287 + $0x220] sm:$0xff]
          %v636 = vld [vmem:[%s287 + $0x228] sm:$0xff]
          %v637 = vld [vmem:[%s287 + $0x230] sm:$0xff]
          %v638 = vld [vmem:[%s287 + $0x238] sm:$0xff]
          %v639 = vld [vmem:[%s287 + $0x240] sm:$0xff]
          %v640 = vld [vmem:[%s287 + $0x248] sm:$0xff]
          %v641 = vld [vmem:[%s287 + $0x250] sm:$0xff]
          %v642 = vld [vmem:[%s287 + $0x258] sm:$0xff]
          %v643 = vld [vmem:[%s287 + $0x260] sm:$0xff]
          %v644 = vld [vmem:[%s287 + $0x268] sm:$0xff]
          %v645 = vld [vmem:[%s287 + $0x270] sm:$0xff]
          %v646 = vld [vmem:[%s287 + $0x278] sm:$0xff]
          %v647 = vld [vmem:[%s287 + $0x280] sm:$0xff]
          %v648 = vld [vmem:[%s287 + $0x288] sm:$0xff]
          %v649 = vld [vmem:[%s287 + $0x290] sm:$0xff]
          %v650 = vld [vmem:[%s287 + $0x298] sm:$0xff]
          %v651 = vld [vmem:[%s287 + $0x2a0] sm:$0xff]
          %v652 = vld [vmem:[%s287 + $0x2a8] sm:$0xff]
          %v653 = vld [vmem:[%s287 + $0x2b0] sm:$0xff]
          %v654 = vld [vmem:[%s287 + $0x2b8] sm:$0xff]
          %v655 = vld [vmem:[%s287 + $0x2c0] sm:$0xff]
          %v656 = vld [vmem:[%s287 + $0x2c8] sm:$0xff]
          %v657 = vld [vmem:[%s287 + $0x2d0] sm:$0xff]
          %v658 = vld [vmem:[%s287 + $0x2d8] sm:$0xff]
          %v659 = vld [vmem:[%s287 + $0x2e0] sm:$0xff]
          %v660 = vld [vmem:[%s287 + $0x2e8] sm:$0xff]
          %v661 = vld [vmem:[%s287 + $0x2f0] sm:$0xff]
          %v662 = vld [vmem:[%s287 + $0x2f8] sm:$0xff]
          %v663 = vld [vmem:[%s287 + $0x300] sm:$0xff]
          %v664 = vld [vmem:[%s287 + $0x308] sm:$0xff]
          %v665 = vld [vmem:[%s287 + $0x310] sm:$0xff]
          %v666 = vld [vmem:[%s287 + $0x318] sm:$0xff]
          %v667 = vld [vmem:[%s287 + $0x320] sm:$0xff]
          %v668 = vld [vmem:[%s287 + $0x328] sm:$0xff]
          %v669 = vld [vmem:[%s287 + $0x330] sm:$0xff]
          %v670 = vld [vmem:[%s287 + $0x338] sm:$0xff]
          %v671 = vld [vmem:[%s287 + $0x340] sm:$0xff]
          %v672 = vld [vmem:[%s287 + $0x348] sm:$0xff]
          %v673 = vld [vmem:[%s287 + $0x350] sm:$0xff]
          %v674 = vld [vmem:[%s287 + $0x358] sm:$0xff]
          %v675 = vld [vmem:[%s287 + $0x360] sm:$0xff]
          %v676 = vld [vmem:[%s287 + $0x368] sm:$0xff]
          %v677 = vld [vmem:[%s287 + $0x370] sm:$0xff]
          %v678 = vld [vmem:[%s287 + $0x378] sm:$0xff]
          %v679 = vld [vmem:[%s287 + $0x380] sm:$0xff]
          %v680 = vld [vmem:[%s287 + $0x388] sm:$0xff]
          %v681 = vld [vmem:[%s287 + $0x390] sm:$0xff]
          %v682 = vld [vmem:[%s287 + $0x398] sm:$0xff]
          %v683 = vld [vmem:[%s287 + $0x3a0] sm:$0xff]
          %v684 = vld [vmem:[%s287 + $0x3a8] sm:$0xff]
          %v685 = vld [vmem:[%s287 + $0x3b0] sm:$0xff]
          %v686 = vld [vmem:[%s287 + $0x3b8] sm:$0xff]
          %v687 = vld [vmem:[%s287 + $0x3c0] sm:$0xff]
          %v688 = vld [vmem:[%s287 + $0x3c8] sm:$0xff]
          %v689 = vld [vmem:[%s287 + $0x3d0] sm:$0xff]
          %v690 = vld [vmem:[%s287 + $0x3d8] sm:$0xff]
          %v691 = vld [vmem:[%s287 + $0x3e0] sm:$0xff]
          %v692 = vld [vmem:[%s287 + $0x3e8] sm:$0xff]
          %v693 = vld [vmem:[%s287 + $0x3f0] sm:$0xff]
          %v694 = vld [vmem:[%s287 + $0x3f8] sm:$0xff]
          %v695 = vld [vmem:[%s287 + $0x400] sm:$0xff]
          %v696 = vld [vmem:[%s287 + $0x408] sm:$0xff]
          %v697 = vld [vmem:[%s287 + $0x410] sm:$0xff]
          %v698 = vld [vmem:[%s287 + $0x418] sm:$0xff]
          %v699 = vld [vmem:[%s287 + $0x420] sm:$0xff]
          %v700 = vld [vmem:[%s287 + $0x428] sm:$0xff]
          %v701 = vld [vmem:[%s287 + $0x430] sm:$0xff]
          %v702 = vld [vmem:[%s287 + $0x438] sm:$0xff]
          %v703 = vld [vmem:[%s287 + $0x440] sm:$0xff]
          %v704 = vld [vmem:[%s287 + $0x448] sm:$0xff]
          %v705 = vld [vmem:[%s287 + $0x450] sm:$0xff]
          %v706 = vld [vmem:[%s287 + $0x458] sm:$0xff]
          %v707 = vld [vmem:[%s287 + $0x460] sm:$0xff]
          %v708 = vld [vmem:[%s287 + $0x468] sm:$0xff]
          %v709 = vld [vmem:[%s287 + $0x470] sm:$0xff]
          %v710 = vld [vmem:[%s287 + $0x478] sm:$0xff]
          %v711 = vld [vmem:[%s287 + $0x480] sm:$0xff]
          %v712 = vld [vmem:[%s287 + $0x488] sm:$0xff]
          %v713 = vld [vmem:[%s287 + $0x490] sm:$0xff]
          %v714 = vld [vmem:[%s287 + $0x498] sm:$0xff]
          %v715 = vld [vmem:[%s287 + $0x4a0] sm:$0xff]
          %v716 = vld [vmem:[%s287 + $0x4a8] sm:$0xff]
          %v717 = vld [vmem:[%s287 + $0x4b0] sm:$0xff]
          %v718 = vld [vmem:[%s287 + $0x4b8] sm:$0xff]
          %v719 = vld [vmem:[%s287 + $0x4c0] sm:$0xff]
          %v720 = vld [vmem:[%s287 + $0x4c8] sm:$0xff]
          %v721 = vld [vmem:[%s287 + $0x4d0] sm:$0xff]
          %v722 = vld [vmem:[%s287 + $0x4d8] sm:$0xff]
          %v723 = vld [vmem:[%s287 + $0x4e0] sm:$0xff]
          %v724 = vld [vmem:[%s287 + $0x4e8] sm:$0xff]
          %v725 = vld [vmem:[%s287 + $0x4f0] sm:$0xff]
          %v726 = vld [vmem:[%s287 + $0x4f8] sm:$0xff]
          %v727 = vld [vmem:[%s287 + $0x500] sm:$0xff]
          %v728 = vld [vmem:[%s287 + $0x508] sm:$0xff]
          %v729 = vld [vmem:[%s287 + $0x510] sm:$0xff]
          %v730 = vld [vmem:[%s287 + $0x518] sm:$0xff]
          %v731 = vld [vmem:[%s287 + $0x520] sm:$0xff]
          %v732 = vld [vmem:[%s287 + $0x528] sm:$0xff]
          %v733 = vld [vmem:[%s287 + $0x530] sm:$0xff]
          %v734 = vld [vmem:[%s287 + $0x538] sm:$0xff]
          %v735 = vld [vmem:[%s287 + $0x540] sm:$0xff]
          %v736 = vld [vmem:[%s287 + $0x548] sm:$0xff]
          %v737 = vld [vmem:[%s287 + $0x550] sm:$0xff]
          %v738 = vld [vmem:[%s287 + $0x558] sm:$0xff]
          %v739 = vld [vmem:[%s287 + $0x560] sm:$0xff]
          %v740 = vld [vmem:[%s287 + $0x568] sm:$0xff]
          %v741 = vld [vmem:[%s287 + $0x570] sm:$0xff]
          %v742 = vld [vmem:[%s287 + $0x578] sm:$0xff]
          %v743 = vld [vmem:[%s287 + $0x580] sm:$0xff]
          %v744 = vld [vmem:[%s287 + $0x588] sm:$0xff]
          %v745 = vld [vmem:[%s287 + $0x590] sm:$0xff]
          %v746 = vld [vmem:[%s287 + $0x598] sm:$0xff]
          %v747 = vld [vmem:[%s287 + $0x5a0] sm:$0xff]
          %v748 = vld [vmem:[%s287 + $0x5a8] sm:$0xff]
          %v749 = vld [vmem:[%s287 + $0x5b0] sm:$0xff]
          %v750 = vld [vmem:[%s287 + $0x5b8] sm:$0xff]
          %v751 = vld [vmem:[%s287 + $0x5c0] sm:$0xff]
          %v752 = vld [vmem:[%s287 + $0x5c8] sm:$0xff]
          %v753 = vld [vmem:[%s287 + $0x5d0] sm:$0xff]
          %v754 = vld [vmem:[%s287 + $0x5d8] sm:$0xff]
          %v755 = vld [vmem:[%s287 + $0x5e0] sm:$0xff]
          %v756 = vld [vmem:[%s287 + $0x5e8] sm:$0xff]
          %v757 = vld [vmem:[%s287 + $0x5f0] sm:$0xff]
          %v758 = vld [vmem:[%s287 + $0x5f8] sm:$0xff]
          %v759 = vld [vmem:[%s287 + $0x600] sm:$0xff]
          %v760 = vld [vmem:[%s287 + $0x608] sm:$0xff]
          %v761 = vld [vmem:[%s287 + $0x610] sm:$0xff]
          %v762 = vld [vmem:[%s287 + $0x618] sm:$0xff]
          %v763 = vld [vmem:[%s287 + $0x620] sm:$0xff]
          %v764 = vld [vmem:[%s287 + $0x628] sm:$0xff]
          %v765 = vld [vmem:[%s287 + $0x630] sm:$0xff]
          %v766 = vld [vmem:[%s287 + $0x638] sm:$0xff]
          %v767 = vld [vmem:[%s287 + $0x640] sm:$0xff]
          %v768 = vld [vmem:[%s287 + $0x648] sm:$0xff]
          %v769 = vld [vmem:[%s287 + $0x650] sm:$0xff]
          %v770 = vld [vmem:[%s287 + $0x658] sm:$0xff]
          %v771 = vld [vmem:[%s287 + $0x660] sm:$0xff]
          %v772 = vld [vmem:[%s287 + $0x668] sm:$0xff]
          %v773 = vld [vmem:[%s287 + $0x670] sm:$0xff]
          %v774 = vld [vmem:[%s287 + $0x678] sm:$0xff]
          %v775 = vld [vmem:[%s287 + $0x680] sm:$0xff]
          %v776 = vld [vmem:[%s287 + $0x688] sm:$0xff]
          %v777 = vld [vmem:[%s287 + $0x690] sm:$0xff]
          %v778 = vld [vmem:[%s287 + $0x698] sm:$0xff]
          %v779 = vld [vmem:[%s287 + $0x6a0] sm:$0xff]
          %v780 = vld [vmem:[%s287 + $0x6a8] sm:$0xff]
          %v781 = vld [vmem:[%s287 + $0x6b0] sm:$0xff]
          %v782 = vld [vmem:[%s287 + $0x6b8] sm:$0xff]
          %v783 = vld [vmem:[%s287 + $0x6c0] sm:$0xff]
          %v784 = vld [vmem:[%s287 + $0x6c8] sm:$0xff]
          %v785 = vld [vmem:[%s287 + $0x6d0] sm:$0xff]
          %v786 = vld [vmem:[%s287 + $0x6d8] sm:$0xff]
          %v787 = vld [vmem:[%s287 + $0x6e0] sm:$0xff]
          %v788 = vld [vmem:[%s287 + $0x6e8] sm:$0xff]
          %v789 = vld [vmem:[%s287 + $0x6f0] sm:$0xff]
          %v790 = vld [vmem:[%s287 + $0x6f8] sm:$0xff]
          %v791 = vld [vmem:[%s287 + $0x700] sm:$0xff]
          %v792 = vld [vmem:[%s287 + $0x708] sm:$0xff]
          %v793 = vld [vmem:[%s287 + $0x710] sm:$0xff]
          %v794 = vld [vmem:[%s287 + $0x718] sm:$0xff]
          %v795 = vld [vmem:[%s287 + $0x720] sm:$0xff]
          %v796 = vld [vmem:[%s287 + $0x728] sm:$0xff]
          %v797 = vld [vmem:[%s287 + $0x730] sm:$0xff]
          %v798 = vld [vmem:[%s287 + $0x738] sm:$0xff]
          %v799 = vld [vmem:[%s287 + $0x740] sm:$0xff]
          %v800 = vld [vmem:[%s287 + $0x748] sm:$0xff]
          %v801 = vld [vmem:[%s287 + $0x750] sm:$0xff]
          %v802 = vld [vmem:[%s287 + $0x758] sm:$0xff]
          %v803 = vld [vmem:[%s287 + $0x760] sm:$0xff]
          %v804 = vld [vmem:[%s287 + $0x768] sm:$0xff]
          %v805 = vld [vmem:[%s287 + $0x770] sm:$0xff]
          %v806 = vld [vmem:[%s287 + $0x778] sm:$0xff]
          %v807 = vld [vmem:[%s287 + $0x780] sm:$0xff]
          %v808 = vld [vmem:[%s287 + $0x788] sm:$0xff]
          %v809 = vld [vmem:[%s287 + $0x790] sm:$0xff]
          %v810 = vld [vmem:[%s287 + $0x798] sm:$0xff]
          %v811 = vld [vmem:[%s287 + $0x7a0] sm:$0xff]
          %v812 = vld [vmem:[%s287 + $0x7a8] sm:$0xff]
          %v813 = vld [vmem:[%s287 + $0x7b0] sm:$0xff]
          %v814 = vld [vmem:[%s287 + $0x7b8] sm:$0xff]
          %v815 = vld [vmem:[%s287 + $0x7c0] sm:$0xff]
          %v816 = vld [vmem:[%s287 + $0x7c8] sm:$0xff]
          %v817 = vld [vmem:[%s287 + $0x7d0] sm:$0xff]
          %v818 = vld [vmem:[%s287 + $0x7d8] sm:$0xff]
          %v819 = vld [vmem:[%s287 + $0x7e0] sm:$0xff]
          %v820 = vld [vmem:[%s287 + $0x7e8] sm:$0xff]
          %v821 = vld [vmem:[%s287 + $0x7f0] sm:$0xff]
          %v822 = vld [vmem:[%s287 + $0x7f8] sm:$0xff]
          %vm823 = vcmask 31744
          %v825 = vsel %vm823, %v311, 0
          %v828 = vsel %vm823, %v312, 0
          %v831 = vsel %vm823, %v313, 0
          %v834 = vsel %vm823, %v314, 0
          %v837 = vsel %vm823, %v315, 0
          %v840 = vsel %vm823, %v316, 0
          %v843 = vsel %vm823, %v317, 0
          %v846 = vsel %vm823, %v318, 0
          %v849 = vsel %vm823, %v319, 0
          %v852 = vsel %vm823, %v320, 0
          %v855 = vsel %vm823, %v321, 0
          %v858 = vsel %vm823, %v322, 0
          %v861 = vsel %vm823, %v323, 0
          %v864 = vsel %vm823, %v324, 0
          %v867 = vsel %vm823, %v325, 0
          %v870 = vsel %vm823, %v326, 0
          %v873 = vsel %vm823, %v567, 0
          %v876 = vsel %vm823, %v568, 0
          %v879 = vsel %vm823, %v569, 0
          %v882 = vsel %vm823, %v570, 0
          %v885 = vsel %vm823, %v571, 0
          %v888 = vsel %vm823, %v572, 0
          %v891 = vsel %vm823, %v573, 0
          %v894 = vsel %vm823, %v574, 0
          %v897 = vsel %vm823, %v575, 0
          %v900 = vsel %vm823, %v576, 0
          %v903 = vsel %vm823, %v577, 0
          %v906 = vsel %vm823, %v578, 0
          %v909 = vsel %vm823, %v579, 0
          %v912 = vsel %vm823, %v580, 0
          %v915 = vsel %vm823, %v581, 0
          %v918 = vsel %vm823, %v582, 0
          %920 = vmatpush.xpose.msra.mxu0 %v918
          %921 = vmatpush.xpose.msra.mxu0 %v915
          %922 = vmatpush.xpose.msra.mxu0 %v912
          %923 = vmatpush.xpose.msra.mxu0 %v909
          %924 = vmatpush.xpose.msra.mxu0 %v906
          %925 = vmatpush.xpose.msra.mxu0 %v903
          %926 = vmatpush.xpose.msra.mxu0 %v900
          %927 = vmatpush.xpose.msra.mxu0 %v897
          %928 = vmatpush.xpose.msra.mxu0 %v894
          %929 = vmatpush.xpose.msra.mxu0 %v891
          %930 = vmatpush.xpose.msra.mxu0 %v888
          %931 = vmatpush.xpose.msra.mxu0 %v885
          %932 = vmatpush.xpose.msra.mxu0 %v882
          %933 = vmatpush.xpose.msra.mxu0 %v879
          %934 = vmatpush.xpose.msra.mxu0 %v876
          %935 = vmatpush.xpose.msra.mxu0 %v873
          %936 = vmatmul.f32.gmra.mxu0 %v825
          %v937 = vpop.f32.mrf.mxu0
          %v938 = vadd.f32 0.0, %v937
          %939 = vmatmul.f32.gmra.mxu0 %v828
          %v940 = vpop.f32.mrf.mxu0
          %v941 = vadd.f32 0.0, %v940
          %942 = vmatmul.f32.gmra.mxu0 %v831
          %v943 = vpop.f32.mrf.mxu0
          %v944 = vadd.f32 0.0, %v943
          %945 = vmatmul.f32.gmra.mxu0 %v834
          %v946 = vpop.f32.mrf.mxu0
          %v947 = vadd.f32 0.0, %v946
          %948 = vmatmul.f32.gmra.mxu0 %v837
          %v949 = vpop.f32.mrf.mxu0
          %v950 = vadd.f32 0.0, %v949
          %951 = vmatmul.f32.gmra.mxu0 %v840
          %v952 = vpop.f32.mrf.mxu0
          %v953 = vadd.f32 0.0, %v952
          %954 = vmatmul.f32.gmra.mxu0 %v843
          %v955 = vpop.f32.mrf.mxu0
          %v956 = vadd.f32 0.0, %v955
          %957 = vmatmul.f32.gmra.mxu0 %v846
          %v958 = vpop.f32.mrf.mxu0
          %v959 = vadd.f32 0.0, %v958
          %960 = vmatmul.f32.gmra.mxu0 %v849
          %v961 = vpop.f32.mrf.mxu0
          %v962 = vadd.f32 0.0, %v961
          %963 = vmatmul.f32.gmra.mxu0 %v852
          %v964 = vpop.f32.mrf.mxu0
          %v965 = vadd.f32 0.0, %v964
          %966 = vmatmul.f32.gmra.mxu0 %v855
          %v967 = vpop.f32.mrf.mxu0
          %v968 = vadd.f32 0.0, %v967
          %969 = vmatmul.f32.gmra.mxu0 %v858
          %v970 = vpop.f32.mrf.mxu0
          %v971 = vadd.f32 0.0, %v970
          %972 = vmatmul.f32.gmra.mxu0 %v861
          %v973 = vpop.f32.mrf.mxu0
          %v974 = vadd.f32 0.0, %v973
          %975 = vmatmul.f32.gmra.mxu0 %v864
          %v976 = vpop.f32.mrf.mxu0
          %v977 = vadd.f32 0.0, %v976
          %978 = vmatmul.f32.gmra.mxu0 %v867
          %v979 = vpop.f32.mrf.mxu0
          %v980 = vadd.f32 0.0, %v979
          %981 = vmatmul.f32.gmra.mxu0 %v870
          %v982 = vpop.f32.mrf.mxu0
          %v983 = vadd.f32 0.0, %v982
          %984 = vdwg.mxu0
          %v986 = vsel %vm823, %v327, 0
          %v989 = vsel %vm823, %v328, 0
          %v992 = vsel %vm823, %v329, 0
          %v995 = vsel %vm823, %v330, 0
          %v998 = vsel %vm823, %v331, 0
          %v1001 = vsel %vm823, %v332, 0
          %v1004 = vsel %vm823, %v333, 0
          %v1007 = vsel %vm823, %v334, 0
          %v1010 = vsel %vm823, %v335, 0
          %v1013 = vsel %vm823, %v336, 0
          %v1016 = vsel %vm823, %v337, 0
          %v1019 = vsel %vm823, %v338, 0
          %v1022 = vsel %vm823, %v339, 0
          %v1025 = vsel %vm823, %v340, 0
          %v1028 = vsel %vm823, %v341, 0
          %v1031 = vsel %vm823, %v342, 0
          %v1034 = vsel %vm823, %v583, 0
          %v1037 = vsel %vm823, %v584, 0
          %v1040 = vsel %vm823, %v585, 0
          %v1043 = vsel %vm823, %v586, 0
          %v1046 = vsel %vm823, %v587, 0
          %v1049 = vsel %vm823, %v588, 0
          %v1052 = vsel %vm823, %v589, 0
          %v1055 = vsel %vm823, %v590, 0
          %v1058 = vsel %vm823, %v591, 0
          %v1061 = vsel %vm823, %v592, 0
          %v1064 = vsel %vm823, %v593, 0
          %v1067 = vsel %vm823, %v594, 0
          %v1070 = vsel %vm823, %v595, 0
          %v1073 = vsel %vm823, %v596, 0
          %v1076 = vsel %vm823, %v597, 0
          %v1079 = vsel %vm823, %v598, 0
          %1081 = vmatpush.xpose.msra.mxu0 %v1079
          %1082 = vmatpush.xpose.msra.mxu0 %v1076
          %1083 = vmatpush.xpose.msra.mxu0 %v1073
          %1084 = vmatpush.xpose.msra.mxu0 %v1070
          %1085 = vmatpush.xpose.msra.mxu0 %v1067
          %1086 = vmatpush.xpose.msra.mxu0 %v1064
          %1087 = vmatpush.xpose.msra.mxu0 %v1061
          %1088 = vmatpush.xpose.msra.mxu0 %v1058
          %1089 = vmatpush.xpose.msra.mxu0 %v1055
          %1090 = vmatpush.xpose.msra.mxu0 %v1052
          %1091 = vmatpush.xpose.msra.mxu0 %v1049
          %1092 = vmatpush.xpose.msra.mxu0 %v1046
          %1093 = vmatpush.xpose.msra.mxu0 %v1043
          %1094 = vmatpush.xpose.msra.mxu0 %v1040
          %1095 = vmatpush.xpose.msra.mxu0 %v1037
          %1096 = vmatpush.xpose.msra.mxu0 %v1034
          %1097 = vmatmul.f32.gmra.mxu0 %v986
          %v1098 = vpop.f32.mrf.mxu0
          %v1099 = vadd.f32 0.0, %v1098
          %1100 = vmatmul.f32.gmra.mxu0 %v989
          %v1101 = vpop.f32.mrf.mxu0
          %v1102 = vadd.f32 0.0, %v1101
          %1103 = vmatmul.f32.gmra.mxu0 %v992
          %v1104 = vpop.f32.mrf.mxu0
          %v1105 = vadd.f32 0.0, %v1104
          %1106 = vmatmul.f32.gmra.mxu0 %v995
          %v1107 = vpop.f32.mrf.mxu0
          %v1108 = vadd.f32 0.0, %v1107
          %1109 = vmatmul.f32.gmra.mxu0 %v998
          %v1110 = vpop.f32.mrf.mxu0
          %v1111 = vadd.f32 0.0, %v1110
          %1112 = vmatmul.f32.gmra.mxu0 %v1001
          %v1113 = vpop.f32.mrf.mxu0
          %v1114 = vadd.f32 0.0, %v1113
          %1115 = vmatmul.f32.gmra.mxu0 %v1004
          %v1116 = vpop.f32.mrf.mxu0
          %v1117 = vadd.f32 0.0, %v1116
          %1118 = vmatmul.f32.gmra.mxu0 %v1007
          %v1119 = vpop.f32.mrf.mxu0
          %v1120 = vadd.f32 0.0, %v1119
          %1121 = vmatmul.f32.gmra.mxu0 %v1010
          %v1122 = vpop.f32.mrf.mxu0
          %v1123 = vadd.f32 0.0, %v1122
          %1124 = vmatmul.f32.gmra.mxu0 %v1013
          %v1125 = vpop.f32.mrf.mxu0
          %v1126 = vadd.f32 0.0, %v1125
          %1127 = vmatmul.f32.gmra.mxu0 %v1016
          %v1128 = vpop.f32.mrf.mxu0
          %v1129 = vadd.f32 0.0, %v1128
          %1130 = vmatmul.f32.gmra.mxu0 %v1019
          %v1131 = vpop.f32.mrf.mxu0
          %v1132 = vadd.f32 0.0, %v1131
          %1133 = vmatmul.f32.gmra.mxu0 %v1022
          %v1134 = vpop.f32.mrf.mxu0
          %v1135 = vadd.f32 0.0, %v1134
          %1136 = vmatmul.f32.gmra.mxu0 %v1025
          %v1137 = vpop.f32.mrf.mxu0
          %v1138 = vadd.f32 0.0, %v1137
          %1139 = vmatmul.f32.gmra.mxu0 %v1028
          %v1140 = vpop.f32.mrf.mxu0
          %v1141 = vadd.f32 0.0, %v1140
          %1142 = vmatmul.f32.gmra.mxu0 %v1031
          %v1143 = vpop.f32.mrf.mxu0
          %v1144 = vadd.f32 0.0, %v1143
          %1145 = vdwg.mxu0
          %v1147 = vsel %vm823, %v343, 0
          %v1150 = vsel %vm823, %v344, 0
          %v1153 = vsel %vm823, %v345, 0
          %v1156 = vsel %vm823, %v346, 0
          %v1159 = vsel %vm823, %v347, 0
          %v1162 = vsel %vm823, %v348, 0
          %v1165 = vsel %vm823, %v349, 0
          %v1168 = vsel %vm823, %v350, 0
          %v1171 = vsel %vm823, %v351, 0
          %v1174 = vsel %vm823, %v352, 0
          %v1177 = vsel %vm823, %v353, 0
          %v1180 = vsel %vm823, %v354, 0
          %v1183 = vsel %vm823, %v355, 0
          %v1186 = vsel %vm823, %v356, 0
          %v1189 = vsel %vm823, %v357, 0
          %v1192 = vsel %vm823, %v358, 0
          %v1195 = vsel %vm823, %v599, 0
          %v1198 = vsel %vm823, %v600, 0
          %v1201 = vsel %vm823, %v601, 0
          %v1204 = vsel %vm823, %v602, 0
          %v1207 = vsel %vm823, %v603, 0
          %v1210 = vsel %vm823, %v604, 0
          %v1213 = vsel %vm823, %v605, 0
          %v1216 = vsel %vm823, %v606, 0
          %v1219 = vsel %vm823, %v607, 0
          %v1222 = vsel %vm823, %v608, 0
          %v1225 = vsel %vm823, %v609, 0
          %v1228 = vsel %vm823, %v610, 0
          %v1231 = vsel %vm823, %v611, 0
          %v1234 = vsel %vm823, %v612, 0
          %v1237 = vsel %vm823, %v613, 0
          %v1240 = vsel %vm823, %v614, 0
          %1242 = vmatpush.xpose.msra.mxu0 %v1240
          %1243 = vmatpush.xpose.msra.mxu0 %v1237
          %1244 = vmatpush.xpose.msra.mxu0 %v1234
          %1245 = vmatpush.xpose.msra.mxu0 %v1231
          %1246 = vmatpush.xpose.msra.mxu0 %v1228
          %1247 = vmatpush.xpose.msra.mxu0 %v1225
          %1248 = vmatpush.xpose.msra.mxu0 %v1222
          %1249 = vmatpush.xpose.msra.mxu0 %v1219
          %1250 = vmatpush.xpose.msra.mxu0 %v1216
          %1251 = vmatpush.xpose.msra.mxu0 %v1213
          %1252 = vmatpush.xpose.msra.mxu0 %v1210
          %1253 = vmatpush.xpose.msra.mxu0 %v1207
          %1254 = vmatpush.xpose.msra.mxu0 %v1204
          %1255 = vmatpush.xpose.msra.mxu0 %v1201
          %1256 = vmatpush.xpose.msra.mxu0 %v1198
          %1257 = vmatpush.xpose.msra.mxu0 %v1195
          %1258 = vmatmul.f32.gmra.mxu0 %v1147
          %v1259 = vpop.f32.mrf.mxu0
          %v1260 = vadd.f32 0.0, %v1259
          %1261 = vmatmul.f32.gmra.mxu0 %v1150
          %v1262 = vpop.f32.mrf.mxu0
          %v1263 = vadd.f32 0.0, %v1262
          %1264 = vmatmul.f32.gmra.mxu0 %v1153
          %v1265 = vpop.f32.mrf.mxu0
          %v1266 = vadd.f32 0.0, %v1265
          %1267 = vmatmul.f32.gmra.mxu0 %v1156
          %v1268 = vpop.f32.mrf.mxu0
          %v1269 = vadd.f32 0.0, %v1268
          %1270 = vmatmul.f32.gmra.mxu0 %v1159
          %v1271 = vpop.f32.mrf.mxu0
          %v1272 = vadd.f32 0.0, %v1271
          %1273 = vmatmul.f32.gmra.mxu0 %v1162
          %v1274 = vpop.f32.mrf.mxu0
          %v1275 = vadd.f32 0.0, %v1274
          %1276 = vmatmul.f32.gmra.mxu0 %v1165
          %v1277 = vpop.f32.mrf.mxu0
          %v1278 = vadd.f32 0.0, %v1277
          %1279 = vmatmul.f32.gmra.mxu0 %v1168
          %v1280 = vpop.f32.mrf.mxu0
          %v1281 = vadd.f32 0.0, %v1280
          %1282 = vmatmul.f32.gmra.mxu0 %v1171
          %v1283 = vpop.f32.mrf.mxu0
          %v1284 = vadd.f32 0.0, %v1283
          %1285 = vmatmul.f32.gmra.mxu0 %v1174
          %v1286 = vpop.f32.mrf.mxu0
          %v1287 = vadd.f32 0.0, %v1286
          %1288 = vmatmul.f32.gmra.mxu0 %v1177
          %v1289 = vpop.f32.mrf.mxu0
          %v1290 = vadd.f32 0.0, %v1289
          %1291 = vmatmul.f32.gmra.mxu0 %v1180
          %v1292 = vpop.f32.mrf.mxu0
          %v1293 = vadd.f32 0.0, %v1292
          %1294 = vmatmul.f32.gmra.mxu0 %v1183
          %v1295 = vpop.f32.mrf.mxu0
          %v1296 = vadd.f32 0.0, %v1295
          %1297 = vmatmul.f32.gmra.mxu0 %v1186
          %v1298 = vpop.f32.mrf.mxu0
          %v1299 = vadd.f32 0.0, %v1298
          %1300 = vmatmul.f32.gmra.mxu0 %v1189
          %v1301 = vpop.f32.mrf.mxu0
          %v1302 = vadd.f32 0.0, %v1301
          %1303 = vmatmul.f32.gmra.mxu0 %v1192
          %v1304 = vpop.f32.mrf.mxu0
          %v1305 = vadd.f32 0.0, %v1304
          %1306 = vdwg.mxu0
          %v1308 = vsel %vm823, %v359, 0
          %v1311 = vsel %vm823, %v360, 0
          %v1314 = vsel %vm823, %v361, 0
          %v1317 = vsel %vm823, %v362, 0
          %v1320 = vsel %vm823, %v363, 0
          %v1323 = vsel %vm823, %v364, 0
          %v1326 = vsel %vm823, %v365, 0
          %v1329 = vsel %vm823, %v366, 0
          %v1332 = vsel %vm823, %v367, 0
          %v1335 = vsel %vm823, %v368, 0
          %v1338 = vsel %vm823, %v369, 0
          %v1341 = vsel %vm823, %v370, 0
          %v1344 = vsel %vm823, %v371, 0
          %v1347 = vsel %vm823, %v372, 0
          %v1350 = vsel %vm823, %v373, 0
          %v1353 = vsel %vm823, %v374, 0
          %v1356 = vsel %vm823, %v615, 0
          %v1359 = vsel %vm823, %v616, 0
          %v1362 = vsel %vm823, %v617, 0
          %v1365 = vsel %vm823, %v618, 0
          %v1368 = vsel %vm823, %v619, 0
          %v1371 = vsel %vm823, %v620, 0
          %v1374 = vsel %vm823, %v621, 0
          %v1377 = vsel %vm823, %v622, 0
          %v1380 = vsel %vm823, %v623, 0
          %v1383 = vsel %vm823, %v624, 0
          %v1386 = vsel %vm823, %v625, 0
          %v1389 = vsel %vm823, %v626, 0
          %v1392 = vsel %vm823, %v627, 0
          %v1395 = vsel %vm823, %v628, 0
          %v1398 = vsel %vm823, %v629, 0
          %v1401 = vsel %vm823, %v630, 0
          %1403 = vmatpush.xpose.msra.mxu0 %v1401
          %1404 = vmatpush.xpose.msra.mxu0 %v1398
          %1405 = vmatpush.xpose.msra.mxu0 %v1395
          %1406 = vmatpush.xpose.msra.mxu0 %v1392
          %1407 = vmatpush.xpose.msra.mxu0 %v1389
          %1408 = vmatpush.xpose.msra.mxu0 %v1386
          %1409 = vmatpush.xpose.msra.mxu0 %v1383
          %1410 = vmatpush.xpose.msra.mxu0 %v1380
          %1411 = vmatpush.xpose.msra.mxu0 %v1377
          %1412 = vmatpush.xpose.msra.mxu0 %v1374
          %1413 = vmatpush.xpose.msra.mxu0 %v1371
          %1414 = vmatpush.xpose.msra.mxu0 %v1368
          %1415 = vmatpush.xpose.msra.mxu0 %v1365
          %1416 = vmatpush.xpose.msra.mxu0 %v1362
          %1417 = vmatpush.xpose.msra.mxu0 %v1359
          %1418 = vmatpush.xpose.msra.mxu0 %v1356
          %1419 = vmatmul.f32.gmra.mxu0 %v1308
          %v1420 = vpop.f32.mrf.mxu0
          %v1421 = vadd.f32 0.0, %v1420
          %1422 = vmatmul.f32.gmra.mxu0 %v1311
          %v1423 = vpop.f32.mrf.mxu0
          %v1424 = vadd.f32 0.0, %v1423
          %1425 = vmatmul.f32.gmra.mxu0 %v1314
          %v1426 = vpop.f32.mrf.mxu0
          %v1427 = vadd.f32 0.0, %v1426
          %1428 = vmatmul.f32.gmra.mxu0 %v1317
          %v1429 = vpop.f32.mrf.mxu0
          %v1430 = vadd.f32 0.0, %v1429
          %1431 = vmatmul.f32.gmra.mxu0 %v1320
          %v1432 = vpop.f32.mrf.mxu0
          %v1433 = vadd.f32 0.0, %v1432
          %1434 = vmatmul.f32.gmra.mxu0 %v1323
          %v1435 = vpop.f32.mrf.mxu0
          %v1436 = vadd.f32 0.0, %v1435
          %1437 = vmatmul.f32.gmra.mxu0 %v1326
          %v1438 = vpop.f32.mrf.mxu0
          %v1439 = vadd.f32 0.0, %v1438
          %1440 = vmatmul.f32.gmra.mxu0 %v1329
          %v1441 = vpop.f32.mrf.mxu0
          %v1442 = vadd.f32 0.0, %v1441
          %1443 = vmatmul.f32.gmra.mxu0 %v1332
          %v1444 = vpop.f32.mrf.mxu0
          %v1445 = vadd.f32 0.0, %v1444
          %1446 = vmatmul.f32.gmra.mxu0 %v1335
          %v1447 = vpop.f32.mrf.mxu0
          %v1448 = vadd.f32 0.0, %v1447
          %1449 = vmatmul.f32.gmra.mxu0 %v1338
          %v1450 = vpop.f32.mrf.mxu0
          %v1451 = vadd.f32 0.0, %v1450
          %1452 = vmatmul.f32.gmra.mxu0 %v1341
          %v1453 = vpop.f32.mrf.mxu0
          %v1454 = vadd.f32 0.0, %v1453
          %1455 = vmatmul.f32.gmra.mxu0 %v1344
          %v1456 = vpop.f32.mrf.mxu0
          %v1457 = vadd.f32 0.0, %v1456
          %1458 = vmatmul.f32.gmra.mxu0 %v1347
          %v1459 = vpop.f32.mrf.mxu0
          %v1460 = vadd.f32 0.0, %v1459
          %1461 = vmatmul.f32.gmra.mxu0 %v1350
          %v1462 = vpop.f32.mrf.mxu0
          %v1463 = vadd.f32 0.0, %v1462
          %1464 = vmatmul.f32.gmra.mxu0 %v1353
          %v1465 = vpop.f32.mrf.mxu0
          %v1466 = vadd.f32 0.0, %v1465
          %1467 = vdwg.mxu0
          %v1469 = vsel %vm823, %v375, 0
          %v1472 = vsel %vm823, %v376, 0
          %v1475 = vsel %vm823, %v377, 0
          %v1478 = vsel %vm823, %v378, 0
          %v1481 = vsel %vm823, %v379, 0
          %v1484 = vsel %vm823, %v380, 0
          %v1487 = vsel %vm823, %v381, 0
          %v1490 = vsel %vm823, %v382, 0
          %v1493 = vsel %vm823, %v383, 0
          %v1496 = vsel %vm823, %v384, 0
          %v1499 = vsel %vm823, %v385, 0
          %v1502 = vsel %vm823, %v386, 0
          %v1505 = vsel %vm823, %v387, 0
          %v1508 = vsel %vm823, %v388, 0
          %v1511 = vsel %vm823, %v389, 0
          %v1514 = vsel %vm823, %v390, 0
          %v1517 = vsel %vm823, %v631, 0
          %v1520 = vsel %vm823, %v632, 0
          %v1523 = vsel %vm823, %v633, 0
          %v1526 = vsel %vm823, %v634, 0
          %v1529 = vsel %vm823, %v635, 0
          %v1532 = vsel %vm823, %v636, 0
          %v1535 = vsel %vm823, %v637, 0
          %v1538 = vsel %vm823, %v638, 0
          %v1541 = vsel %vm823, %v639, 0
          %v1544 = vsel %vm823, %v640, 0
          %v1547 = vsel %vm823, %v641, 0
          %v1550 = vsel %vm823, %v642, 0
          %v1553 = vsel %vm823, %v643, 0
          %v1556 = vsel %vm823, %v644, 0
          %v1559 = vsel %vm823, %v645, 0
          %v1562 = vsel %vm823, %v646, 0
          %1564 = vmatpush.xpose.msra.mxu0 %v1562
          %1565 = vmatpush.xpose.msra.mxu0 %v1559
          %1566 = vmatpush.xpose.msra.mxu0 %v1556
          %1567 = vmatpush.xpose.msra.mxu0 %v1553
          %1568 = vmatpush.xpose.msra.mxu0 %v1550
          %1569 = vmatpush.xpose.msra.mxu0 %v1547
          %1570 = vmatpush.xpose.msra.mxu0 %v1544
          %1571 = vmatpush.xpose.msra.mxu0 %v1541
          %1572 = vmatpush.xpose.msra.mxu0 %v1538
          %1573 = vmatpush.xpose.msra.mxu0 %v1535
          %1574 = vmatpush.xpose.msra.mxu0 %v1532
          %1575 = vmatpush.xpose.msra.mxu0 %v1529
          %1576 = vmatpush.xpose.msra.mxu0 %v1526
          %1577 = vmatpush.xpose.msra.mxu0 %v1523
          %1578 = vmatpush.xpose.msra.mxu0 %v1520
          %1579 = vmatpush.xpose.msra.mxu0 %v1517
          %1580 = vmatmul.f32.gmra.mxu0 %v1469
          %v1581 = vpop.f32.mrf.mxu0
          %v1582 = vadd.f32 0.0, %v1581
          %1583 = vmatmul.f32.gmra.mxu0 %v1472
          %v1584 = vpop.f32.mrf.mxu0
          %v1585 = vadd.f32 0.0, %v1584
          %1586 = vmatmul.f32.gmra.mxu0 %v1475
          %v1587 = vpop.f32.mrf.mxu0
          %v1588 = vadd.f32 0.0, %v1587
          %1589 = vmatmul.f32.gmra.mxu0 %v1478
          %v1590 = vpop.f32.mrf.mxu0
          %v1591 = vadd.f32 0.0, %v1590
          %1592 = vmatmul.f32.gmra.mxu0 %v1481
          %v1593 = vpop.f32.mrf.mxu0
          %v1594 = vadd.f32 0.0, %v1593
          %1595 = vmatmul.f32.gmra.mxu0 %v1484
          %v1596 = vpop.f32.mrf.mxu0
          %v1597 = vadd.f32 0.0, %v1596
          %1598 = vmatmul.f32.gmra.mxu0 %v1487
          %v1599 = vpop.f32.mrf.mxu0
          %v1600 = vadd.f32 0.0, %v1599
          %1601 = vmatmul.f32.gmra.mxu0 %v1490
          %v1602 = vpop.f32.mrf.mxu0
          %v1603 = vadd.f32 0.0, %v1602
          %1604 = vmatmul.f32.gmra.mxu0 %v1493
          %v1605 = vpop.f32.mrf.mxu0
          %v1606 = vadd.f32 0.0, %v1605
          %1607 = vmatmul.f32.gmra.mxu0 %v1496
          %v1608 = vpop.f32.mrf.mxu0
          %v1609 = vadd.f32 0.0, %v1608
          %1610 = vmatmul.f32.gmra.mxu0 %v1499
          %v1611 = vpop.f32.mrf.mxu0
          %v1612 = vadd.f32 0.0, %v1611
          %1613 = vmatmul.f32.gmra.mxu0 %v1502
          %v1614 = vpop.f32.mrf.mxu0
          %v1615 = vadd.f32 0.0, %v1614
          %1616 = vmatmul.f32.gmra.mxu0 %v1505
          %v1617 = vpop.f32.mrf.mxu0
          %v1618 = vadd.f32 0.0, %v1617
          %1619 = vmatmul.f32.gmra.mxu0 %v1508
          %v1620 = vpop.f32.mrf.mxu0
          %v1621 = vadd.f32 0.0, %v1620
          %1622 = vmatmul.f32.gmra.mxu0 %v1511
          %v1623 = vpop.f32.mrf.mxu0
          %v1624 = vadd.f32 0.0, %v1623
          %1625 = vmatmul.f32.gmra.mxu0 %v1514
          %v1626 = vpop.f32.mrf.mxu0
          %v1627 = vadd.f32 0.0, %v1626
          %1628 = vdwg.mxu0
          %v1630 = vsel %vm823, %v391, 0
          %v1633 = vsel %vm823, %v392, 0
          %v1636 = vsel %vm823, %v393, 0
          %v1639 = vsel %vm823, %v394, 0
          %v1642 = vsel %vm823, %v395, 0
          %v1645 = vsel %vm823, %v396, 0
          %v1648 = vsel %vm823, %v397, 0
          %v1651 = vsel %vm823, %v398, 0
          %v1654 = vsel %vm823, %v399, 0
          %v1657 = vsel %vm823, %v400, 0
          %v1660 = vsel %vm823, %v401, 0
          %v1663 = vsel %vm823, %v402, 0
          %v1666 = vsel %vm823, %v403, 0
          %v1669 = vsel %vm823, %v404, 0
          %v1672 = vsel %vm823, %v405, 0
          %v1675 = vsel %vm823, %v406, 0
          %v1678 = vsel %vm823, %v647, 0
          %v1681 = vsel %vm823, %v648, 0
          %v1684 = vsel %vm823, %v649, 0
          %v1687 = vsel %vm823, %v650, 0
          %v1690 = vsel %vm823, %v651, 0
          %v1693 = vsel %vm823, %v652, 0
          %v1696 = vsel %vm823, %v653, 0
          %v1699 = vsel %vm823, %v654, 0
          %v1702 = vsel %vm823, %v655, 0
          %v1705 = vsel %vm823, %v656, 0
          %v1708 = vsel %vm823, %v657, 0
          %v1711 = vsel %vm823, %v658, 0
          %v1714 = vsel %vm823, %v659, 0
          %v1717 = vsel %vm823, %v660, 0
          %v1720 = vsel %vm823, %v661, 0
          %v1723 = vsel %vm823, %v662, 0
          %1725 = vmatpush.xpose.msra.mxu0 %v1723
          %1726 = vmatpush.xpose.msra.mxu0 %v1720
          %1727 = vmatpush.xpose.msra.mxu0 %v1717
          %1728 = vmatpush.xpose.msra.mxu0 %v1714
          %1729 = vmatpush.xpose.msra.mxu0 %v1711
          %1730 = vmatpush.xpose.msra.mxu0 %v1708
          %1731 = vmatpush.xpose.msra.mxu0 %v1705
          %1732 = vmatpush.xpose.msra.mxu0 %v1702
          %1733 = vmatpush.xpose.msra.mxu0 %v1699
          %1734 = vmatpush.xpose.msra.mxu0 %v1696
          %1735 = vmatpush.xpose.msra.mxu0 %v1693
          %1736 = vmatpush.xpose.msra.mxu0 %v1690
          %1737 = vmatpush.xpose.msra.mxu0 %v1687
          %1738 = vmatpush.xpose.msra.mxu0 %v1684
          %1739 = vmatpush.xpose.msra.mxu0 %v1681
          %1740 = vmatpush.xpose.msra.mxu0 %v1678
          %1741 = vmatmul.f32.gmra.mxu0 %v1630
          %v1742 = vpop.f32.mrf.mxu0
          %v1743 = vadd.f32 0.0, %v1742
          %1744 = vmatmul.f32.gmra.mxu0 %v1633
          %v1745 = vpop.f32.mrf.mxu0
          %v1746 = vadd.f32 0.0, %v1745
          %1747 = vmatmul.f32.gmra.mxu0 %v1636
          %v1748 = vpop.f32.mrf.mxu0
          %v1749 = vadd.f32 0.0, %v1748
          %1750 = vmatmul.f32.gmra.mxu0 %v1639
          %v1751 = vpop.f32.mrf.mxu0
          %v1752 = vadd.f32 0.0, %v1751
          %1753 = vmatmul.f32.gmra.mxu0 %v1642
          %v1754 = vpop.f32.mrf.mxu0
          %v1755 = vadd.f32 0.0, %v1754
          %1756 = vmatmul.f32.gmra.mxu0 %v1645
          %v1757 = vpop.f32.mrf.mxu0
          %v1758 = vadd.f32 0.0, %v1757
          %1759 = vmatmul.f32.gmra.mxu0 %v1648
          %v1760 = vpop.f32.mrf.mxu0
          %v1761 = vadd.f32 0.0, %v1760
          %1762 = vmatmul.f32.gmra.mxu0 %v1651
          %v1763 = vpop.f32.mrf.mxu0
          %v1764 = vadd.f32 0.0, %v1763
          %1765 = vmatmul.f32.gmra.mxu0 %v1654
          %v1766 = vpop.f32.mrf.mxu0
          %v1767 = vadd.f32 0.0, %v1766
          %1768 = vmatmul.f32.gmra.mxu0 %v1657
          %v1769 = vpop.f32.mrf.mxu0
          %v1770 = vadd.f32 0.0, %v1769
          %1771 = vmatmul.f32.gmra.mxu0 %v1660
          %v1772 = vpop.f32.mrf.mxu0
          %v1773 = vadd.f32 0.0, %v1772
          %1774 = vmatmul.f32.gmra.mxu0 %v1663
          %v1775 = vpop.f32.mrf.mxu0
          %v1776 = vadd.f32 0.0, %v1775
          %1777 = vmatmul.f32.gmra.mxu0 %v1666
          %v1778 = vpop.f32.mrf.mxu0
          %v1779 = vadd.f32 0.0, %v1778
          %1780 = vmatmul.f32.gmra.mxu0 %v1669
          %v1781 = vpop.f32.mrf.mxu0
          %v1782 = vadd.f32 0.0, %v1781
          %1783 = vmatmul.f32.gmra.mxu0 %v1672
          %v1784 = vpop.f32.mrf.mxu0
          %v1785 = vadd.f32 0.0, %v1784
          %1786 = vmatmul.f32.gmra.mxu0 %v1675
          %v1787 = vpop.f32.mrf.mxu0
          %v1788 = vadd.f32 0.0, %v1787
          %1789 = vdwg.mxu0
          %v1791 = vsel %vm823, %v407, 0
          %v1794 = vsel %vm823, %v408, 0
          %v1797 = vsel %vm823, %v409, 0
          %v1800 = vsel %vm823, %v410, 0
          %v1803 = vsel %vm823, %v411, 0
          %v1806 = vsel %vm823, %v412, 0
          %v1809 = vsel %vm823, %v413, 0
          %v1812 = vsel %vm823, %v414, 0
          %v1815 = vsel %vm823, %v415, 0
          %v1818 = vsel %vm823, %v416, 0
          %v1821 = vsel %vm823, %v417, 0
          %v1824 = vsel %vm823, %v418, 0
          %v1827 = vsel %vm823, %v419, 0
          %v1830 = vsel %vm823, %v420, 0
          %v1833 = vsel %vm823, %v421, 0
          %v1836 = vsel %vm823, %v422, 0
          %v1839 = vsel %vm823, %v663, 0
          %v1842 = vsel %vm823, %v664, 0
          %v1845 = vsel %vm823, %v665, 0
          %v1848 = vsel %vm823, %v666, 0
          %v1851 = vsel %vm823, %v667, 0
          %v1854 = vsel %vm823, %v668, 0
          %v1857 = vsel %vm823, %v669, 0
          %v1860 = vsel %vm823, %v670, 0
          %v1863 = vsel %vm823, %v671, 0
          %v1866 = vsel %vm823, %v672, 0
          %v1869 = vsel %vm823, %v673, 0
          %v1872 = vsel %vm823, %v674, 0
          %v1875 = vsel %vm823, %v675, 0
          %v1878 = vsel %vm823, %v676, 0
          %v1881 = vsel %vm823, %v677, 0
          %v1884 = vsel %vm823, %v678, 0
          %1886 = vmatpush.xpose.msra.mxu0 %v1884
          %1887 = vmatpush.xpose.msra.mxu0 %v1881
          %1888 = vmatpush.xpose.msra.mxu0 %v1878
          %1889 = vmatpush.xpose.msra.mxu0 %v1875
          %1890 = vmatpush.xpose.msra.mxu0 %v1872
          %1891 = vmatpush.xpose.msra.mxu0 %v1869
          %1892 = vmatpush.xpose.msra.mxu0 %v1866
          %1893 = vmatpush.xpose.msra.mxu0 %v1863
          %1894 = vmatpush.xpose.msra.mxu0 %v1860
          %1895 = vmatpush.xpose.msra.mxu0 %v1857
          %1896 = vmatpush.xpose.msra.mxu0 %v1854
          %1897 = vmatpush.xpose.msra.mxu0 %v1851
          %1898 = vmatpush.xpose.msra.mxu0 %v1848
          %1899 = vmatpush.xpose.msra.mxu0 %v1845
          %1900 = vmatpush.xpose.msra.mxu0 %v1842
          %1901 = vmatpush.xpose.msra.mxu0 %v1839
          %1902 = vmatmul.f32.gmra.mxu0 %v1791
          %v1903 = vpop.f32.mrf.mxu0
          %v1904 = vadd.f32 0.0, %v1903
          %1905 = vmatmul.f32.gmra.mxu0 %v1794
          %v1906 = vpop.f32.mrf.mxu0
          %v1907 = vadd.f32 0.0, %v1906
          %1908 = vmatmul.f32.gmra.mxu0 %v1797
          %v1909 = vpop.f32.mrf.mxu0
          %v1910 = vadd.f32 0.0, %v1909
          %1911 = vmatmul.f32.gmra.mxu0 %v1800
          %v1912 = vpop.f32.mrf.mxu0
          %v1913 = vadd.f32 0.0, %v1912
          %1914 = vmatmul.f32.gmra.mxu0 %v1803
          %v1915 = vpop.f32.mrf.mxu0
          %v1916 = vadd.f32 0.0, %v1915
          %1917 = vmatmul.f32.gmra.mxu0 %v1806
          %v1918 = vpop.f32.mrf.mxu0
          %v1919 = vadd.f32 0.0, %v1918
          %1920 = vmatmul.f32.gmra.mxu0 %v1809
          %v1921 = vpop.f32.mrf.mxu0
          %v1922 = vadd.f32 0.0, %v1921
          %1923 = vmatmul.f32.gmra.mxu0 %v1812
          %v1924 = vpop.f32.mrf.mxu0
          %v1925 = vadd.f32 0.0, %v1924
          %1926 = vmatmul.f32.gmra.mxu0 %v1815
          %v1927 = vpop.f32.mrf.mxu0
          %v1928 = vadd.f32 0.0, %v1927
          %1929 = vmatmul.f32.gmra.mxu0 %v1818
          %v1930 = vpop.f32.mrf.mxu0
          %v1931 = vadd.f32 0.0, %v1930
          %1932 = vmatmul.f32.gmra.mxu0 %v1821
          %v1933 = vpop.f32.mrf.mxu0
          %v1934 = vadd.f32 0.0, %v1933
          %1935 = vmatmul.f32.gmra.mxu0 %v1824
          %v1936 = vpop.f32.mrf.mxu0
          %v1937 = vadd.f32 0.0, %v1936
          %1938 = vmatmul.f32.gmra.mxu0 %v1827
          %v1939 = vpop.f32.mrf.mxu0
          %v1940 = vadd.f32 0.0, %v1939
          %1941 = vmatmul.f32.gmra.mxu0 %v1830
          %v1942 = vpop.f32.mrf.mxu0
          %v1943 = vadd.f32 0.0, %v1942
          %1944 = vmatmul.f32.gmra.mxu0 %v1833
          %v1945 = vpop.f32.mrf.mxu0
          %v1946 = vadd.f32 0.0, %v1945
          %1947 = vmatmul.f32.gmra.mxu0 %v1836
          %v1948 = vpop.f32.mrf.mxu0
          %v1949 = vadd.f32 0.0, %v1948
          %1950 = vdwg.mxu0
          %v1952 = vsel %vm823, %v423, 0
          %v1955 = vsel %vm823, %v424, 0
          %v1958 = vsel %vm823, %v425, 0
          %v1961 = vsel %vm823, %v426, 0
          %v1964 = vsel %vm823, %v427, 0
          %v1967 = vsel %vm823, %v428, 0
          %v1970 = vsel %vm823, %v429, 0
          %v1973 = vsel %vm823, %v430, 0
          %v1976 = vsel %vm823, %v431, 0
          %v1979 = vsel %vm823, %v432, 0
          %v1982 = vsel %vm823, %v433, 0
          %v1985 = vsel %vm823, %v434, 0
          %v1988 = vsel %vm823, %v435, 0
          %v1991 = vsel %vm823, %v436, 0
          %v1994 = vsel %vm823, %v437, 0
          %v1997 = vsel %vm823, %v438, 0
          %v2000 = vsel %vm823, %v679, 0
          %v2003 = vsel %vm823, %v680, 0
          %v2006 = vsel %vm823, %v681, 0
          %v2009 = vsel %vm823, %v682, 0
          %v2012 = vsel %vm823, %v683, 0
          %v2015 = vsel %vm823, %v684, 0
          %v2018 = vsel %vm823, %v685, 0
          %v2021 = vsel %vm823, %v686, 0
          %v2024 = vsel %vm823, %v687, 0
          %v2027 = vsel %vm823, %v688, 0
          %v2030 = vsel %vm823, %v689, 0
          %v2033 = vsel %vm823, %v690, 0
          %v2036 = vsel %vm823, %v691, 0
          %v2039 = vsel %vm823, %v692, 0
          %v2042 = vsel %vm823, %v693, 0
          %v2045 = vsel %vm823, %v694, 0
          %2047 = vmatpush.xpose.msra.mxu0 %v2045
          %2048 = vmatpush.xpose.msra.mxu0 %v2042
          %2049 = vmatpush.xpose.msra.mxu0 %v2039
          %2050 = vmatpush.xpose.msra.mxu0 %v2036
          %2051 = vmatpush.xpose.msra.mxu0 %v2033
          %2052 = vmatpush.xpose.msra.mxu0 %v2030
          %2053 = vmatpush.xpose.msra.mxu0 %v2027
          %2054 = vmatpush.xpose.msra.mxu0 %v2024
          %2055 = vmatpush.xpose.msra.mxu0 %v2021
          %2056 = vmatpush.xpose.msra.mxu0 %v2018
          %2057 = vmatpush.xpose.msra.mxu0 %v2015
          %2058 = vmatpush.xpose.msra.mxu0 %v2012
          %2059 = vmatpush.xpose.msra.mxu0 %v2009
          %2060 = vmatpush.xpose.msra.mxu0 %v2006
          %2061 = vmatpush.xpose.msra.mxu0 %v2003
          %2062 = vmatpush.xpose.msra.mxu0 %v2000
          %2063 = vmatmul.f32.gmra.mxu0 %v1952
          %v2064 = vpop.f32.mrf.mxu0
          %v2065 = vadd.f32 0.0, %v2064
          %2066 = vmatmul.f32.gmra.mxu0 %v1955
          %v2067 = vpop.f32.mrf.mxu0
          %v2068 = vadd.f32 0.0, %v2067
          %2069 = vmatmul.f32.gmra.mxu0 %v1958
          %v2070 = vpop.f32.mrf.mxu0
          %v2071 = vadd.f32 0.0, %v2070
          %2072 = vmatmul.f32.gmra.mxu0 %v1961
          %v2073 = vpop.f32.mrf.mxu0
          %v2074 = vadd.f32 0.0, %v2073
          %2075 = vmatmul.f32.gmra.mxu0 %v1964
          %v2076 = vpop.f32.mrf.mxu0
          %v2077 = vadd.f32 0.0, %v2076
          %2078 = vmatmul.f32.gmra.mxu0 %v1967
          %v2079 = vpop.f32.mrf.mxu0
          %v2080 = vadd.f32 0.0, %v2079
          %2081 = vmatmul.f32.gmra.mxu0 %v1970
          %v2082 = vpop.f32.mrf.mxu0
          %v2083 = vadd.f32 0.0, %v2082
          %2084 = vmatmul.f32.gmra.mxu0 %v1973
          %v2085 = vpop.f32.mrf.mxu0
          %v2086 = vadd.f32 0.0, %v2085
          %2087 = vmatmul.f32.gmra.mxu0 %v1976
          %v2088 = vpop.f32.mrf.mxu0
          %v2089 = vadd.f32 0.0, %v2088
          %2090 = vmatmul.f32.gmra.mxu0 %v1979
          %v2091 = vpop.f32.mrf.mxu0
          %v2092 = vadd.f32 0.0, %v2091
          %2093 = vmatmul.f32.gmra.mxu0 %v1982
          %v2094 = vpop.f32.mrf.mxu0
          %v2095 = vadd.f32 0.0, %v2094
          %2096 = vmatmul.f32.gmra.mxu0 %v1985
          %v2097 = vpop.f32.mrf.mxu0
          %v2098 = vadd.f32 0.0, %v2097
          %2099 = vmatmul.f32.gmra.mxu0 %v1988
          %v2100 = vpop.f32.mrf.mxu0
          %v2101 = vadd.f32 0.0, %v2100
          %2102 = vmatmul.f32.gmra.mxu0 %v1991
          %v2103 = vpop.f32.mrf.mxu0
          %v2104 = vadd.f32 0.0, %v2103
          %2105 = vmatmul.f32.gmra.mxu0 %v1994
          %v2106 = vpop.f32.mrf.mxu0
          %v2107 = vadd.f32 0.0, %v2106
          %2108 = vmatmul.f32.gmra.mxu0 %v1997
          %v2109 = vpop.f32.mrf.mxu0
          %v2110 = vadd.f32 0.0, %v2109
          %2111 = vdwg.mxu0
          %v2113 = vsel %vm823, %v439, 0
          %v2116 = vsel %vm823, %v440, 0
          %v2119 = vsel %vm823, %v441, 0
          %v2122 = vsel %vm823, %v442, 0
          %v2125 = vsel %vm823, %v443, 0
          %v2128 = vsel %vm823, %v444, 0
          %v2131 = vsel %vm823, %v445, 0
          %v2134 = vsel %vm823, %v446, 0
          %v2137 = vsel %vm823, %v447, 0
          %v2140 = vsel %vm823, %v448, 0
          %v2143 = vsel %vm823, %v449, 0
          %v2146 = vsel %vm823, %v450, 0
          %v2149 = vsel %vm823, %v451, 0
          %v2152 = vsel %vm823, %v452, 0
          %v2155 = vsel %vm823, %v453, 0
          %v2158 = vsel %vm823, %v454, 0
          %v2161 = vsel %vm823, %v695, 0
          %v2164 = vsel %vm823, %v696, 0
          %v2167 = vsel %vm823, %v697, 0
          %v2170 = vsel %vm823, %v698, 0
          %v2173 = vsel %vm823, %v699, 0
          %v2176 = vsel %vm823, %v700, 0
          %v2179 = vsel %vm823, %v701, 0
          %v2182 = vsel %vm823, %v702, 0
          %v2185 = vsel %vm823, %v703, 0
          %v2188 = vsel %vm823, %v704, 0
          %v2191 = vsel %vm823, %v705, 0
          %v2194 = vsel %vm823, %v706, 0
          %v2197 = vsel %vm823, %v707, 0
          %v2200 = vsel %vm823, %v708, 0
          %v2203 = vsel %vm823, %v709, 0
          %v2206 = vsel %vm823, %v710, 0
          %2208 = vmatpush.xpose.msra.mxu0 %v2206
          %2209 = vmatpush.xpose.msra.mxu0 %v2203
          %2210 = vmatpush.xpose.msra.mxu0 %v2200
          %2211 = vmatpush.xpose.msra.mxu0 %v2197
          %2212 = vmatpush.xpose.msra.mxu0 %v2194
          %2213 = vmatpush.xpose.msra.mxu0 %v2191
          %2214 = vmatpush.xpose.msra.mxu0 %v2188
          %2215 = vmatpush.xpose.msra.mxu0 %v2185
          %2216 = vmatpush.xpose.msra.mxu0 %v2182
          %2217 = vmatpush.xpose.msra.mxu0 %v2179
          %2218 = vmatpush.xpose.msra.mxu0 %v2176
          %2219 = vmatpush.xpose.msra.mxu0 %v2173
          %2220 = vmatpush.xpose.msra.mxu0 %v2170
          %2221 = vmatpush.xpose.msra.mxu0 %v2167
          %2222 = vmatpush.xpose.msra.mxu0 %v2164
          %2223 = vmatpush.xpose.msra.mxu0 %v2161
          %2224 = vmatmul.f32.gmra.mxu0 %v2113
          %v2225 = vpop.f32.mrf.mxu0
          %v2226 = vadd.f32 0.0, %v2225
          %2227 = vmatmul.f32.gmra.mxu0 %v2116
          %v2228 = vpop.f32.mrf.mxu0
          %v2229 = vadd.f32 0.0, %v2228
          %2230 = vmatmul.f32.gmra.mxu0 %v2119
          %v2231 = vpop.f32.mrf.mxu0
          %v2232 = vadd.f32 0.0, %v2231
          %2233 = vmatmul.f32.gmra.mxu0 %v2122
          %v2234 = vpop.f32.mrf.mxu0
          %v2235 = vadd.f32 0.0, %v2234
          %2236 = vmatmul.f32.gmra.mxu0 %v2125
          %v2237 = vpop.f32.mrf.mxu0
          %v2238 = vadd.f32 0.0, %v2237
          %2239 = vmatmul.f32.gmra.mxu0 %v2128
          %v2240 = vpop.f32.mrf.mxu0
          %v2241 = vadd.f32 0.0, %v2240
          %2242 = vmatmul.f32.gmra.mxu0 %v2131
          %v2243 = vpop.f32.mrf.mxu0
          %v2244 = vadd.f32 0.0, %v2243
          %2245 = vmatmul.f32.gmra.mxu0 %v2134
          %v2246 = vpop.f32.mrf.mxu0
          %v2247 = vadd.f32 0.0, %v2246
          %2248 = vmatmul.f32.gmra.mxu0 %v2137
          %v2249 = vpop.f32.mrf.mxu0
          %v2250 = vadd.f32 0.0, %v2249
          %2251 = vmatmul.f32.gmra.mxu0 %v2140
          %v2252 = vpop.f32.mrf.mxu0
          %v2253 = vadd.f32 0.0, %v2252
          %2254 = vmatmul.f32.gmra.mxu0 %v2143
          %v2255 = vpop.f32.mrf.mxu0
          %v2256 = vadd.f32 0.0, %v2255
          %2257 = vmatmul.f32.gmra.mxu0 %v2146
          %v2258 = vpop.f32.mrf.mxu0
          %v2259 = vadd.f32 0.0, %v2258
          %2260 = vmatmul.f32.gmra.mxu0 %v2149
          %v2261 = vpop.f32.mrf.mxu0
          %v2262 = vadd.f32 0.0, %v2261
          %2263 = vmatmul.f32.gmra.mxu0 %v2152
          %v2264 = vpop.f32.mrf.mxu0
          %v2265 = vadd.f32 0.0, %v2264
          %2266 = vmatmul.f32.gmra.mxu0 %v2155
          %v2267 = vpop.f32.mrf.mxu0
          %v2268 = vadd.f32 0.0, %v2267
          %2269 = vmatmul.f32.gmra.mxu0 %v2158
          %v2270 = vpop.f32.mrf.mxu0
          %v2271 = vadd.f32 0.0, %v2270
          %2272 = vdwg.mxu0
          %v2274 = vsel %vm823, %v455, 0
          %v2277 = vsel %vm823, %v456, 0
          %v2280 = vsel %vm823, %v457, 0
          %v2283 = vsel %vm823, %v458, 0
          %v2286 = vsel %vm823, %v459, 0
          %v2289 = vsel %vm823, %v460, 0
          %v2292 = vsel %vm823, %v461, 0
          %v2295 = vsel %vm823, %v462, 0
          %v2298 = vsel %vm823, %v463, 0
          %v2301 = vsel %vm823, %v464, 0
          %v2304 = vsel %vm823, %v465, 0
          %v2307 = vsel %vm823, %v466, 0
          %v2310 = vsel %vm823, %v467, 0
          %v2313 = vsel %vm823, %v468, 0
          %v2316 = vsel %vm823, %v469, 0
          %v2319 = vsel %vm823, %v470, 0
          %v2322 = vsel %vm823, %v711, 0
          %v2325 = vsel %vm823, %v712, 0
          %v2328 = vsel %vm823, %v713, 0
          %v2331 = vsel %vm823, %v714, 0
          %v2334 = vsel %vm823, %v715, 0
          %v2337 = vsel %vm823, %v716, 0
          %v2340 = vsel %vm823, %v717, 0
          %v2343 = vsel %vm823, %v718, 0
          %v2346 = vsel %vm823, %v719, 0
          %v2349 = vsel %vm823, %v720, 0
          %v2352 = vsel %vm823, %v721, 0
          %v2355 = vsel %vm823, %v722, 0
          %v2358 = vsel %vm823, %v723, 0
          %v2361 = vsel %vm823, %v724, 0
          %v2364 = vsel %vm823, %v725, 0
          %v2367 = vsel %vm823, %v726, 0
          %2369 = vmatpush.xpose.msra.mxu0 %v2367
          %2370 = vmatpush.xpose.msra.mxu0 %v2364
          %2371 = vmatpush.xpose.msra.mxu0 %v2361
          %2372 = vmatpush.xpose.msra.mxu0 %v2358
          %2373 = vmatpush.xpose.msra.mxu0 %v2355
          %2374 = vmatpush.xpose.msra.mxu0 %v2352
          %2375 = vmatpush.xpose.msra.mxu0 %v2349
          %2376 = vmatpush.xpose.msra.mxu0 %v2346
          %2377 = vmatpush.xpose.msra.mxu0 %v2343
          %2378 = vmatpush.xpose.msra.mxu0 %v2340
          %2379 = vmatpush.xpose.msra.mxu0 %v2337
          %2380 = vmatpush.xpose.msra.mxu0 %v2334
          %2381 = vmatpush.xpose.msra.mxu0 %v2331
          %2382 = vmatpush.xpose.msra.mxu0 %v2328
          %2383 = vmatpush.xpose.msra.mxu0 %v2325
          %2384 = vmatpush.xpose.msra.mxu0 %v2322
          %2385 = vmatmul.f32.gmra.mxu0 %v2274
          %v2386 = vpop.f32.mrf.mxu0
          %v2387 = vadd.f32 0.0, %v2386
          %2388 = vmatmul.f32.gmra.mxu0 %v2277
          %v2389 = vpop.f32.mrf.mxu0
          %v2390 = vadd.f32 0.0, %v2389
          %2391 = vmatmul.f32.gmra.mxu0 %v2280
          %v2392 = vpop.f32.mrf.mxu0
          %v2393 = vadd.f32 0.0, %v2392
          %2394 = vmatmul.f32.gmra.mxu0 %v2283
          %v2395 = vpop.f32.mrf.mxu0
          %v2396 = vadd.f32 0.0, %v2395
          %2397 = vmatmul.f32.gmra.mxu0 %v2286
          %v2398 = vpop.f32.mrf.mxu0
          %v2399 = vadd.f32 0.0, %v2398
          %2400 = vmatmul.f32.gmra.mxu0 %v2289
          %v2401 = vpop.f32.mrf.mxu0
          %v2402 = vadd.f32 0.0, %v2401
          %2403 = vmatmul.f32.gmra.mxu0 %v2292
          %v2404 = vpop.f32.mrf.mxu0
          %v2405 = vadd.f32 0.0, %v2404
          %2406 = vmatmul.f32.gmra.mxu0 %v2295
          %v2407 = vpop.f32.mrf.mxu0
          %v2408 = vadd.f32 0.0, %v2407
          %2409 = vmatmul.f32.gmra.mxu0 %v2298
          %v2410 = vpop.f32.mrf.mxu0
          %v2411 = vadd.f32 0.0, %v2410
          %2412 = vmatmul.f32.gmra.mxu0 %v2301
          %v2413 = vpop.f32.mrf.mxu0
          %v2414 = vadd.f32 0.0, %v2413
          %2415 = vmatmul.f32.gmra.mxu0 %v2304
          %v2416 = vpop.f32.mrf.mxu0
          %v2417 = vadd.f32 0.0, %v2416
          %2418 = vmatmul.f32.gmra.mxu0 %v2307
          %v2419 = vpop.f32.mrf.mxu0
          %v2420 = vadd.f32 0.0, %v2419
          %2421 = vmatmul.f32.gmra.mxu0 %v2310
          %v2422 = vpop.f32.mrf.mxu0
          %v2423 = vadd.f32 0.0, %v2422
          %2424 = vmatmul.f32.gmra.mxu0 %v2313
          %v2425 = vpop.f32.mrf.mxu0
          %v2426 = vadd.f32 0.0, %v2425
          %2427 = vmatmul.f32.gmra.mxu0 %v2316
          %v2428 = vpop.f32.mrf.mxu0
          %v2429 = vadd.f32 0.0, %v2428
          %2430 = vmatmul.f32.gmra.mxu0 %v2319
          %v2431 = vpop.f32.mrf.mxu0
          %v2432 = vadd.f32 0.0, %v2431
          %2433 = vdwg.mxu0
          %v2435 = vsel %vm823, %v471, 0
          %v2438 = vsel %vm823, %v472, 0
          %v2441 = vsel %vm823, %v473, 0
          %v2444 = vsel %vm823, %v474, 0
          %v2447 = vsel %vm823, %v475, 0
          %v2450 = vsel %vm823, %v476, 0
          %v2453 = vsel %vm823, %v477, 0
          %v2456 = vsel %vm823, %v478, 0
          %v2459 = vsel %vm823, %v479, 0
          %v2462 = vsel %vm823, %v480, 0
          %v2465 = vsel %vm823, %v481, 0
          %v2468 = vsel %vm823, %v482, 0
          %v2471 = vsel %vm823, %v483, 0
          %v2474 = vsel %vm823, %v484, 0
          %v2477 = vsel %vm823, %v485, 0
          %v2480 = vsel %vm823, %v486, 0
          %v2483 = vsel %vm823, %v727, 0
          %v2486 = vsel %vm823, %v728, 0
          %v2489 = vsel %vm823, %v729, 0
          %v2492 = vsel %vm823, %v730, 0
          %v2495 = vsel %vm823, %v731, 0
          %v2498 = vsel %vm823, %v732, 0
          %v2501 = vsel %vm823, %v733, 0
          %v2504 = vsel %vm823, %v734, 0
          %v2507 = vsel %vm823, %v735, 0
          %v2510 = vsel %vm823, %v736, 0
          %v2513 = vsel %vm823, %v737, 0
          %v2516 = vsel %vm823, %v738, 0
          %v2519 = vsel %vm823, %v739, 0
          %v2522 = vsel %vm823, %v740, 0
          %v2525 = vsel %vm823, %v741, 0
          %v2528 = vsel %vm823, %v742, 0
          %2530 = vmatpush.xpose.msra.mxu0 %v2528
          %2531 = vmatpush.xpose.msra.mxu0 %v2525
          %2532 = vmatpush.xpose.msra.mxu0 %v2522
          %2533 = vmatpush.xpose.msra.mxu0 %v2519
          %2534 = vmatpush.xpose.msra.mxu0 %v2516
          %2535 = vmatpush.xpose.msra.mxu0 %v2513
          %2536 = vmatpush.xpose.msra.mxu0 %v2510
          %2537 = vmatpush.xpose.msra.mxu0 %v2507
          %2538 = vmatpush.xpose.msra.mxu0 %v2504
          %2539 = vmatpush.xpose.msra.mxu0 %v2501
          %2540 = vmatpush.xpose.msra.mxu0 %v2498
          %2541 = vmatpush.xpose.msra.mxu0 %v2495
          %2542 = vmatpush.xpose.msra.mxu0 %v2492
          %2543 = vmatpush.xpose.msra.mxu0 %v2489
          %2544 = vmatpush.xpose.msra.mxu0 %v2486
          %2545 = vmatpush.xpose.msra.mxu0 %v2483
          %2546 = vmatmul.f32.gmra.mxu0 %v2435
          %v2547 = vpop.f32.mrf.mxu0
          %v2548 = vadd.f32 0.0, %v2547
          %2549 = vmatmul.f32.gmra.mxu0 %v2438
          %v2550 = vpop.f32.mrf.mxu0
          %v2551 = vadd.f32 0.0, %v2550
          %2552 = vmatmul.f32.gmra.mxu0 %v2441
          %v2553 = vpop.f32.mrf.mxu0
          %v2554 = vadd.f32 0.0, %v2553
          %2555 = vmatmul.f32.gmra.mxu0 %v2444
          %v2556 = vpop.f32.mrf.mxu0
          %v2557 = vadd.f32 0.0, %v2556
          %2558 = vmatmul.f32.gmra.mxu0 %v2447
          %v2559 = vpop.f32.mrf.mxu0
          %v2560 = vadd.f32 0.0, %v2559
          %2561 = vmatmul.f32.gmra.mxu0 %v2450
          %v2562 = vpop.f32.mrf.mxu0
          %v2563 = vadd.f32 0.0, %v2562
          %2564 = vmatmul.f32.gmra.mxu0 %v2453
          %v2565 = vpop.f32.mrf.mxu0
          %v2566 = vadd.f32 0.0, %v2565
          %2567 = vmatmul.f32.gmra.mxu0 %v2456
          %v2568 = vpop.f32.mrf.mxu0
          %v2569 = vadd.f32 0.0, %v2568
          %2570 = vmatmul.f32.gmra.mxu0 %v2459
          %v2571 = vpop.f32.mrf.mxu0
          %v2572 = vadd.f32 0.0, %v2571
          %2573 = vmatmul.f32.gmra.mxu0 %v2462
          %v2574 = vpop.f32.mrf.mxu0
          %v2575 = vadd.f32 0.0, %v2574
          %2576 = vmatmul.f32.gmra.mxu0 %v2465
          %v2577 = vpop.f32.mrf.mxu0
          %v2578 = vadd.f32 0.0, %v2577
          %2579 = vmatmul.f32.gmra.mxu0 %v2468
          %v2580 = vpop.f32.mrf.mxu0
          %v2581 = vadd.f32 0.0, %v2580
          %2582 = vmatmul.f32.gmra.mxu0 %v2471
          %v2583 = vpop.f32.mrf.mxu0
          %v2584 = vadd.f32 0.0, %v2583
          %2585 = vmatmul.f32.gmra.mxu0 %v2474
          %v2586 = vpop.f32.mrf.mxu0
          %v2587 = vadd.f32 0.0, %v2586
          %2588 = vmatmul.f32.gmra.mxu0 %v2477
          %v2589 = vpop.f32.mrf.mxu0
          %v2590 = vadd.f32 0.0, %v2589
          %2591 = vmatmul.f32.gmra.mxu0 %v2480
          %v2592 = vpop.f32.mrf.mxu0
          %v2593 = vadd.f32 0.0, %v2592
          %2594 = vdwg.mxu0
          %v2596 = vsel %vm823, %v487, 0
          %v2599 = vsel %vm823, %v488, 0
          %v2602 = vsel %vm823, %v489, 0
          %v2605 = vsel %vm823, %v490, 0
          %v2608 = vsel %vm823, %v491, 0
          %v2611 = vsel %vm823, %v492, 0
          %v2614 = vsel %vm823, %v493, 0
          %v2617 = vsel %vm823, %v494, 0
          %v2620 = vsel %vm823, %v495, 0
          %v2623 = vsel %vm823, %v496, 0
          %v2626 = vsel %vm823, %v497, 0
          %v2629 = vsel %vm823, %v498, 0
          %v2632 = vsel %vm823, %v499, 0
          %v2635 = vsel %vm823, %v500, 0
          %v2638 = vsel %vm823, %v501, 0
          %v2641 = vsel %vm823, %v502, 0
          %v2644 = vsel %vm823, %v743, 0
          %v2647 = vsel %vm823, %v744, 0
          %v2650 = vsel %vm823, %v745, 0
          %v2653 = vsel %vm823, %v746, 0
          %v2656 = vsel %vm823, %v747, 0
          %v2659 = vsel %vm823, %v748, 0
          %v2662 = vsel %vm823, %v749, 0
          %v2665 = vsel %vm823, %v750, 0
          %v2668 = vsel %vm823, %v751, 0
          %v2671 = vsel %vm823, %v752, 0
          %v2674 = vsel %vm823, %v753, 0
          %v2677 = vsel %vm823, %v754, 0
          %v2680 = vsel %vm823, %v755, 0
          %v2683 = vsel %vm823, %v756, 0
          %v2686 = vsel %vm823, %v757, 0
          %v2689 = vsel %vm823, %v758, 0
          %2691 = vmatpush.xpose.msra.mxu0 %v2689
          %2692 = vmatpush.xpose.msra.mxu0 %v2686
          %2693 = vmatpush.xpose.msra.mxu0 %v2683
          %2694 = vmatpush.xpose.msra.mxu0 %v2680
          %2695 = vmatpush.xpose.msra.mxu0 %v2677
          %2696 = vmatpush.xpose.msra.mxu0 %v2674
          %2697 = vmatpush.xpose.msra.mxu0 %v2671
          %2698 = vmatpush.xpose.msra.mxu0 %v2668
          %2699 = vmatpush.xpose.msra.mxu0 %v2665
          %2700 = vmatpush.xpose.msra.mxu0 %v2662
          %2701 = vmatpush.xpose.msra.mxu0 %v2659
          %2702 = vmatpush.xpose.msra.mxu0 %v2656
          %2703 = vmatpush.xpose.msra.mxu0 %v2653
          %2704 = vmatpush.xpose.msra.mxu0 %v2650
          %2705 = vmatpush.xpose.msra.mxu0 %v2647
          %2706 = vmatpush.xpose.msra.mxu0 %v2644
          %2707 = vmatmul.f32.gmra.mxu0 %v2596
          %v2708 = vpop.f32.mrf.mxu0
          %v2709 = vadd.f32 0.0, %v2708
          %2710 = vmatmul.f32.gmra.mxu0 %v2599
          %v2711 = vpop.f32.mrf.mxu0
          %v2712 = vadd.f32 0.0, %v2711
          %2713 = vmatmul.f32.gmra.mxu0 %v2602
          %v2714 = vpop.f32.mrf.mxu0
          %v2715 = vadd.f32 0.0, %v2714
          %2716 = vmatmul.f32.gmra.mxu0 %v2605
          %v2717 = vpop.f32.mrf.mxu0
          %v2718 = vadd.f32 0.0, %v2717
          %2719 = vmatmul.f32.gmra.mxu0 %v2608
          %v2720 = vpop.f32.mrf.mxu0
          %v2721 = vadd.f32 0.0, %v2720
          %2722 = vmatmul.f32.gmra.mxu0 %v2611
          %v2723 = vpop.f32.mrf.mxu0
          %v2724 = vadd.f32 0.0, %v2723
          %2725 = vmatmul.f32.gmra.mxu0 %v2614
          %v2726 = vpop.f32.mrf.mxu0
          %v2727 = vadd.f32 0.0, %v2726
          %2728 = vmatmul.f32.gmra.mxu0 %v2617
          %v2729 = vpop.f32.mrf.mxu0
          %v2730 = vadd.f32 0.0, %v2729
          %2731 = vmatmul.f32.gmra.mxu0 %v2620
          %v2732 = vpop.f32.mrf.mxu0
          %v2733 = vadd.f32 0.0, %v2732
          %2734 = vmatmul.f32.gmra.mxu0 %v2623
          %v2735 = vpop.f32.mrf.mxu0
          %v2736 = vadd.f32 0.0, %v2735
          %2737 = vmatmul.f32.gmra.mxu0 %v2626
          %v2738 = vpop.f32.mrf.mxu0
          %v2739 = vadd.f32 0.0, %v2738
          %2740 = vmatmul.f32.gmra.mxu0 %v2629
          %v2741 = vpop.f32.mrf.mxu0
          %v2742 = vadd.f32 0.0, %v2741
          %2743 = vmatmul.f32.gmra.mxu0 %v2632
          %v2744 = vpop.f32.mrf.mxu0
          %v2745 = vadd.f32 0.0, %v2744
          %2746 = vmatmul.f32.gmra.mxu0 %v2635
          %v2747 = vpop.f32.mrf.mxu0
          %v2748 = vadd.f32 0.0, %v2747
          %2749 = vmatmul.f32.gmra.mxu0 %v2638
          %v2750 = vpop.f32.mrf.mxu0
          %v2751 = vadd.f32 0.0, %v2750
          %2752 = vmatmul.f32.gmra.mxu0 %v2641
          %v2753 = vpop.f32.mrf.mxu0
          %v2754 = vadd.f32 0.0, %v2753
          %2755 = vdwg.mxu0
          %v2757 = vsel %vm823, %v503, 0
          %v2760 = vsel %vm823, %v504, 0
          %v2763 = vsel %vm823, %v505, 0
          %v2766 = vsel %vm823, %v506, 0
          %v2769 = vsel %vm823, %v507, 0
          %v2772 = vsel %vm823, %v508, 0
          %v2775 = vsel %vm823, %v509, 0
          %v2778 = vsel %vm823, %v510, 0
          %v2781 = vsel %vm823, %v511, 0
          %v2784 = vsel %vm823, %v512, 0
          %v2787 = vsel %vm823, %v513, 0
          %v2790 = vsel %vm823, %v514, 0
          %v2793 = vsel %vm823, %v515, 0
          %v2796 = vsel %vm823, %v516, 0
          %v2799 = vsel %vm823, %v517, 0
          %v2802 = vsel %vm823, %v518, 0
          %v2805 = vsel %vm823, %v759, 0
          %v2808 = vsel %vm823, %v760, 0
          %v2811 = vsel %vm823, %v761, 0
          %v2814 = vsel %vm823, %v762, 0
          %v2817 = vsel %vm823, %v763, 0
          %v2820 = vsel %vm823, %v764, 0
          %v2823 = vsel %vm823, %v765, 0
          %v2826 = vsel %vm823, %v766, 0
          %v2829 = vsel %vm823, %v767, 0
          %v2832 = vsel %vm823, %v768, 0
          %v2835 = vsel %vm823, %v769, 0
          %v2838 = vsel %vm823, %v770, 0
          %v2841 = vsel %vm823, %v771, 0
          %v2844 = vsel %vm823, %v772, 0
          %v2847 = vsel %vm823, %v773, 0
          %v2850 = vsel %vm823, %v774, 0
          %2852 = vmatpush.xpose.msra.mxu0 %v2850
          %2853 = vmatpush.xpose.msra.mxu0 %v2847
          %2854 = vmatpush.xpose.msra.mxu0 %v2844
          %2855 = vmatpush.xpose.msra.mxu0 %v2841
          %2856 = vmatpush.xpose.msra.mxu0 %v2838
          %2857 = vmatpush.xpose.msra.mxu0 %v2835
          %2858 = vmatpush.xpose.msra.mxu0 %v2832
          %2859 = vmatpush.xpose.msra.mxu0 %v2829
          %2860 = vmatpush.xpose.msra.mxu0 %v2826
          %2861 = vmatpush.xpose.msra.mxu0 %v2823
          %2862 = vmatpush.xpose.msra.mxu0 %v2820
          %2863 = vmatpush.xpose.msra.mxu0 %v2817
          %2864 = vmatpush.xpose.msra.mxu0 %v2814
          %2865 = vmatpush.xpose.msra.mxu0 %v2811
          %2866 = vmatpush.xpose.msra.mxu0 %v2808
          %2867 = vmatpush.xpose.msra.mxu0 %v2805
          %2868 = vmatmul.f32.gmra.mxu0 %v2757
          %v2869 = vpop.f32.mrf.mxu0
          %v2870 = vadd.f32 0.0, %v2869
          %2871 = vmatmul.f32.gmra.mxu0 %v2760
          %v2872 = vpop.f32.mrf.mxu0
          %v2873 = vadd.f32 0.0, %v2872
          %2874 = vmatmul.f32.gmra.mxu0 %v2763
          %v2875 = vpop.f32.mrf.mxu0
          %v2876 = vadd.f32 0.0, %v2875
          %2877 = vmatmul.f32.gmra.mxu0 %v2766
          %v2878 = vpop.f32.mrf.mxu0
          %v2879 = vadd.f32 0.0, %v2878
          %2880 = vmatmul.f32.gmra.mxu0 %v2769
          %v2881 = vpop.f32.mrf.mxu0
          %v2882 = vadd.f32 0.0, %v2881
          %2883 = vmatmul.f32.gmra.mxu0 %v2772
          %v2884 = vpop.f32.mrf.mxu0
          %v2885 = vadd.f32 0.0, %v2884
          %2886 = vmatmul.f32.gmra.mxu0 %v2775
          %v2887 = vpop.f32.mrf.mxu0
          %v2888 = vadd.f32 0.0, %v2887
          %2889 = vmatmul.f32.gmra.mxu0 %v2778
          %v2890 = vpop.f32.mrf.mxu0
          %v2891 = vadd.f32 0.0, %v2890
          %2892 = vmatmul.f32.gmra.mxu0 %v2781
          %v2893 = vpop.f32.mrf.mxu0
          %v2894 = vadd.f32 0.0, %v2893
          %2895 = vmatmul.f32.gmra.mxu0 %v2784
          %v2896 = vpop.f32.mrf.mxu0
          %v2897 = vadd.f32 0.0, %v2896
          %2898 = vmatmul.f32.gmra.mxu0 %v2787
          %v2899 = vpop.f32.mrf.mxu0
          %v2900 = vadd.f32 0.0, %v2899
          %2901 = vmatmul.f32.gmra.mxu0 %v2790
          %v2902 = vpop.f32.mrf.mxu0
          %v2903 = vadd.f32 0.0, %v2902
          %2904 = vmatmul.f32.gmra.mxu0 %v2793
          %v2905 = vpop.f32.mrf.mxu0
          %v2906 = vadd.f32 0.0, %v2905
          %2907 = vmatmul.f32.gmra.mxu0 %v2796
          %v2908 = vpop.f32.mrf.mxu0
          %v2909 = vadd.f32 0.0, %v2908
          %2910 = vmatmul.f32.gmra.mxu0 %v2799
          %v2911 = vpop.f32.mrf.mxu0
          %v2912 = vadd.f32 0.0, %v2911
          %2913 = vmatmul.f32.gmra.mxu0 %v2802
          %v2914 = vpop.f32.mrf.mxu0
          %v2915 = vadd.f32 0.0, %v2914
          %2916 = vdwg.mxu0
          %v2918 = vsel %vm823, %v519, 0
          %v2921 = vsel %vm823, %v520, 0
          %v2924 = vsel %vm823, %v521, 0
          %v2927 = vsel %vm823, %v522, 0
          %v2930 = vsel %vm823, %v523, 0
          %v2933 = vsel %vm823, %v524, 0
          %v2936 = vsel %vm823, %v525, 0
          %v2939 = vsel %vm823, %v526, 0
          %v2942 = vsel %vm823, %v527, 0
          %v2945 = vsel %vm823, %v528, 0
          %v2948 = vsel %vm823, %v529, 0
          %v2951 = vsel %vm823, %v530, 0
          %v2954 = vsel %vm823, %v531, 0
          %v2957 = vsel %vm823, %v532, 0
          %v2960 = vsel %vm823, %v533, 0
          %v2963 = vsel %vm823, %v534, 0
          %v2966 = vsel %vm823, %v775, 0
          %v2969 = vsel %vm823, %v776, 0
          %v2972 = vsel %vm823, %v777, 0
          %v2975 = vsel %vm823, %v778, 0
          %v2978 = vsel %vm823, %v779, 0
          %v2981 = vsel %vm823, %v780, 0
          %v2984 = vsel %vm823, %v781, 0
          %v2987 = vsel %vm823, %v782, 0
          %v2990 = vsel %vm823, %v783, 0
          %v2993 = vsel %vm823, %v784, 0
          %v2996 = vsel %vm823, %v785, 0
          %v2999 = vsel %vm823, %v786, 0
          %v3002 = vsel %vm823, %v787, 0
          %v3005 = vsel %vm823, %v788, 0
          %v3008 = vsel %vm823, %v789, 0
          %v3011 = vsel %vm823, %v790, 0
          %3013 = vmatpush.xpose.msra.mxu0 %v3011
          %3014 = vmatpush.xpose.msra.mxu0 %v3008
          %3015 = vmatpush.xpose.msra.mxu0 %v3005
          %3016 = vmatpush.xpose.msra.mxu0 %v3002
          %3017 = vmatpush.xpose.msra.mxu0 %v2999
          %3018 = vmatpush.xpose.msra.mxu0 %v2996
          %3019 = vmatpush.xpose.msra.mxu0 %v2993
          %3020 = vmatpush.xpose.msra.mxu0 %v2990
          %3021 = vmatpush.xpose.msra.mxu0 %v2987
          %3022 = vmatpush.xpose.msra.mxu0 %v2984
          %3023 = vmatpush.xpose.msra.mxu0 %v2981
          %3024 = vmatpush.xpose.msra.mxu0 %v2978
          %3025 = vmatpush.xpose.msra.mxu0 %v2975
          %3026 = vmatpush.xpose.msra.mxu0 %v2972
          %3027 = vmatpush.xpose.msra.mxu0 %v2969
          %3028 = vmatpush.xpose.msra.mxu0 %v2966
          %3029 = vmatmul.f32.gmra.mxu0 %v2918
          %v3030 = vpop.f32.mrf.mxu0
          %v3031 = vadd.f32 0.0, %v3030
          %3032 = vmatmul.f32.gmra.mxu0 %v2921
          %v3033 = vpop.f32.mrf.mxu0
          %v3034 = vadd.f32 0.0, %v3033
          %3035 = vmatmul.f32.gmra.mxu0 %v2924
          %v3036 = vpop.f32.mrf.mxu0
          %v3037 = vadd.f32 0.0, %v3036
          %3038 = vmatmul.f32.gmra.mxu0 %v2927
          %v3039 = vpop.f32.mrf.mxu0
          %v3040 = vadd.f32 0.0, %v3039
          %3041 = vmatmul.f32.gmra.mxu0 %v2930
          %v3042 = vpop.f32.mrf.mxu0
          %v3043 = vadd.f32 0.0, %v3042
          %3044 = vmatmul.f32.gmra.mxu0 %v2933
          %v3045 = vpop.f32.mrf.mxu0
          %v3046 = vadd.f32 0.0, %v3045
          %3047 = vmatmul.f32.gmra.mxu0 %v2936
          %v3048 = vpop.f32.mrf.mxu0
          %v3049 = vadd.f32 0.0, %v3048
          %3050 = vmatmul.f32.gmra.mxu0 %v2939
          %v3051 = vpop.f32.mrf.mxu0
          %v3052 = vadd.f32 0.0, %v3051
          %3053 = vmatmul.f32.gmra.mxu0 %v2942
          %v3054 = vpop.f32.mrf.mxu0
          %v3055 = vadd.f32 0.0, %v3054
          %3056 = vmatmul.f32.gmra.mxu0 %v2945
          %v3057 = vpop.f32.mrf.mxu0
          %v3058 = vadd.f32 0.0, %v3057
          %3059 = vmatmul.f32.gmra.mxu0 %v2948
          %v3060 = vpop.f32.mrf.mxu0
          %v3061 = vadd.f32 0.0, %v3060
          %3062 = vmatmul.f32.gmra.mxu0 %v2951
          %v3063 = vpop.f32.mrf.mxu0
          %v3064 = vadd.f32 0.0, %v3063
          %3065 = vmatmul.f32.gmra.mxu0 %v2954
          %v3066 = vpop.f32.mrf.mxu0
          %v3067 = vadd.f32 0.0, %v3066
          %3068 = vmatmul.f32.gmra.mxu0 %v2957
          %v3069 = vpop.f32.mrf.mxu0
          %v3070 = vadd.f32 0.0, %v3069
          %3071 = vmatmul.f32.gmra.mxu0 %v2960
          %v3072 = vpop.f32.mrf.mxu0
          %v3073 = vadd.f32 0.0, %v3072
          %3074 = vmatmul.f32.gmra.mxu0 %v2963
          %v3075 = vpop.f32.mrf.mxu0
          %v3076 = vadd.f32 0.0, %v3075
          %3077 = vdwg.mxu0
          %v3079 = vsel %vm823, %v535, 0
          %v3082 = vsel %vm823, %v536, 0
          %v3085 = vsel %vm823, %v537, 0
          %v3088 = vsel %vm823, %v538, 0
          %v3091 = vsel %vm823, %v539, 0
          %v3094 = vsel %vm823, %v540, 0
          %v3097 = vsel %vm823, %v541, 0
          %v3100 = vsel %vm823, %v542, 0
          %v3103 = vsel %vm823, %v543, 0
          %v3106 = vsel %vm823, %v544, 0
          %v3109 = vsel %vm823, %v545, 0
          %v3112 = vsel %vm823, %v546, 0
          %v3115 = vsel %vm823, %v547, 0
          %v3118 = vsel %vm823, %v548, 0
          %v3121 = vsel %vm823, %v549, 0
          %v3124 = vsel %vm823, %v550, 0
          %v3127 = vsel %vm823, %v791, 0
          %v3130 = vsel %vm823, %v792, 0
          %v3133 = vsel %vm823, %v793, 0
          %v3136 = vsel %vm823, %v794, 0
          %v3139 = vsel %vm823, %v795, 0
          %v3142 = vsel %vm823, %v796, 0
          %v3145 = vsel %vm823, %v797, 0
          %v3148 = vsel %vm823, %v798, 0
          %v3151 = vsel %vm823, %v799, 0
          %v3154 = vsel %vm823, %v800, 0
          %v3157 = vsel %vm823, %v801, 0
          %v3160 = vsel %vm823, %v802, 0
          %v3163 = vsel %vm823, %v803, 0
          %v3166 = vsel %vm823, %v804, 0
          %v3169 = vsel %vm823, %v805, 0
          %v3172 = vsel %vm823, %v806, 0
          %3174 = vmatpush.xpose.msra.mxu0 %v3172
          %3175 = vmatpush.xpose.msra.mxu0 %v3169
          %3176 = vmatpush.xpose.msra.mxu0 %v3166
          %3177 = vmatpush.xpose.msra.mxu0 %v3163
          %3178 = vmatpush.xpose.msra.mxu0 %v3160
          %3179 = vmatpush.xpose.msra.mxu0 %v3157
          %3180 = vmatpush.xpose.msra.mxu0 %v3154
          %3181 = vmatpush.xpose.msra.mxu0 %v3151
          %3182 = vmatpush.xpose.msra.mxu0 %v3148
          %3183 = vmatpush.xpose.msra.mxu0 %v3145
          %3184 = vmatpush.xpose.msra.mxu0 %v3142
          %3185 = vmatpush.xpose.msra.mxu0 %v3139
          %3186 = vmatpush.xpose.msra.mxu0 %v3136
          %3187 = vmatpush.xpose.msra.mxu0 %v3133
          %3188 = vmatpush.xpose.msra.mxu0 %v3130
          %3189 = vmatpush.xpose.msra.mxu0 %v3127
          %3190 = vmatmul.f32.gmra.mxu0 %v3079
          %v3191 = vpop.f32.mrf.mxu0
          %v3192 = vadd.f32 0.0, %v3191
          %3193 = vmatmul.f32.gmra.mxu0 %v3082
          %v3194 = vpop.f32.mrf.mxu0
          %v3195 = vadd.f32 0.0, %v3194
          %3196 = vmatmul.f32.gmra.mxu0 %v3085
          %v3197 = vpop.f32.mrf.mxu0
          %v3198 = vadd.f32 0.0, %v3197
          %3199 = vmatmul.f32.gmra.mxu0 %v3088
          %v3200 = vpop.f32.mrf.mxu0
          %v3201 = vadd.f32 0.0, %v3200
          %3202 = vmatmul.f32.gmra.mxu0 %v3091
          %v3203 = vpop.f32.mrf.mxu0
          %v3204 = vadd.f32 0.0, %v3203
          %3205 = vmatmul.f32.gmra.mxu0 %v3094
          %v3206 = vpop.f32.mrf.mxu0
          %v3207 = vadd.f32 0.0, %v3206
          %3208 = vmatmul.f32.gmra.mxu0 %v3097
          %v3209 = vpop.f32.mrf.mxu0
          %v3210 = vadd.f32 0.0, %v3209
          %3211 = vmatmul.f32.gmra.mxu0 %v3100
          %v3212 = vpop.f32.mrf.mxu0
          %v3213 = vadd.f32 0.0, %v3212
          %3214 = vmatmul.f32.gmra.mxu0 %v3103
          %v3215 = vpop.f32.mrf.mxu0
          %v3216 = vadd.f32 0.0, %v3215
          %3217 = vmatmul.f32.gmra.mxu0 %v3106
          %v3218 = vpop.f32.mrf.mxu0
          %v3219 = vadd.f32 0.0, %v3218
          %3220 = vmatmul.f32.gmra.mxu0 %v3109
          %v3221 = vpop.f32.mrf.mxu0
          %v3222 = vadd.f32 0.0, %v3221
          %3223 = vmatmul.f32.gmra.mxu0 %v3112
          %v3224 = vpop.f32.mrf.mxu0
          %v3225 = vadd.f32 0.0, %v3224
          %3226 = vmatmul.f32.gmra.mxu0 %v3115
          %v3227 = vpop.f32.mrf.mxu0
          %v3228 = vadd.f32 0.0, %v3227
          %3229 = vmatmul.f32.gmra.mxu0 %v3118
          %v3230 = vpop.f32.mrf.mxu0
          %v3231 = vadd.f32 0.0, %v3230
          %3232 = vmatmul.f32.gmra.mxu0 %v3121
          %v3233 = vpop.f32.mrf.mxu0
          %v3234 = vadd.f32 0.0, %v3233
          %3235 = vmatmul.f32.gmra.mxu0 %v3124
          %v3236 = vpop.f32.mrf.mxu0
          %v3237 = vadd.f32 0.0, %v3236
          %3238 = vdwg.mxu0
          %v3240 = vsel %vm823, %v551, 0
          %v3243 = vsel %vm823, %v552, 0
          %v3246 = vsel %vm823, %v553, 0
          %v3249 = vsel %vm823, %v554, 0
          %v3252 = vsel %vm823, %v555, 0
          %v3255 = vsel %vm823, %v556, 0
          %v3258 = vsel %vm823, %v557, 0
          %v3261 = vsel %vm823, %v558, 0
          %v3264 = vsel %vm823, %v559, 0
          %v3267 = vsel %vm823, %v560, 0
          %v3270 = vsel %vm823, %v561, 0
          %v3273 = vsel %vm823, %v562, 0
          %v3276 = vsel %vm823, %v563, 0
          %v3279 = vsel %vm823, %v564, 0
          %v3282 = vsel %vm823, %v565, 0
          %v3285 = vsel %vm823, %v566, 0
          %v3288 = vsel %vm823, %v807, 0
          %v3291 = vsel %vm823, %v808, 0
          %v3294 = vsel %vm823, %v809, 0
          %v3297 = vsel %vm823, %v810, 0
          %v3300 = vsel %vm823, %v811, 0
          %v3303 = vsel %vm823, %v812, 0
          %v3306 = vsel %vm823, %v813, 0
          %v3309 = vsel %vm823, %v814, 0
          %v3312 = vsel %vm823, %v815, 0
          %v3315 = vsel %vm823, %v816, 0
          %v3318 = vsel %vm823, %v817, 0
          %v3321 = vsel %vm823, %v818, 0
          %v3324 = vsel %vm823, %v819, 0
          %v3327 = vsel %vm823, %v820, 0
          %v3330 = vsel %vm823, %v821, 0
          %v3333 = vsel %vm823, %v822, 0
          %3335 = vmatpush.xpose.msra.mxu0 %v3333
          %3336 = vmatpush.xpose.msra.mxu0 %v3330
          %3337 = vmatpush.xpose.msra.mxu0 %v3327
          %3338 = vmatpush.xpose.msra.mxu0 %v3324
          %3339 = vmatpush.xpose.msra.mxu0 %v3321
          %3340 = vmatpush.xpose.msra.mxu0 %v3318
          %3341 = vmatpush.xpose.msra.mxu0 %v3315
          %3342 = vmatpush.xpose.msra.mxu0 %v3312
          %3343 = vmatpush.xpose.msra.mxu0 %v3309
          %3344 = vmatpush.xpose.msra.mxu0 %v3306
          %3345 = vmatpush.xpose.msra.mxu0 %v3303
          %3346 = vmatpush.xpose.msra.mxu0 %v3300
          %3347 = vmatpush.xpose.msra.mxu0 %v3297
          %3348 = vmatpush.xpose.msra.mxu0 %v3294
          %3349 = vmatpush.xpose.msra.mxu0 %v3291
          %3350 = vmatpush.xpose.msra.mxu0 %v3288
          %3351 = vmatmul.f32.gmra.mxu0 %v3240
          %v3352 = vpop.f32.mrf.mxu0
          %v3353 = vadd.f32 0.0, %v3352
          %3354 = vmatmul.f32.gmra.mxu0 %v3243
          %v3355 = vpop.f32.mrf.mxu0
          %v3356 = vadd.f32 0.0, %v3355
          %3357 = vmatmul.f32.gmra.mxu0 %v3246
          %v3358 = vpop.f32.mrf.mxu0
          %v3359 = vadd.f32 0.0, %v3358
          %3360 = vmatmul.f32.gmra.mxu0 %v3249
          %v3361 = vpop.f32.mrf.mxu0
          %v3362 = vadd.f32 0.0, %v3361
          %3363 = vmatmul.f32.gmra.mxu0 %v3252
          %v3364 = vpop.f32.mrf.mxu0
          %v3365 = vadd.f32 0.0, %v3364
          %3366 = vmatmul.f32.gmra.mxu0 %v3255
          %v3367 = vpop.f32.mrf.mxu0
          %v3368 = vadd.f32 0.0, %v3367
          %3369 = vmatmul.f32.gmra.mxu0 %v3258
          %v3370 = vpop.f32.mrf.mxu0
          %v3371 = vadd.f32 0.0, %v3370
          %3372 = vmatmul.f32.gmra.mxu0 %v3261
          %v3373 = vpop.f32.mrf.mxu0
          %v3374 = vadd.f32 0.0, %v3373
          %3375 = vmatmul.f32.gmra.mxu0 %v3264
          %v3376 = vpop.f32.mrf.mxu0
          %v3377 = vadd.f32 0.0, %v3376
          %3378 = vmatmul.f32.gmra.mxu0 %v3267
          %v3379 = vpop.f32.mrf.mxu0
          %v3380 = vadd.f32 0.0, %v3379
          %3381 = vmatmul.f32.gmra.mxu0 %v3270
          %v3382 = vpop.f32.mrf.mxu0
          %v3383 = vadd.f32 0.0, %v3382
          %3384 = vmatmul.f32.gmra.mxu0 %v3273
          %v3385 = vpop.f32.mrf.mxu0
          %v3386 = vadd.f32 0.0, %v3385
          %3387 = vmatmul.f32.gmra.mxu0 %v3276
          %v3388 = vpop.f32.mrf.mxu0
          %v3389 = vadd.f32 0.0, %v3388
          %3390 = vmatmul.f32.gmra.mxu0 %v3279
          %v3391 = vpop.f32.mrf.mxu0
          %v3392 = vadd.f32 0.0, %v3391
          %3393 = vmatmul.f32.gmra.mxu0 %v3282
          %v3394 = vpop.f32.mrf.mxu0
          %v3395 = vadd.f32 0.0, %v3394
          %3396 = vmatmul.f32.gmra.mxu0 %v3285
          %v3397 = vpop.f32.mrf.mxu0
          %v3398 = vadd.f32 0.0, %v3397
          %3399 = vdwg.mxu0
          %3400 = vst [vmem:[#allocation2] sm:$0xff] %v938
          %3401 = vst [vmem:[#allocation2 + $0x8] sm:$0xff] %v941
          %3402 = vst [vmem:[#allocation2 + $0x10] sm:$0xff] %v944
          %3403 = vst [vmem:[#allocation2 + $0x18] sm:$0xff] %v947
          %3404 = vst [vmem:[#allocation2 + $0x20] sm:$0xff] %v950
          %3405 = vst [vmem:[#allocation2 + $0x28] sm:$0xff] %v953
          %3406 = vst [vmem:[#allocation2 + $0x30] sm:$0xff] %v956
          %3407 = vst [vmem:[#allocation2 + $0x38] sm:$0xff] %v959
          %3408 = vst [vmem:[#allocation2 + $0x40] sm:$0xff] %v962
          %3409 = vst [vmem:[#allocation2 + $0x48] sm:$0xff] %v965
          %3410 = vst [vmem:[#allocation2 + $0x50] sm:$0xff] %v968
          %3411 = vst [vmem:[#allocation2 + $0x58] sm:$0xff] %v971
          %3412 = vst [vmem:[#allocation2 + $0x60] sm:$0xff] %v974
          %3413 = vst [vmem:[#allocation2 + $0x68] sm:$0xff] %v977
          %3414 = vst [vmem:[#allocation2 + $0x70] sm:$0xff] %v980
          %3415 = vst [vmem:[#allocation2 + $0x78] sm:$0xff] %v983
          %3416 = vst [vmem:[#allocation2 + $0x80] sm:$0xff] %v1099
          %3417 = vst [vmem:[#allocation2 + $0x88] sm:$0xff] %v1102
          %3418 = vst [vmem:[#allocation2 + $0x90] sm:$0xff] %v1105
          %3419 = vst [vmem:[#allocation2 + $0x98] sm:$0xff] %v1108
          %3420 = vst [vmem:[#allocation2 + $0xa0] sm:$0xff] %v1111
          %3421 = vst [vmem:[#allocation2 + $0xa8] sm:$0xff] %v1114
          %3422 = vst [vmem:[#allocation2 + $0xb0] sm:$0xff] %v1117
          %3423 = vst [vmem:[#allocation2 + $0xb8] sm:$0xff] %v1120
          %3424 = vst [vmem:[#allocation2 + $0xc0] sm:$0xff] %v1123
          %3425 = vst [vmem:[#allocation2 + $0xc8] sm:$0xff] %v1126
          %3426 = vst [vmem:[#allocation2 + $0xd0] sm:$0xff] %v1129
          %3427 = vst [vmem:[#allocation2 + $0xd8] sm:$0xff] %v1132
          %3428 = vst [vmem:[#allocation2 + $0xe0] sm:$0xff] %v1135
          %3429 = vst [vmem:[#allocation2 + $0xe8] sm:$0xff] %v1138
          %3430 = vst [vmem:[#allocation2 + $0xf0] sm:$0xff] %v1141
          %3431 = vst [vmem:[#allocation2 + $0xf8] sm:$0xff] %v1144
          %3432 = vst [vmem:[#allocation2 + $0x100] sm:$0xff] %v1260
          %3433 = vst [vmem:[#allocation2 + $0x108] sm:$0xff] %v1263
          %3434 = vst [vmem:[#allocation2 + $0x110] sm:$0xff] %v1266
          %3435 = vst [vmem:[#allocation2 + $0x118] sm:$0xff] %v1269
          %3436 = vst [vmem:[#allocation2 + $0x120] sm:$0xff] %v1272
          %3437 = vst [vmem:[#allocation2 + $0x128] sm:$0xff] %v1275
          %3438 = vst [vmem:[#allocation2 + $0x130] sm:$0xff] %v1278
          %3439 = vst [vmem:[#allocation2 + $0x138] sm:$0xff] %v1281
          %3440 = vst [vmem:[#allocation2 + $0x140] sm:$0xff] %v1284
          %3441 = vst [vmem:[#allocation2 + $0x148] sm:$0xff] %v1287
          %3442 = vst [vmem:[#allocation2 + $0x150] sm:$0xff] %v1290
          %3443 = vst [vmem:[#allocation2 + $0x158] sm:$0xff] %v1293
          %3444 = vst [vmem:[#allocation2 + $0x160] sm:$0xff] %v1296
          %3445 = vst [vmem:[#allocation2 + $0x168] sm:$0xff] %v1299
          %3446 = vst [vmem:[#allocation2 + $0x170] sm:$0xff] %v1302
          %3447 = vst [vmem:[#allocation2 + $0x178] sm:$0xff] %v1305
          %3448 = vst [vmem:[#allocation2 + $0x180] sm:$0xff] %v1421
          %3449 = vst [vmem:[#allocation2 + $0x188] sm:$0xff] %v1424
          %3450 = vst [vmem:[#allocation2 + $0x190] sm:$0xff] %v1427
          %3451 = vst [vmem:[#allocation2 + $0x198] sm:$0xff] %v1430
          %3452 = vst [vmem:[#allocation2 + $0x1a0] sm:$0xff] %v1433
          %3453 = vst [vmem:[#allocation2 + $0x1a8] sm:$0xff] %v1436
          %3454 = vst [vmem:[#allocation2 + $0x1b0] sm:$0xff] %v1439
          %3455 = vst [vmem:[#allocation2 + $0x1b8] sm:$0xff] %v1442
          %3456 = vst [vmem:[#allocation2 + $0x1c0] sm:$0xff] %v1445
          %3457 = vst [vmem:[#allocation2 + $0x1c8] sm:$0xff] %v1448
          %3458 = vst [vmem:[#allocation2 + $0x1d0] sm:$0xff] %v1451
          %3459 = vst [vmem:[#allocation2 + $0x1d8] sm:$0xff] %v1454
          %3460 = vst [vmem:[#allocation2 + $0x1e0] sm:$0xff] %v1457
          %3461 = vst [vmem:[#allocation2 + $0x1e8] sm:$0xff] %v1460
          %3462 = vst [vmem:[#allocation2 + $0x1f0] sm:$0xff] %v1463
          %3463 = vst [vmem:[#allocation2 + $0x1f8] sm:$0xff] %v1466
          %3464 = vst [vmem:[#allocation2 + $0x200] sm:$0xff] %v1582
          %3465 = vst [vmem:[#allocation2 + $0x208] sm:$0xff] %v1585
          %3466 = vst [vmem:[#allocation2 + $0x210] sm:$0xff] %v1588
          %3467 = vst [vmem:[#allocation2 + $0x218] sm:$0xff] %v1591
          %3468 = vst [vmem:[#allocation2 + $0x220] sm:$0xff] %v1594
          %3469 = vst [vmem:[#allocation2 + $0x228] sm:$0xff] %v1597
          %3470 = vst [vmem:[#allocation2 + $0x230] sm:$0xff] %v1600
          %3471 = vst [vmem:[#allocation2 + $0x238] sm:$0xff] %v1603
          %3472 = vst [vmem:[#allocation2 + $0x240] sm:$0xff] %v1606
          %3473 = vst [vmem:[#allocation2 + $0x248] sm:$0xff] %v1609
          %3474 = vst [vmem:[#allocation2 + $0x250] sm:$0xff] %v1612
          %3475 = vst [vmem:[#allocation2 + $0x258] sm:$0xff] %v1615
          %3476 = vst [vmem:[#allocation2 + $0x260] sm:$0xff] %v1618
          %3477 = vst [vmem:[#allocation2 + $0x268] sm:$0xff] %v1621
          %3478 = vst [vmem:[#allocation2 + $0x270] sm:$0xff] %v1624
          %3479 = vst [vmem:[#allocation2 + $0x278] sm:$0xff] %v1627
          %3480 = vst [vmem:[#allocation2 + $0x280] sm:$0xff] %v1743
          %3481 = vst [vmem:[#allocation2 + $0x288] sm:$0xff] %v1746
          %3482 = vst [vmem:[#allocation2 + $0x290] sm:$0xff] %v1749
          %3483 = vst [vmem:[#allocation2 + $0x298] sm:$0xff] %v1752
          %3484 = vst [vmem:[#allocation2 + $0x2a0] sm:$0xff] %v1755
          %3485 = vst [vmem:[#allocation2 + $0x2a8] sm:$0xff] %v1758
          %3486 = vst [vmem:[#allocation2 + $0x2b0] sm:$0xff] %v1761
          %3487 = vst [vmem:[#allocation2 + $0x2b8] sm:$0xff] %v1764
          %3488 = vst [vmem:[#allocation2 + $0x2c0] sm:$0xff] %v1767
          %3489 = vst [vmem:[#allocation2 + $0x2c8] sm:$0xff] %v1770
          %3490 = vst [vmem:[#allocation2 + $0x2d0] sm:$0xff] %v1773
          %3491 = vst [vmem:[#allocation2 + $0x2d8] sm:$0xff] %v1776
          %3492 = vst [vmem:[#allocation2 + $0x2e0] sm:$0xff] %v1779
          %3493 = vst [vmem:[#allocation2 + $0x2e8] sm:$0xff] %v1782
          %3494 = vst [vmem:[#allocation2 + $0x2f0] sm:$0xff] %v1785
          %3495 = vst [vmem:[#allocation2 + $0x2f8] sm:$0xff] %v1788
          %3496 = vst [vmem:[#allocation2 + $0x300] sm:$0xff] %v1904
          %3497 = vst [vmem:[#allocation2 + $0x308] sm:$0xff] %v1907
          %3498 = vst [vmem:[#allocation2 + $0x310] sm:$0xff] %v1910
          %3499 = vst [vmem:[#allocation2 + $0x318] sm:$0xff] %v1913
          %3500 = vst [vmem:[#allocation2 + $0x320] sm:$0xff] %v1916
          %3501 = vst [vmem:[#allocation2 + $0x328] sm:$0xff] %v1919
          %3502 = vst [vmem:[#allocation2 + $0x330] sm:$0xff] %v1922
          %3503 = vst [vmem:[#allocation2 + $0x338] sm:$0xff] %v1925
          %3504 = vst [vmem:[#allocation2 + $0x340] sm:$0xff] %v1928
          %3505 = vst [vmem:[#allocation2 + $0x348] sm:$0xff] %v1931
          %3506 = vst [vmem:[#allocation2 + $0x350] sm:$0xff] %v1934
          %3507 = vst [vmem:[#allocation2 + $0x358] sm:$0xff] %v1937
          %3508 = vst [vmem:[#allocation2 + $0x360] sm:$0xff] %v1940
          %3509 = vst [vmem:[#allocation2 + $0x368] sm:$0xff] %v1943
          %3510 = vst [vmem:[#allocation2 + $0x370] sm:$0xff] %v1946
          %3511 = vst [vmem:[#allocation2 + $0x378] sm:$0xff] %v1949
          %3512 = vst [vmem:[#allocation2 + $0x380] sm:$0xff] %v2065
          %3513 = vst [vmem:[#allocation2 + $0x388] sm:$0xff] %v2068
          %3514 = vst [vmem:[#allocation2 + $0x390] sm:$0xff] %v2071
          %3515 = vst [vmem:[#allocation2 + $0x398] sm:$0xff] %v2074
          %3516 = vst [vmem:[#allocation2 + $0x3a0] sm:$0xff] %v2077
          %3517 = vst [vmem:[#allocation2 + $0x3a8] sm:$0xff] %v2080
          %3518 = vst [vmem:[#allocation2 + $0x3b0] sm:$0xff] %v2083
          %3519 = vst [vmem:[#allocation2 + $0x3b8] sm:$0xff] %v2086
          %3520 = vst [vmem:[#allocation2 + $0x3c0] sm:$0xff] %v2089
          %3521 = vst [vmem:[#allocation2 + $0x3c8] sm:$0xff] %v2092
          %3522 = vst [vmem:[#allocation2 + $0x3d0] sm:$0xff] %v2095
          %3523 = vst [vmem:[#allocation2 + $0x3d8] sm:$0xff] %v2098
          %3524 = vst [vmem:[#allocation2 + $0x3e0] sm:$0xff] %v2101
          %3525 = vst [vmem:[#allocation2 + $0x3e8] sm:$0xff] %v2104
          %3526 = vst [vmem:[#allocation2 + $0x3f0] sm:$0xff] %v2107
          %3527 = vst [vmem:[#allocation2 + $0x3f8] sm:$0xff] %v2110
          %3528 = vst [vmem:[#allocation2 + $0x400] sm:$0xff] %v2226
          %3529 = vst [vmem:[#allocation2 + $0x408] sm:$0xff] %v2229
          %3530 = vst [vmem:[#allocation2 + $0x410] sm:$0xff] %v2232
          %3531 = vst [vmem:[#allocation2 + $0x418] sm:$0xff] %v2235
          %3532 = vst [vmem:[#allocation2 + $0x420] sm:$0xff] %v2238
          %3533 = vst [vmem:[#allocation2 + $0x428] sm:$0xff] %v2241
          %3534 = vst [vmem:[#allocation2 + $0x430] sm:$0xff] %v2244
          %3535 = vst [vmem:[#allocation2 + $0x438] sm:$0xff] %v2247
          %3536 = vst [vmem:[#allocation2 + $0x440] sm:$0xff] %v2250
          %3537 = vst [vmem:[#allocation2 + $0x448] sm:$0xff] %v2253
          %3538 = vst [vmem:[#allocation2 + $0x450] sm:$0xff] %v2256
          %3539 = vst [vmem:[#allocation2 + $0x458] sm:$0xff] %v2259
          %3540 = vst [vmem:[#allocation2 + $0x460] sm:$0xff] %v2262
          %3541 = vst [vmem:[#allocation2 + $0x468] sm:$0xff] %v2265
          %3542 = vst [vmem:[#allocation2 + $0x470] sm:$0xff] %v2268
          %3543 = vst [vmem:[#allocation2 + $0x478] sm:$0xff] %v2271
          %3544 = vst [vmem:[#allocation2 + $0x480] sm:$0xff] %v2387
          %3545 = vst [vmem:[#allocation2 + $0x488] sm:$0xff] %v2390
          %3546 = vst [vmem:[#allocation2 + $0x490] sm:$0xff] %v2393
          %3547 = vst [vmem:[#allocation2 + $0x498] sm:$0xff] %v2396
          %3548 = vst [vmem:[#allocation2 + $0x4a0] sm:$0xff] %v2399
          %3549 = vst [vmem:[#allocation2 + $0x4a8] sm:$0xff] %v2402
          %3550 = vst [vmem:[#allocation2 + $0x4b0] sm:$0xff] %v2405
          %3551 = vst [vmem:[#allocation2 + $0x4b8] sm:$0xff] %v2408
          %3552 = vst [vmem:[#allocation2 + $0x4c0] sm:$0xff] %v2411
          %3553 = vst [vmem:[#allocation2 + $0x4c8] sm:$0xff] %v2414
          %3554 = vst [vmem:[#allocation2 + $0x4d0] sm:$0xff] %v2417
          %3555 = vst [vmem:[#allocation2 + $0x4d8] sm:$0xff] %v2420
          %3556 = vst [vmem:[#allocation2 + $0x4e0] sm:$0xff] %v2423
          %3557 = vst [vmem:[#allocation2 + $0x4e8] sm:$0xff] %v2426
          %3558 = vst [vmem:[#allocation2 + $0x4f0] sm:$0xff] %v2429
          %3559 = vst [vmem:[#allocation2 + $0x4f8] sm:$0xff] %v2432
          %3560 = vst [vmem:[#allocation2 + $0x500] sm:$0xff] %v2548
          %3561 = vst [vmem:[#allocation2 + $0x508] sm:$0xff] %v2551
          %3562 = vst [vmem:[#allocation2 + $0x510] sm:$0xff] %v2554
          %3563 = vst [vmem:[#allocation2 + $0x518] sm:$0xff] %v2557
          %3564 = vst [vmem:[#allocation2 + $0x520] sm:$0xff] %v2560
          %3565 = vst [vmem:[#allocation2 + $0x528] sm:$0xff] %v2563
          %3566 = vst [vmem:[#allocation2 + $0x530] sm:$0xff] %v2566
          %3567 = vst [vmem:[#allocation2 + $0x538] sm:$0xff] %v2569
          %3568 = vst [vmem:[#allocation2 + $0x540] sm:$0xff] %v2572
          %3569 = vst [vmem:[#allocation2 + $0x548] sm:$0xff] %v2575
          %3570 = vst [vmem:[#allocation2 + $0x550] sm:$0xff] %v2578
          %3571 = vst [vmem:[#allocation2 + $0x558] sm:$0xff] %v2581
          %3572 = vst [vmem:[#allocation2 + $0x560] sm:$0xff] %v2584
          %3573 = vst [vmem:[#allocation2 + $0x568] sm:$0xff] %v2587
          %3574 = vst [vmem:[#allocation2 + $0x570] sm:$0xff] %v2590
          %3575 = vst [vmem:[#allocation2 + $0x578] sm:$0xff] %v2593
          %3576 = vst [vmem:[#allocation2 + $0x580] sm:$0xff] %v2709
          %3577 = vst [vmem:[#allocation2 + $0x588] sm:$0xff] %v2712
          %3578 = vst [vmem:[#allocation2 + $0x590] sm:$0xff] %v2715
          %3579 = vst [vmem:[#allocation2 + $0x598] sm:$0xff] %v2718
          %3580 = vst [vmem:[#allocation2 + $0x5a0] sm:$0xff] %v2721
          %3581 = vst [vmem:[#allocation2 + $0x5a8] sm:$0xff] %v2724
          %3582 = vst [vmem:[#allocation2 + $0x5b0] sm:$0xff] %v2727
          %3583 = vst [vmem:[#allocation2 + $0x5b8] sm:$0xff] %v2730
          %3584 = vst [vmem:[#allocation2 + $0x5c0] sm:$0xff] %v2733
          %3585 = vst [vmem:[#allocation2 + $0x5c8] sm:$0xff] %v2736
          %3586 = vst [vmem:[#allocation2 + $0x5d0] sm:$0xff] %v2739
          %3587 = vst [vmem:[#allocation2 + $0x5d8] sm:$0xff] %v2742
          %3588 = vst [vmem:[#allocation2 + $0x5e0] sm:$0xff] %v2745
          %3589 = vst [vmem:[#allocation2 + $0x5e8] sm:$0xff] %v2748
          %3590 = vst [vmem:[#allocation2 + $0x5f0] sm:$0xff] %v2751
          %3591 = vst [vmem:[#allocation2 + $0x5f8] sm:$0xff] %v2754
          %3592 = vst [vmem:[#allocation2 + $0x600] sm:$0xff] %v2870
          %3593 = vst [vmem:[#allocation2 + $0x608] sm:$0xff] %v2873
          %3594 = vst [vmem:[#allocation2 + $0x610] sm:$0xff] %v2876
          %3595 = vst [vmem:[#allocation2 + $0x618] sm:$0xff] %v2879
          %3596 = vst [vmem:[#allocation2 + $0x620] sm:$0xff] %v2882
          %3597 = vst [vmem:[#allocation2 + $0x628] sm:$0xff] %v2885
          %3598 = vst [vmem:[#allocation2 + $0x630] sm:$0xff] %v2888
          %3599 = vst [vmem:[#allocation2 + $0x638] sm:$0xff] %v2891
          %3600 = vst [vmem:[#allocation2 + $0x640] sm:$0xff] %v2894
          %3601 = vst [vmem:[#allocation2 + $0x648] sm:$0xff] %v2897
          %3602 = vst [vmem:[#allocation2 + $0x650] sm:$0xff] %v2900
          %3603 = vst [vmem:[#allocation2 + $0x658] sm:$0xff] %v2903
          %3604 = vst [vmem:[#allocation2 + $0x660] sm:$0xff] %v2906
          %3605 = vst [vmem:[#allocation2 + $0x668] sm:$0xff] %v2909
          %3606 = vst [vmem:[#allocation2 + $0x670] sm:$0xff] %v2912
          %3607 = vst [vmem:[#allocation2 + $0x678] sm:$0xff] %v2915
          %3608 = vst [vmem:[#allocation2 + $0x680] sm:$0xff] %v3031
          %3609 = vst [vmem:[#allocation2 + $0x688] sm:$0xff] %v3034
          %3610 = vst [vmem:[#allocation2 + $0x690] sm:$0xff] %v3037
          %3611 = vst [vmem:[#allocation2 + $0x698] sm:$0xff] %v3040
          %3612 = vst [vmem:[#allocation2 + $0x6a0] sm:$0xff] %v3043
          %3613 = vst [vmem:[#allocation2 + $0x6a8] sm:$0xff] %v3046
          %3614 = vst [vmem:[#allocation2 + $0x6b0] sm:$0xff] %v3049
          %3615 = vst [vmem:[#allocation2 + $0x6b8] sm:$0xff] %v3052
          %3616 = vst [vmem:[#allocation2 + $0x6c0] sm:$0xff] %v3055
          %3617 = vst [vmem:[#allocation2 + $0x6c8] sm:$0xff] %v3058
          %3618 = vst [vmem:[#allocation2 + $0x6d0] sm:$0xff] %v3061
          %3619 = vst [vmem:[#allocation2 + $0x6d8] sm:$0xff] %v3064
          %3620 = vst [vmem:[#allocation2 + $0x6e0] sm:$0xff] %v3067
          %3621 = vst [vmem:[#allocation2 + $0x6e8] sm:$0xff] %v3070
          %3622 = vst [vmem:[#allocation2 + $0x6f0] sm:$0xff] %v3073
          %3623 = vst [vmem:[#allocation2 + $0x6f8] sm:$0xff] %v3076
          %3624 = vst [vmem:[#allocation2 + $0x700] sm:$0xff] %v3192
          %3625 = vst [vmem:[#allocation2 + $0x708] sm:$0xff] %v3195
          %3626 = vst [vmem:[#allocation2 + $0x710] sm:$0xff] %v3198
          %3627 = vst [vmem:[#allocation2 + $0x718] sm:$0xff] %v3201
          %3628 = vst [vmem:[#allocation2 + $0x720] sm:$0xff] %v3204
          %3629 = vst [vmem:[#allocation2 + $0x728] sm:$0xff] %v3207
          %3630 = vst [vmem:[#allocation2 + $0x730] sm:$0xff] %v3210
          %3631 = vst [vmem:[#allocation2 + $0x738] sm:$0xff] %v3213
          %3632 = vst [vmem:[#allocation2 + $0x740] sm:$0xff] %v3216
          %3633 = vst [vmem:[#allocation2 + $0x748] sm:$0xff] %v3219
          %3634 = vst [vmem:[#allocation2 + $0x750] sm:$0xff] %v3222
          %3635 = vst [vmem:[#allocation2 + $0x758] sm:$0xff] %v3225
          %3636 = vst [vmem:[#allocation2 + $0x760] sm:$0xff] %v3228
          %3637 = vst [vmem:[#allocation2 + $0x768] sm:$0xff] %v3231
          %3638 = vst [vmem:[#allocation2 + $0x770] sm:$0xff] %v3234
          %3639 = vst [vmem:[#allocation2 + $0x778] sm:$0xff] %v3237
          %3640 = vst [vmem:[#allocation2 + $0x780] sm:$0xff] %v3353
          %3641 = vst [vmem:[#allocation2 + $0x788] sm:$0xff] %v3356
          %3642 = vst [vmem:[#allocation2 + $0x790] sm:$0xff] %v3359
          %3643 = vst [vmem:[#allocation2 + $0x798] sm:$0xff] %v3362
          %3644 = vst [vmem:[#allocation2 + $0x7a0] sm:$0xff] %v3365
          %3645 = vst [vmem:[#allocation2 + $0x7a8] sm:$0xff] %v3368
          %3646 = vst [vmem:[#allocation2 + $0x7b0] sm:$0xff] %v3371
          %3647 = vst [vmem:[#allocation2 + $0x7b8] sm:$0xff] %v3374
          %3648 = vst [vmem:[#allocation2 + $0x7c0] sm:$0xff] %v3377
          %3649 = vst [vmem:[#allocation2 + $0x7c8] sm:$0xff] %v3380
          %3650 = vst [vmem:[#allocation2 + $0x7d0] sm:$0xff] %v3383
          %3651 = vst [vmem:[#allocation2 + $0x7d8] sm:$0xff] %v3386
          %3652 = vst [vmem:[#allocation2 + $0x7e0] sm:$0xff] %v3389
          %3653 = vst [vmem:[#allocation2 + $0x7e8] sm:$0xff] %v3392
          %3654 = vst [vmem:[#allocation2 + $0x7f0] sm:$0xff] %v3395
          %3655 = vst [vmem:[#allocation2 + $0x7f8] sm:$0xff] %v3398
        $region36: #{get_cost_volume.7} parent=31 // pred_fallthru
          _
        %v3656 = vlaneseq
        %v3657 = vand.u32 %v3656, 127
        %v3658 = vcvt.s32.f32 %v3657
        loop: start=0, step=1, limit=8
        $region37: #{get_cost_volume.7} parent=31 // loop_pre_header
          _
        $region38: #{get_cost_volume.7} parent=31 // loop_header
          %s3660 = sphi 0, %s3664
          %p3661 = scmp.ge.s32.totalorder %s3660, 8
        $region39: #{get_cost_volume.7} parent=31 // loop_header_branch
          %3663 = sbr.rel (%p3661) target = $region43
        $region40: #{get_cost_volume.7} parent=31 // loop_body
          %s3665 = smul.u32 %s3660, 16
          %s3666 = scalar_lea.vmem %s302, %s3665
          %v3667 = vld [vmem:[%s3666] sm:$0xff]
          %v3668 = vld [vmem:[%s3666 + $0x8] sm:$0xff]
          %v3669 = vmul.f32 %v3667, 1.0666667
          %v3670 = vmul.f32 %v3668, 1.0666667
          %v3671 = vsub.f32 %v3669, 0.5
          %v3672 = vsub.f32 %v3670, 0.5
          %v3673 = vperm.slane %v3671, 0
          %v3674 = vlaneseq
          %v3675 = vshrl.u32 %v3674, 7
          %3677 = vset.pattern.permute.xlu0 %v3675
          %3678 = vperm.xlu0 %3677, %v3673
          %v3679 = vpop.permute.xlu0 %3678
          %v3680 = vlaneseq
          %v3681 = vshrl.u32 %v3680, 7
          %v3682 = vadd.s32 %v3681, 8
          %3683 = vset.pattern.permute.xlu0 %v3682
          %3684 = vperm.xlu0 %3683, %v3673
          %v3685 = vpop.permute.xlu0 %3684
          %v3686 = vlaneseq
          %v3687 = vshrl.u32 %v3686, 7
          %v3688 = vadd.s32 %v3687, 16
          %3689 = vset.pattern.permute.xlu0 %v3688
          %3690 = vperm.xlu0 %3689, %v3673
          %v3691 = vpop.permute.xlu0 %3690
          %v3692 = vlaneseq
          %v3693 = vshrl.u32 %v3692, 7
          %v3694 = vadd.s32 %v3693, 24
          %3695 = vset.pattern.permute.xlu0 %v3694
          %3696 = vperm.xlu0 %3695, %v3673
          %v3697 = vpop.permute.xlu0 %3696
          %v3698 = vlaneseq
          %v3699 = vshrl.u32 %v3698, 7
          %v3700 = vadd.s32 %v3699, 32
          %3701 = vset.pattern.permute.xlu0 %v3700
          %3702 = vperm.xlu0 %3701, %v3673
          %v3703 = vpop.permute.xlu0 %3702
          %v3704 = vlaneseq
          %v3705 = vshrl.u32 %v3704, 7
          %v3706 = vadd.s32 %v3705, 40
          %3707 = vset.pattern.permute.xlu0 %v3706
          %3708 = vperm.xlu0 %3707, %v3673
          %v3709 = vpop.permute.xlu0 %3708
          %v3710 = vlaneseq
          %v3711 = vshrl.u32 %v3710, 7
          %v3712 = vadd.s32 %v3711, 48
          %3713 = vset.pattern.permute.xlu0 %v3712
          %3714 = vperm.xlu0 %3713, %v3673
          %v3715 = vpop.permute.xlu0 %3714
          %v3716 = vlaneseq
          %v3717 = vshrl.u32 %v3716, 7
          %v3718 = vadd.s32 %v3717, 56
          %3719 = vset.pattern.permute.xlu0 %v3718
          %3720 = vperm.xlu0 %3719, %v3673
          %v3721 = vpop.permute.xlu0 %3720
          %v3722 = vlaneseq
          %v3723 = vshrl.u32 %v3722, 7
          %v3724 = vadd.s32 %v3723, 64
          %3725 = vset.pattern.permute.xlu0 %v3724
          %3726 = vperm.xlu0 %3725, %v3673
          %v3727 = vpop.permute.xlu0 %3726
          %v3728 = vlaneseq
          %v3729 = vshrl.u32 %v3728, 7
          %v3730 = vadd.s32 %v3729, 72
          %3731 = vset.pattern.permute.xlu0 %v3730
          %3732 = vperm.xlu0 %3731, %v3673
          %v3733 = vpop.permute.xlu0 %3732
          %v3734 = vlaneseq
          %v3735 = vshrl.u32 %v3734, 7
          %v3736 = vadd.s32 %v3735, 80
          %3737 = vset.pattern.permute.xlu0 %v3736
          %3738 = vperm.xlu0 %3737, %v3673
          %v3739 = vpop.permute.xlu0 %3738
          %v3740 = vlaneseq
          %v3741 = vshrl.u32 %v3740, 7
          %v3742 = vadd.s32 %v3741, 88
          %3743 = vset.pattern.permute.xlu0 %v3742
          %3744 = vperm.xlu0 %3743, %v3673
          %v3745 = vpop.permute.xlu0 %3744
          %v3746 = vlaneseq
          %v3747 = vshrl.u32 %v3746, 7
          %v3748 = vadd.s32 %v3747, 96
          %3749 = vset.pattern.permute.xlu0 %v3748
          %3750 = vperm.xlu0 %3749, %v3673
          %v3751 = vpop.permute.xlu0 %3750
          %v3752 = vlaneseq
          %v3753 = vshrl.u32 %v3752, 7
          %v3754 = vadd.s32 %v3753, 104
          %3755 = vset.pattern.permute.xlu0 %v3754
          %3756 = vperm.xlu0 %3755, %v3673
          %v3757 = vpop.permute.xlu0 %3756
          %v3758 = vlaneseq
          %v3759 = vshrl.u32 %v3758, 7
          %v3760 = vadd.s32 %v3759, 112
          %3761 = vset.pattern.permute.xlu0 %v3760
          %3762 = vperm.xlu0 %3761, %v3673
          %v3763 = vpop.permute.xlu0 %3762
          %v3764 = vlaneseq
          %v3765 = vshrl.u32 %v3764, 7
          %v3766 = vadd.s32 %v3765, 120
          %3767 = vset.pattern.permute.xlu0 %v3766
          %3768 = vperm.xlu0 %3767, %v3673
          %v3769 = vpop.permute.xlu0 %3768
          %v3770 = vperm.slane %v3671, 1
          %v3771 = vlaneseq
          %v3772 = vshrl.u32 %v3771, 7
          %3774 = vset.pattern.permute.xlu0 %v3772
          %3775 = vperm.xlu0 %3774, %v3770
          %v3776 = vpop.permute.xlu0 %3775
          %v3777 = vlaneseq
          %v3778 = vshrl.u32 %v3777, 7
          %v3779 = vadd.s32 %v3778, 8
          %3780 = vset.pattern.permute.xlu0 %v3779
          %3781 = vperm.xlu0 %3780, %v3770
          %v3782 = vpop.permute.xlu0 %3781
          %v3783 = vlaneseq
          %v3784 = vshrl.u32 %v3783, 7
          %v3785 = vadd.s32 %v3784, 16
          %3786 = vset.pattern.permute.xlu0 %v3785
          %3787 = vperm.xlu0 %3786, %v3770
          %v3788 = vpop.permute.xlu0 %3787
          %v3789 = vlaneseq
          %v3790 = vshrl.u32 %v3789, 7
          %v3791 = vadd.s32 %v3790, 24
          %3792 = vset.pattern.permute.xlu0 %v3791
          %3793 = vperm.xlu0 %3792, %v3770
          %v3794 = vpop.permute.xlu0 %3793
          %v3795 = vlaneseq
          %v3796 = vshrl.u32 %v3795, 7
          %v3797 = vadd.s32 %v3796, 32
          %3798 = vset.pattern.permute.xlu0 %v3797
          %3799 = vperm.xlu0 %3798, %v3770
          %v3800 = vpop.permute.xlu0 %3799
          %v3801 = vlaneseq
          %v3802 = vshrl.u32 %v3801, 7
          %v3803 = vadd.s32 %v3802, 40
          %3804 = vset.pattern.permute.xlu0 %v3803
          %3805 = vperm.xlu0 %3804, %v3770
          %v3806 = vpop.permute.xlu0 %3805
          %v3807 = vlaneseq
          %v3808 = vshrl.u32 %v3807, 7
          %v3809 = vadd.s32 %v3808, 48
          %3810 = vset.pattern.permute.xlu0 %v3809
          %3811 = vperm.xlu0 %3810, %v3770
          %v3812 = vpop.permute.xlu0 %3811
          %v3813 = vlaneseq
          %v3814 = vshrl.u32 %v3813, 7
          %v3815 = vadd.s32 %v3814, 56
          %3816 = vset.pattern.permute.xlu0 %v3815
          %3817 = vperm.xlu0 %3816, %v3770
          %v3818 = vpop.permute.xlu0 %3817
          %v3819 = vlaneseq
          %v3820 = vshrl.u32 %v3819, 7
          %v3821 = vadd.s32 %v3820, 64
          %3822 = vset.pattern.permute.xlu0 %v3821
          %3823 = vperm.xlu0 %3822, %v3770
          %v3824 = vpop.permute.xlu0 %3823
          %v3825 = vlaneseq
          %v3826 = vshrl.u32 %v3825, 7
          %v3827 = vadd.s32 %v3826, 72
          %3828 = vset.pattern.permute.xlu0 %v3827
          %3829 = vperm.xlu0 %3828, %v3770
          %v3830 = vpop.permute.xlu0 %3829
          %v3831 = vlaneseq
          %v3832 = vshrl.u32 %v3831, 7
          %v3833 = vadd.s32 %v3832, 80
          %3834 = vset.pattern.permute.xlu0 %v3833
          %3835 = vperm.xlu0 %3834, %v3770
          %v3836 = vpop.permute.xlu0 %3835
          %v3837 = vlaneseq
          %v3838 = vshrl.u32 %v3837, 7
          %v3839 = vadd.s32 %v3838, 88
          %3840 = vset.pattern.permute.xlu0 %v3839
          %3841 = vperm.xlu0 %3840, %v3770
          %v3842 = vpop.permute.xlu0 %3841
          %v3843 = vlaneseq
          %v3844 = vshrl.u32 %v3843, 7
          %v3845 = vadd.s32 %v3844, 96
          %3846 = vset.pattern.permute.xlu0 %v3845
          %3847 = vperm.xlu0 %3846, %v3770
          %v3848 = vpop.permute.xlu0 %3847
          %v3849 = vlaneseq
          %v3850 = vshrl.u32 %v3849, 7
          %v3851 = vadd.s32 %v3850, 104
          %3852 = vset.pattern.permute.xlu0 %v3851
          %3853 = vperm.xlu0 %3852, %v3770
          %v3854 = vpop.permute.xlu0 %3853
          %v3855 = vlaneseq
          %v3856 = vshrl.u32 %v3855, 7
          %v3857 = vadd.s32 %v3856, 112
          %3858 = vset.pattern.permute.xlu0 %v3857
          %3859 = vperm.xlu0 %3858, %v3770
          %v3860 = vpop.permute.xlu0 %3859
          %v3861 = vlaneseq
          %v3862 = vshrl.u32 %v3861, 7
          %v3863 = vadd.s32 %v3862, 120
          %3864 = vset.pattern.permute.xlu0 %v3863
          %3865 = vperm.xlu0 %3864, %v3770
          %v3866 = vpop.permute.xlu0 %3865
          %v3867 = vperm.slane %v3671, 2
          %v3868 = vlaneseq
          %v3869 = vshrl.u32 %v3868, 7
          %3871 = vset.pattern.permute.xlu0 %v3869
          %3872 = vperm.xlu0 %3871, %v3867
          %v3873 = vpop.permute.xlu0 %3872
          %v3874 = vlaneseq
          %v3875 = vshrl.u32 %v3874, 7
          %v3876 = vadd.s32 %v3875, 8
          %3877 = vset.pattern.permute.xlu0 %v3876
          %3878 = vperm.xlu0 %3877, %v3867
          %v3879 = vpop.permute.xlu0 %3878
          %v3880 = vlaneseq
          %v3881 = vshrl.u32 %v3880, 7
          %v3882 = vadd.s32 %v3881, 16
          %3883 = vset.pattern.permute.xlu0 %v3882
          %3884 = vperm.xlu0 %3883, %v3867
          %v3885 = vpop.permute.xlu0 %3884
          %v3886 = vlaneseq
          %v3887 = vshrl.u32 %v3886, 7
          %v3888 = vadd.s32 %v3887, 24
          %3889 = vset.pattern.permute.xlu0 %v3888
          %3890 = vperm.xlu0 %3889, %v3867
          %v3891 = vpop.permute.xlu0 %3890
          %v3892 = vlaneseq
          %v3893 = vshrl.u32 %v3892, 7
          %v3894 = vadd.s32 %v3893, 32
          %3895 = vset.pattern.permute.xlu0 %v3894
          %3896 = vperm.xlu0 %3895, %v3867
          %v3897 = vpop.permute.xlu0 %3896
          %v3898 = vlaneseq
          %v3899 = vshrl.u32 %v3898, 7
          %v3900 = vadd.s32 %v3899, 40
          %3901 = vset.pattern.permute.xlu0 %v3900
          %3902 = vperm.xlu0 %3901, %v3867
          %v3903 = vpop.permute.xlu0 %3902
          %v3904 = vlaneseq
          %v3905 = vshrl.u32 %v3904, 7
          %v3906 = vadd.s32 %v3905, 48
          %3907 = vset.pattern.permute.xlu0 %v3906
          %3908 = vperm.xlu0 %3907, %v3867
          %v3909 = vpop.permute.xlu0 %3908
          %v3910 = vlaneseq
          %v3911 = vshrl.u32 %v3910, 7
          %v3912 = vadd.s32 %v3911, 56
          %3913 = vset.pattern.permute.xlu0 %v3912
          %3914 = vperm.xlu0 %3913, %v3867
          %v3915 = vpop.permute.xlu0 %3914
          %v3916 = vlaneseq
          %v3917 = vshrl.u32 %v3916, 7
          %v3918 = vadd.s32 %v3917, 64
          %3919 = vset.pattern.permute.xlu0 %v3918
          %3920 = vperm.xlu0 %3919, %v3867
          %v3921 = vpop.permute.xlu0 %3920
          %v3922 = vlaneseq
          %v3923 = vshrl.u32 %v3922, 7
          %v3924 = vadd.s32 %v3923, 72
          %3925 = vset.pattern.permute.xlu0 %v3924
          %3926 = vperm.xlu0 %3925, %v3867
          %v3927 = vpop.permute.xlu0 %3926
          %v3928 = vlaneseq
          %v3929 = vshrl.u32 %v3928, 7
          %v3930 = vadd.s32 %v3929, 80
          %3931 = vset.pattern.permute.xlu0 %v3930
          %3932 = vperm.xlu0 %3931, %v3867
          %v3933 = vpop.permute.xlu0 %3932
          %v3934 = vlaneseq
          %v3935 = vshrl.u32 %v3934, 7
          %v3936 = vadd.s32 %v3935, 88
          %3937 = vset.pattern.permute.xlu0 %v3936
          %3938 = vperm.xlu0 %3937, %v3867
          %v3939 = vpop.permute.xlu0 %3938
          %v3940 = vlaneseq
          %v3941 = vshrl.u32 %v3940, 7
          %v3942 = vadd.s32 %v3941, 96
          %3943 = vset.pattern.permute.xlu0 %v3942
          %3944 = vperm.xlu0 %3943, %v3867
          %v3945 = vpop.permute.xlu0 %3944
          %v3946 = vlaneseq
          %v3947 = vshrl.u32 %v3946, 7
          %v3948 = vadd.s32 %v3947, 104
          %3949 = vset.pattern.permute.xlu0 %v3948
          %3950 = vperm.xlu0 %3949, %v3867
          %v3951 = vpop.permute.xlu0 %3950
          %v3952 = vlaneseq
          %v3953 = vshrl.u32 %v3952, 7
          %v3954 = vadd.s32 %v3953, 112
          %3955 = vset.pattern.permute.xlu0 %v3954
          %3956 = vperm.xlu0 %3955, %v3867
          %v3957 = vpop.permute.xlu0 %3956
          %v3958 = vlaneseq
          %v3959 = vshrl.u32 %v3958, 7
          %v3960 = vadd.s32 %v3959, 120
          %3961 = vset.pattern.permute.xlu0 %v3960
          %3962 = vperm.xlu0 %3961, %v3867
          %v3963 = vpop.permute.xlu0 %3962
          %v3964 = vperm.slane %v3671, 3
          %v3965 = vlaneseq
          %v3966 = vshrl.u32 %v3965, 7
          %3968 = vset.pattern.permute.xlu0 %v3966
          %3969 = vperm.xlu0 %3968, %v3964
          %v3970 = vpop.permute.xlu0 %3969
          %v3971 = vlaneseq
          %v3972 = vshrl.u32 %v3971, 7
          %v3973 = vadd.s32 %v3972, 8
          %3974 = vset.pattern.permute.xlu0 %v3973
          %3975 = vperm.xlu0 %3974, %v3964
          %v3976 = vpop.permute.xlu0 %3975
          %v3977 = vlaneseq
          %v3978 = vshrl.u32 %v3977, 7
          %v3979 = vadd.s32 %v3978, 16
          %3980 = vset.pattern.permute.xlu0 %v3979
          %3981 = vperm.xlu0 %3980, %v3964
          %v3982 = vpop.permute.xlu0 %3981
          %v3983 = vlaneseq
          %v3984 = vshrl.u32 %v3983, 7
          %v3985 = vadd.s32 %v3984, 24
          %3986 = vset.pattern.permute.xlu0 %v3985
          %3987 = vperm.xlu0 %3986, %v3964
          %v3988 = vpop.permute.xlu0 %3987
          %v3989 = vlaneseq
          %v3990 = vshrl.u32 %v3989, 7
          %v3991 = vadd.s32 %v3990, 32
          %3992 = vset.pattern.permute.xlu0 %v3991
          %3993 = vperm.xlu0 %3992, %v3964
          %v3994 = vpop.permute.xlu0 %3993
          %v3995 = vlaneseq
          %v3996 = vshrl.u32 %v3995, 7
          %v3997 = vadd.s32 %v3996, 40
          %3998 = vset.pattern.permute.xlu0 %v3997
          %3999 = vperm.xlu0 %3998, %v3964
          %v4000 = vpop.permute.xlu0 %3999
          %v4001 = vlaneseq
          %v4002 = vshrl.u32 %v4001, 7
          %v4003 = vadd.s32 %v4002, 48
          %4004 = vset.pattern.permute.xlu0 %v4003
          %4005 = vperm.xlu0 %4004, %v3964
          %v4006 = vpop.permute.xlu0 %4005
          %v4007 = vlaneseq
          %v4008 = vshrl.u32 %v4007, 7
          %v4009 = vadd.s32 %v4008, 56
          %4010 = vset.pattern.permute.xlu0 %v4009
          %4011 = vperm.xlu0 %4010, %v3964
          %v4012 = vpop.permute.xlu0 %4011
          %v4013 = vlaneseq
          %v4014 = vshrl.u32 %v4013, 7
          %v4015 = vadd.s32 %v4014, 64
          %4016 = vset.pattern.permute.xlu0 %v4015
          %4017 = vperm.xlu0 %4016, %v3964
          %v4018 = vpop.permute.xlu0 %4017
          %v4019 = vlaneseq
          %v4020 = vshrl.u32 %v4019, 7
          %v4021 = vadd.s32 %v4020, 72
          %4022 = vset.pattern.permute.xlu0 %v4021
          %4023 = vperm.xlu0 %4022, %v3964
          %v4024 = vpop.permute.xlu0 %4023
          %v4025 = vlaneseq
          %v4026 = vshrl.u32 %v4025, 7
          %v4027 = vadd.s32 %v4026, 80
          %4028 = vset.pattern.permute.xlu0 %v4027
          %4029 = vperm.xlu0 %4028, %v3964
          %v4030 = vpop.permute.xlu0 %4029
          %v4031 = vlaneseq
          %v4032 = vshrl.u32 %v4031, 7
          %v4033 = vadd.s32 %v4032, 88
          %4034 = vset.pattern.permute.xlu0 %v4033
          %4035 = vperm.xlu0 %4034, %v3964
          %v4036 = vpop.permute.xlu0 %4035
          %v4037 = vlaneseq
          %v4038 = vshrl.u32 %v4037, 7
          %v4039 = vadd.s32 %v4038, 96
          %4040 = vset.pattern.permute.xlu0 %v4039
          %4041 = vperm.xlu0 %4040, %v3964
          %v4042 = vpop.permute.xlu0 %4041
          %v4043 = vlaneseq
          %v4044 = vshrl.u32 %v4043, 7
          %v4045 = vadd.s32 %v4044, 104
          %4046 = vset.pattern.permute.xlu0 %v4045
          %4047 = vperm.xlu0 %4046, %v3964
          %v4048 = vpop.permute.xlu0 %4047
          %v4049 = vlaneseq
          %v4050 = vshrl.u32 %v4049, 7
          %v4051 = vadd.s32 %v4050, 112
          %4052 = vset.pattern.permute.xlu0 %v4051
          %4053 = vperm.xlu0 %4052, %v3964
          %v4054 = vpop.permute.xlu0 %4053
          %v4055 = vlaneseq
          %v4056 = vshrl.u32 %v4055, 7
          %v4057 = vadd.s32 %v4056, 120
          %4058 = vset.pattern.permute.xlu0 %v4057
          %4059 = vperm.xlu0 %4058, %v3964
          %v4060 = vpop.permute.xlu0 %4059
          %v4061 = vperm.slane %v3671, 4
          %v4062 = vlaneseq
          %v4063 = vshrl.u32 %v4062, 7
          %4065 = vset.pattern.permute.xlu0 %v4063
          %4066 = vperm.xlu0 %4065, %v4061
          %v4067 = vpop.permute.xlu0 %4066
          %v4068 = vlaneseq
          %v4069 = vshrl.u32 %v4068, 7
          %v4070 = vadd.s32 %v4069, 8
          %4071 = vset.pattern.permute.xlu0 %v4070
          %4072 = vperm.xlu0 %4071, %v4061
          %v4073 = vpop.permute.xlu0 %4072
          %v4074 = vlaneseq
          %v4075 = vshrl.u32 %v4074, 7
          %v4076 = vadd.s32 %v4075, 16
          %4077 = vset.pattern.permute.xlu0 %v4076
          %4078 = vperm.xlu0 %4077, %v4061
          %v4079 = vpop.permute.xlu0 %4078
          %v4080 = vlaneseq
          %v4081 = vshrl.u32 %v4080, 7
          %v4082 = vadd.s32 %v4081, 24
          %4083 = vset.pattern.permute.xlu0 %v4082
          %4084 = vperm.xlu0 %4083, %v4061
          %v4085 = vpop.permute.xlu0 %4084
          %v4086 = vlaneseq
          %v4087 = vshrl.u32 %v4086, 7
          %v4088 = vadd.s32 %v4087, 32
          %4089 = vset.pattern.permute.xlu0 %v4088
          %4090 = vperm.xlu0 %4089, %v4061
          %v4091 = vpop.permute.xlu0 %4090
          %v4092 = vlaneseq
          %v4093 = vshrl.u32 %v4092, 7
          %v4094 = vadd.s32 %v4093, 40
          %4095 = vset.pattern.permute.xlu0 %v4094
          %4096 = vperm.xlu0 %4095, %v4061
          %v4097 = vpop.permute.xlu0 %4096
          %v4098 = vlaneseq
          %v4099 = vshrl.u32 %v4098, 7
          %v4100 = vadd.s32 %v4099, 48
          %4101 = vset.pattern.permute.xlu0 %v4100
          %4102 = vperm.xlu0 %4101, %v4061
          %v4103 = vpop.permute.xlu0 %4102
          %v4104 = vlaneseq
          %v4105 = vshrl.u32 %v4104, 7
          %v4106 = vadd.s32 %v4105, 56
          %4107 = vset.pattern.permute.xlu0 %v4106
          %4108 = vperm.xlu0 %4107, %v4061
          %v4109 = vpop.permute.xlu0 %4108
          %v4110 = vlaneseq
          %v4111 = vshrl.u32 %v4110, 7
          %v4112 = vadd.s32 %v4111, 64
          %4113 = vset.pattern.permute.xlu0 %v4112
          %4114 = vperm.xlu0 %4113, %v4061
          %v4115 = vpop.permute.xlu0 %4114
          %v4116 = vlaneseq
          %v4117 = vshrl.u32 %v4116, 7
          %v4118 = vadd.s32 %v4117, 72
          %4119 = vset.pattern.permute.xlu0 %v4118
          %4120 = vperm.xlu0 %4119, %v4061
          %v4121 = vpop.permute.xlu0 %4120
          %v4122 = vlaneseq
          %v4123 = vshrl.u32 %v4122, 7
          %v4124 = vadd.s32 %v4123, 80
          %4125 = vset.pattern.permute.xlu0 %v4124
          %4126 = vperm.xlu0 %4125, %v4061
          %v4127 = vpop.permute.xlu0 %4126
          %v4128 = vlaneseq
          %v4129 = vshrl.u32 %v4128, 7
          %v4130 = vadd.s32 %v4129, 88
          %4131 = vset.pattern.permute.xlu0 %v4130
          %4132 = vperm.xlu0 %4131, %v4061
          %v4133 = vpop.permute.xlu0 %4132
          %v4134 = vlaneseq
          %v4135 = vshrl.u32 %v4134, 7
          %v4136 = vadd.s32 %v4135, 96
          %4137 = vset.pattern.permute.xlu0 %v4136
          %4138 = vperm.xlu0 %4137, %v4061
          %v4139 = vpop.permute.xlu0 %4138
          %v4140 = vlaneseq
          %v4141 = vshrl.u32 %v4140, 7
          %v4142 = vadd.s32 %v4141, 104
          %4143 = vset.pattern.permute.xlu0 %v4142
          %4144 = vperm.xlu0 %4143, %v4061
          %v4145 = vpop.permute.xlu0 %4144
          %v4146 = vlaneseq
          %v4147 = vshrl.u32 %v4146, 7
          %v4148 = vadd.s32 %v4147, 112
          %4149 = vset.pattern.permute.xlu0 %v4148
          %4150 = vperm.xlu0 %4149, %v4061
          %v4151 = vpop.permute.xlu0 %4150
          %v4152 = vlaneseq
          %v4153 = vshrl.u32 %v4152, 7
          %v4154 = vadd.s32 %v4153, 120
          %4155 = vset.pattern.permute.xlu0 %v4154
          %4156 = vperm.xlu0 %4155, %v4061
          %v4157 = vpop.permute.xlu0 %4156
          %v4158 = vperm.slane %v3671, 5
          %v4159 = vlaneseq
          %v4160 = vshrl.u32 %v4159, 7
          %4162 = vset.pattern.permute.xlu0 %v4160
          %4163 = vperm.xlu0 %4162, %v4158
          %v4164 = vpop.permute.xlu0 %4163
          %v4165 = vlaneseq
          %v4166 = vshrl.u32 %v4165, 7
          %v4167 = vadd.s32 %v4166, 8
          %4168 = vset.pattern.permute.xlu0 %v4167
          %4169 = vperm.xlu0 %4168, %v4158
          %v4170 = vpop.permute.xlu0 %4169
          %v4171 = vlaneseq
          %v4172 = vshrl.u32 %v4171, 7
          %v4173 = vadd.s32 %v4172, 16
          %4174 = vset.pattern.permute.xlu0 %v4173
          %4175 = vperm.xlu0 %4174, %v4158
          %v4176 = vpop.permute.xlu0 %4175
          %v4177 = vlaneseq
          %v4178 = vshrl.u32 %v4177, 7
          %v4179 = vadd.s32 %v4178, 24
          %4180 = vset.pattern.permute.xlu0 %v4179
          %4181 = vperm.xlu0 %4180, %v4158
          %v4182 = vpop.permute.xlu0 %4181
          %v4183 = vlaneseq
          %v4184 = vshrl.u32 %v4183, 7
          %v4185 = vadd.s32 %v4184, 32
          %4186 = vset.pattern.permute.xlu0 %v4185
          %4187 = vperm.xlu0 %4186, %v4158
          %v4188 = vpop.permute.xlu0 %4187
          %v4189 = vlaneseq
          %v4190 = vshrl.u32 %v4189, 7
          %v4191 = vadd.s32 %v4190, 40
          %4192 = vset.pattern.permute.xlu0 %v4191
          %4193 = vperm.xlu0 %4192, %v4158
          %v4194 = vpop.permute.xlu0 %4193
          %v4195 = vlaneseq
          %v4196 = vshrl.u32 %v4195, 7
          %v4197 = vadd.s32 %v4196, 48
          %4198 = vset.pattern.permute.xlu0 %v4197
          %4199 = vperm.xlu0 %4198, %v4158
          %v4200 = vpop.permute.xlu0 %4199
          %v4201 = vlaneseq
          %v4202 = vshrl.u32 %v4201, 7
          %v4203 = vadd.s32 %v4202, 56
          %4204 = vset.pattern.permute.xlu0 %v4203
          %4205 = vperm.xlu0 %4204, %v4158
          %v4206 = vpop.permute.xlu0 %4205
          %v4207 = vlaneseq
          %v4208 = vshrl.u32 %v4207, 7
          %v4209 = vadd.s32 %v4208, 64
          %4210 = vset.pattern.permute.xlu0 %v4209
          %4211 = vperm.xlu0 %4210, %v4158
          %v4212 = vpop.permute.xlu0 %4211
          %v4213 = vlaneseq
          %v4214 = vshrl.u32 %v4213, 7
          %v4215 = vadd.s32 %v4214, 72
          %4216 = vset.pattern.permute.xlu0 %v4215
          %4217 = vperm.xlu0 %4216, %v4158
          %v4218 = vpop.permute.xlu0 %4217
          %v4219 = vlaneseq
          %v4220 = vshrl.u32 %v4219, 7
          %v4221 = vadd.s32 %v4220, 80
          %4222 = vset.pattern.permute.xlu0 %v4221
          %4223 = vperm.xlu0 %4222, %v4158
          %v4224 = vpop.permute.xlu0 %4223
          %v4225 = vlaneseq
          %v4226 = vshrl.u32 %v4225, 7
          %v4227 = vadd.s32 %v4226, 88
          %4228 = vset.pattern.permute.xlu0 %v4227
          %4229 = vperm.xlu0 %4228, %v4158
          %v4230 = vpop.permute.xlu0 %4229
          %v4231 = vlaneseq
          %v4232 = vshrl.u32 %v4231, 7
          %v4233 = vadd.s32 %v4232, 96
          %4234 = vset.pattern.permute.xlu0 %v4233
          %4235 = vperm.xlu0 %4234, %v4158
          %v4236 = vpop.permute.xlu0 %4235
          %v4237 = vlaneseq
          %v4238 = vshrl.u32 %v4237, 7
          %v4239 = vadd.s32 %v4238, 104
          %4240 = vset.pattern.permute.xlu0 %v4239
          %4241 = vperm.xlu0 %4240, %v4158
          %v4242 = vpop.permute.xlu0 %4241
          %v4243 = vlaneseq
          %v4244 = vshrl.u32 %v4243, 7
          %v4245 = vadd.s32 %v4244, 112
          %4246 = vset.pattern.permute.xlu0 %v4245
          %4247 = vperm.xlu0 %4246, %v4158
          %v4248 = vpop.permute.xlu0 %4247
          %v4249 = vlaneseq
          %v4250 = vshrl.u32 %v4249, 7
          %v4251 = vadd.s32 %v4250, 120
          %4252 = vset.pattern.permute.xlu0 %v4251
          %4253 = vperm.xlu0 %4252, %v4158
          %v4254 = vpop.permute.xlu0 %4253
          %v4255 = vperm.slane %v3671, 6
          %v4256 = vlaneseq
          %v4257 = vshrl.u32 %v4256, 7
          %4259 = vset.pattern.permute.xlu0 %v4257
          %4260 = vperm.xlu0 %4259, %v4255
          %v4261 = vpop.permute.xlu0 %4260
          %v4262 = vlaneseq
          %v4263 = vshrl.u32 %v4262, 7
          %v4264 = vadd.s32 %v4263, 8
          %4265 = vset.pattern.permute.xlu0 %v4264
          %4266 = vperm.xlu0 %4265, %v4255
          %v4267 = vpop.permute.xlu0 %4266
          %v4268 = vlaneseq
          %v4269 = vshrl.u32 %v4268, 7
          %v4270 = vadd.s32 %v4269, 16
          %4271 = vset.pattern.permute.xlu0 %v4270
          %4272 = vperm.xlu0 %4271, %v4255
          %v4273 = vpop.permute.xlu0 %4272
          %v4274 = vlaneseq
          %v4275 = vshrl.u32 %v4274, 7
          %v4276 = vadd.s32 %v4275, 24
          %4277 = vset.pattern.permute.xlu0 %v4276
          %4278 = vperm.xlu0 %4277, %v4255
          %v4279 = vpop.permute.xlu0 %4278
          %v4280 = vlaneseq
          %v4281 = vshrl.u32 %v4280, 7
          %v4282 = vadd.s32 %v4281, 32
          %4283 = vset.pattern.permute.xlu0 %v4282
          %4284 = vperm.xlu0 %4283, %v4255
          %v4285 = vpop.permute.xlu0 %4284
          %v4286 = vlaneseq
          %v4287 = vshrl.u32 %v4286, 7
          %v4288 = vadd.s32 %v4287, 40
          %4289 = vset.pattern.permute.xlu0 %v4288
          %4290 = vperm.xlu0 %4289, %v4255
          %v4291 = vpop.permute.xlu0 %4290
          %v4292 = vlaneseq
          %v4293 = vshrl.u32 %v4292, 7
          %v4294 = vadd.s32 %v4293, 48
          %4295 = vset.pattern.permute.xlu0 %v4294
          %4296 = vperm.xlu0 %4295, %v4255
          %v4297 = vpop.permute.xlu0 %4296
          %v4298 = vlaneseq
          %v4299 = vshrl.u32 %v4298, 7
          %v4300 = vadd.s32 %v4299, 56
          %4301 = vset.pattern.permute.xlu0 %v4300
          %4302 = vperm.xlu0 %4301, %v4255
          %v4303 = vpop.permute.xlu0 %4302
          %v4304 = vlaneseq
          %v4305 = vshrl.u32 %v4304, 7
          %v4306 = vadd.s32 %v4305, 64
          %4307 = vset.pattern.permute.xlu0 %v4306
          %4308 = vperm.xlu0 %4307, %v4255
          %v4309 = vpop.permute.xlu0 %4308
          %v4310 = vlaneseq
          %v4311 = vshrl.u32 %v4310, 7
          %v4312 = vadd.s32 %v4311, 72
          %4313 = vset.pattern.permute.xlu0 %v4312
          %4314 = vperm.xlu0 %4313, %v4255
          %v4315 = vpop.permute.xlu0 %4314
          %v4316 = vlaneseq
          %v4317 = vshrl.u32 %v4316, 7
          %v4318 = vadd.s32 %v4317, 80
          %4319 = vset.pattern.permute.xlu0 %v4318
          %4320 = vperm.xlu0 %4319, %v4255
          %v4321 = vpop.permute.xlu0 %4320
          %v4322 = vlaneseq
          %v4323 = vshrl.u32 %v4322, 7
          %v4324 = vadd.s32 %v4323, 88
          %4325 = vset.pattern.permute.xlu0 %v4324
          %4326 = vperm.xlu0 %4325, %v4255
          %v4327 = vpop.permute.xlu0 %4326
          %v4328 = vlaneseq
          %v4329 = vshrl.u32 %v4328, 7
          %v4330 = vadd.s32 %v4329, 96
          %4331 = vset.pattern.permute.xlu0 %v4330
          %4332 = vperm.xlu0 %4331, %v4255
          %v4333 = vpop.permute.xlu0 %4332
          %v4334 = vlaneseq
          %v4335 = vshrl.u32 %v4334, 7
          %v4336 = vadd.s32 %v4335, 104
          %4337 = vset.pattern.permute.xlu0 %v4336
          %4338 = vperm.xlu0 %4337, %v4255
          %v4339 = vpop.permute.xlu0 %4338
          %v4340 = vlaneseq
          %v4341 = vshrl.u32 %v4340, 7
          %v4342 = vadd.s32 %v4341, 112
          %4343 = vset.pattern.permute.xlu0 %v4342
          %4344 = vperm.xlu0 %4343, %v4255
          %v4345 = vpop.permute.xlu0 %4344
          %v4346 = vlaneseq
          %v4347 = vshrl.u32 %v4346, 7
          %v4348 = vadd.s32 %v4347, 120
          %4349 = vset.pattern.permute.xlu0 %v4348
          %4350 = vperm.xlu0 %4349, %v4255
          %v4351 = vpop.permute.xlu0 %4350
          %v4352 = vperm.slane %v3671, 7
          %v4353 = vlaneseq
          %v4354 = vshrl.u32 %v4353, 7
          %4356 = vset.pattern.permute.xlu0 %v4354
          %4357 = vperm.xlu0 %4356, %v4352
          %v4358 = vpop.permute.xlu0 %4357
          %v4359 = vlaneseq
          %v4360 = vshrl.u32 %v4359, 7
          %v4361 = vadd.s32 %v4360, 8
          %4362 = vset.pattern.permute.xlu0 %v4361
          %4363 = vperm.xlu0 %4362, %v4352
          %v4364 = vpop.permute.xlu0 %4363
          %v4365 = vlaneseq
          %v4366 = vshrl.u32 %v4365, 7
          %v4367 = vadd.s32 %v4366, 16
          %4368 = vset.pattern.permute.xlu0 %v4367
          %4369 = vperm.xlu0 %4368, %v4352
          %v4370 = vpop.permute.xlu0 %4369
          %v4371 = vlaneseq
          %v4372 = vshrl.u32 %v4371, 7
          %v4373 = vadd.s32 %v4372, 24
          %4374 = vset.pattern.permute.xlu0 %v4373
          %4375 = vperm.xlu0 %4374, %v4352
          %v4376 = vpop.permute.xlu0 %4375
          %v4377 = vlaneseq
          %v4378 = vshrl.u32 %v4377, 7
          %v4379 = vadd.s32 %v4378, 32
          %4380 = vset.pattern.permute.xlu0 %v4379
          %4381 = vperm.xlu0 %4380, %v4352
          %v4382 = vpop.permute.xlu0 %4381
          %v4383 = vlaneseq
          %v4384 = vshrl.u32 %v4383, 7
          %v4385 = vadd.s32 %v4384, 40
          %4386 = vset.pattern.permute.xlu0 %v4385
          %4387 = vperm.xlu0 %4386, %v4352
          %v4388 = vpop.permute.xlu0 %4387
          %v4389 = vlaneseq
          %v4390 = vshrl.u32 %v4389, 7
          %v4391 = vadd.s32 %v4390, 48
          %4392 = vset.pattern.permute.xlu0 %v4391
          %4393 = vperm.xlu0 %4392, %v4352
          %v4394 = vpop.permute.xlu0 %4393
          %v4395 = vlaneseq
          %v4396 = vshrl.u32 %v4395, 7
          %v4397 = vadd.s32 %v4396, 56
          %4398 = vset.pattern.permute.xlu0 %v4397
          %4399 = vperm.xlu0 %4398, %v4352
          %v4400 = vpop.permute.xlu0 %4399
          %v4401 = vlaneseq
          %v4402 = vshrl.u32 %v4401, 7
          %v4403 = vadd.s32 %v4402, 64
          %4404 = vset.pattern.permute.xlu0 %v4403
          %4405 = vperm.xlu0 %4404, %v4352
          %v4406 = vpop.permute.xlu0 %4405
          %v4407 = vlaneseq
          %v4408 = vshrl.u32 %v4407, 7
          %v4409 = vadd.s32 %v4408, 72
          %4410 = vset.pattern.permute.xlu0 %v4409
          %4411 = vperm.xlu0 %4410, %v4352
          %v4412 = vpop.permute.xlu0 %4411
          %v4413 = vlaneseq
          %v4414 = vshrl.u32 %v4413, 7
          %v4415 = vadd.s32 %v4414, 80
          %4416 = vset.pattern.permute.xlu0 %v4415
          %4417 = vperm.xlu0 %4416, %v4352
          %v4418 = vpop.permute.xlu0 %4417
          %v4419 = vlaneseq
          %v4420 = vshrl.u32 %v4419, 7
          %v4421 = vadd.s32 %v4420, 88
          %4422 = vset.pattern.permute.xlu0 %v4421
          %4423 = vperm.xlu0 %4422, %v4352
          %v4424 = vpop.permute.xlu0 %4423
          %v4425 = vlaneseq
          %v4426 = vshrl.u32 %v4425, 7
          %v4427 = vadd.s32 %v4426, 96
          %4428 = vset.pattern.permute.xlu0 %v4427
          %4429 = vperm.xlu0 %4428, %v4352
          %v4430 = vpop.permute.xlu0 %4429
          %v4431 = vlaneseq
          %v4432 = vshrl.u32 %v4431, 7
          %v4433 = vadd.s32 %v4432, 104
          %4434 = vset.pattern.permute.xlu0 %v4433
          %4435 = vperm.xlu0 %4434, %v4352
          %v4436 = vpop.permute.xlu0 %4435
          %v4437 = vlaneseq
          %v4438 = vshrl.u32 %v4437, 7
          %v4439 = vadd.s32 %v4438, 112
          %4440 = vset.pattern.permute.xlu0 %v4439
          %4441 = vperm.xlu0 %4440, %v4352
          %v4442 = vpop.permute.xlu0 %4441
          %v4443 = vlaneseq
          %v4444 = vshrl.u32 %v4443, 7
          %v4445 = vadd.s32 %v4444, 120
          %4446 = vset.pattern.permute.xlu0 %v4445
          %4447 = vperm.xlu0 %4446, %v4352
          %v4448 = vpop.permute.xlu0 %4447
          %v4449 = vperm.slane %v3672, 0
          %v4450 = vlaneseq
          %v4451 = vshrl.u32 %v4450, 7
          %4453 = vset.pattern.permute.xlu0 %v4451
          %4454 = vperm.xlu0 %4453, %v4449
          %v4455 = vpop.permute.xlu0 %4454
          %v4456 = vlaneseq
          %v4457 = vshrl.u32 %v4456, 7
          %v4458 = vadd.s32 %v4457, 8
          %4459 = vset.pattern.permute.xlu0 %v4458
          %4460 = vperm.xlu0 %4459, %v4449
          %v4461 = vpop.permute.xlu0 %4460
          %v4462 = vlaneseq
          %v4463 = vshrl.u32 %v4462, 7
          %v4464 = vadd.s32 %v4463, 16
          %4465 = vset.pattern.permute.xlu0 %v4464
          %4466 = vperm.xlu0 %4465, %v4449
          %v4467 = vpop.permute.xlu0 %4466
          %v4468 = vlaneseq
          %v4469 = vshrl.u32 %v4468, 7
          %v4470 = vadd.s32 %v4469, 24
          %4471 = vset.pattern.permute.xlu0 %v4470
          %4472 = vperm.xlu0 %4471, %v4449
          %v4473 = vpop.permute.xlu0 %4472
          %v4474 = vlaneseq
          %v4475 = vshrl.u32 %v4474, 7
          %v4476 = vadd.s32 %v4475, 32
          %4477 = vset.pattern.permute.xlu0 %v4476
          %4478 = vperm.xlu0 %4477, %v4449
          %v4479 = vpop.permute.xlu0 %4478
          %v4480 = vlaneseq
          %v4481 = vshrl.u32 %v4480, 7
          %v4482 = vadd.s32 %v4481, 40
          %4483 = vset.pattern.permute.xlu0 %v4482
          %4484 = vperm.xlu0 %4483, %v4449
          %v4485 = vpop.permute.xlu0 %4484
          %v4486 = vlaneseq
          %v4487 = vshrl.u32 %v4486, 7
          %v4488 = vadd.s32 %v4487, 48
          %4489 = vset.pattern.permute.xlu0 %v4488
          %4490 = vperm.xlu0 %4489, %v4449
          %v4491 = vpop.permute.xlu0 %4490
          %v4492 = vlaneseq
          %v4493 = vshrl.u32 %v4492, 7
          %v4494 = vadd.s32 %v4493, 56
          %4495 = vset.pattern.permute.xlu0 %v4494
          %4496 = vperm.xlu0 %4495, %v4449
          %v4497 = vpop.permute.xlu0 %4496
          %v4498 = vlaneseq
          %v4499 = vshrl.u32 %v4498, 7
          %v4500 = vadd.s32 %v4499, 64
          %4501 = vset.pattern.permute.xlu0 %v4500
          %4502 = vperm.xlu0 %4501, %v4449
          %v4503 = vpop.permute.xlu0 %4502
          %v4504 = vlaneseq
          %v4505 = vshrl.u32 %v4504, 7
          %v4506 = vadd.s32 %v4505, 72
          %4507 = vset.pattern.permute.xlu0 %v4506
          %4508 = vperm.xlu0 %4507, %v4449
          %v4509 = vpop.permute.xlu0 %4508
          %v4510 = vlaneseq
          %v4511 = vshrl.u32 %v4510, 7
          %v4512 = vadd.s32 %v4511, 80
          %4513 = vset.pattern.permute.xlu0 %v4512
          %4514 = vperm.xlu0 %4513, %v4449
          %v4515 = vpop.permute.xlu0 %4514
          %v4516 = vlaneseq
          %v4517 = vshrl.u32 %v4516, 7
          %v4518 = vadd.s32 %v4517, 88
          %4519 = vset.pattern.permute.xlu0 %v4518
          %4520 = vperm.xlu0 %4519, %v4449
          %v4521 = vpop.permute.xlu0 %4520
          %v4522 = vlaneseq
          %v4523 = vshrl.u32 %v4522, 7
          %v4524 = vadd.s32 %v4523, 96
          %4525 = vset.pattern.permute.xlu0 %v4524
          %4526 = vperm.xlu0 %4525, %v4449
          %v4527 = vpop.permute.xlu0 %4526
          %v4528 = vlaneseq
          %v4529 = vshrl.u32 %v4528, 7
          %v4530 = vadd.s32 %v4529, 104
          %4531 = vset.pattern.permute.xlu0 %v4530
          %4532 = vperm.xlu0 %4531, %v4449
          %v4533 = vpop.permute.xlu0 %4532
          %v4534 = vlaneseq
          %v4535 = vshrl.u32 %v4534, 7
          %v4536 = vadd.s32 %v4535, 112
          %4537 = vset.pattern.permute.xlu0 %v4536
          %4538 = vperm.xlu0 %4537, %v4449
          %v4539 = vpop.permute.xlu0 %4538
          %v4540 = vlaneseq
          %v4541 = vshrl.u32 %v4540, 7
          %v4542 = vadd.s32 %v4541, 120
          %4543 = vset.pattern.permute.xlu0 %v4542
          %4544 = vperm.xlu0 %4543, %v4449
          %v4545 = vpop.permute.xlu0 %4544
          %v4546 = vperm.slane %v3672, 1
          %v4547 = vlaneseq
          %v4548 = vshrl.u32 %v4547, 7
          %4550 = vset.pattern.permute.xlu0 %v4548
          %4551 = vperm.xlu0 %4550, %v4546
          %v4552 = vpop.permute.xlu0 %4551
          %v4553 = vlaneseq
          %v4554 = vshrl.u32 %v4553, 7
          %v4555 = vadd.s32 %v4554, 8
          %4556 = vset.pattern.permute.xlu0 %v4555
          %4557 = vperm.xlu0 %4556, %v4546
          %v4558 = vpop.permute.xlu0 %4557
          %v4559 = vlaneseq
          %v4560 = vshrl.u32 %v4559, 7
          %v4561 = vadd.s32 %v4560, 16
          %4562 = vset.pattern.permute.xlu0 %v4561
          %4563 = vperm.xlu0 %4562, %v4546
          %v4564 = vpop.permute.xlu0 %4563
          %v4565 = vlaneseq
          %v4566 = vshrl.u32 %v4565, 7
          %v4567 = vadd.s32 %v4566, 24
          %4568 = vset.pattern.permute.xlu0 %v4567
          %4569 = vperm.xlu0 %4568, %v4546
          %v4570 = vpop.permute.xlu0 %4569
          %v4571 = vlaneseq
          %v4572 = vshrl.u32 %v4571, 7
          %v4573 = vadd.s32 %v4572, 32
          %4574 = vset.pattern.permute.xlu0 %v4573
          %4575 = vperm.xlu0 %4574, %v4546
          %v4576 = vpop.permute.xlu0 %4575
          %v4577 = vlaneseq
          %v4578 = vshrl.u32 %v4577, 7
          %v4579 = vadd.s32 %v4578, 40
          %4580 = vset.pattern.permute.xlu0 %v4579
          %4581 = vperm.xlu0 %4580, %v4546
          %v4582 = vpop.permute.xlu0 %4581
          %v4583 = vlaneseq
          %v4584 = vshrl.u32 %v4583, 7
          %v4585 = vadd.s32 %v4584, 48
          %4586 = vset.pattern.permute.xlu0 %v4585
          %4587 = vperm.xlu0 %4586, %v4546
          %v4588 = vpop.permute.xlu0 %4587
          %v4589 = vlaneseq
          %v4590 = vshrl.u32 %v4589, 7
          %v4591 = vadd.s32 %v4590, 56
          %4592 = vset.pattern.permute.xlu0 %v4591
          %4593 = vperm.xlu0 %4592, %v4546
          %v4594 = vpop.permute.xlu0 %4593
          %v4595 = vlaneseq
          %v4596 = vshrl.u32 %v4595, 7
          %v4597 = vadd.s32 %v4596, 64
          %4598 = vset.pattern.permute.xlu0 %v4597
          %4599 = vperm.xlu0 %4598, %v4546
          %v4600 = vpop.permute.xlu0 %4599
          %v4601 = vlaneseq
          %v4602 = vshrl.u32 %v4601, 7
          %v4603 = vadd.s32 %v4602, 72
          %4604 = vset.pattern.permute.xlu0 %v4603
          %4605 = vperm.xlu0 %4604, %v4546
          %v4606 = vpop.permute.xlu0 %4605
          %v4607 = vlaneseq
          %v4608 = vshrl.u32 %v4607, 7
          %v4609 = vadd.s32 %v4608, 80
          %4610 = vset.pattern.permute.xlu0 %v4609
          %4611 = vperm.xlu0 %4610, %v4546
          %v4612 = vpop.permute.xlu0 %4611
          %v4613 = vlaneseq
          %v4614 = vshrl.u32 %v4613, 7
          %v4615 = vadd.s32 %v4614, 88
          %4616 = vset.pattern.permute.xlu0 %v4615
          %4617 = vperm.xlu0 %4616, %v4546
          %v4618 = vpop.permute.xlu0 %4617
          %v4619 = vlaneseq
          %v4620 = vshrl.u32 %v4619, 7
          %v4621 = vadd.s32 %v4620, 96
          %4622 = vset.pattern.permute.xlu0 %v4621
          %4623 = vperm.xlu0 %4622, %v4546
          %v4624 = vpop.permute.xlu0 %4623
          %v4625 = vlaneseq
          %v4626 = vshrl.u32 %v4625, 7
          %v4627 = vadd.s32 %v4626, 104
          %4628 = vset.pattern.permute.xlu0 %v4627
          %4629 = vperm.xlu0 %4628, %v4546
          %v4630 = vpop.permute.xlu0 %4629
          %v4631 = vlaneseq
          %v4632 = vshrl.u32 %v4631, 7
          %v4633 = vadd.s32 %v4632, 112
          %4634 = vset.pattern.permute.xlu0 %v4633
          %4635 = vperm.xlu0 %4634, %v4546
          %v4636 = vpop.permute.xlu0 %4635
          %v4637 = vlaneseq
          %v4638 = vshrl.u32 %v4637, 7
          %v4639 = vadd.s32 %v4638, 120
          %4640 = vset.pattern.permute.xlu0 %v4639
          %4641 = vperm.xlu0 %4640, %v4546
          %v4642 = vpop.permute.xlu0 %4641
          %v4643 = vperm.slane %v3672, 2
          %v4644 = vlaneseq
          %v4645 = vshrl.u32 %v4644, 7
          %4647 = vset.pattern.permute.xlu0 %v4645
          %4648 = vperm.xlu0 %4647, %v4643
          %v4649 = vpop.permute.xlu0 %4648
          %v4650 = vlaneseq
          %v4651 = vshrl.u32 %v4650, 7
          %v4652 = vadd.s32 %v4651, 8
          %4653 = vset.pattern.permute.xlu0 %v4652
          %4654 = vperm.xlu0 %4653, %v4643
          %v4655 = vpop.permute.xlu0 %4654
          %v4656 = vlaneseq
          %v4657 = vshrl.u32 %v4656, 7
          %v4658 = vadd.s32 %v4657, 16
          %4659 = vset.pattern.permute.xlu0 %v4658
          %4660 = vperm.xlu0 %4659, %v4643
          %v4661 = vpop.permute.xlu0 %4660
          %v4662 = vlaneseq
          %v4663 = vshrl.u32 %v4662, 7
          %v4664 = vadd.s32 %v4663, 24
          %4665 = vset.pattern.permute.xlu0 %v4664
          %4666 = vperm.xlu0 %4665, %v4643
          %v4667 = vpop.permute.xlu0 %4666
          %v4668 = vlaneseq
          %v4669 = vshrl.u32 %v4668, 7
          %v4670 = vadd.s32 %v4669, 32
          %4671 = vset.pattern.permute.xlu0 %v4670
          %4672 = vperm.xlu0 %4671, %v4643
          %v4673 = vpop.permute.xlu0 %4672
          %v4674 = vlaneseq
          %v4675 = vshrl.u32 %v4674, 7
          %v4676 = vadd.s32 %v4675, 40
          %4677 = vset.pattern.permute.xlu0 %v4676
          %4678 = vperm.xlu0 %4677, %v4643
          %v4679 = vpop.permute.xlu0 %4678
          %v4680 = vlaneseq
          %v4681 = vshrl.u32 %v4680, 7
          %v4682 = vadd.s32 %v4681, 48
          %4683 = vset.pattern.permute.xlu0 %v4682
          %4684 = vperm.xlu0 %4683, %v4643
          %v4685 = vpop.permute.xlu0 %4684
          %v4686 = vlaneseq
          %v4687 = vshrl.u32 %v4686, 7
          %v4688 = vadd.s32 %v4687, 56
          %4689 = vset.pattern.permute.xlu0 %v4688
          %4690 = vperm.xlu0 %4689, %v4643
          %v4691 = vpop.permute.xlu0 %4690
          %v4692 = vlaneseq
          %v4693 = vshrl.u32 %v4692, 7
          %v4694 = vadd.s32 %v4693, 64
          %4695 = vset.pattern.permute.xlu0 %v4694
          %4696 = vperm.xlu0 %4695, %v4643
          %v4697 = vpop.permute.xlu0 %4696
          %v4698 = vlaneseq
          %v4699 = vshrl.u32 %v4698, 7
          %v4700 = vadd.s32 %v4699, 72
          %4701 = vset.pattern.permute.xlu0 %v4700
          %4702 = vperm.xlu0 %4701, %v4643
          %v4703 = vpop.permute.xlu0 %4702
          %v4704 = vlaneseq
          %v4705 = vshrl.u32 %v4704, 7
          %v4706 = vadd.s32 %v4705, 80
          %4707 = vset.pattern.permute.xlu0 %v4706
          %4708 = vperm.xlu0 %4707, %v4643
          %v4709 = vpop.permute.xlu0 %4708
          %v4710 = vlaneseq
          %v4711 = vshrl.u32 %v4710, 7
          %v4712 = vadd.s32 %v4711, 88
          %4713 = vset.pattern.permute.xlu0 %v4712
          %4714 = vperm.xlu0 %4713, %v4643
          %v4715 = vpop.permute.xlu0 %4714
          %v4716 = vlaneseq
          %v4717 = vshrl.u32 %v4716, 7
          %v4718 = vadd.s32 %v4717, 96
          %4719 = vset.pattern.permute.xlu0 %v4718
          %4720 = vperm.xlu0 %4719, %v4643
          %v4721 = vpop.permute.xlu0 %4720
          %v4722 = vlaneseq
          %v4723 = vshrl.u32 %v4722, 7
          %v4724 = vadd.s32 %v4723, 104
          %4725 = vset.pattern.permute.xlu0 %v4724
          %4726 = vperm.xlu0 %4725, %v4643
          %v4727 = vpop.permute.xlu0 %4726
          %v4728 = vlaneseq
          %v4729 = vshrl.u32 %v4728, 7
          %v4730 = vadd.s32 %v4729, 112
          %4731 = vset.pattern.permute.xlu0 %v4730
          %4732 = vperm.xlu0 %4731, %v4643
          %v4733 = vpop.permute.xlu0 %4732
          %v4734 = vlaneseq
          %v4735 = vshrl.u32 %v4734, 7
          %v4736 = vadd.s32 %v4735, 120
          %4737 = vset.pattern.permute.xlu0 %v4736
          %4738 = vperm.xlu0 %4737, %v4643
          %v4739 = vpop.permute.xlu0 %4738
          %v4740 = vperm.slane %v3672, 3
          %v4741 = vlaneseq
          %v4742 = vshrl.u32 %v4741, 7
          %4744 = vset.pattern.permute.xlu0 %v4742
          %4745 = vperm.xlu0 %4744, %v4740
          %v4746 = vpop.permute.xlu0 %4745
          %v4747 = vlaneseq
          %v4748 = vshrl.u32 %v4747, 7
          %v4749 = vadd.s32 %v4748, 8
          %4750 = vset.pattern.permute.xlu0 %v4749
          %4751 = vperm.xlu0 %4750, %v4740
          %v4752 = vpop.permute.xlu0 %4751
          %v4753 = vlaneseq
          %v4754 = vshrl.u32 %v4753, 7
          %v4755 = vadd.s32 %v4754, 16
          %4756 = vset.pattern.permute.xlu0 %v4755
          %4757 = vperm.xlu0 %4756, %v4740
          %v4758 = vpop.permute.xlu0 %4757
          %v4759 = vlaneseq
          %v4760 = vshrl.u32 %v4759, 7
          %v4761 = vadd.s32 %v4760, 24
          %4762 = vset.pattern.permute.xlu0 %v4761
          %4763 = vperm.xlu0 %4762, %v4740
          %v4764 = vpop.permute.xlu0 %4763
          %v4765 = vlaneseq
          %v4766 = vshrl.u32 %v4765, 7
          %v4767 = vadd.s32 %v4766, 32
          %4768 = vset.pattern.permute.xlu0 %v4767
          %4769 = vperm.xlu0 %4768, %v4740
          %v4770 = vpop.permute.xlu0 %4769
          %v4771 = vlaneseq
          %v4772 = vshrl.u32 %v4771, 7
          %v4773 = vadd.s32 %v4772, 40
          %4774 = vset.pattern.permute.xlu0 %v4773
          %4775 = vperm.xlu0 %4774, %v4740
          %v4776 = vpop.permute.xlu0 %4775
          %v4777 = vlaneseq
          %v4778 = vshrl.u32 %v4777, 7
          %v4779 = vadd.s32 %v4778, 48
          %4780 = vset.pattern.permute.xlu0 %v4779
          %4781 = vperm.xlu0 %4780, %v4740
          %v4782 = vpop.permute.xlu0 %4781
          %v4783 = vlaneseq
          %v4784 = vshrl.u32 %v4783, 7
          %v4785 = vadd.s32 %v4784, 56
          %4786 = vset.pattern.permute.xlu0 %v4785
          %4787 = vperm.xlu0 %4786, %v4740
          %v4788 = vpop.permute.xlu0 %4787
          %v4789 = vlaneseq
          %v4790 = vshrl.u32 %v4789, 7
          %v4791 = vadd.s32 %v4790, 64
          %4792 = vset.pattern.permute.xlu0 %v4791
          %4793 = vperm.xlu0 %4792, %v4740
          %v4794 = vpop.permute.xlu0 %4793
          %v4795 = vlaneseq
          %v4796 = vshrl.u32 %v4795, 7
          %v4797 = vadd.s32 %v4796, 72
          %4798 = vset.pattern.permute.xlu0 %v4797
          %4799 = vperm.xlu0 %4798, %v4740
          %v4800 = vpop.permute.xlu0 %4799
          %v4801 = vlaneseq
          %v4802 = vshrl.u32 %v4801, 7
          %v4803 = vadd.s32 %v4802, 80
          %4804 = vset.pattern.permute.xlu0 %v4803
          %4805 = vperm.xlu0 %4804, %v4740
          %v4806 = vpop.permute.xlu0 %4805
          %v4807 = vlaneseq
          %v4808 = vshrl.u32 %v4807, 7
          %v4809 = vadd.s32 %v4808, 88
          %4810 = vset.pattern.permute.xlu0 %v4809
          %4811 = vperm.xlu0 %4810, %v4740
          %v4812 = vpop.permute.xlu0 %4811
          %v4813 = vlaneseq
          %v4814 = vshrl.u32 %v4813, 7
          %v4815 = vadd.s32 %v4814, 96
          %4816 = vset.pattern.permute.xlu0 %v4815
          %4817 = vperm.xlu0 %4816, %v4740
          %v4818 = vpop.permute.xlu0 %4817
          %v4819 = vlaneseq
          %v4820 = vshrl.u32 %v4819, 7
          %v4821 = vadd.s32 %v4820, 104
          %4822 = vset.pattern.permute.xlu0 %v4821
          %4823 = vperm.xlu0 %4822, %v4740
          %v4824 = vpop.permute.xlu0 %4823
          %v4825 = vlaneseq
          %v4826 = vshrl.u32 %v4825, 7
          %v4827 = vadd.s32 %v4826, 112
          %4828 = vset.pattern.permute.xlu0 %v4827
          %4829 = vperm.xlu0 %4828, %v4740
          %v4830 = vpop.permute.xlu0 %4829
          %v4831 = vlaneseq
          %v4832 = vshrl.u32 %v4831, 7
          %v4833 = vadd.s32 %v4832, 120
          %4834 = vset.pattern.permute.xlu0 %v4833
          %4835 = vperm.xlu0 %4834, %v4740
          %v4836 = vpop.permute.xlu0 %4835
          %v4837 = vperm.slane %v3672, 4
          %v4838 = vlaneseq
          %v4839 = vshrl.u32 %v4838, 7
          %4841 = vset.pattern.permute.xlu0 %v4839
          %4842 = vperm.xlu0 %4841, %v4837
          %v4843 = vpop.permute.xlu0 %4842
          %v4844 = vlaneseq
          %v4845 = vshrl.u32 %v4844, 7
          %v4846 = vadd.s32 %v4845, 8
          %4847 = vset.pattern.permute.xlu0 %v4846
          %4848 = vperm.xlu0 %4847, %v4837
          %v4849 = vpop.permute.xlu0 %4848
          %v4850 = vlaneseq
          %v4851 = vshrl.u32 %v4850, 7
          %v4852 = vadd.s32 %v4851, 16
          %4853 = vset.pattern.permute.xlu0 %v4852
          %4854 = vperm.xlu0 %4853, %v4837
          %v4855 = vpop.permute.xlu0 %4854
          %v4856 = vlaneseq
          %v4857 = vshrl.u32 %v4856, 7
          %v4858 = vadd.s32 %v4857, 24
          %4859 = vset.pattern.permute.xlu0 %v4858
          %4860 = vperm.xlu0 %4859, %v4837
          %v4861 = vpop.permute.xlu0 %4860
          %v4862 = vlaneseq
          %v4863 = vshrl.u32 %v4862, 7
          %v4864 = vadd.s32 %v4863, 32
          %4865 = vset.pattern.permute.xlu0 %v4864
          %4866 = vperm.xlu0 %4865, %v4837
          %v4867 = vpop.permute.xlu0 %4866
          %v4868 = vlaneseq
          %v4869 = vshrl.u32 %v4868, 7
          %v4870 = vadd.s32 %v4869, 40
          %4871 = vset.pattern.permute.xlu0 %v4870
          %4872 = vperm.xlu0 %4871, %v4837
          %v4873 = vpop.permute.xlu0 %4872
          %v4874 = vlaneseq
          %v4875 = vshrl.u32 %v4874, 7
          %v4876 = vadd.s32 %v4875, 48
          %4877 = vset.pattern.permute.xlu0 %v4876
          %4878 = vperm.xlu0 %4877, %v4837
          %v4879 = vpop.permute.xlu0 %4878
          %v4880 = vlaneseq
          %v4881 = vshrl.u32 %v4880, 7
          %v4882 = vadd.s32 %v4881, 56
          %4883 = vset.pattern.permute.xlu0 %v4882
          %4884 = vperm.xlu0 %4883, %v4837
          %v4885 = vpop.permute.xlu0 %4884
          %v4886 = vlaneseq
          %v4887 = vshrl.u32 %v4886, 7
          %v4888 = vadd.s32 %v4887, 64
          %4889 = vset.pattern.permute.xlu0 %v4888
          %4890 = vperm.xlu0 %4889, %v4837
          %v4891 = vpop.permute.xlu0 %4890
          %v4892 = vlaneseq
          %v4893 = vshrl.u32 %v4892, 7
          %v4894 = vadd.s32 %v4893, 72
          %4895 = vset.pattern.permute.xlu0 %v4894
          %4896 = vperm.xlu0 %4895, %v4837
          %v4897 = vpop.permute.xlu0 %4896
          %v4898 = vlaneseq
          %v4899 = vshrl.u32 %v4898, 7
          %v4900 = vadd.s32 %v4899, 80
          %4901 = vset.pattern.permute.xlu0 %v4900
          %4902 = vperm.xlu0 %4901, %v4837
          %v4903 = vpop.permute.xlu0 %4902
          %v4904 = vlaneseq
          %v4905 = vshrl.u32 %v4904, 7
          %v4906 = vadd.s32 %v4905, 88
          %4907 = vset.pattern.permute.xlu0 %v4906
          %4908 = vperm.xlu0 %4907, %v4837
          %v4909 = vpop.permute.xlu0 %4908
          %v4910 = vlaneseq
          %v4911 = vshrl.u32 %v4910, 7
          %v4912 = vadd.s32 %v4911, 96
          %4913 = vset.pattern.permute.xlu0 %v4912
          %4914 = vperm.xlu0 %4913, %v4837
          %v4915 = vpop.permute.xlu0 %4914
          %v4916 = vlaneseq
          %v4917 = vshrl.u32 %v4916, 7
          %v4918 = vadd.s32 %v4917, 104
          %4919 = vset.pattern.permute.xlu0 %v4918
          %4920 = vperm.xlu0 %4919, %v4837
          %v4921 = vpop.permute.xlu0 %4920
          %v4922 = vlaneseq
          %v4923 = vshrl.u32 %v4922, 7
          %v4924 = vadd.s32 %v4923, 112
          %4925 = vset.pattern.permute.xlu0 %v4924
          %4926 = vperm.xlu0 %4925, %v4837
          %v4927 = vpop.permute.xlu0 %4926
          %v4928 = vlaneseq
          %v4929 = vshrl.u32 %v4928, 7
          %v4930 = vadd.s32 %v4929, 120
          %4931 = vset.pattern.permute.xlu0 %v4930
          %4932 = vperm.xlu0 %4931, %v4837
          %v4933 = vpop.permute.xlu0 %4932
          %v4934 = vperm.slane %v3672, 5
          %v4935 = vlaneseq
          %v4936 = vshrl.u32 %v4935, 7
          %4938 = vset.pattern.permute.xlu0 %v4936
          %4939 = vperm.xlu0 %4938, %v4934
          %v4940 = vpop.permute.xlu0 %4939
          %v4941 = vlaneseq
          %v4942 = vshrl.u32 %v4941, 7
          %v4943 = vadd.s32 %v4942, 8
          %4944 = vset.pattern.permute.xlu0 %v4943
          %4945 = vperm.xlu0 %4944, %v4934
          %v4946 = vpop.permute.xlu0 %4945
          %v4947 = vlaneseq
          %v4948 = vshrl.u32 %v4947, 7
          %v4949 = vadd.s32 %v4948, 16
          %4950 = vset.pattern.permute.xlu0 %v4949
          %4951 = vperm.xlu0 %4950, %v4934
          %v4952 = vpop.permute.xlu0 %4951
          %v4953 = vlaneseq
          %v4954 = vshrl.u32 %v4953, 7
          %v4955 = vadd.s32 %v4954, 24
          %4956 = vset.pattern.permute.xlu0 %v4955
          %4957 = vperm.xlu0 %4956, %v4934
          %v4958 = vpop.permute.xlu0 %4957
          %v4959 = vlaneseq
          %v4960 = vshrl.u32 %v4959, 7
          %v4961 = vadd.s32 %v4960, 32
          %4962 = vset.pattern.permute.xlu0 %v4961
          %4963 = vperm.xlu0 %4962, %v4934
          %v4964 = vpop.permute.xlu0 %4963
          %v4965 = vlaneseq
          %v4966 = vshrl.u32 %v4965, 7
          %v4967 = vadd.s32 %v4966, 40
          %4968 = vset.pattern.permute.xlu0 %v4967
          %4969 = vperm.xlu0 %4968, %v4934
          %v4970 = vpop.permute.xlu0 %4969
          %v4971 = vlaneseq
          %v4972 = vshrl.u32 %v4971, 7
          %v4973 = vadd.s32 %v4972, 48
          %4974 = vset.pattern.permute.xlu0 %v4973
          %4975 = vperm.xlu0 %4974, %v4934
          %v4976 = vpop.permute.xlu0 %4975
          %v4977 = vlaneseq
          %v4978 = vshrl.u32 %v4977, 7
          %v4979 = vadd.s32 %v4978, 56
          %4980 = vset.pattern.permute.xlu0 %v4979
          %4981 = vperm.xlu0 %4980, %v4934
          %v4982 = vpop.permute.xlu0 %4981
          %v4983 = vlaneseq
          %v4984 = vshrl.u32 %v4983, 7
          %v4985 = vadd.s32 %v4984, 64
          %4986 = vset.pattern.permute.xlu0 %v4985
          %4987 = vperm.xlu0 %4986, %v4934
          %v4988 = vpop.permute.xlu0 %4987
          %v4989 = vlaneseq
          %v4990 = vshrl.u32 %v4989, 7
          %v4991 = vadd.s32 %v4990, 72
          %4992 = vset.pattern.permute.xlu0 %v4991
          %4993 = vperm.xlu0 %4992, %v4934
          %v4994 = vpop.permute.xlu0 %4993
          %v4995 = vlaneseq
          %v4996 = vshrl.u32 %v4995, 7
          %v4997 = vadd.s32 %v4996, 80
          %4998 = vset.pattern.permute.xlu0 %v4997
          %4999 = vperm.xlu0 %4998, %v4934
          %v5000 = vpop.permute.xlu0 %4999
          %v5001 = vlaneseq
          %v5002 = vshrl.u32 %v5001, 7
          %v5003 = vadd.s32 %v5002, 88
          %5004 = vset.pattern.permute.xlu0 %v5003
          %5005 = vperm.xlu0 %5004, %v4934
          %v5006 = vpop.permute.xlu0 %5005
          %v5007 = vlaneseq
          %v5008 = vshrl.u32 %v5007, 7
          %v5009 = vadd.s32 %v5008, 96
          %5010 = vset.pattern.permute.xlu0 %v5009
          %5011 = vperm.xlu0 %5010, %v4934
          %v5012 = vpop.permute.xlu0 %5011
          %v5013 = vlaneseq
          %v5014 = vshrl.u32 %v5013, 7
          %v5015 = vadd.s32 %v5014, 104
          %5016 = vset.pattern.permute.xlu0 %v5015
          %5017 = vperm.xlu0 %5016, %v4934
          %v5018 = vpop.permute.xlu0 %5017
          %v5019 = vlaneseq
          %v5020 = vshrl.u32 %v5019, 7
          %v5021 = vadd.s32 %v5020, 112
          %5022 = vset.pattern.permute.xlu0 %v5021
          %5023 = vperm.xlu0 %5022, %v4934
          %v5024 = vpop.permute.xlu0 %5023
          %v5025 = vlaneseq
          %v5026 = vshrl.u32 %v5025, 7
          %v5027 = vadd.s32 %v5026, 120
          %5028 = vset.pattern.permute.xlu0 %v5027
          %5029 = vperm.xlu0 %5028, %v4934
          %v5030 = vpop.permute.xlu0 %5029
          %v5031 = vperm.slane %v3672, 6
          %v5032 = vlaneseq
          %v5033 = vshrl.u32 %v5032, 7
          %5035 = vset.pattern.permute.xlu0 %v5033
          %5036 = vperm.xlu0 %5035, %v5031
          %v5037 = vpop.permute.xlu0 %5036
          %v5038 = vlaneseq
          %v5039 = vshrl.u32 %v5038, 7
          %v5040 = vadd.s32 %v5039, 8
          %5041 = vset.pattern.permute.xlu0 %v5040
          %5042 = vperm.xlu0 %5041, %v5031
          %v5043 = vpop.permute.xlu0 %5042
          %v5044 = vlaneseq
          %v5045 = vshrl.u32 %v5044, 7
          %v5046 = vadd.s32 %v5045, 16
          %5047 = vset.pattern.permute.xlu0 %v5046
          %5048 = vperm.xlu0 %5047, %v5031
          %v5049 = vpop.permute.xlu0 %5048
          %v5050 = vlaneseq
          %v5051 = vshrl.u32 %v5050, 7
          %v5052 = vadd.s32 %v5051, 24
          %5053 = vset.pattern.permute.xlu0 %v5052
          %5054 = vperm.xlu0 %5053, %v5031
          %v5055 = vpop.permute.xlu0 %5054
          %v5056 = vlaneseq
          %v5057 = vshrl.u32 %v5056, 7
          %v5058 = vadd.s32 %v5057, 32
          %5059 = vset.pattern.permute.xlu0 %v5058
          %5060 = vperm.xlu0 %5059, %v5031
          %v5061 = vpop.permute.xlu0 %5060
          %v5062 = vlaneseq
          %v5063 = vshrl.u32 %v5062, 7
          %v5064 = vadd.s32 %v5063, 40
          %5065 = vset.pattern.permute.xlu0 %v5064
          %5066 = vperm.xlu0 %5065, %v5031
          %v5067 = vpop.permute.xlu0 %5066
          %v5068 = vlaneseq
          %v5069 = vshrl.u32 %v5068, 7
          %v5070 = vadd.s32 %v5069, 48
          %5071 = vset.pattern.permute.xlu0 %v5070
          %5072 = vperm.xlu0 %5071, %v5031
          %v5073 = vpop.permute.xlu0 %5072
          %v5074 = vlaneseq
          %v5075 = vshrl.u32 %v5074, 7
          %v5076 = vadd.s32 %v5075, 56
          %5077 = vset.pattern.permute.xlu0 %v5076
          %5078 = vperm.xlu0 %5077, %v5031
          %v5079 = vpop.permute.xlu0 %5078
          %v5080 = vlaneseq
          %v5081 = vshrl.u32 %v5080, 7
          %v5082 = vadd.s32 %v5081, 64
          %5083 = vset.pattern.permute.xlu0 %v5082
          %5084 = vperm.xlu0 %5083, %v5031
          %v5085 = vpop.permute.xlu0 %5084
          %v5086 = vlaneseq
          %v5087 = vshrl.u32 %v5086, 7
          %v5088 = vadd.s32 %v5087, 72
          %5089 = vset.pattern.permute.xlu0 %v5088
          %5090 = vperm.xlu0 %5089, %v5031
          %v5091 = vpop.permute.xlu0 %5090
          %v5092 = vlaneseq
          %v5093 = vshrl.u32 %v5092, 7
          %v5094 = vadd.s32 %v5093, 80
          %5095 = vset.pattern.permute.xlu0 %v5094
          %5096 = vperm.xlu0 %5095, %v5031
          %v5097 = vpop.permute.xlu0 %5096
          %v5098 = vlaneseq
          %v5099 = vshrl.u32 %v5098, 7
          %v5100 = vadd.s32 %v5099, 88
          %5101 = vset.pattern.permute.xlu0 %v5100
          %5102 = vperm.xlu0 %5101, %v5031
          %v5103 = vpop.permute.xlu0 %5102
          %v5104 = vlaneseq
          %v5105 = vshrl.u32 %v5104, 7
          %v5106 = vadd.s32 %v5105, 96
          %5107 = vset.pattern.permute.xlu0 %v5106
          %5108 = vperm.xlu0 %5107, %v5031
          %v5109 = vpop.permute.xlu0 %5108
          %v5110 = vlaneseq
          %v5111 = vshrl.u32 %v5110, 7
          %v5112 = vadd.s32 %v5111, 104
          %5113 = vset.pattern.permute.xlu0 %v5112
          %5114 = vperm.xlu0 %5113, %v5031
          %v5115 = vpop.permute.xlu0 %5114
          %v5116 = vlaneseq
          %v5117 = vshrl.u32 %v5116, 7
          %v5118 = vadd.s32 %v5117, 112
          %5119 = vset.pattern.permute.xlu0 %v5118
          %5120 = vperm.xlu0 %5119, %v5031
          %v5121 = vpop.permute.xlu0 %5120
          %v5122 = vlaneseq
          %v5123 = vshrl.u32 %v5122, 7
          %v5124 = vadd.s32 %v5123, 120
          %5125 = vset.pattern.permute.xlu0 %v5124
          %5126 = vperm.xlu0 %5125, %v5031
          %v5127 = vpop.permute.xlu0 %5126
          %v5128 = vperm.slane %v3672, 7
          %v5129 = vlaneseq
          %v5130 = vshrl.u32 %v5129, 7
          %5132 = vset.pattern.permute.xlu0 %v5130
          %5133 = vperm.xlu0 %5132, %v5128
          %v5134 = vpop.permute.xlu0 %5133
          %v5135 = vlaneseq
          %v5136 = vshrl.u32 %v5135, 7
          %v5137 = vadd.s32 %v5136, 8
          %5138 = vset.pattern.permute.xlu0 %v5137
          %5139 = vperm.xlu0 %5138, %v5128
          %v5140 = vpop.permute.xlu0 %5139
          %v5141 = vlaneseq
          %v5142 = vshrl.u32 %v5141, 7
          %v5143 = vadd.s32 %v5142, 16
          %5144 = vset.pattern.permute.xlu0 %v5143
          %5145 = vperm.xlu0 %5144, %v5128
          %v5146 = vpop.permute.xlu0 %5145
          %v5147 = vlaneseq
          %v5148 = vshrl.u32 %v5147, 7
          %v5149 = vadd.s32 %v5148, 24
          %5150 = vset.pattern.permute.xlu0 %v5149
          %5151 = vperm.xlu0 %5150, %v5128
          %v5152 = vpop.permute.xlu0 %5151
          %v5153 = vlaneseq
          %v5154 = vshrl.u32 %v5153, 7
          %v5155 = vadd.s32 %v5154, 32
          %5156 = vset.pattern.permute.xlu0 %v5155
          %5157 = vperm.xlu0 %5156, %v5128
          %v5158 = vpop.permute.xlu0 %5157
          %v5159 = vlaneseq
          %v5160 = vshrl.u32 %v5159, 7
          %v5161 = vadd.s32 %v5160, 40
          %5162 = vset.pattern.permute.xlu0 %v5161
          %5163 = vperm.xlu0 %5162, %v5128
          %v5164 = vpop.permute.xlu0 %5163
          %v5165 = vlaneseq
          %v5166 = vshrl.u32 %v5165, 7
          %v5167 = vadd.s32 %v5166, 48
          %5168 = vset.pattern.permute.xlu0 %v5167
          %5169 = vperm.xlu0 %5168, %v5128
          %v5170 = vpop.permute.xlu0 %5169
          %v5171 = vlaneseq
          %v5172 = vshrl.u32 %v5171, 7
          %v5173 = vadd.s32 %v5172, 56
          %5174 = vset.pattern.permute.xlu0 %v5173
          %5175 = vperm.xlu0 %5174, %v5128
          %v5176 = vpop.permute.xlu0 %5175
          %v5177 = vlaneseq
          %v5178 = vshrl.u32 %v5177, 7
          %v5179 = vadd.s32 %v5178, 64
          %5180 = vset.pattern.permute.xlu0 %v5179
          %5181 = vperm.xlu0 %5180, %v5128
          %v5182 = vpop.permute.xlu0 %5181
          %v5183 = vlaneseq
          %v5184 = vshrl.u32 %v5183, 7
          %v5185 = vadd.s32 %v5184, 72
          %5186 = vset.pattern.permute.xlu0 %v5185
          %5187 = vperm.xlu0 %5186, %v5128
          %v5188 = vpop.permute.xlu0 %5187
          %v5189 = vlaneseq
          %v5190 = vshrl.u32 %v5189, 7
          %v5191 = vadd.s32 %v5190, 80
          %5192 = vset.pattern.permute.xlu0 %v5191
          %5193 = vperm.xlu0 %5192, %v5128
          %v5194 = vpop.permute.xlu0 %5193
          %v5195 = vlaneseq
          %v5196 = vshrl.u32 %v5195, 7
          %v5197 = vadd.s32 %v5196, 88
          %5198 = vset.pattern.permute.xlu0 %v5197
          %5199 = vperm.xlu0 %5198, %v5128
          %v5200 = vpop.permute.xlu0 %5199
          %v5201 = vlaneseq
          %v5202 = vshrl.u32 %v5201, 7
          %v5203 = vadd.s32 %v5202, 96
          %5204 = vset.pattern.permute.xlu0 %v5203
          %5205 = vperm.xlu0 %5204, %v5128
          %v5206 = vpop.permute.xlu0 %5205
          %v5207 = vlaneseq
          %v5208 = vshrl.u32 %v5207, 7
          %v5209 = vadd.s32 %v5208, 104
          %5210 = vset.pattern.permute.xlu0 %v5209
          %5211 = vperm.xlu0 %5210, %v5128
          %v5212 = vpop.permute.xlu0 %5211
          %v5213 = vlaneseq
          %v5214 = vshrl.u32 %v5213, 7
          %v5215 = vadd.s32 %v5214, 112
          %5216 = vset.pattern.permute.xlu0 %v5215
          %5217 = vperm.xlu0 %5216, %v5128
          %v5218 = vpop.permute.xlu0 %5217
          %v5219 = vlaneseq
          %v5220 = vshrl.u32 %v5219, 7
          %v5221 = vadd.s32 %v5220, 120
          %5222 = vset.pattern.permute.xlu0 %v5221
          %5223 = vperm.xlu0 %5222, %v5128
          %v5224 = vpop.permute.xlu0 %5223
          %v5225 = vsub.f32 %v3679, %v3658
          %v5226 = vsub.f32 %v3685, %v3658
          %v5227 = vsub.f32 %v3691, %v3658
          %v5228 = vsub.f32 %v3697, %v3658
          %v5229 = vsub.f32 %v3703, %v3658
          %v5230 = vsub.f32 %v3709, %v3658
          %v5231 = vsub.f32 %v3715, %v3658
          %v5232 = vsub.f32 %v3721, %v3658
          %v5233 = vsub.f32 %v3727, %v3658
          %v5234 = vsub.f32 %v3733, %v3658
          %v5235 = vsub.f32 %v3739, %v3658
          %v5236 = vsub.f32 %v3745, %v3658
          %v5237 = vsub.f32 %v3751, %v3658
          %v5238 = vsub.f32 %v3757, %v3658
          %v5239 = vsub.f32 %v3763, %v3658
          %v5240 = vsub.f32 %v3769, %v3658
          %v5241 = vsub.f32 %v3776, %v3658
          %v5242 = vsub.f32 %v3782, %v3658
          %v5243 = vsub.f32 %v3788, %v3658
          %v5244 = vsub.f32 %v3794, %v3658
          %v5245 = vsub.f32 %v3800, %v3658
          %v5246 = vsub.f32 %v3806, %v3658
          %v5247 = vsub.f32 %v3812, %v3658
          %v5248 = vsub.f32 %v3818, %v3658
          %v5249 = vsub.f32 %v3824, %v3658
          %v5250 = vsub.f32 %v3830, %v3658
          %v5251 = vsub.f32 %v3836, %v3658
          %v5252 = vsub.f32 %v3842, %v3658
          %v5253 = vsub.f32 %v3848, %v3658
          %v5254 = vsub.f32 %v3854, %v3658
          %v5255 = vsub.f32 %v3860, %v3658
          %v5256 = vsub.f32 %v3866, %v3658
          %v5257 = vsub.f32 %v3873, %v3658
          %v5258 = vsub.f32 %v3879, %v3658
          %v5259 = vsub.f32 %v3885, %v3658
          %v5260 = vsub.f32 %v3891, %v3658
          %v5261 = vsub.f32 %v3897, %v3658
          %v5262 = vsub.f32 %v3903, %v3658
          %v5263 = vsub.f32 %v3909, %v3658
          %v5264 = vsub.f32 %v3915, %v3658
          %v5265 = vsub.f32 %v3921, %v3658
          %v5266 = vsub.f32 %v3927, %v3658
          %v5267 = vsub.f32 %v3933, %v3658
          %v5268 = vsub.f32 %v3939, %v3658
          %v5269 = vsub.f32 %v3945, %v3658
          %v5270 = vsub.f32 %v3951, %v3658
          %v5271 = vsub.f32 %v3957, %v3658
          %v5272 = vsub.f32 %v3963, %v3658
          %v5273 = vsub.f32 %v3970, %v3658
          %v5274 = vsub.f32 %v3976, %v3658
          %v5275 = vsub.f32 %v3982, %v3658
          %v5276 = vsub.f32 %v3988, %v3658
          %v5277 = vsub.f32 %v3994, %v3658
          %v5278 = vsub.f32 %v4000, %v3658
          %v5279 = vsub.f32 %v4006, %v3658
          %v5280 = vsub.f32 %v4012, %v3658
          %v5281 = vsub.f32 %v4018, %v3658
          %v5282 = vsub.f32 %v4024, %v3658
          %v5283 = vsub.f32 %v4030, %v3658
          %v5284 = vsub.f32 %v4036, %v3658
          %v5285 = vsub.f32 %v4042, %v3658
          %v5286 = vsub.f32 %v4048, %v3658
          %v5287 = vsub.f32 %v4054, %v3658
          %v5288 = vsub.f32 %v4060, %v3658
          %v5289 = vsub.f32 %v4067, %v3658
          %v5290 = vsub.f32 %v4073, %v3658
          %v5291 = vsub.f32 %v4079, %v3658
          %v5292 = vsub.f32 %v4085, %v3658
          %v5293 = vsub.f32 %v4091, %v3658
          %v5294 = vsub.f32 %v4097, %v3658
          %v5295 = vsub.f32 %v4103, %v3658
          %v5296 = vsub.f32 %v4109, %v3658
          %v5297 = vsub.f32 %v4115, %v3658
          %v5298 = vsub.f32 %v4121, %v3658
          %v5299 = vsub.f32 %v4127, %v3658
          %v5300 = vsub.f32 %v4133, %v3658
          %v5301 = vsub.f32 %v4139, %v3658
          %v5302 = vsub.f32 %v4145, %v3658
          %v5303 = vsub.f32 %v4151, %v3658
          %v5304 = vsub.f32 %v4157, %v3658
          %v5305 = vsub.f32 %v4164, %v3658
          %v5306 = vsub.f32 %v4170, %v3658
          %v5307 = vsub.f32 %v4176, %v3658
          %v5308 = vsub.f32 %v4182, %v3658
          %v5309 = vsub.f32 %v4188, %v3658
          %v5310 = vsub.f32 %v4194, %v3658
          %v5311 = vsub.f32 %v4200, %v3658
          %v5312 = vsub.f32 %v4206, %v3658
          %v5313 = vsub.f32 %v4212, %v3658
          %v5314 = vsub.f32 %v4218, %v3658
          %v5315 = vsub.f32 %v4224, %v3658
          %v5316 = vsub.f32 %v4230, %v3658
          %v5317 = vsub.f32 %v4236, %v3658
          %v5318 = vsub.f32 %v4242, %v3658
          %v5319 = vsub.f32 %v4248, %v3658
          %v5320 = vsub.f32 %v4254, %v3658
          %v5321 = vsub.f32 %v4261, %v3658
          %v5322 = vsub.f32 %v4267, %v3658
          %v5323 = vsub.f32 %v4273, %v3658
          %v5324 = vsub.f32 %v4279, %v3658
          %v5325 = vsub.f32 %v4285, %v3658
          %v5326 = vsub.f32 %v4291, %v3658
          %v5327 = vsub.f32 %v4297, %v3658
          %v5328 = vsub.f32 %v4303, %v3658
          %v5329 = vsub.f32 %v4309, %v3658
          %v5330 = vsub.f32 %v4315, %v3658
          %v5331 = vsub.f32 %v4321, %v3658
          %v5332 = vsub.f32 %v4327, %v3658
          %v5333 = vsub.f32 %v4333, %v3658
          %v5334 = vsub.f32 %v4339, %v3658
          %v5335 = vsub.f32 %v4345, %v3658
          %v5336 = vsub.f32 %v4351, %v3658
          %v5337 = vsub.f32 %v4358, %v3658
          %v5338 = vsub.f32 %v4364, %v3658
          %v5339 = vsub.f32 %v4370, %v3658
          %v5340 = vsub.f32 %v4376, %v3658
          %v5341 = vsub.f32 %v4382, %v3658
          %v5342 = vsub.f32 %v4388, %v3658
          %v5343 = vsub.f32 %v4394, %v3658
          %v5344 = vsub.f32 %v4400, %v3658
          %v5345 = vsub.f32 %v4406, %v3658
          %v5346 = vsub.f32 %v4412, %v3658
          %v5347 = vsub.f32 %v4418, %v3658
          %v5348 = vsub.f32 %v4424, %v3658
          %v5349 = vsub.f32 %v4430, %v3658
          %v5350 = vsub.f32 %v4436, %v3658
          %v5351 = vsub.f32 %v4442, %v3658
          %v5352 = vsub.f32 %v4448, %v3658
          %v5353 = vsub.f32 %v4455, %v3658
          %v5354 = vsub.f32 %v4461, %v3658
          %v5355 = vsub.f32 %v4467, %v3658
          %v5356 = vsub.f32 %v4473, %v3658
          %v5357 = vsub.f32 %v4479, %v3658
          %v5358 = vsub.f32 %v4485, %v3658
          %v5359 = vsub.f32 %v4491, %v3658
          %v5360 = vsub.f32 %v4497, %v3658
          %v5361 = vsub.f32 %v4503, %v3658
          %v5362 = vsub.f32 %v4509, %v3658
          %v5363 = vsub.f32 %v4515, %v3658
          %v5364 = vsub.f32 %v4521, %v3658
          %v5365 = vsub.f32 %v4527, %v3658
          %v5366 = vsub.f32 %v4533, %v3658
          %v5367 = vsub.f32 %v4539, %v3658
          %v5368 = vsub.f32 %v4545, %v3658
          %v5369 = vsub.f32 %v4552, %v3658
          %v5370 = vsub.f32 %v4558, %v3658
          %v5371 = vsub.f32 %v4564, %v3658
          %v5372 = vsub.f32 %v4570, %v3658
          %v5373 = vsub.f32 %v4576, %v3658
          %v5374 = vsub.f32 %v4582, %v3658
          %v5375 = vsub.f32 %v4588, %v3658
          %v5376 = vsub.f32 %v4594, %v3658
          %v5377 = vsub.f32 %v4600, %v3658
          %v5378 = vsub.f32 %v4606, %v3658
          %v5379 = vsub.f32 %v4612, %v3658
          %v5380 = vsub.f32 %v4618, %v3658
          %v5381 = vsub.f32 %v4624, %v3658
          %v5382 = vsub.f32 %v4630, %v3658
          %v5383 = vsub.f32 %v4636, %v3658
          %v5384 = vsub.f32 %v4642, %v3658
          %v5385 = vsub.f32 %v4649, %v3658
          %v5386 = vsub.f32 %v4655, %v3658
          %v5387 = vsub.f32 %v4661, %v3658
          %v5388 = vsub.f32 %v4667, %v3658
          %v5389 = vsub.f32 %v4673, %v3658
          %v5390 = vsub.f32 %v4679, %v3658
          %v5391 = vsub.f32 %v4685, %v3658
          %v5392 = vsub.f32 %v4691, %v3658
          %v5393 = vsub.f32 %v4697, %v3658
          %v5394 = vsub.f32 %v4703, %v3658
          %v5395 = vsub.f32 %v4709, %v3658
          %v5396 = vsub.f32 %v4715, %v3658
          %v5397 = vsub.f32 %v4721, %v3658
          %v5398 = vsub.f32 %v4727, %v3658
          %v5399 = vsub.f32 %v4733, %v3658
          %v5400 = vsub.f32 %v4739, %v3658
          %v5401 = vsub.f32 %v4746, %v3658
          %v5402 = vsub.f32 %v4752, %v3658
          %v5403 = vsub.f32 %v4758, %v3658
          %v5404 = vsub.f32 %v4764, %v3658
          %v5405 = vsub.f32 %v4770, %v3658
          %v5406 = vsub.f32 %v4776, %v3658
          %v5407 = vsub.f32 %v4782, %v3658
          %v5408 = vsub.f32 %v4788, %v3658
          %v5409 = vsub.f32 %v4794, %v3658
          %v5410 = vsub.f32 %v4800, %v3658
          %v5411 = vsub.f32 %v4806, %v3658
          %v5412 = vsub.f32 %v4812, %v3658
          %v5413 = vsub.f32 %v4818, %v3658
          %v5414 = vsub.f32 %v4824, %v3658
          %v5415 = vsub.f32 %v4830, %v3658
          %v5416 = vsub.f32 %v4836, %v3658
          %v5417 = vsub.f32 %v4843, %v3658
          %v5418 = vsub.f32 %v4849, %v3658
          %v5419 = vsub.f32 %v4855, %v3658
          %v5420 = vsub.f32 %v4861, %v3658
          %v5421 = vsub.f32 %v4867, %v3658
          %v5422 = vsub.f32 %v4873, %v3658
          %v5423 = vsub.f32 %v4879, %v3658
          %v5424 = vsub.f32 %v4885, %v3658
          %v5425 = vsub.f32 %v4891, %v3658
          %v5426 = vsub.f32 %v4897, %v3658
          %v5427 = vsub.f32 %v4903, %v3658
          %v5428 = vsub.f32 %v4909, %v3658
          %v5429 = vsub.f32 %v4915, %v3658
          %v5430 = vsub.f32 %v4921, %v3658
          %v5431 = vsub.f32 %v4927, %v3658
          %v5432 = vsub.f32 %v4933, %v3658
          %v5433 = vsub.f32 %v4940, %v3658
          %v5434 = vsub.f32 %v4946, %v3658
          %v5435 = vsub.f32 %v4952, %v3658
          %v5436 = vsub.f32 %v4958, %v3658
          %v5437 = vsub.f32 %v4964, %v3658
          %v5438 = vsub.f32 %v4970, %v3658
          %v5439 = vsub.f32 %v4976, %v3658
          %v5440 = vsub.f32 %v4982, %v3658
          %v5441 = vsub.f32 %v4988, %v3658
          %v5442 = vsub.f32 %v4994, %v3658
          %v5443 = vsub.f32 %v5000, %v3658
          %v5444 = vsub.f32 %v5006, %v3658
          %v5445 = vsub.f32 %v5012, %v3658
          %v5446 = vsub.f32 %v5018, %v3658
          %v5447 = vsub.f32 %v5024, %v3658
          %v5448 = vsub.f32 %v5030, %v3658
          %v5449 = vsub.f32 %v5037, %v3658
          %v5450 = vsub.f32 %v5043, %v3658
          %v5451 = vsub.f32 %v5049, %v3658
          %v5452 = vsub.f32 %v5055, %v3658
          %v5453 = vsub.f32 %v5061, %v3658
          %v5454 = vsub.f32 %v5067, %v3658
          %v5455 = vsub.f32 %v5073, %v3658
          %v5456 = vsub.f32 %v5079, %v3658
          %v5457 = vsub.f32 %v5085, %v3658
          %v5458 = vsub.f32 %v5091, %v3658
          %v5459 = vsub.f32 %v5097, %v3658
          %v5460 = vsub.f32 %v5103, %v3658
          %v5461 = vsub.f32 %v5109, %v3658
          %v5462 = vsub.f32 %v5115, %v3658
          %v5463 = vsub.f32 %v5121, %v3658
          %v5464 = vsub.f32 %v5127, %v3658
          %v5465 = vsub.f32 %v5134, %v3658
          %v5466 = vsub.f32 %v5140, %v3658
          %v5467 = vsub.f32 %v5146, %v3658
          %v5468 = vsub.f32 %v5152, %v3658
          %v5469 = vsub.f32 %v5158, %v3658
          %v5470 = vsub.f32 %v5164, %v3658
          %v5471 = vsub.f32 %v5170, %v3658
          %v5472 = vsub.f32 %v5176, %v3658
          %v5473 = vsub.f32 %v5182, %v3658
          %v5474 = vsub.f32 %v5188, %v3658
          %v5475 = vsub.f32 %v5194, %v3658
          %v5476 = vsub.f32 %v5200, %v3658
          %v5477 = vsub.f32 %v5206, %v3658
          %v5478 = vsub.f32 %v5212, %v3658
          %v5479 = vsub.f32 %v5218, %v3658
          %v5480 = vsub.f32 %v5224, %v3658
          %v5481 = vand.u32 2147483647, %v5225
          %v5482 = vand.u32 2147483647, %v5226
          %v5483 = vand.u32 2147483647, %v5227
          %v5484 = vand.u32 2147483647, %v5228
          %v5485 = vand.u32 2147483647, %v5229
          %v5486 = vand.u32 2147483647, %v5230
          %v5487 = vand.u32 2147483647, %v5231
          %v5488 = vand.u32 2147483647, %v5232
          %v5489 = vand.u32 2147483647, %v5233
          %v5490 = vand.u32 2147483647, %v5234
          %v5491 = vand.u32 2147483647, %v5235
          %v5492 = vand.u32 2147483647, %v5236
          %v5493 = vand.u32 2147483647, %v5237
          %v5494 = vand.u32 2147483647, %v5238
          %v5495 = vand.u32 2147483647, %v5239
          %v5496 = vand.u32 2147483647, %v5240
          %v5497 = vand.u32 2147483647, %v5241
          %v5498 = vand.u32 2147483647, %v5242
          %v5499 = vand.u32 2147483647, %v5243
          %v5500 = vand.u32 2147483647, %v5244
          %v5501 = vand.u32 2147483647, %v5245
          %v5502 = vand.u32 2147483647, %v5246
          %v5503 = vand.u32 2147483647, %v5247
          %v5504 = vand.u32 2147483647, %v5248
          %v5505 = vand.u32 2147483647, %v5249
          %v5506 = vand.u32 2147483647, %v5250
          %v5507 = vand.u32 2147483647, %v5251
          %v5508 = vand.u32 2147483647, %v5252
          %v5509 = vand.u32 2147483647, %v5253
          %v5510 = vand.u32 2147483647, %v5254
          %v5511 = vand.u32 2147483647, %v5255
          %v5512 = vand.u32 2147483647, %v5256
          %v5513 = vand.u32 2147483647, %v5257
          %v5514 = vand.u32 2147483647, %v5258
          %v5515 = vand.u32 2147483647, %v5259
          %v5516 = vand.u32 2147483647, %v5260
          %v5517 = vand.u32 2147483647, %v5261
          %v5518 = vand.u32 2147483647, %v5262
          %v5519 = vand.u32 2147483647, %v5263
          %v5520 = vand.u32 2147483647, %v5264
          %v5521 = vand.u32 2147483647, %v5265
          %v5522 = vand.u32 2147483647, %v5266
          %v5523 = vand.u32 2147483647, %v5267
          %v5524 = vand.u32 2147483647, %v5268
          %v5525 = vand.u32 2147483647, %v5269
          %v5526 = vand.u32 2147483647, %v5270
          %v5527 = vand.u32 2147483647, %v5271
          %v5528 = vand.u32 2147483647, %v5272
          %v5529 = vand.u32 2147483647, %v5273
          %v5530 = vand.u32 2147483647, %v5274
          %v5531 = vand.u32 2147483647, %v5275
          %v5532 = vand.u32 2147483647, %v5276
          %v5533 = vand.u32 2147483647, %v5277
          %v5534 = vand.u32 2147483647, %v5278
          %v5535 = vand.u32 2147483647, %v5279
          %v5536 = vand.u32 2147483647, %v5280
          %v5537 = vand.u32 2147483647, %v5281
          %v5538 = vand.u32 2147483647, %v5282
          %v5539 = vand.u32 2147483647, %v5283
          %v5540 = vand.u32 2147483647, %v5284
          %v5541 = vand.u32 2147483647, %v5285
          %v5542 = vand.u32 2147483647, %v5286
          %v5543 = vand.u32 2147483647, %v5287
          %v5544 = vand.u32 2147483647, %v5288
          %v5545 = vand.u32 2147483647, %v5289
          %v5546 = vand.u32 2147483647, %v5290
          %v5547 = vand.u32 2147483647, %v5291
          %v5548 = vand.u32 2147483647, %v5292
          %v5549 = vand.u32 2147483647, %v5293
          %v5550 = vand.u32 2147483647, %v5294
          %v5551 = vand.u32 2147483647, %v5295
          %v5552 = vand.u32 2147483647, %v5296
          %v5553 = vand.u32 2147483647, %v5297
          %v5554 = vand.u32 2147483647, %v5298
          %v5555 = vand.u32 2147483647, %v5299
          %v5556 = vand.u32 2147483647, %v5300
          %v5557 = vand.u32 2147483647, %v5301
          %v5558 = vand.u32 2147483647, %v5302
          %v5559 = vand.u32 2147483647, %v5303
          %v5560 = vand.u32 2147483647, %v5304
          %v5561 = vand.u32 2147483647, %v5305
          %v5562 = vand.u32 2147483647, %v5306
          %v5563 = vand.u32 2147483647, %v5307
          %v5564 = vand.u32 2147483647, %v5308
          %v5565 = vand.u32 2147483647, %v5309
          %v5566 = vand.u32 2147483647, %v5310
          %v5567 = vand.u32 2147483647, %v5311
          %v5568 = vand.u32 2147483647, %v5312
          %v5569 = vand.u32 2147483647, %v5313
          %v5570 = vand.u32 2147483647, %v5314
          %v5571 = vand.u32 2147483647, %v5315
          %v5572 = vand.u32 2147483647, %v5316
          %v5573 = vand.u32 2147483647, %v5317
          %v5574 = vand.u32 2147483647, %v5318
          %v5575 = vand.u32 2147483647, %v5319
          %v5576 = vand.u32 2147483647, %v5320
          %v5577 = vand.u32 2147483647, %v5321
          %v5578 = vand.u32 2147483647, %v5322
          %v5579 = vand.u32 2147483647, %v5323
          %v5580 = vand.u32 2147483647, %v5324
          %v5581 = vand.u32 2147483647, %v5325
          %v5582 = vand.u32 2147483647, %v5326
          %v5583 = vand.u32 2147483647, %v5327
          %v5584 = vand.u32 2147483647, %v5328
          %v5585 = vand.u32 2147483647, %v5329
          %v5586 = vand.u32 2147483647, %v5330
          %v5587 = vand.u32 2147483647, %v5331
          %v5588 = vand.u32 2147483647, %v5332
          %v5589 = vand.u32 2147483647, %v5333
          %v5590 = vand.u32 2147483647, %v5334
          %v5591 = vand.u32 2147483647, %v5335
          %v5592 = vand.u32 2147483647, %v5336
          %v5593 = vand.u32 2147483647, %v5337
          %v5594 = vand.u32 2147483647, %v5338
          %v5595 = vand.u32 2147483647, %v5339
          %v5596 = vand.u32 2147483647, %v5340
          %v5597 = vand.u32 2147483647, %v5341
          %v5598 = vand.u32 2147483647, %v5342
          %v5599 = vand.u32 2147483647, %v5343
          %v5600 = vand.u32 2147483647, %v5344
          %v5601 = vand.u32 2147483647, %v5345
          %v5602 = vand.u32 2147483647, %v5346
          %v5603 = vand.u32 2147483647, %v5347
          %v5604 = vand.u32 2147483647, %v5348
          %v5605 = vand.u32 2147483647, %v5349
          %v5606 = vand.u32 2147483647, %v5350
          %v5607 = vand.u32 2147483647, %v5351
          %v5608 = vand.u32 2147483647, %v5352
          %v5609 = vand.u32 2147483647, %v5353
          %v5610 = vand.u32 2147483647, %v5354
          %v5611 = vand.u32 2147483647, %v5355
          %v5612 = vand.u32 2147483647, %v5356
          %v5613 = vand.u32 2147483647, %v5357
          %v5614 = vand.u32 2147483647, %v5358
          %v5615 = vand.u32 2147483647, %v5359
          %v5616 = vand.u32 2147483647, %v5360
          %v5617 = vand.u32 2147483647, %v5361
          %v5618 = vand.u32 2147483647, %v5362
          %v5619 = vand.u32 2147483647, %v5363
          %v5620 = vand.u32 2147483647, %v5364
          %v5621 = vand.u32 2147483647, %v5365
          %v5622 = vand.u32 2147483647, %v5366
          %v5623 = vand.u32 2147483647, %v5367
          %v5624 = vand.u32 2147483647, %v5368
          %v5625 = vand.u32 2147483647, %v5369
          %v5626 = vand.u32 2147483647, %v5370
          %v5627 = vand.u32 2147483647, %v5371
          %v5628 = vand.u32 2147483647, %v5372
          %v5629 = vand.u32 2147483647, %v5373
          %v5630 = vand.u32 2147483647, %v5374
          %v5631 = vand.u32 2147483647, %v5375
          %v5632 = vand.u32 2147483647, %v5376
          %v5633 = vand.u32 2147483647, %v5377
          %v5634 = vand.u32 2147483647, %v5378
          %v5635 = vand.u32 2147483647, %v5379
          %v5636 = vand.u32 2147483647, %v5380
          %v5637 = vand.u32 2147483647, %v5381
          %v5638 = vand.u32 2147483647, %v5382
          %v5639 = vand.u32 2147483647, %v5383
          %v5640 = vand.u32 2147483647, %v5384
          %v5641 = vand.u32 2147483647, %v5385
          %v5642 = vand.u32 2147483647, %v5386
          %v5643 = vand.u32 2147483647, %v5387
          %v5644 = vand.u32 2147483647, %v5388
          %v5645 = vand.u32 2147483647, %v5389
          %v5646 = vand.u32 2147483647, %v5390
          %v5647 = vand.u32 2147483647, %v5391
          %v5648 = vand.u32 2147483647, %v5392
          %v5649 = vand.u32 2147483647, %v5393
          %v5650 = vand.u32 2147483647, %v5394
          %v5651 = vand.u32 2147483647, %v5395
          %v5652 = vand.u32 2147483647, %v5396
          %v5653 = vand.u32 2147483647, %v5397
          %v5654 = vand.u32 2147483647, %v5398
          %v5655 = vand.u32 2147483647, %v5399
          %v5656 = vand.u32 2147483647, %v5400
          %v5657 = vand.u32 2147483647, %v5401
          %v5658 = vand.u32 2147483647, %v5402
          %v5659 = vand.u32 2147483647, %v5403
          %v5660 = vand.u32 2147483647, %v5404
          %v5661 = vand.u32 2147483647, %v5405
          %v5662 = vand.u32 2147483647, %v5406
          %v5663 = vand.u32 2147483647, %v5407
          %v5664 = vand.u32 2147483647, %v5408
          %v5665 = vand.u32 2147483647, %v5409
          %v5666 = vand.u32 2147483647, %v5410
          %v5667 = vand.u32 2147483647, %v5411
          %v5668 = vand.u32 2147483647, %v5412
          %v5669 = vand.u32 2147483647, %v5413
          %v5670 = vand.u32 2147483647, %v5414
          %v5671 = vand.u32 2147483647, %v5415
          %v5672 = vand.u32 2147483647, %v5416
          %v5673 = vand.u32 2147483647, %v5417
          %v5674 = vand.u32 2147483647, %v5418
          %v5675 = vand.u32 2147483647, %v5419
          %v5676 = vand.u32 2147483647, %v5420
          %v5677 = vand.u32 2147483647, %v5421
          %v5678 = vand.u32 2147483647, %v5422
          %v5679 = vand.u32 2147483647, %v5423
          %v5680 = vand.u32 2147483647, %v5424
          %v5681 = vand.u32 2147483647, %v5425
          %v5682 = vand.u32 2147483647, %v5426
          %v5683 = vand.u32 2147483647, %v5427
          %v5684 = vand.u32 2147483647, %v5428
          %v5685 = vand.u32 2147483647, %v5429
          %v5686 = vand.u32 2147483647, %v5430
          %v5687 = vand.u32 2147483647, %v5431
          %v5688 = vand.u32 2147483647, %v5432
          %v5689 = vand.u32 2147483647, %v5433
          %v5690 = vand.u32 2147483647, %v5434
          %v5691 = vand.u32 2147483647, %v5435
          %v5692 = vand.u32 2147483647, %v5436
          %v5693 = vand.u32 2147483647, %v5437
          %v5694 = vand.u32 2147483647, %v5438
          %v5695 = vand.u32 2147483647, %v5439
          %v5696 = vand.u32 2147483647, %v5440
          %v5697 = vand.u32 2147483647, %v5441
          %v5698 = vand.u32 2147483647, %v5442
          %v5699 = vand.u32 2147483647, %v5443
          %v5700 = vand.u32 2147483647, %v5444
          %v5701 = vand.u32 2147483647, %v5445
          %v5702 = vand.u32 2147483647, %v5446
          %v5703 = vand.u32 2147483647, %v5447
          %v5704 = vand.u32 2147483647, %v5448
          %v5705 = vand.u32 2147483647, %v5449
          %v5706 = vand.u32 2147483647, %v5450
          %v5707 = vand.u32 2147483647, %v5451
          %v5708 = vand.u32 2147483647, %v5452
          %v5709 = vand.u32 2147483647, %v5453
          %v5710 = vand.u32 2147483647, %v5454
          %v5711 = vand.u32 2147483647, %v5455
          %v5712 = vand.u32 2147483647, %v5456
          %v5713 = vand.u32 2147483647, %v5457
          %v5714 = vand.u32 2147483647, %v5458
          %v5715 = vand.u32 2147483647, %v5459
          %v5716 = vand.u32 2147483647, %v5460
          %v5717 = vand.u32 2147483647, %v5461
          %v5718 = vand.u32 2147483647, %v5462
          %v5719 = vand.u32 2147483647, %v5463
          %v5720 = vand.u32 2147483647, %v5464
          %v5721 = vand.u32 2147483647, %v5465
          %v5722 = vand.u32 2147483647, %v5466
          %v5723 = vand.u32 2147483647, %v5467
          %v5724 = vand.u32 2147483647, %v5468
          %v5725 = vand.u32 2147483647, %v5469
          %v5726 = vand.u32 2147483647, %v5470
          %v5727 = vand.u32 2147483647, %v5471
          %v5728 = vand.u32 2147483647, %v5472
          %v5729 = vand.u32 2147483647, %v5473
          %v5730 = vand.u32 2147483647, %v5474
          %v5731 = vand.u32 2147483647, %v5475
          %v5732 = vand.u32 2147483647, %v5476
          %v5733 = vand.u32 2147483647, %v5477
          %v5734 = vand.u32 2147483647, %v5478
          %v5735 = vand.u32 2147483647, %v5479
          %v5736 = vand.u32 2147483647, %v5480
          %v5737 = vsub.f32 1.0, %v5481
          %v5738 = vsub.f32 1.0, %v5482
          %v5739 = vsub.f32 1.0, %v5483
          %v5740 = vsub.f32 1.0, %v5484
          %v5741 = vsub.f32 1.0, %v5485
          %v5742 = vsub.f32 1.0, %v5486
          %v5743 = vsub.f32 1.0, %v5487
          %v5744 = vsub.f32 1.0, %v5488
          %v5745 = vsub.f32 1.0, %v5489
          %v5746 = vsub.f32 1.0, %v5490
          %v5747 = vsub.f32 1.0, %v5491
          %v5748 = vsub.f32 1.0, %v5492
          %v5749 = vsub.f32 1.0, %v5493
          %v5750 = vsub.f32 1.0, %v5494
          %v5751 = vsub.f32 1.0, %v5495
          %v5752 = vsub.f32 1.0, %v5496
          %v5753 = vsub.f32 1.0, %v5497
          %v5754 = vsub.f32 1.0, %v5498
          %v5755 = vsub.f32 1.0, %v5499
          %v5756 = vsub.f32 1.0, %v5500
          %v5757 = vsub.f32 1.0, %v5501
          %v5758 = vsub.f32 1.0, %v5502
          %v5759 = vsub.f32 1.0, %v5503
          %v5760 = vsub.f32 1.0, %v5504
          %v5761 = vsub.f32 1.0, %v5505
          %v5762 = vsub.f32 1.0, %v5506
          %v5763 = vsub.f32 1.0, %v5507
          %v5764 = vsub.f32 1.0, %v5508
          %v5765 = vsub.f32 1.0, %v5509
          %v5766 = vsub.f32 1.0, %v5510
          %v5767 = vsub.f32 1.0, %v5511
          %v5768 = vsub.f32 1.0, %v5512
          %v5769 = vsub.f32 1.0, %v5513
          %v5770 = vsub.f32 1.0, %v5514
          %v5771 = vsub.f32 1.0, %v5515
          %v5772 = vsub.f32 1.0, %v5516
          %v5773 = vsub.f32 1.0, %v5517
          %v5774 = vsub.f32 1.0, %v5518
          %v5775 = vsub.f32 1.0, %v5519
          %v5776 = vsub.f32 1.0, %v5520
          %v5777 = vsub.f32 1.0, %v5521
          %v5778 = vsub.f32 1.0, %v5522
          %v5779 = vsub.f32 1.0, %v5523
          %v5780 = vsub.f32 1.0, %v5524
          %v5781 = vsub.f32 1.0, %v5525
          %v5782 = vsub.f32 1.0, %v5526
          %v5783 = vsub.f32 1.0, %v5527
          %v5784 = vsub.f32 1.0, %v5528
          %v5785 = vsub.f32 1.0, %v5529
          %v5786 = vsub.f32 1.0, %v5530
          %v5787 = vsub.f32 1.0, %v5531
          %v5788 = vsub.f32 1.0, %v5532
          %v5789 = vsub.f32 1.0, %v5533
          %v5790 = vsub.f32 1.0, %v5534
          %v5791 = vsub.f32 1.0, %v5535
          %v5792 = vsub.f32 1.0, %v5536
          %v5793 = vsub.f32 1.0, %v5537
          %v5794 = vsub.f32 1.0, %v5538
          %v5795 = vsub.f32 1.0, %v5539
          %v5796 = vsub.f32 1.0, %v5540
          %v5797 = vsub.f32 1.0, %v5541
          %v5798 = vsub.f32 1.0, %v5542
          %v5799 = vsub.f32 1.0, %v5543
          %v5800 = vsub.f32 1.0, %v5544
          %v5801 = vsub.f32 1.0, %v5545
          %v5802 = vsub.f32 1.0, %v5546
          %v5803 = vsub.f32 1.0, %v5547
          %v5804 = vsub.f32 1.0, %v5548
          %v5805 = vsub.f32 1.0, %v5549
          %v5806 = vsub.f32 1.0, %v5550
          %v5807 = vsub.f32 1.0, %v5551
          %v5808 = vsub.f32 1.0, %v5552
          %v5809 = vsub.f32 1.0, %v5553
          %v5810 = vsub.f32 1.0, %v5554
          %v5811 = vsub.f32 1.0, %v5555
          %v5812 = vsub.f32 1.0, %v5556
          %v5813 = vsub.f32 1.0, %v5557
          %v5814 = vsub.f32 1.0, %v5558
          %v5815 = vsub.f32 1.0, %v5559
          %v5816 = vsub.f32 1.0, %v5560
          %v5817 = vsub.f32 1.0, %v5561
          %v5818 = vsub.f32 1.0, %v5562
          %v5819 = vsub.f32 1.0, %v5563
          %v5820 = vsub.f32 1.0, %v5564
          %v5821 = vsub.f32 1.0, %v5565
          %v5822 = vsub.f32 1.0, %v5566
          %v5823 = vsub.f32 1.0, %v5567
          %v5824 = vsub.f32 1.0, %v5568
          %v5825 = vsub.f32 1.0, %v5569
          %v5826 = vsub.f32 1.0, %v5570
          %v5827 = vsub.f32 1.0, %v5571
          %v5828 = vsub.f32 1.0, %v5572
          %v5829 = vsub.f32 1.0, %v5573
          %v5830 = vsub.f32 1.0, %v5574
          %v5831 = vsub.f32 1.0, %v5575
          %v5832 = vsub.f32 1.0, %v5576
          %v5833 = vsub.f32 1.0, %v5577
          %v5834 = vsub.f32 1.0, %v5578
          %v5835 = vsub.f32 1.0, %v5579
          %v5836 = vsub.f32 1.0, %v5580
          %v5837 = vsub.f32 1.0, %v5581
          %v5838 = vsub.f32 1.0, %v5582
          %v5839 = vsub.f32 1.0, %v5583
          %v5840 = vsub.f32 1.0, %v5584
          %v5841 = vsub.f32 1.0, %v5585
          %v5842 = vsub.f32 1.0, %v5586
          %v5843 = vsub.f32 1.0, %v5587
          %v5844 = vsub.f32 1.0, %v5588
          %v5845 = vsub.f32 1.0, %v5589
          %v5846 = vsub.f32 1.0, %v5590
          %v5847 = vsub.f32 1.0, %v5591
          %v5848 = vsub.f32 1.0, %v5592
          %v5849 = vsub.f32 1.0, %v5593
          %v5850 = vsub.f32 1.0, %v5594
          %v5851 = vsub.f32 1.0, %v5595
          %v5852 = vsub.f32 1.0, %v5596
          %v5853 = vsub.f32 1.0, %v5597
          %v5854 = vsub.f32 1.0, %v5598
          %v5855 = vsub.f32 1.0, %v5599
          %v5856 = vsub.f32 1.0, %v5600
          %v5857 = vsub.f32 1.0, %v5601
          %v5858 = vsub.f32 1.0, %v5602
          %v5859 = vsub.f32 1.0, %v5603
          %v5860 = vsub.f32 1.0, %v5604
          %v5861 = vsub.f32 1.0, %v5605
          %v5862 = vsub.f32 1.0, %v5606
          %v5863 = vsub.f32 1.0, %v5607
          %v5864 = vsub.f32 1.0, %v5608
          %v5865 = vsub.f32 1.0, %v5609
          %v5866 = vsub.f32 1.0, %v5610
          %v5867 = vsub.f32 1.0, %v5611
          %v5868 = vsub.f32 1.0, %v5612
          %v5869 = vsub.f32 1.0, %v5613
          %v5870 = vsub.f32 1.0, %v5614
          %v5871 = vsub.f32 1.0, %v5615
          %v5872 = vsub.f32 1.0, %v5616
          %v5873 = vsub.f32 1.0, %v5617
          %v5874 = vsub.f32 1.0, %v5618
          %v5875 = vsub.f32 1.0, %v5619
          %v5876 = vsub.f32 1.0, %v5620
          %v5877 = vsub.f32 1.0, %v5621
          %v5878 = vsub.f32 1.0, %v5622
          %v5879 = vsub.f32 1.0, %v5623
          %v5880 = vsub.f32 1.0, %v5624
          %v5881 = vsub.f32 1.0, %v5625
          %v5882 = vsub.f32 1.0, %v5626
          %v5883 = vsub.f32 1.0, %v5627
          %v5884 = vsub.f32 1.0, %v5628
          %v5885 = vsub.f32 1.0, %v5629
          %v5886 = vsub.f32 1.0, %v5630
          %v5887 = vsub.f32 1.0, %v5631
          %v5888 = vsub.f32 1.0, %v5632
          %v5889 = vsub.f32 1.0, %v5633
          %v5890 = vsub.f32 1.0, %v5634
          %v5891 = vsub.f32 1.0, %v5635
          %v5892 = vsub.f32 1.0, %v5636
          %v5893 = vsub.f32 1.0, %v5637
          %v5894 = vsub.f32 1.0, %v5638
          %v5895 = vsub.f32 1.0, %v5639
          %v5896 = vsub.f32 1.0, %v5640
          %v5897 = vsub.f32 1.0, %v5641
          %v5898 = vsub.f32 1.0, %v5642
          %v5899 = vsub.f32 1.0, %v5643
          %v5900 = vsub.f32 1.0, %v5644
          %v5901 = vsub.f32 1.0, %v5645
          %v5902 = vsub.f32 1.0, %v5646
          %v5903 = vsub.f32 1.0, %v5647
          %v5904 = vsub.f32 1.0, %v5648
          %v5905 = vsub.f32 1.0, %v5649
          %v5906 = vsub.f32 1.0, %v5650
          %v5907 = vsub.f32 1.0, %v5651
          %v5908 = vsub.f32 1.0, %v5652
          %v5909 = vsub.f32 1.0, %v5653
          %v5910 = vsub.f32 1.0, %v5654
          %v5911 = vsub.f32 1.0, %v5655
          %v5912 = vsub.f32 1.0, %v5656
          %v5913 = vsub.f32 1.0, %v5657
          %v5914 = vsub.f32 1.0, %v5658
          %v5915 = vsub.f32 1.0, %v5659
          %v5916 = vsub.f32 1.0, %v5660
          %v5917 = vsub.f32 1.0, %v5661
          %v5918 = vsub.f32 1.0, %v5662
          %v5919 = vsub.f32 1.0, %v5663
          %v5920 = vsub.f32 1.0, %v5664
          %v5921 = vsub.f32 1.0, %v5665
          %v5922 = vsub.f32 1.0, %v5666
          %v5923 = vsub.f32 1.0, %v5667
          %v5924 = vsub.f32 1.0, %v5668
          %v5925 = vsub.f32 1.0, %v5669
          %v5926 = vsub.f32 1.0, %v5670
          %v5927 = vsub.f32 1.0, %v5671
          %v5928 = vsub.f32 1.0, %v5672
          %v5929 = vsub.f32 1.0, %v5673
          %v5930 = vsub.f32 1.0, %v5674
          %v5931 = vsub.f32 1.0, %v5675
          %v5932 = vsub.f32 1.0, %v5676
          %v5933 = vsub.f32 1.0, %v5677
          %v5934 = vsub.f32 1.0, %v5678
          %v5935 = vsub.f32 1.0, %v5679
          %v5936 = vsub.f32 1.0, %v5680
          %v5937 = vsub.f32 1.0, %v5681
          %v5938 = vsub.f32 1.0, %v5682
          %v5939 = vsub.f32 1.0, %v5683
          %v5940 = vsub.f32 1.0, %v5684
          %v5941 = vsub.f32 1.0, %v5685
          %v5942 = vsub.f32 1.0, %v5686
          %v5943 = vsub.f32 1.0, %v5687
          %v5944 = vsub.f32 1.0, %v5688
          %v5945 = vsub.f32 1.0, %v5689
          %v5946 = vsub.f32 1.0, %v5690
          %v5947 = vsub.f32 1.0, %v5691
          %v5948 = vsub.f32 1.0, %v5692
          %v5949 = vsub.f32 1.0, %v5693
          %v5950 = vsub.f32 1.0, %v5694
          %v5951 = vsub.f32 1.0, %v5695
          %v5952 = vsub.f32 1.0, %v5696
          %v5953 = vsub.f32 1.0, %v5697
          %v5954 = vsub.f32 1.0, %v5698
          %v5955 = vsub.f32 1.0, %v5699
          %v5956 = vsub.f32 1.0, %v5700
          %v5957 = vsub.f32 1.0, %v5701
          %v5958 = vsub.f32 1.0, %v5702
          %v5959 = vsub.f32 1.0, %v5703
          %v5960 = vsub.f32 1.0, %v5704
          %v5961 = vsub.f32 1.0, %v5705
          %v5962 = vsub.f32 1.0, %v5706
          %v5963 = vsub.f32 1.0, %v5707
          %v5964 = vsub.f32 1.0, %v5708
          %v5965 = vsub.f32 1.0, %v5709
          %v5966 = vsub.f32 1.0, %v5710
          %v5967 = vsub.f32 1.0, %v5711
          %v5968 = vsub.f32 1.0, %v5712
          %v5969 = vsub.f32 1.0, %v5713
          %v5970 = vsub.f32 1.0, %v5714
          %v5971 = vsub.f32 1.0, %v5715
          %v5972 = vsub.f32 1.0, %v5716
          %v5973 = vsub.f32 1.0, %v5717
          %v5974 = vsub.f32 1.0, %v5718
          %v5975 = vsub.f32 1.0, %v5719
          %v5976 = vsub.f32 1.0, %v5720
          %v5977 = vsub.f32 1.0, %v5721
          %v5978 = vsub.f32 1.0, %v5722
          %v5979 = vsub.f32 1.0, %v5723
          %v5980 = vsub.f32 1.0, %v5724
          %v5981 = vsub.f32 1.0, %v5725
          %v5982 = vsub.f32 1.0, %v5726
          %v5983 = vsub.f32 1.0, %v5727
          %v5984 = vsub.f32 1.0, %v5728
          %v5985 = vsub.f32 1.0, %v5729
          %v5986 = vsub.f32 1.0, %v5730
          %v5987 = vsub.f32 1.0, %v5731
          %v5988 = vsub.f32 1.0, %v5732
          %v5989 = vsub.f32 1.0, %v5733
          %v5990 = vsub.f32 1.0, %v5734
          %v5991 = vsub.f32 1.0, %v5735
          %v5992 = vsub.f32 1.0, %v5736
          %v5993 = vmax.f32 %v5737, 0.0
          %v5994 = vmax.f32 %v5738, 0.0
          %v5995 = vmax.f32 %v5739, 0.0
          %v5996 = vmax.f32 %v5740, 0.0
          %v5997 = vmax.f32 %v5741, 0.0
          %v5998 = vmax.f32 %v5742, 0.0
          %v5999 = vmax.f32 %v5743, 0.0
          %v6000 = vmax.f32 %v5744, 0.0
          %v6001 = vmax.f32 %v5745, 0.0
          %v6002 = vmax.f32 %v5746, 0.0
          %v6003 = vmax.f32 %v5747, 0.0
          %v6004 = vmax.f32 %v5748, 0.0
          %v6005 = vmax.f32 %v5749, 0.0
          %v6006 = vmax.f32 %v5750, 0.0
          %v6007 = vmax.f32 %v5751, 0.0
          %v6008 = vmax.f32 %v5752, 0.0
          %v6009 = vmax.f32 %v5753, 0.0
          %v6010 = vmax.f32 %v5754, 0.0
          %v6011 = vmax.f32 %v5755, 0.0
          %v6012 = vmax.f32 %v5756, 0.0
          %v6013 = vmax.f32 %v5757, 0.0
          %v6014 = vmax.f32 %v5758, 0.0
          %v6015 = vmax.f32 %v5759, 0.0
          %v6016 = vmax.f32 %v5760, 0.0
          %v6017 = vmax.f32 %v5761, 0.0
          %v6018 = vmax.f32 %v5762, 0.0
          %v6019 = vmax.f32 %v5763, 0.0
          %v6020 = vmax.f32 %v5764, 0.0
          %v6021 = vmax.f32 %v5765, 0.0
          %v6022 = vmax.f32 %v5766, 0.0
          %v6023 = vmax.f32 %v5767, 0.0
          %v6024 = vmax.f32 %v5768, 0.0
          %v6025 = vmax.f32 %v5769, 0.0
          %v6026 = vmax.f32 %v5770, 0.0
          %v6027 = vmax.f32 %v5771, 0.0
          %v6028 = vmax.f32 %v5772, 0.0
          %v6029 = vmax.f32 %v5773, 0.0
          %v6030 = vmax.f32 %v5774, 0.0
          %v6031 = vmax.f32 %v5775, 0.0
          %v6032 = vmax.f32 %v5776, 0.0
          %v6033 = vmax.f32 %v5777, 0.0
          %v6034 = vmax.f32 %v5778, 0.0
          %v6035 = vmax.f32 %v5779, 0.0
          %v6036 = vmax.f32 %v5780, 0.0
          %v6037 = vmax.f32 %v5781, 0.0
          %v6038 = vmax.f32 %v5782, 0.0
          %v6039 = vmax.f32 %v5783, 0.0
          %v6040 = vmax.f32 %v5784, 0.0
          %v6041 = vmax.f32 %v5785, 0.0
          %v6042 = vmax.f32 %v5786, 0.0
          %v6043 = vmax.f32 %v5787, 0.0
          %v6044 = vmax.f32 %v5788, 0.0
          %v6045 = vmax.f32 %v5789, 0.0
          %v6046 = vmax.f32 %v5790, 0.0
          %v6047 = vmax.f32 %v5791, 0.0
          %v6048 = vmax.f32 %v5792, 0.0
          %v6049 = vmax.f32 %v5793, 0.0
          %v6050 = vmax.f32 %v5794, 0.0
          %v6051 = vmax.f32 %v5795, 0.0
          %v6052 = vmax.f32 %v5796, 0.0
          %v6053 = vmax.f32 %v5797, 0.0
          %v6054 = vmax.f32 %v5798, 0.0
          %v6055 = vmax.f32 %v5799, 0.0
          %v6056 = vmax.f32 %v5800, 0.0
          %v6057 = vmax.f32 %v5801, 0.0
          %v6058 = vmax.f32 %v5802, 0.0
          %v6059 = vmax.f32 %v5803, 0.0
          %v6060 = vmax.f32 %v5804, 0.0
          %v6061 = vmax.f32 %v5805, 0.0
          %v6062 = vmax.f32 %v5806, 0.0
          %v6063 = vmax.f32 %v5807, 0.0
          %v6064 = vmax.f32 %v5808, 0.0
          %v6065 = vmax.f32 %v5809, 0.0
          %v6066 = vmax.f32 %v5810, 0.0
          %v6067 = vmax.f32 %v5811, 0.0
          %v6068 = vmax.f32 %v5812, 0.0
          %v6069 = vmax.f32 %v5813, 0.0
          %v6070 = vmax.f32 %v5814, 0.0
          %v6071 = vmax.f32 %v5815, 0.0
          %v6072 = vmax.f32 %v5816, 0.0
          %v6073 = vmax.f32 %v5817, 0.0
          %v6074 = vmax.f32 %v5818, 0.0
          %v6075 = vmax.f32 %v5819, 0.0
          %v6076 = vmax.f32 %v5820, 0.0
          %v6077 = vmax.f32 %v5821, 0.0
          %v6078 = vmax.f32 %v5822, 0.0
          %v6079 = vmax.f32 %v5823, 0.0
          %v6080 = vmax.f32 %v5824, 0.0
          %v6081 = vmax.f32 %v5825, 0.0
          %v6082 = vmax.f32 %v5826, 0.0
          %v6083 = vmax.f32 %v5827, 0.0
          %v6084 = vmax.f32 %v5828, 0.0
          %v6085 = vmax.f32 %v5829, 0.0
          %v6086 = vmax.f32 %v5830, 0.0
          %v6087 = vmax.f32 %v5831, 0.0
          %v6088 = vmax.f32 %v5832, 0.0
          %v6089 = vmax.f32 %v5833, 0.0
          %v6090 = vmax.f32 %v5834, 0.0
          %v6091 = vmax.f32 %v5835, 0.0
          %v6092 = vmax.f32 %v5836, 0.0
          %v6093 = vmax.f32 %v5837, 0.0
          %v6094 = vmax.f32 %v5838, 0.0
          %v6095 = vmax.f32 %v5839, 0.0
          %v6096 = vmax.f32 %v5840, 0.0
          %v6097 = vmax.f32 %v5841, 0.0
          %v6098 = vmax.f32 %v5842, 0.0
          %v6099 = vmax.f32 %v5843, 0.0
          %v6100 = vmax.f32 %v5844, 0.0
          %v6101 = vmax.f32 %v5845, 0.0
          %v6102 = vmax.f32 %v5846, 0.0
          %v6103 = vmax.f32 %v5847, 0.0
          %v6104 = vmax.f32 %v5848, 0.0
          %v6105 = vmax.f32 %v5849, 0.0
          %v6106 = vmax.f32 %v5850, 0.0
          %v6107 = vmax.f32 %v5851, 0.0
          %v6108 = vmax.f32 %v5852, 0.0
          %v6109 = vmax.f32 %v5853, 0.0
          %v6110 = vmax.f32 %v5854, 0.0
          %v6111 = vmax.f32 %v5855, 0.0
          %v6112 = vmax.f32 %v5856, 0.0
          %v6113 = vmax.f32 %v5857, 0.0
          %v6114 = vmax.f32 %v5858, 0.0
          %v6115 = vmax.f32 %v5859, 0.0
          %v6116 = vmax.f32 %v5860, 0.0
          %v6117 = vmax.f32 %v5861, 0.0
          %v6118 = vmax.f32 %v5862, 0.0
          %v6119 = vmax.f32 %v5863, 0.0
          %v6120 = vmax.f32 %v5864, 0.0
          %v6121 = vmax.f32 %v5865, 0.0
          %v6122 = vmax.f32 %v5866, 0.0
          %v6123 = vmax.f32 %v5867, 0.0
          %v6124 = vmax.f32 %v5868, 0.0
          %v6125 = vmax.f32 %v5869, 0.0
          %v6126 = vmax.f32 %v5870, 0.0
          %v6127 = vmax.f32 %v5871, 0.0
          %v6128 = vmax.f32 %v5872, 0.0
          %v6129 = vmax.f32 %v5873, 0.0
          %v6130 = vmax.f32 %v5874, 0.0
          %v6131 = vmax.f32 %v5875, 0.0
          %v6132 = vmax.f32 %v5876, 0.0
          %v6133 = vmax.f32 %v5877, 0.0
          %v6134 = vmax.f32 %v5878, 0.0
          %v6135 = vmax.f32 %v5879, 0.0
          %v6136 = vmax.f32 %v5880, 0.0
          %v6137 = vmax.f32 %v5881, 0.0
          %v6138 = vmax.f32 %v5882, 0.0
          %v6139 = vmax.f32 %v5883, 0.0
          %v6140 = vmax.f32 %v5884, 0.0
          %v6141 = vmax.f32 %v5885, 0.0
          %v6142 = vmax.f32 %v5886, 0.0
          %v6143 = vmax.f32 %v5887, 0.0
          %v6144 = vmax.f32 %v5888, 0.0
          %v6145 = vmax.f32 %v5889, 0.0
          %v6146 = vmax.f32 %v5890, 0.0
          %v6147 = vmax.f32 %v5891, 0.0
          %v6148 = vmax.f32 %v5892, 0.0
          %v6149 = vmax.f32 %v5893, 0.0
          %v6150 = vmax.f32 %v5894, 0.0
          %v6151 = vmax.f32 %v5895, 0.0
          %v6152 = vmax.f32 %v5896, 0.0
          %v6153 = vmax.f32 %v5897, 0.0
          %v6154 = vmax.f32 %v5898, 0.0
          %v6155 = vmax.f32 %v5899, 0.0
          %v6156 = vmax.f32 %v5900, 0.0
          %v6157 = vmax.f32 %v5901, 0.0
          %v6158 = vmax.f32 %v5902, 0.0
          %v6159 = vmax.f32 %v5903, 0.0
          %v6160 = vmax.f32 %v5904, 0.0
          %v6161 = vmax.f32 %v5905, 0.0
          %v6162 = vmax.f32 %v5906, 0.0
          %v6163 = vmax.f32 %v5907, 0.0
          %v6164 = vmax.f32 %v5908, 0.0
          %v6165 = vmax.f32 %v5909, 0.0
          %v6166 = vmax.f32 %v5910, 0.0
          %v6167 = vmax.f32 %v5911, 0.0
          %v6168 = vmax.f32 %v5912, 0.0
          %v6169 = vmax.f32 %v5913, 0.0
          %v6170 = vmax.f32 %v5914, 0.0
          %v6171 = vmax.f32 %v5915, 0.0
          %v6172 = vmax.f32 %v5916, 0.0
          %v6173 = vmax.f32 %v5917, 0.0
          %v6174 = vmax.f32 %v5918, 0.0
          %v6175 = vmax.f32 %v5919, 0.0
          %v6176 = vmax.f32 %v5920, 0.0
          %v6177 = vmax.f32 %v5921, 0.0
          %v6178 = vmax.f32 %v5922, 0.0
          %v6179 = vmax.f32 %v5923, 0.0
          %v6180 = vmax.f32 %v5924, 0.0
          %v6181 = vmax.f32 %v5925, 0.0
          %v6182 = vmax.f32 %v5926, 0.0
          %v6183 = vmax.f32 %v5927, 0.0
          %v6184 = vmax.f32 %v5928, 0.0
          %v6185 = vmax.f32 %v5929, 0.0
          %v6186 = vmax.f32 %v5930, 0.0
          %v6187 = vmax.f32 %v5931, 0.0
          %v6188 = vmax.f32 %v5932, 0.0
          %v6189 = vmax.f32 %v5933, 0.0
          %v6190 = vmax.f32 %v5934, 0.0
          %v6191 = vmax.f32 %v5935, 0.0
          %v6192 = vmax.f32 %v5936, 0.0
          %v6193 = vmax.f32 %v5937, 0.0
          %v6194 = vmax.f32 %v5938, 0.0
          %v6195 = vmax.f32 %v5939, 0.0
          %v6196 = vmax.f32 %v5940, 0.0
          %v6197 = vmax.f32 %v5941, 0.0
          %v6198 = vmax.f32 %v5942, 0.0
          %v6199 = vmax.f32 %v5943, 0.0
          %v6200 = vmax.f32 %v5944, 0.0
          %v6201 = vmax.f32 %v5945, 0.0
          %v6202 = vmax.f32 %v5946, 0.0
          %v6203 = vmax.f32 %v5947, 0.0
          %v6204 = vmax.f32 %v5948, 0.0
          %v6205 = vmax.f32 %v5949, 0.0
          %v6206 = vmax.f32 %v5950, 0.0
          %v6207 = vmax.f32 %v5951, 0.0
          %v6208 = vmax.f32 %v5952, 0.0
          %v6209 = vmax.f32 %v5953, 0.0
          %v6210 = vmax.f32 %v5954, 0.0
          %v6211 = vmax.f32 %v5955, 0.0
          %v6212 = vmax.f32 %v5956, 0.0
          %v6213 = vmax.f32 %v5957, 0.0
          %v6214 = vmax.f32 %v5958, 0.0
          %v6215 = vmax.f32 %v5959, 0.0
          %v6216 = vmax.f32 %v5960, 0.0
          %v6217 = vmax.f32 %v5961, 0.0
          %v6218 = vmax.f32 %v5962, 0.0
          %v6219 = vmax.f32 %v5963, 0.0
          %v6220 = vmax.f32 %v5964, 0.0
          %v6221 = vmax.f32 %v5965, 0.0
          %v6222 = vmax.f32 %v5966, 0.0
          %v6223 = vmax.f32 %v5967, 0.0
          %v6224 = vmax.f32 %v5968, 0.0
          %v6225 = vmax.f32 %v5969, 0.0
          %v6226 = vmax.f32 %v5970, 0.0
          %v6227 = vmax.f32 %v5971, 0.0
          %v6228 = vmax.f32 %v5972, 0.0
          %v6229 = vmax.f32 %v5973, 0.0
          %v6230 = vmax.f32 %v5974, 0.0
          %v6231 = vmax.f32 %v5975, 0.0
          %v6232 = vmax.f32 %v5976, 0.0
          %v6233 = vmax.f32 %v5977, 0.0
          %v6234 = vmax.f32 %v5978, 0.0
          %v6235 = vmax.f32 %v5979, 0.0
          %v6236 = vmax.f32 %v5980, 0.0
          %v6237 = vmax.f32 %v5981, 0.0
          %v6238 = vmax.f32 %v5982, 0.0
          %v6239 = vmax.f32 %v5983, 0.0
          %v6240 = vmax.f32 %v5984, 0.0
          %v6241 = vmax.f32 %v5985, 0.0
          %v6242 = vmax.f32 %v5986, 0.0
          %v6243 = vmax.f32 %v5987, 0.0
          %v6244 = vmax.f32 %v5988, 0.0
          %v6245 = vmax.f32 %v5989, 0.0
          %v6246 = vmax.f32 %v5990, 0.0
          %v6247 = vmax.f32 %v5991, 0.0
          %v6248 = vmax.f32 %v5992, 0.0
          %v6249 = vld [vmem:[#allocation2] sm:$0xff]
          %v6250 = vld [vmem:[#allocation2 + $0x8] sm:$0xff]
          %v6251 = vld [vmem:[#allocation2 + $0x10] sm:$0xff]
          %v6252 = vld [vmem:[#allocation2 + $0x18] sm:$0xff]
          %v6253 = vld [vmem:[#allocation2 + $0x20] sm:$0xff]
          %v6254 = vld [vmem:[#allocation2 + $0x28] sm:$0xff]
          %v6255 = vld [vmem:[#allocation2 + $0x30] sm:$0xff]
          %v6256 = vld [vmem:[#allocation2 + $0x38] sm:$0xff]
          %v6257 = vld [vmem:[#allocation2 + $0x40] sm:$0xff]
          %v6258 = vld [vmem:[#allocation2 + $0x48] sm:$0xff]
          %v6259 = vld [vmem:[#allocation2 + $0x50] sm:$0xff]
          %v6260 = vld [vmem:[#allocation2 + $0x58] sm:$0xff]
          %v6261 = vld [vmem:[#allocation2 + $0x60] sm:$0xff]
          %v6262 = vld [vmem:[#allocation2 + $0x68] sm:$0xff]
          %v6263 = vld [vmem:[#allocation2 + $0x70] sm:$0xff]
          %v6264 = vld [vmem:[#allocation2 + $0x78] sm:$0xff]
          %v6265 = vld [vmem:[#allocation2 + $0x80] sm:$0xff]
          %v6266 = vld [vmem:[#allocation2 + $0x88] sm:$0xff]
          %v6267 = vld [vmem:[#allocation2 + $0x90] sm:$0xff]
          %v6268 = vld [vmem:[#allocation2 + $0x98] sm:$0xff]
          %v6269 = vld [vmem:[#allocation2 + $0xa0] sm:$0xff]
          %v6270 = vld [vmem:[#allocation2 + $0xa8] sm:$0xff]
          %v6271 = vld [vmem:[#allocation2 + $0xb0] sm:$0xff]
          %v6272 = vld [vmem:[#allocation2 + $0xb8] sm:$0xff]
          %v6273 = vld [vmem:[#allocation2 + $0xc0] sm:$0xff]
          %v6274 = vld [vmem:[#allocation2 + $0xc8] sm:$0xff]
          %v6275 = vld [vmem:[#allocation2 + $0xd0] sm:$0xff]
          %v6276 = vld [vmem:[#allocation2 + $0xd8] sm:$0xff]
          %v6277 = vld [vmem:[#allocation2 + $0xe0] sm:$0xff]
          %v6278 = vld [vmem:[#allocation2 + $0xe8] sm:$0xff]
          %v6279 = vld [vmem:[#allocation2 + $0xf0] sm:$0xff]
          %v6280 = vld [vmem:[#allocation2 + $0xf8] sm:$0xff]
          %v6281 = vld [vmem:[#allocation2 + $0x100] sm:$0xff]
          %v6282 = vld [vmem:[#allocation2 + $0x108] sm:$0xff]
          %v6283 = vld [vmem:[#allocation2 + $0x110] sm:$0xff]
          %v6284 = vld [vmem:[#allocation2 + $0x118] sm:$0xff]
          %v6285 = vld [vmem:[#allocation2 + $0x120] sm:$0xff]
          %v6286 = vld [vmem:[#allocation2 + $0x128] sm:$0xff]
          %v6287 = vld [vmem:[#allocation2 + $0x130] sm:$0xff]
          %v6288 = vld [vmem:[#allocation2 + $0x138] sm:$0xff]
          %v6289 = vld [vmem:[#allocation2 + $0x140] sm:$0xff]
          %v6290 = vld [vmem:[#allocation2 + $0x148] sm:$0xff]
          %v6291 = vld [vmem:[#allocation2 + $0x150] sm:$0xff]
          %v6292 = vld [vmem:[#allocation2 + $0x158] sm:$0xff]
          %v6293 = vld [vmem:[#allocation2 + $0x160] sm:$0xff]
          %v6294 = vld [vmem:[#allocation2 + $0x168] sm:$0xff]
          %v6295 = vld [vmem:[#allocation2 + $0x170] sm:$0xff]
          %v6296 = vld [vmem:[#allocation2 + $0x178] sm:$0xff]
          %v6297 = vld [vmem:[#allocation2 + $0x180] sm:$0xff]
          %v6298 = vld [vmem:[#allocation2 + $0x188] sm:$0xff]
          %v6299 = vld [vmem:[#allocation2 + $0x190] sm:$0xff]
          %v6300 = vld [vmem:[#allocation2 + $0x198] sm:$0xff]
          %v6301 = vld [vmem:[#allocation2 + $0x1a0] sm:$0xff]
          %v6302 = vld [vmem:[#allocation2 + $0x1a8] sm:$0xff]
          %v6303 = vld [vmem:[#allocation2 + $0x1b0] sm:$0xff]
          %v6304 = vld [vmem:[#allocation2 + $0x1b8] sm:$0xff]
          %v6305 = vld [vmem:[#allocation2 + $0x1c0] sm:$0xff]
          %v6306 = vld [vmem:[#allocation2 + $0x1c8] sm:$0xff]
          %v6307 = vld [vmem:[#allocation2 + $0x1d0] sm:$0xff]
          %v6308 = vld [vmem:[#allocation2 + $0x1d8] sm:$0xff]
          %v6309 = vld [vmem:[#allocation2 + $0x1e0] sm:$0xff]
          %v6310 = vld [vmem:[#allocation2 + $0x1e8] sm:$0xff]
          %v6311 = vld [vmem:[#allocation2 + $0x1f0] sm:$0xff]
          %v6312 = vld [vmem:[#allocation2 + $0x1f8] sm:$0xff]
          %v6313 = vld [vmem:[#allocation2 + $0x200] sm:$0xff]
          %v6314 = vld [vmem:[#allocation2 + $0x208] sm:$0xff]
          %v6315 = vld [vmem:[#allocation2 + $0x210] sm:$0xff]
          %v6316 = vld [vmem:[#allocation2 + $0x218] sm:$0xff]
          %v6317 = vld [vmem:[#allocation2 + $0x220] sm:$0xff]
          %v6318 = vld [vmem:[#allocation2 + $0x228] sm:$0xff]
          %v6319 = vld [vmem:[#allocation2 + $0x230] sm:$0xff]
          %v6320 = vld [vmem:[#allocation2 + $0x238] sm:$0xff]
          %v6321 = vld [vmem:[#allocation2 + $0x240] sm:$0xff]
          %v6322 = vld [vmem:[#allocation2 + $0x248] sm:$0xff]
          %v6323 = vld [vmem:[#allocation2 + $0x250] sm:$0xff]
          %v6324 = vld [vmem:[#allocation2 + $0x258] sm:$0xff]
          %v6325 = vld [vmem:[#allocation2 + $0x260] sm:$0xff]
          %v6326 = vld [vmem:[#allocation2 + $0x268] sm:$0xff]
          %v6327 = vld [vmem:[#allocation2 + $0x270] sm:$0xff]
          %v6328 = vld [vmem:[#allocation2 + $0x278] sm:$0xff]
          %v6329 = vld [vmem:[#allocation2 + $0x280] sm:$0xff]
          %v6330 = vld [vmem:[#allocation2 + $0x288] sm:$0xff]
          %v6331 = vld [vmem:[#allocation2 + $0x290] sm:$0xff]
          %v6332 = vld [vmem:[#allocation2 + $0x298] sm:$0xff]
          %v6333 = vld [vmem:[#allocation2 + $0x2a0] sm:$0xff]
          %v6334 = vld [vmem:[#allocation2 + $0x2a8] sm:$0xff]
          %v6335 = vld [vmem:[#allocation2 + $0x2b0] sm:$0xff]
          %v6336 = vld [vmem:[#allocation2 + $0x2b8] sm:$0xff]
          %v6337 = vld [vmem:[#allocation2 + $0x2c0] sm:$0xff]
          %v6338 = vld [vmem:[#allocation2 + $0x2c8] sm:$0xff]
          %v6339 = vld [vmem:[#allocation2 + $0x2d0] sm:$0xff]
          %v6340 = vld [vmem:[#allocation2 + $0x2d8] sm:$0xff]
          %v6341 = vld [vmem:[#allocation2 + $0x2e0] sm:$0xff]
          %v6342 = vld [vmem:[#allocation2 + $0x2e8] sm:$0xff]
          %v6343 = vld [vmem:[#allocation2 + $0x2f0] sm:$0xff]
          %v6344 = vld [vmem:[#allocation2 + $0x2f8] sm:$0xff]
          %v6345 = vld [vmem:[#allocation2 + $0x300] sm:$0xff]
          %v6346 = vld [vmem:[#allocation2 + $0x308] sm:$0xff]
          %v6347 = vld [vmem:[#allocation2 + $0x310] sm:$0xff]
          %v6348 = vld [vmem:[#allocation2 + $0x318] sm:$0xff]
          %v6349 = vld [vmem:[#allocation2 + $0x320] sm:$0xff]
          %v6350 = vld [vmem:[#allocation2 + $0x328] sm:$0xff]
          %v6351 = vld [vmem:[#allocation2 + $0x330] sm:$0xff]
          %v6352 = vld [vmem:[#allocation2 + $0x338] sm:$0xff]
          %v6353 = vld [vmem:[#allocation2 + $0x340] sm:$0xff]
          %v6354 = vld [vmem:[#allocation2 + $0x348] sm:$0xff]
          %v6355 = vld [vmem:[#allocation2 + $0x350] sm:$0xff]
          %v6356 = vld [vmem:[#allocation2 + $0x358] sm:$0xff]
          %v6357 = vld [vmem:[#allocation2 + $0x360] sm:$0xff]
          %v6358 = vld [vmem:[#allocation2 + $0x368] sm:$0xff]
          %v6359 = vld [vmem:[#allocation2 + $0x370] sm:$0xff]
          %v6360 = vld [vmem:[#allocation2 + $0x378] sm:$0xff]
          %v6361 = vld [vmem:[#allocation2 + $0x380] sm:$0xff]
          %v6362 = vld [vmem:[#allocation2 + $0x388] sm:$0xff]
          %v6363 = vld [vmem:[#allocation2 + $0x390] sm:$0xff]
          %v6364 = vld [vmem:[#allocation2 + $0x398] sm:$0xff]
          %v6365 = vld [vmem:[#allocation2 + $0x3a0] sm:$0xff]
          %v6366 = vld [vmem:[#allocation2 + $0x3a8] sm:$0xff]
          %v6367 = vld [vmem:[#allocation2 + $0x3b0] sm:$0xff]
          %v6368 = vld [vmem:[#allocation2 + $0x3b8] sm:$0xff]
          %v6369 = vld [vmem:[#allocation2 + $0x3c0] sm:$0xff]
          %v6370 = vld [vmem:[#allocation2 + $0x3c8] sm:$0xff]
          %v6371 = vld [vmem:[#allocation2 + $0x3d0] sm:$0xff]
          %v6372 = vld [vmem:[#allocation2 + $0x3d8] sm:$0xff]
          %v6373 = vld [vmem:[#allocation2 + $0x3e0] sm:$0xff]
          %v6374 = vld [vmem:[#allocation2 + $0x3e8] sm:$0xff]
          %v6375 = vld [vmem:[#allocation2 + $0x3f0] sm:$0xff]
          %v6376 = vld [vmem:[#allocation2 + $0x3f8] sm:$0xff]
          %v6377 = vld [vmem:[#allocation2 + $0x400] sm:$0xff]
          %v6378 = vld [vmem:[#allocation2 + $0x408] sm:$0xff]
          %v6379 = vld [vmem:[#allocation2 + $0x410] sm:$0xff]
          %v6380 = vld [vmem:[#allocation2 + $0x418] sm:$0xff]
          %v6381 = vld [vmem:[#allocation2 + $0x420] sm:$0xff]
          %v6382 = vld [vmem:[#allocation2 + $0x428] sm:$0xff]
          %v6383 = vld [vmem:[#allocation2 + $0x430] sm:$0xff]
          %v6384 = vld [vmem:[#allocation2 + $0x438] sm:$0xff]
          %v6385 = vld [vmem:[#allocation2 + $0x440] sm:$0xff]
          %v6386 = vld [vmem:[#allocation2 + $0x448] sm:$0xff]
          %v6387 = vld [vmem:[#allocation2 + $0x450] sm:$0xff]
          %v6388 = vld [vmem:[#allocation2 + $0x458] sm:$0xff]
          %v6389 = vld [vmem:[#allocation2 + $0x460] sm:$0xff]
          %v6390 = vld [vmem:[#allocation2 + $0x468] sm:$0xff]
          %v6391 = vld [vmem:[#allocation2 + $0x470] sm:$0xff]
          %v6392 = vld [vmem:[#allocation2 + $0x478] sm:$0xff]
          %v6393 = vld [vmem:[#allocation2 + $0x480] sm:$0xff]
          %v6394 = vld [vmem:[#allocation2 + $0x488] sm:$0xff]
          %v6395 = vld [vmem:[#allocation2 + $0x490] sm:$0xff]
          %v6396 = vld [vmem:[#allocation2 + $0x498] sm:$0xff]
          %v6397 = vld [vmem:[#allocation2 + $0x4a0] sm:$0xff]
          %v6398 = vld [vmem:[#allocation2 + $0x4a8] sm:$0xff]
          %v6399 = vld [vmem:[#allocation2 + $0x4b0] sm:$0xff]
          %v6400 = vld [vmem:[#allocation2 + $0x4b8] sm:$0xff]
          %v6401 = vld [vmem:[#allocation2 + $0x4c0] sm:$0xff]
          %v6402 = vld [vmem:[#allocation2 + $0x4c8] sm:$0xff]
          %v6403 = vld [vmem:[#allocation2 + $0x4d0] sm:$0xff]
          %v6404 = vld [vmem:[#allocation2 + $0x4d8] sm:$0xff]
          %v6405 = vld [vmem:[#allocation2 + $0x4e0] sm:$0xff]
          %v6406 = vld [vmem:[#allocation2 + $0x4e8] sm:$0xff]
          %v6407 = vld [vmem:[#allocation2 + $0x4f0] sm:$0xff]
          %v6408 = vld [vmem:[#allocation2 + $0x4f8] sm:$0xff]
          %v6409 = vld [vmem:[#allocation2 + $0x500] sm:$0xff]
          %v6410 = vld [vmem:[#allocation2 + $0x508] sm:$0xff]
          %v6411 = vld [vmem:[#allocation2 + $0x510] sm:$0xff]
          %v6412 = vld [vmem:[#allocation2 + $0x518] sm:$0xff]
          %v6413 = vld [vmem:[#allocation2 + $0x520] sm:$0xff]
          %v6414 = vld [vmem:[#allocation2 + $0x528] sm:$0xff]
          %v6415 = vld [vmem:[#allocation2 + $0x530] sm:$0xff]
          %v6416 = vld [vmem:[#allocation2 + $0x538] sm:$0xff]
          %v6417 = vld [vmem:[#allocation2 + $0x540] sm:$0xff]
          %v6418 = vld [vmem:[#allocation2 + $0x548] sm:$0xff]
          %v6419 = vld [vmem:[#allocation2 + $0x550] sm:$0xff]
          %v6420 = vld [vmem:[#allocation2 + $0x558] sm:$0xff]
          %v6421 = vld [vmem:[#allocation2 + $0x560] sm:$0xff]
          %v6422 = vld [vmem:[#allocation2 + $0x568] sm:$0xff]
          %v6423 = vld [vmem:[#allocation2 + $0x570] sm:$0xff]
          %v6424 = vld [vmem:[#allocation2 + $0x578] sm:$0xff]
          %v6425 = vld [vmem:[#allocation2 + $0x580] sm:$0xff]
          %v6426 = vld [vmem:[#allocation2 + $0x588] sm:$0xff]
          %v6427 = vld [vmem:[#allocation2 + $0x590] sm:$0xff]
          %v6428 = vld [vmem:[#allocation2 + $0x598] sm:$0xff]
          %v6429 = vld [vmem:[#allocation2 + $0x5a0] sm:$0xff]
          %v6430 = vld [vmem:[#allocation2 + $0x5a8] sm:$0xff]
          %v6431 = vld [vmem:[#allocation2 + $0x5b0] sm:$0xff]
          %v6432 = vld [vmem:[#allocation2 + $0x5b8] sm:$0xff]
          %v6433 = vld [vmem:[#allocation2 + $0x5c0] sm:$0xff]
          %v6434 = vld [vmem:[#allocation2 + $0x5c8] sm:$0xff]
          %v6435 = vld [vmem:[#allocation2 + $0x5d0] sm:$0xff]
          %v6436 = vld [vmem:[#allocation2 + $0x5d8] sm:$0xff]
          %v6437 = vld [vmem:[#allocation2 + $0x5e0] sm:$0xff]
          %v6438 = vld [vmem:[#allocation2 + $0x5e8] sm:$0xff]
          %v6439 = vld [vmem:[#allocation2 + $0x5f0] sm:$0xff]
          %v6440 = vld [vmem:[#allocation2 + $0x5f8] sm:$0xff]
          %v6441 = vld [vmem:[#allocation2 + $0x600] sm:$0xff]
          %v6442 = vld [vmem:[#allocation2 + $0x608] sm:$0xff]
          %v6443 = vld [vmem:[#allocation2 + $0x610] sm:$0xff]
          %v6444 = vld [vmem:[#allocation2 + $0x618] sm:$0xff]
          %v6445 = vld [vmem:[#allocation2 + $0x620] sm:$0xff]
          %v6446 = vld [vmem:[#allocation2 + $0x628] sm:$0xff]
          %v6447 = vld [vmem:[#allocation2 + $0x630] sm:$0xff]
          %v6448 = vld [vmem:[#allocation2 + $0x638] sm:$0xff]
          %v6449 = vld [vmem:[#allocation2 + $0x640] sm:$0xff]
          %v6450 = vld [vmem:[#allocation2 + $0x648] sm:$0xff]
          %v6451 = vld [vmem:[#allocation2 + $0x650] sm:$0xff]
          %v6452 = vld [vmem:[#allocation2 + $0x658] sm:$0xff]
          %v6453 = vld [vmem:[#allocation2 + $0x660] sm:$0xff]
          %v6454 = vld [vmem:[#allocation2 + $0x668] sm:$0xff]
          %v6455 = vld [vmem:[#allocation2 + $0x670] sm:$0xff]
          %v6456 = vld [vmem:[#allocation2 + $0x678] sm:$0xff]
          %v6457 = vld [vmem:[#allocation2 + $0x680] sm:$0xff]
          %v6458 = vld [vmem:[#allocation2 + $0x688] sm:$0xff]
          %v6459 = vld [vmem:[#allocation2 + $0x690] sm:$0xff]
          %v6460 = vld [vmem:[#allocation2 + $0x698] sm:$0xff]
          %v6461 = vld [vmem:[#allocation2 + $0x6a0] sm:$0xff]
          %v6462 = vld [vmem:[#allocation2 + $0x6a8] sm:$0xff]
          %v6463 = vld [vmem:[#allocation2 + $0x6b0] sm:$0xff]
          %v6464 = vld [vmem:[#allocation2 + $0x6b8] sm:$0xff]
          %v6465 = vld [vmem:[#allocation2 + $0x6c0] sm:$0xff]
          %v6466 = vld [vmem:[#allocation2 + $0x6c8] sm:$0xff]
          %v6467 = vld [vmem:[#allocation2 + $0x6d0] sm:$0xff]
          %v6468 = vld [vmem:[#allocation2 + $0x6d8] sm:$0xff]
          %v6469 = vld [vmem:[#allocation2 + $0x6e0] sm:$0xff]
          %v6470 = vld [vmem:[#allocation2 + $0x6e8] sm:$0xff]
          %v6471 = vld [vmem:[#allocation2 + $0x6f0] sm:$0xff]
          %v6472 = vld [vmem:[#allocation2 + $0x6f8] sm:$0xff]
          %v6473 = vld [vmem:[#allocation2 + $0x700] sm:$0xff]
          %v6474 = vld [vmem:[#allocation2 + $0x708] sm:$0xff]
          %v6475 = vld [vmem:[#allocation2 + $0x710] sm:$0xff]
          %v6476 = vld [vmem:[#allocation2 + $0x718] sm:$0xff]
          %v6477 = vld [vmem:[#allocation2 + $0x720] sm:$0xff]
          %v6478 = vld [vmem:[#allocation2 + $0x728] sm:$0xff]
          %v6479 = vld [vmem:[#allocation2 + $0x730] sm:$0xff]
          %v6480 = vld [vmem:[#allocation2 + $0x738] sm:$0xff]
          %v6481 = vld [vmem:[#allocation2 + $0x740] sm:$0xff]
          %v6482 = vld [vmem:[#allocation2 + $0x748] sm:$0xff]
          %v6483 = vld [vmem:[#allocation2 + $0x750] sm:$0xff]
          %v6484 = vld [vmem:[#allocation2 + $0x758] sm:$0xff]
          %v6485 = vld [vmem:[#allocation2 + $0x760] sm:$0xff]
          %v6486 = vld [vmem:[#allocation2 + $0x768] sm:$0xff]
          %v6487 = vld [vmem:[#allocation2 + $0x770] sm:$0xff]
          %v6488 = vld [vmem:[#allocation2 + $0x778] sm:$0xff]
          %v6489 = vld [vmem:[#allocation2 + $0x780] sm:$0xff]
          %v6490 = vld [vmem:[#allocation2 + $0x788] sm:$0xff]
          %v6491 = vld [vmem:[#allocation2 + $0x790] sm:$0xff]
          %v6492 = vld [vmem:[#allocation2 + $0x798] sm:$0xff]
          %v6493 = vld [vmem:[#allocation2 + $0x7a0] sm:$0xff]
          %v6494 = vld [vmem:[#allocation2 + $0x7a8] sm:$0xff]
          %v6495 = vld [vmem:[#allocation2 + $0x7b0] sm:$0xff]
          %v6496 = vld [vmem:[#allocation2 + $0x7b8] sm:$0xff]
          %v6497 = vld [vmem:[#allocation2 + $0x7c0] sm:$0xff]
          %v6498 = vld [vmem:[#allocation2 + $0x7c8] sm:$0xff]
          %v6499 = vld [vmem:[#allocation2 + $0x7d0] sm:$0xff]
          %v6500 = vld [vmem:[#allocation2 + $0x7d8] sm:$0xff]
          %v6501 = vld [vmem:[#allocation2 + $0x7e0] sm:$0xff]
          %v6502 = vld [vmem:[#allocation2 + $0x7e8] sm:$0xff]
          %v6503 = vld [vmem:[#allocation2 + $0x7f0] sm:$0xff]
          %v6504 = vld [vmem:[#allocation2 + $0x7f8] sm:$0xff]
          %v6505 = vmul.f32 %v5993, %v6249
          %v6506 = vmul.f32 %v5994, %v6250
          %v6507 = vmul.f32 %v5995, %v6251
          %v6508 = vmul.f32 %v5996, %v6252
          %v6509 = vmul.f32 %v5997, %v6253
          %v6510 = vmul.f32 %v5998, %v6254
          %v6511 = vmul.f32 %v5999, %v6255
          %v6512 = vmul.f32 %v6000, %v6256
          %v6513 = vmul.f32 %v6001, %v6257
          %v6514 = vmul.f32 %v6002, %v6258
          %v6515 = vmul.f32 %v6003, %v6259
          %v6516 = vmul.f32 %v6004, %v6260
          %v6517 = vmul.f32 %v6005, %v6261
          %v6518 = vmul.f32 %v6006, %v6262
          %v6519 = vmul.f32 %v6007, %v6263
          %v6520 = vmul.f32 %v6008, %v6264
          %v6521 = vmul.f32 %v6009, %v6265
          %v6522 = vmul.f32 %v6010, %v6266
          %v6523 = vmul.f32 %v6011, %v6267
          %v6524 = vmul.f32 %v6012, %v6268
          %v6525 = vmul.f32 %v6013, %v6269
          %v6526 = vmul.f32 %v6014, %v6270
          %v6527 = vmul.f32 %v6015, %v6271
          %v6528 = vmul.f32 %v6016, %v6272
          %v6529 = vmul.f32 %v6017, %v6273
          %v6530 = vmul.f32 %v6018, %v6274
          %v6531 = vmul.f32 %v6019, %v6275
          %v6532 = vmul.f32 %v6020, %v6276
          %v6533 = vmul.f32 %v6021, %v6277
          %v6534 = vmul.f32 %v6022, %v6278
          %v6535 = vmul.f32 %v6023, %v6279
          %v6536 = vmul.f32 %v6024, %v6280
          %v6537 = vmul.f32 %v6025, %v6281
          %v6538 = vmul.f32 %v6026, %v6282
          %v6539 = vmul.f32 %v6027, %v6283
          %v6540 = vmul.f32 %v6028, %v6284
          %v6541 = vmul.f32 %v6029, %v6285
          %v6542 = vmul.f32 %v6030, %v6286
          %v6543 = vmul.f32 %v6031, %v6287
          %v6544 = vmul.f32 %v6032, %v6288
          %v6545 = vmul.f32 %v6033, %v6289
          %v6546 = vmul.f32 %v6034, %v6290
          %v6547 = vmul.f32 %v6035, %v6291
          %v6548 = vmul.f32 %v6036, %v6292
          %v6549 = vmul.f32 %v6037, %v6293
          %v6550 = vmul.f32 %v6038, %v6294
          %v6551 = vmul.f32 %v6039, %v6295
          %v6552 = vmul.f32 %v6040, %v6296
          %v6553 = vmul.f32 %v6041, %v6297
          %v6554 = vmul.f32 %v6042, %v6298
          %v6555 = vmul.f32 %v6043, %v6299
          %v6556 = vmul.f32 %v6044, %v6300
          %v6557 = vmul.f32 %v6045, %v6301
          %v6558 = vmul.f32 %v6046, %v6302
          %v6559 = vmul.f32 %v6047, %v6303
          %v6560 = vmul.f32 %v6048, %v6304
          %v6561 = vmul.f32 %v6049, %v6305
          %v6562 = vmul.f32 %v6050, %v6306
          %v6563 = vmul.f32 %v6051, %v6307
          %v6564 = vmul.f32 %v6052, %v6308
          %v6565 = vmul.f32 %v6053, %v6309
          %v6566 = vmul.f32 %v6054, %v6310
          %v6567 = vmul.f32 %v6055, %v6311
          %v6568 = vmul.f32 %v6056, %v6312
          %v6569 = vmul.f32 %v6057, %v6313
          %v6570 = vmul.f32 %v6058, %v6314
          %v6571 = vmul.f32 %v6059, %v6315
          %v6572 = vmul.f32 %v6060, %v6316
          %v6573 = vmul.f32 %v6061, %v6317
          %v6574 = vmul.f32 %v6062, %v6318
          %v6575 = vmul.f32 %v6063, %v6319
          %v6576 = vmul.f32 %v6064, %v6320
          %v6577 = vmul.f32 %v6065, %v6321
          %v6578 = vmul.f32 %v6066, %v6322
          %v6579 = vmul.f32 %v6067, %v6323
          %v6580 = vmul.f32 %v6068, %v6324
          %v6581 = vmul.f32 %v6069, %v6325
          %v6582 = vmul.f32 %v6070, %v6326
          %v6583 = vmul.f32 %v6071, %v6327
          %v6584 = vmul.f32 %v6072, %v6328
          %v6585 = vmul.f32 %v6073, %v6329
          %v6586 = vmul.f32 %v6074, %v6330
          %v6587 = vmul.f32 %v6075, %v6331
          %v6588 = vmul.f32 %v6076, %v6332
          %v6589 = vmul.f32 %v6077, %v6333
          %v6590 = vmul.f32 %v6078, %v6334
          %v6591 = vmul.f32 %v6079, %v6335
          %v6592 = vmul.f32 %v6080, %v6336
          %v6593 = vmul.f32 %v6081, %v6337
          %v6594 = vmul.f32 %v6082, %v6338
          %v6595 = vmul.f32 %v6083, %v6339
          %v6596 = vmul.f32 %v6084, %v6340
          %v6597 = vmul.f32 %v6085, %v6341
          %v6598 = vmul.f32 %v6086, %v6342
          %v6599 = vmul.f32 %v6087, %v6343
          %v6600 = vmul.f32 %v6088, %v6344
          %v6601 = vmul.f32 %v6089, %v6345
          %v6602 = vmul.f32 %v6090, %v6346
          %v6603 = vmul.f32 %v6091, %v6347
          %v6604 = vmul.f32 %v6092, %v6348
          %v6605 = vmul.f32 %v6093, %v6349
          %v6606 = vmul.f32 %v6094, %v6350
          %v6607 = vmul.f32 %v6095, %v6351
          %v6608 = vmul.f32 %v6096, %v6352
          %v6609 = vmul.f32 %v6097, %v6353
          %v6610 = vmul.f32 %v6098, %v6354
          %v6611 = vmul.f32 %v6099, %v6355
          %v6612 = vmul.f32 %v6100, %v6356
          %v6613 = vmul.f32 %v6101, %v6357
          %v6614 = vmul.f32 %v6102, %v6358
          %v6615 = vmul.f32 %v6103, %v6359
          %v6616 = vmul.f32 %v6104, %v6360
          %v6617 = vmul.f32 %v6105, %v6361
          %v6618 = vmul.f32 %v6106, %v6362
          %v6619 = vmul.f32 %v6107, %v6363
          %v6620 = vmul.f32 %v6108, %v6364
          %v6621 = vmul.f32 %v6109, %v6365
          %v6622 = vmul.f32 %v6110, %v6366
          %v6623 = vmul.f32 %v6111, %v6367
          %v6624 = vmul.f32 %v6112, %v6368
          %v6625 = vmul.f32 %v6113, %v6369
          %v6626 = vmul.f32 %v6114, %v6370
          %v6627 = vmul.f32 %v6115, %v6371
          %v6628 = vmul.f32 %v6116, %v6372
          %v6629 = vmul.f32 %v6117, %v6373
          %v6630 = vmul.f32 %v6118, %v6374
          %v6631 = vmul.f32 %v6119, %v6375
          %v6632 = vmul.f32 %v6120, %v6376
          %v6633 = vmul.f32 %v6121, %v6377
          %v6634 = vmul.f32 %v6122, %v6378
          %v6635 = vmul.f32 %v6123, %v6379
          %v6636 = vmul.f32 %v6124, %v6380
          %v6637 = vmul.f32 %v6125, %v6381
          %v6638 = vmul.f32 %v6126, %v6382
          %v6639 = vmul.f32 %v6127, %v6383
          %v6640 = vmul.f32 %v6128, %v6384
          %v6641 = vmul.f32 %v6129, %v6385
          %v6642 = vmul.f32 %v6130, %v6386
          %v6643 = vmul.f32 %v6131, %v6387
          %v6644 = vmul.f32 %v6132, %v6388
          %v6645 = vmul.f32 %v6133, %v6389
          %v6646 = vmul.f32 %v6134, %v6390
          %v6647 = vmul.f32 %v6135, %v6391
          %v6648 = vmul.f32 %v6136, %v6392
          %v6649 = vmul.f32 %v6137, %v6393
          %v6650 = vmul.f32 %v6138, %v6394
          %v6651 = vmul.f32 %v6139, %v6395
          %v6652 = vmul.f32 %v6140, %v6396
          %v6653 = vmul.f32 %v6141, %v6397
          %v6654 = vmul.f32 %v6142, %v6398
          %v6655 = vmul.f32 %v6143, %v6399
          %v6656 = vmul.f32 %v6144, %v6400
          %v6657 = vmul.f32 %v6145, %v6401
          %v6658 = vmul.f32 %v6146, %v6402
          %v6659 = vmul.f32 %v6147, %v6403
          %v6660 = vmul.f32 %v6148, %v6404
          %v6661 = vmul.f32 %v6149, %v6405
          %v6662 = vmul.f32 %v6150, %v6406
          %v6663 = vmul.f32 %v6151, %v6407
          %v6664 = vmul.f32 %v6152, %v6408
          %v6665 = vmul.f32 %v6153, %v6409
          %v6666 = vmul.f32 %v6154, %v6410
          %v6667 = vmul.f32 %v6155, %v6411
          %v6668 = vmul.f32 %v6156, %v6412
          %v6669 = vmul.f32 %v6157, %v6413
          %v6670 = vmul.f32 %v6158, %v6414
          %v6671 = vmul.f32 %v6159, %v6415
          %v6672 = vmul.f32 %v6160, %v6416
          %v6673 = vmul.f32 %v6161, %v6417
          %v6674 = vmul.f32 %v6162, %v6418
          %v6675 = vmul.f32 %v6163, %v6419
          %v6676 = vmul.f32 %v6164, %v6420
          %v6677 = vmul.f32 %v6165, %v6421
          %v6678 = vmul.f32 %v6166, %v6422
          %v6679 = vmul.f32 %v6167, %v6423
          %v6680 = vmul.f32 %v6168, %v6424
          %v6681 = vmul.f32 %v6169, %v6425
          %v6682 = vmul.f32 %v6170, %v6426
          %v6683 = vmul.f32 %v6171, %v6427
          %v6684 = vmul.f32 %v6172, %v6428
          %v6685 = vmul.f32 %v6173, %v6429
          %v6686 = vmul.f32 %v6174, %v6430
          %v6687 = vmul.f32 %v6175, %v6431
          %v6688 = vmul.f32 %v6176, %v6432
          %v6689 = vmul.f32 %v6177, %v6433
          %v6690 = vmul.f32 %v6178, %v6434
          %v6691 = vmul.f32 %v6179, %v6435
          %v6692 = vmul.f32 %v6180, %v6436
          %v6693 = vmul.f32 %v6181, %v6437
          %v6694 = vmul.f32 %v6182, %v6438
          %v6695 = vmul.f32 %v6183, %v6439
          %v6696 = vmul.f32 %v6184, %v6440
          %v6697 = vmul.f32 %v6185, %v6441
          %v6698 = vmul.f32 %v6186, %v6442
          %v6699 = vmul.f32 %v6187, %v6443
          %v6700 = vmul.f32 %v6188, %v6444
          %v6701 = vmul.f32 %v6189, %v6445
          %v6702 = vmul.f32 %v6190, %v6446
          %v6703 = vmul.f32 %v6191, %v6447
          %v6704 = vmul.f32 %v6192, %v6448
          %v6705 = vmul.f32 %v6193, %v6449
          %v6706 = vmul.f32 %v6194, %v6450
          %v6707 = vmul.f32 %v6195, %v6451
          %v6708 = vmul.f32 %v6196, %v6452
          %v6709 = vmul.f32 %v6197, %v6453
          %v6710 = vmul.f32 %v6198, %v6454
          %v6711 = vmul.f32 %v6199, %v6455
          %v6712 = vmul.f32 %v6200, %v6456
          %v6713 = vmul.f32 %v6201, %v6457
          %v6714 = vmul.f32 %v6202, %v6458
          %v6715 = vmul.f32 %v6203, %v6459
          %v6716 = vmul.f32 %v6204, %v6460
          %v6717 = vmul.f32 %v6205, %v6461
          %v6718 = vmul.f32 %v6206, %v6462
          %v6719 = vmul.f32 %v6207, %v6463
          %v6720 = vmul.f32 %v6208, %v6464
          %v6721 = vmul.f32 %v6209, %v6465
          %v6722 = vmul.f32 %v6210, %v6466
          %v6723 = vmul.f32 %v6211, %v6467
          %v6724 = vmul.f32 %v6212, %v6468
          %v6725 = vmul.f32 %v6213, %v6469
          %v6726 = vmul.f32 %v6214, %v6470
          %v6727 = vmul.f32 %v6215, %v6471
          %v6728 = vmul.f32 %v6216, %v6472
          %v6729 = vmul.f32 %v6217, %v6473
          %v6730 = vmul.f32 %v6218, %v6474
          %v6731 = vmul.f32 %v6219, %v6475
          %v6732 = vmul.f32 %v6220, %v6476
          %v6733 = vmul.f32 %v6221, %v6477
          %v6734 = vmul.f32 %v6222, %v6478
          %v6735 = vmul.f32 %v6223, %v6479
          %v6736 = vmul.f32 %v6224, %v6480
          %v6737 = vmul.f32 %v6225, %v6481
          %v6738 = vmul.f32 %v6226, %v6482
          %v6739 = vmul.f32 %v6227, %v6483
          %v6740 = vmul.f32 %v6228, %v6484
          %v6741 = vmul.f32 %v6229, %v6485
          %v6742 = vmul.f32 %v6230, %v6486
          %v6743 = vmul.f32 %v6231, %v6487
          %v6744 = vmul.f32 %v6232, %v6488
          %v6745 = vmul.f32 %v6233, %v6489
          %v6746 = vmul.f32 %v6234, %v6490
          %v6747 = vmul.f32 %v6235, %v6491
          %v6748 = vmul.f32 %v6236, %v6492
          %v6749 = vmul.f32 %v6237, %v6493
          %v6750 = vmul.f32 %v6238, %v6494
          %v6751 = vmul.f32 %v6239, %v6495
          %v6752 = vmul.f32 %v6240, %v6496
          %v6753 = vmul.f32 %v6241, %v6497
          %v6754 = vmul.f32 %v6242, %v6498
          %v6755 = vmul.f32 %v6243, %v6499
          %v6756 = vmul.f32 %v6244, %v6500
          %v6757 = vmul.f32 %v6245, %v6501
          %v6758 = vmul.f32 %v6246, %v6502
          %v6759 = vmul.f32 %v6247, %v6503
          %v6760 = vmul.f32 %v6248, %v6504
          %6761 = vadd.xlane.f32.xlu0 %v6505
          %v6762 = vpop.xlane.xlu0 %6761
          %6763 = vadd.xlane.f32.xlu0 %v6506
          %v6764 = vpop.xlane.xlu0 %6763
          %6765 = vadd.xlane.f32.xlu0 %v6507
          %v6766 = vpop.xlane.xlu0 %6765
          %6767 = vadd.xlane.f32.xlu0 %v6508
          %v6768 = vpop.xlane.xlu0 %6767
          %6769 = vadd.xlane.f32.xlu0 %v6509
          %v6770 = vpop.xlane.xlu0 %6769
          %6771 = vadd.xlane.f32.xlu0 %v6510
          %v6772 = vpop.xlane.xlu0 %6771
          %6773 = vadd.xlane.f32.xlu0 %v6511
          %v6774 = vpop.xlane.xlu0 %6773
          %6775 = vadd.xlane.f32.xlu0 %v6512
          %v6776 = vpop.xlane.xlu0 %6775
          %6777 = vadd.xlane.f32.xlu0 %v6513
          %v6778 = vpop.xlane.xlu0 %6777
          %6779 = vadd.xlane.f32.xlu0 %v6514
          %v6780 = vpop.xlane.xlu0 %6779
          %6781 = vadd.xlane.f32.xlu0 %v6515
          %v6782 = vpop.xlane.xlu0 %6781
          %6783 = vadd.xlane.f32.xlu0 %v6516
          %v6784 = vpop.xlane.xlu0 %6783
          %6785 = vadd.xlane.f32.xlu0 %v6517
          %v6786 = vpop.xlane.xlu0 %6785
          %6787 = vadd.xlane.f32.xlu0 %v6518
          %v6788 = vpop.xlane.xlu0 %6787
          %6789 = vadd.xlane.f32.xlu0 %v6519
          %v6790 = vpop.xlane.xlu0 %6789
          %6791 = vadd.xlane.f32.xlu0 %v6520
          %v6792 = vpop.xlane.xlu0 %6791
          %6793 = vadd.xlane.f32.xlu0 %v6521
          %v6794 = vpop.xlane.xlu0 %6793
          %6795 = vadd.xlane.f32.xlu0 %v6522
          %v6796 = vpop.xlane.xlu0 %6795
          %6797 = vadd.xlane.f32.xlu0 %v6523
          %v6798 = vpop.xlane.xlu0 %6797
          %6799 = vadd.xlane.f32.xlu0 %v6524
          %v6800 = vpop.xlane.xlu0 %6799
          %6801 = vadd.xlane.f32.xlu0 %v6525
          %v6802 = vpop.xlane.xlu0 %6801
          %6803 = vadd.xlane.f32.xlu0 %v6526
          %v6804 = vpop.xlane.xlu0 %6803
          %6805 = vadd.xlane.f32.xlu0 %v6527
          %v6806 = vpop.xlane.xlu0 %6805
          %6807 = vadd.xlane.f32.xlu0 %v6528
          %v6808 = vpop.xlane.xlu0 %6807
          %6809 = vadd.xlane.f32.xlu0 %v6529
          %v6810 = vpop.xlane.xlu0 %6809
          %6811 = vadd.xlane.f32.xlu0 %v6530
          %v6812 = vpop.xlane.xlu0 %6811
          %6813 = vadd.xlane.f32.xlu0 %v6531
          %v6814 = vpop.xlane.xlu0 %6813
          %6815 = vadd.xlane.f32.xlu0 %v6532
          %v6816 = vpop.xlane.xlu0 %6815
          %6817 = vadd.xlane.f32.xlu0 %v6533
          %v6818 = vpop.xlane.xlu0 %6817
          %6819 = vadd.xlane.f32.xlu0 %v6534
          %v6820 = vpop.xlane.xlu0 %6819
          %6821 = vadd.xlane.f32.xlu0 %v6535
          %v6822 = vpop.xlane.xlu0 %6821
          %6823 = vadd.xlane.f32.xlu0 %v6536
          %v6824 = vpop.xlane.xlu0 %6823
          %6825 = vadd.xlane.f32.xlu0 %v6537
          %v6826 = vpop.xlane.xlu0 %6825
          %6827 = vadd.xlane.f32.xlu0 %v6538
          %v6828 = vpop.xlane.xlu0 %6827
          %6829 = vadd.xlane.f32.xlu0 %v6539
          %v6830 = vpop.xlane.xlu0 %6829
          %6831 = vadd.xlane.f32.xlu0 %v6540
          %v6832 = vpop.xlane.xlu0 %6831
          %6833 = vadd.xlane.f32.xlu0 %v6541
          %v6834 = vpop.xlane.xlu0 %6833
          %6835 = vadd.xlane.f32.xlu0 %v6542
          %v6836 = vpop.xlane.xlu0 %6835
          %6837 = vadd.xlane.f32.xlu0 %v6543
          %v6838 = vpop.xlane.xlu0 %6837
          %6839 = vadd.xlane.f32.xlu0 %v6544
          %v6840 = vpop.xlane.xlu0 %6839
          %6841 = vadd.xlane.f32.xlu0 %v6545
          %v6842 = vpop.xlane.xlu0 %6841
          %6843 = vadd.xlane.f32.xlu0 %v6546
          %v6844 = vpop.xlane.xlu0 %6843
          %6845 = vadd.xlane.f32.xlu0 %v6547
          %v6846 = vpop.xlane.xlu0 %6845
          %6847 = vadd.xlane.f32.xlu0 %v6548
          %v6848 = vpop.xlane.xlu0 %6847
          %6849 = vadd.xlane.f32.xlu0 %v6549
          %v6850 = vpop.xlane.xlu0 %6849
          %6851 = vadd.xlane.f32.xlu0 %v6550
          %v6852 = vpop.xlane.xlu0 %6851
          %6853 = vadd.xlane.f32.xlu0 %v6551
          %v6854 = vpop.xlane.xlu0 %6853
          %6855 = vadd.xlane.f32.xlu0 %v6552
          %v6856 = vpop.xlane.xlu0 %6855
          %6857 = vadd.xlane.f32.xlu0 %v6553
          %v6858 = vpop.xlane.xlu0 %6857
          %6859 = vadd.xlane.f32.xlu0 %v6554
          %v6860 = vpop.xlane.xlu0 %6859
          %6861 = vadd.xlane.f32.xlu0 %v6555
          %v6862 = vpop.xlane.xlu0 %6861
          %6863 = vadd.xlane.f32.xlu0 %v6556
          %v6864 = vpop.xlane.xlu0 %6863
          %6865 = vadd.xlane.f32.xlu0 %v6557
          %v6866 = vpop.xlane.xlu0 %6865
          %6867 = vadd.xlane.f32.xlu0 %v6558
          %v6868 = vpop.xlane.xlu0 %6867
          %6869 = vadd.xlane.f32.xlu0 %v6559
          %v6870 = vpop.xlane.xlu0 %6869
          %6871 = vadd.xlane.f32.xlu0 %v6560
          %v6872 = vpop.xlane.xlu0 %6871
          %6873 = vadd.xlane.f32.xlu0 %v6561
          %v6874 = vpop.xlane.xlu0 %6873
          %6875 = vadd.xlane.f32.xlu0 %v6562
          %v6876 = vpop.xlane.xlu0 %6875
          %6877 = vadd.xlane.f32.xlu0 %v6563
          %v6878 = vpop.xlane.xlu0 %6877
          %6879 = vadd.xlane.f32.xlu0 %v6564
          %v6880 = vpop.xlane.xlu0 %6879
          %6881 = vadd.xlane.f32.xlu0 %v6565
          %v6882 = vpop.xlane.xlu0 %6881
          %6883 = vadd.xlane.f32.xlu0 %v6566
          %v6884 = vpop.xlane.xlu0 %6883
          %6885 = vadd.xlane.f32.xlu0 %v6567
          %v6886 = vpop.xlane.xlu0 %6885
          %6887 = vadd.xlane.f32.xlu0 %v6568
          %v6888 = vpop.xlane.xlu0 %6887
          %6889 = vadd.xlane.f32.xlu0 %v6569
          %v6890 = vpop.xlane.xlu0 %6889
          %6891 = vadd.xlane.f32.xlu0 %v6570
          %v6892 = vpop.xlane.xlu0 %6891
          %6893 = vadd.xlane.f32.xlu0 %v6571
          %v6894 = vpop.xlane.xlu0 %6893
          %6895 = vadd.xlane.f32.xlu0 %v6572
          %v6896 = vpop.xlane.xlu0 %6895
          %6897 = vadd.xlane.f32.xlu0 %v6573
          %v6898 = vpop.xlane.xlu0 %6897
          %6899 = vadd.xlane.f32.xlu0 %v6574
          %v6900 = vpop.xlane.xlu0 %6899
          %6901 = vadd.xlane.f32.xlu0 %v6575
          %v6902 = vpop.xlane.xlu0 %6901
          %6903 = vadd.xlane.f32.xlu0 %v6576
          %v6904 = vpop.xlane.xlu0 %6903
          %6905 = vadd.xlane.f32.xlu0 %v6577
          %v6906 = vpop.xlane.xlu0 %6905
          %6907 = vadd.xlane.f32.xlu0 %v6578
          %v6908 = vpop.xlane.xlu0 %6907
          %6909 = vadd.xlane.f32.xlu0 %v6579
          %v6910 = vpop.xlane.xlu0 %6909
          %6911 = vadd.xlane.f32.xlu0 %v6580
          %v6912 = vpop.xlane.xlu0 %6911
          %6913 = vadd.xlane.f32.xlu0 %v6581
          %v6914 = vpop.xlane.xlu0 %6913
          %6915 = vadd.xlane.f32.xlu0 %v6582
          %v6916 = vpop.xlane.xlu0 %6915
          %6917 = vadd.xlane.f32.xlu0 %v6583
          %v6918 = vpop.xlane.xlu0 %6917
          %6919 = vadd.xlane.f32.xlu0 %v6584
          %v6920 = vpop.xlane.xlu0 %6919
          %6921 = vadd.xlane.f32.xlu0 %v6585
          %v6922 = vpop.xlane.xlu0 %6921
          %6923 = vadd.xlane.f32.xlu0 %v6586
          %v6924 = vpop.xlane.xlu0 %6923
          %6925 = vadd.xlane.f32.xlu0 %v6587
          %v6926 = vpop.xlane.xlu0 %6925
          %6927 = vadd.xlane.f32.xlu0 %v6588
          %v6928 = vpop.xlane.xlu0 %6927
          %6929 = vadd.xlane.f32.xlu0 %v6589
          %v6930 = vpop.xlane.xlu0 %6929
          %6931 = vadd.xlane.f32.xlu0 %v6590
          %v6932 = vpop.xlane.xlu0 %6931
          %6933 = vadd.xlane.f32.xlu0 %v6591
          %v6934 = vpop.xlane.xlu0 %6933
          %6935 = vadd.xlane.f32.xlu0 %v6592
          %v6936 = vpop.xlane.xlu0 %6935
          %6937 = vadd.xlane.f32.xlu0 %v6593
          %v6938 = vpop.xlane.xlu0 %6937
          %6939 = vadd.xlane.f32.xlu0 %v6594
          %v6940 = vpop.xlane.xlu0 %6939
          %6941 = vadd.xlane.f32.xlu0 %v6595
          %v6942 = vpop.xlane.xlu0 %6941
          %6943 = vadd.xlane.f32.xlu0 %v6596
          %v6944 = vpop.xlane.xlu0 %6943
          %6945 = vadd.xlane.f32.xlu0 %v6597
          %v6946 = vpop.xlane.xlu0 %6945
          %6947 = vadd.xlane.f32.xlu0 %v6598
          %v6948 = vpop.xlane.xlu0 %6947
          %6949 = vadd.xlane.f32.xlu0 %v6599
          %v6950 = vpop.xlane.xlu0 %6949
          %6951 = vadd.xlane.f32.xlu0 %v6600
          %v6952 = vpop.xlane.xlu0 %6951
          %6953 = vadd.xlane.f32.xlu0 %v6601
          %v6954 = vpop.xlane.xlu0 %6953
          %6955 = vadd.xlane.f32.xlu0 %v6602
          %v6956 = vpop.xlane.xlu0 %6955
          %6957 = vadd.xlane.f32.xlu0 %v6603
          %v6958 = vpop.xlane.xlu0 %6957
          %6959 = vadd.xlane.f32.xlu0 %v6604
          %v6960 = vpop.xlane.xlu0 %6959
          %6961 = vadd.xlane.f32.xlu0 %v6605
          %v6962 = vpop.xlane.xlu0 %6961
          %6963 = vadd.xlane.f32.xlu0 %v6606
          %v6964 = vpop.xlane.xlu0 %6963
          %6965 = vadd.xlane.f32.xlu0 %v6607
          %v6966 = vpop.xlane.xlu0 %6965
          %6967 = vadd.xlane.f32.xlu0 %v6608
          %v6968 = vpop.xlane.xlu0 %6967
          %6969 = vadd.xlane.f32.xlu0 %v6609
          %v6970 = vpop.xlane.xlu0 %6969
          %6971 = vadd.xlane.f32.xlu0 %v6610
          %v6972 = vpop.xlane.xlu0 %6971
          %6973 = vadd.xlane.f32.xlu0 %v6611
          %v6974 = vpop.xlane.xlu0 %6973
          %6975 = vadd.xlane.f32.xlu0 %v6612
          %v6976 = vpop.xlane.xlu0 %6975
          %6977 = vadd.xlane.f32.xlu0 %v6613
          %v6978 = vpop.xlane.xlu0 %6977
          %6979 = vadd.xlane.f32.xlu0 %v6614
          %v6980 = vpop.xlane.xlu0 %6979
          %6981 = vadd.xlane.f32.xlu0 %v6615
          %v6982 = vpop.xlane.xlu0 %6981
          %6983 = vadd.xlane.f32.xlu0 %v6616
          %v6984 = vpop.xlane.xlu0 %6983
          %6985 = vadd.xlane.f32.xlu0 %v6617
          %v6986 = vpop.xlane.xlu0 %6985
          %6987 = vadd.xlane.f32.xlu0 %v6618
          %v6988 = vpop.xlane.xlu0 %6987
          %6989 = vadd.xlane.f32.xlu0 %v6619
          %v6990 = vpop.xlane.xlu0 %6989
          %6991 = vadd.xlane.f32.xlu0 %v6620
          %v6992 = vpop.xlane.xlu0 %6991
          %6993 = vadd.xlane.f32.xlu0 %v6621
          %v6994 = vpop.xlane.xlu0 %6993
          %6995 = vadd.xlane.f32.xlu0 %v6622
          %v6996 = vpop.xlane.xlu0 %6995
          %6997 = vadd.xlane.f32.xlu0 %v6623
          %v6998 = vpop.xlane.xlu0 %6997
          %6999 = vadd.xlane.f32.xlu0 %v6624
          %v7000 = vpop.xlane.xlu0 %6999
          %7001 = vadd.xlane.f32.xlu0 %v6625
          %v7002 = vpop.xlane.xlu0 %7001
          %7003 = vadd.xlane.f32.xlu0 %v6626
          %v7004 = vpop.xlane.xlu0 %7003
          %7005 = vadd.xlane.f32.xlu0 %v6627
          %v7006 = vpop.xlane.xlu0 %7005
          %7007 = vadd.xlane.f32.xlu0 %v6628
          %v7008 = vpop.xlane.xlu0 %7007
          %7009 = vadd.xlane.f32.xlu0 %v6629
          %v7010 = vpop.xlane.xlu0 %7009
          %7011 = vadd.xlane.f32.xlu0 %v6630
          %v7012 = vpop.xlane.xlu0 %7011
          %7013 = vadd.xlane.f32.xlu0 %v6631
          %v7014 = vpop.xlane.xlu0 %7013
          %7015 = vadd.xlane.f32.xlu0 %v6632
          %v7016 = vpop.xlane.xlu0 %7015
          %7017 = vadd.xlane.f32.xlu0 %v6633
          %v7018 = vpop.xlane.xlu0 %7017
          %7019 = vadd.xlane.f32.xlu0 %v6634
          %v7020 = vpop.xlane.xlu0 %7019
          %7021 = vadd.xlane.f32.xlu0 %v6635
          %v7022 = vpop.xlane.xlu0 %7021
          %7023 = vadd.xlane.f32.xlu0 %v6636
          %v7024 = vpop.xlane.xlu0 %7023
          %7025 = vadd.xlane.f32.xlu0 %v6637
          %v7026 = vpop.xlane.xlu0 %7025
          %7027 = vadd.xlane.f32.xlu0 %v6638
          %v7028 = vpop.xlane.xlu0 %7027
          %7029 = vadd.xlane.f32.xlu0 %v6639
          %v7030 = vpop.xlane.xlu0 %7029
          %7031 = vadd.xlane.f32.xlu0 %v6640
          %v7032 = vpop.xlane.xlu0 %7031
          %7033 = vadd.xlane.f32.xlu0 %v6641
          %v7034 = vpop.xlane.xlu0 %7033
          %7035 = vadd.xlane.f32.xlu0 %v6642
          %v7036 = vpop.xlane.xlu0 %7035
          %7037 = vadd.xlane.f32.xlu0 %v6643
          %v7038 = vpop.xlane.xlu0 %7037
          %7039 = vadd.xlane.f32.xlu0 %v6644
          %v7040 = vpop.xlane.xlu0 %7039
          %7041 = vadd.xlane.f32.xlu0 %v6645
          %v7042 = vpop.xlane.xlu0 %7041
          %7043 = vadd.xlane.f32.xlu0 %v6646
          %v7044 = vpop.xlane.xlu0 %7043
          %7045 = vadd.xlane.f32.xlu0 %v6647
          %v7046 = vpop.xlane.xlu0 %7045
          %7047 = vadd.xlane.f32.xlu0 %v6648
          %v7048 = vpop.xlane.xlu0 %7047
          %7049 = vadd.xlane.f32.xlu0 %v6649
          %v7050 = vpop.xlane.xlu0 %7049
          %7051 = vadd.xlane.f32.xlu0 %v6650
          %v7052 = vpop.xlane.xlu0 %7051
          %7053 = vadd.xlane.f32.xlu0 %v6651
          %v7054 = vpop.xlane.xlu0 %7053
          %7055 = vadd.xlane.f32.xlu0 %v6652
          %v7056 = vpop.xlane.xlu0 %7055
          %7057 = vadd.xlane.f32.xlu0 %v6653
          %v7058 = vpop.xlane.xlu0 %7057
          %7059 = vadd.xlane.f32.xlu0 %v6654
          %v7060 = vpop.xlane.xlu0 %7059
          %7061 = vadd.xlane.f32.xlu0 %v6655
          %v7062 = vpop.xlane.xlu0 %7061
          %7063 = vadd.xlane.f32.xlu0 %v6656
          %v7064 = vpop.xlane.xlu0 %7063
          %7065 = vadd.xlane.f32.xlu0 %v6657
          %v7066 = vpop.xlane.xlu0 %7065
          %7067 = vadd.xlane.f32.xlu0 %v6658
          %v7068 = vpop.xlane.xlu0 %7067
          %7069 = vadd.xlane.f32.xlu0 %v6659
          %v7070 = vpop.xlane.xlu0 %7069
          %7071 = vadd.xlane.f32.xlu0 %v6660
          %v7072 = vpop.xlane.xlu0 %7071
          %7073 = vadd.xlane.f32.xlu0 %v6661
          %v7074 = vpop.xlane.xlu0 %7073
          %7075 = vadd.xlane.f32.xlu0 %v6662
          %v7076 = vpop.xlane.xlu0 %7075
          %7077 = vadd.xlane.f32.xlu0 %v6663
          %v7078 = vpop.xlane.xlu0 %7077
          %7079 = vadd.xlane.f32.xlu0 %v6664
          %v7080 = vpop.xlane.xlu0 %7079
          %7081 = vadd.xlane.f32.xlu0 %v6665
          %v7082 = vpop.xlane.xlu0 %7081
          %7083 = vadd.xlane.f32.xlu0 %v6666
          %v7084 = vpop.xlane.xlu0 %7083
          %7085 = vadd.xlane.f32.xlu0 %v6667
          %v7086 = vpop.xlane.xlu0 %7085
          %7087 = vadd.xlane.f32.xlu0 %v6668
          %v7088 = vpop.xlane.xlu0 %7087
          %7089 = vadd.xlane.f32.xlu0 %v6669
          %v7090 = vpop.xlane.xlu0 %7089
          %7091 = vadd.xlane.f32.xlu0 %v6670
          %v7092 = vpop.xlane.xlu0 %7091
          %7093 = vadd.xlane.f32.xlu0 %v6671
          %v7094 = vpop.xlane.xlu0 %7093
          %7095 = vadd.xlane.f32.xlu0 %v6672
          %v7096 = vpop.xlane.xlu0 %7095
          %7097 = vadd.xlane.f32.xlu0 %v6673
          %v7098 = vpop.xlane.xlu0 %7097
          %7099 = vadd.xlane.f32.xlu0 %v6674
          %v7100 = vpop.xlane.xlu0 %7099
          %7101 = vadd.xlane.f32.xlu0 %v6675
          %v7102 = vpop.xlane.xlu0 %7101
          %7103 = vadd.xlane.f32.xlu0 %v6676
          %v7104 = vpop.xlane.xlu0 %7103
          %7105 = vadd.xlane.f32.xlu0 %v6677
          %v7106 = vpop.xlane.xlu0 %7105
          %7107 = vadd.xlane.f32.xlu0 %v6678
          %v7108 = vpop.xlane.xlu0 %7107
          %7109 = vadd.xlane.f32.xlu0 %v6679
          %v7110 = vpop.xlane.xlu0 %7109
          %7111 = vadd.xlane.f32.xlu0 %v6680
          %v7112 = vpop.xlane.xlu0 %7111
          %7113 = vadd.xlane.f32.xlu0 %v6681
          %v7114 = vpop.xlane.xlu0 %7113
          %7115 = vadd.xlane.f32.xlu0 %v6682
          %v7116 = vpop.xlane.xlu0 %7115
          %7117 = vadd.xlane.f32.xlu0 %v6683
          %v7118 = vpop.xlane.xlu0 %7117
          %7119 = vadd.xlane.f32.xlu0 %v6684
          %v7120 = vpop.xlane.xlu0 %7119
          %7121 = vadd.xlane.f32.xlu0 %v6685
          %v7122 = vpop.xlane.xlu0 %7121
          %7123 = vadd.xlane.f32.xlu0 %v6686
          %v7124 = vpop.xlane.xlu0 %7123
          %7125 = vadd.xlane.f32.xlu0 %v6687
          %v7126 = vpop.xlane.xlu0 %7125
          %7127 = vadd.xlane.f32.xlu0 %v6688
          %v7128 = vpop.xlane.xlu0 %7127
          %7129 = vadd.xlane.f32.xlu0 %v6689
          %v7130 = vpop.xlane.xlu0 %7129
          %7131 = vadd.xlane.f32.xlu0 %v6690
          %v7132 = vpop.xlane.xlu0 %7131
          %7133 = vadd.xlane.f32.xlu0 %v6691
          %v7134 = vpop.xlane.xlu0 %7133
          %7135 = vadd.xlane.f32.xlu0 %v6692
          %v7136 = vpop.xlane.xlu0 %7135
          %7137 = vadd.xlane.f32.xlu0 %v6693
          %v7138 = vpop.xlane.xlu0 %7137
          %7139 = vadd.xlane.f32.xlu0 %v6694
          %v7140 = vpop.xlane.xlu0 %7139
          %7141 = vadd.xlane.f32.xlu0 %v6695
          %v7142 = vpop.xlane.xlu0 %7141
          %7143 = vadd.xlane.f32.xlu0 %v6696
          %v7144 = vpop.xlane.xlu0 %7143
          %7145 = vadd.xlane.f32.xlu0 %v6697
          %v7146 = vpop.xlane.xlu0 %7145
          %7147 = vadd.xlane.f32.xlu0 %v6698
          %v7148 = vpop.xlane.xlu0 %7147
          %7149 = vadd.xlane.f32.xlu0 %v6699
          %v7150 = vpop.xlane.xlu0 %7149
          %7151 = vadd.xlane.f32.xlu0 %v6700
          %v7152 = vpop.xlane.xlu0 %7151
          %7153 = vadd.xlane.f32.xlu0 %v6701
          %v7154 = vpop.xlane.xlu0 %7153
          %7155 = vadd.xlane.f32.xlu0 %v6702
          %v7156 = vpop.xlane.xlu0 %7155
          %7157 = vadd.xlane.f32.xlu0 %v6703
          %v7158 = vpop.xlane.xlu0 %7157
          %7159 = vadd.xlane.f32.xlu0 %v6704
          %v7160 = vpop.xlane.xlu0 %7159
          %7161 = vadd.xlane.f32.xlu0 %v6705
          %v7162 = vpop.xlane.xlu0 %7161
          %7163 = vadd.xlane.f32.xlu0 %v6706
          %v7164 = vpop.xlane.xlu0 %7163
          %7165 = vadd.xlane.f32.xlu0 %v6707
          %v7166 = vpop.xlane.xlu0 %7165
          %7167 = vadd.xlane.f32.xlu0 %v6708
          %v7168 = vpop.xlane.xlu0 %7167
          %7169 = vadd.xlane.f32.xlu0 %v6709
          %v7170 = vpop.xlane.xlu0 %7169
          %7171 = vadd.xlane.f32.xlu0 %v6710
          %v7172 = vpop.xlane.xlu0 %7171
          %7173 = vadd.xlane.f32.xlu0 %v6711
          %v7174 = vpop.xlane.xlu0 %7173
          %7175 = vadd.xlane.f32.xlu0 %v6712
          %v7176 = vpop.xlane.xlu0 %7175
          %7177 = vadd.xlane.f32.xlu0 %v6713
          %v7178 = vpop.xlane.xlu0 %7177
          %7179 = vadd.xlane.f32.xlu0 %v6714
          %v7180 = vpop.xlane.xlu0 %7179
          %7181 = vadd.xlane.f32.xlu0 %v6715
          %v7182 = vpop.xlane.xlu0 %7181
          %7183 = vadd.xlane.f32.xlu0 %v6716
          %v7184 = vpop.xlane.xlu0 %7183
          %7185 = vadd.xlane.f32.xlu0 %v6717
          %v7186 = vpop.xlane.xlu0 %7185
          %7187 = vadd.xlane.f32.xlu0 %v6718
          %v7188 = vpop.xlane.xlu0 %7187
          %7189 = vadd.xlane.f32.xlu0 %v6719
          %v7190 = vpop.xlane.xlu0 %7189
          %7191 = vadd.xlane.f32.xlu0 %v6720
          %v7192 = vpop.xlane.xlu0 %7191
          %7193 = vadd.xlane.f32.xlu0 %v6721
          %v7194 = vpop.xlane.xlu0 %7193
          %7195 = vadd.xlane.f32.xlu0 %v6722
          %v7196 = vpop.xlane.xlu0 %7195
          %7197 = vadd.xlane.f32.xlu0 %v6723
          %v7198 = vpop.xlane.xlu0 %7197
          %7199 = vadd.xlane.f32.xlu0 %v6724
          %v7200 = vpop.xlane.xlu0 %7199
          %7201 = vadd.xlane.f32.xlu0 %v6725
          %v7202 = vpop.xlane.xlu0 %7201
          %7203 = vadd.xlane.f32.xlu0 %v6726
          %v7204 = vpop.xlane.xlu0 %7203
          %7205 = vadd.xlane.f32.xlu0 %v6727
          %v7206 = vpop.xlane.xlu0 %7205
          %7207 = vadd.xlane.f32.xlu0 %v6728
          %v7208 = vpop.xlane.xlu0 %7207
          %7209 = vadd.xlane.f32.xlu0 %v6729
          %v7210 = vpop.xlane.xlu0 %7209
          %7211 = vadd.xlane.f32.xlu0 %v6730
          %v7212 = vpop.xlane.xlu0 %7211
          %7213 = vadd.xlane.f32.xlu0 %v6731
          %v7214 = vpop.xlane.xlu0 %7213
          %7215 = vadd.xlane.f32.xlu0 %v6732
          %v7216 = vpop.xlane.xlu0 %7215
          %7217 = vadd.xlane.f32.xlu0 %v6733
          %v7218 = vpop.xlane.xlu0 %7217
          %7219 = vadd.xlane.f32.xlu0 %v6734
          %v7220 = vpop.xlane.xlu0 %7219
          %7221 = vadd.xlane.f32.xlu0 %v6735
          %v7222 = vpop.xlane.xlu0 %7221
          %7223 = vadd.xlane.f32.xlu0 %v6736
          %v7224 = vpop.xlane.xlu0 %7223
          %7225 = vadd.xlane.f32.xlu0 %v6737
          %v7226 = vpop.xlane.xlu0 %7225
          %7227 = vadd.xlane.f32.xlu0 %v6738
          %v7228 = vpop.xlane.xlu0 %7227
          %7229 = vadd.xlane.f32.xlu0 %v6739
          %v7230 = vpop.xlane.xlu0 %7229
          %7231 = vadd.xlane.f32.xlu0 %v6740
          %v7232 = vpop.xlane.xlu0 %7231
          %7233 = vadd.xlane.f32.xlu0 %v6741
          %v7234 = vpop.xlane.xlu0 %7233
          %7235 = vadd.xlane.f32.xlu0 %v6742
          %v7236 = vpop.xlane.xlu0 %7235
          %7237 = vadd.xlane.f32.xlu0 %v6743
          %v7238 = vpop.xlane.xlu0 %7237
          %7239 = vadd.xlane.f32.xlu0 %v6744
          %v7240 = vpop.xlane.xlu0 %7239
          %7241 = vadd.xlane.f32.xlu0 %v6745
          %v7242 = vpop.xlane.xlu0 %7241
          %7243 = vadd.xlane.f32.xlu0 %v6746
          %v7244 = vpop.xlane.xlu0 %7243
          %7245 = vadd.xlane.f32.xlu0 %v6747
          %v7246 = vpop.xlane.xlu0 %7245
          %7247 = vadd.xlane.f32.xlu0 %v6748
          %v7248 = vpop.xlane.xlu0 %7247
          %7249 = vadd.xlane.f32.xlu0 %v6749
          %v7250 = vpop.xlane.xlu0 %7249
          %7251 = vadd.xlane.f32.xlu0 %v6750
          %v7252 = vpop.xlane.xlu0 %7251
          %7253 = vadd.xlane.f32.xlu0 %v6751
          %v7254 = vpop.xlane.xlu0 %7253
          %7255 = vadd.xlane.f32.xlu0 %v6752
          %v7256 = vpop.xlane.xlu0 %7255
          %7257 = vadd.xlane.f32.xlu0 %v6753
          %v7258 = vpop.xlane.xlu0 %7257
          %7259 = vadd.xlane.f32.xlu0 %v6754
          %v7260 = vpop.xlane.xlu0 %7259
          %7261 = vadd.xlane.f32.xlu0 %v6755
          %v7262 = vpop.xlane.xlu0 %7261
          %7263 = vadd.xlane.f32.xlu0 %v6756
          %v7264 = vpop.xlane.xlu0 %7263
          %7265 = vadd.xlane.f32.xlu0 %v6757
          %v7266 = vpop.xlane.xlu0 %7265
          %7267 = vadd.xlane.f32.xlu0 %v6758
          %v7268 = vpop.xlane.xlu0 %7267
          %7269 = vadd.xlane.f32.xlu0 %v6759
          %v7270 = vpop.xlane.xlu0 %7269
          %7271 = vadd.xlane.f32.xlu0 %v6760
          %v7272 = vpop.xlane.xlu0 %7271
          %v7529 = vperm.slane %v6762, %v3657
          %v7530 = vadd.s32 %v3657, 4294967288
          %v7531 = vperm.slane %v6764, %v7530
          %vm7532 = vcmask 130112
          %v7533 = vsel %vm7532, %v7531, %v7529
          %v7534 = vadd.s32 %v3657, 4294967280
          %v7535 = vperm.slane %v6766, %v7534
          %vm7536 = vcmask 195712
          %v7537 = vsel %vm7536, %v7535, %v7533
          %v7538 = vadd.s32 %v3657, 4294967272
          %v7539 = vperm.slane %v6768, %v7538
          %vm7540 = vcmask 261312
          %v7541 = vsel %vm7540, %v7539, %v7537
          %v7542 = vadd.s32 %v3657, 4294967264
          %v7543 = vperm.slane %v6770, %v7542
          %vm7544 = vcmask 326912
          %v7545 = vsel %vm7544, %v7543, %v7541
          %v7546 = vadd.s32 %v3657, 4294967256
          %v7547 = vperm.slane %v6772, %v7546
          %vm7548 = vcmask 392512
          %v7549 = vsel %vm7548, %v7547, %v7545
          %v7550 = vadd.s32 %v3657, 4294967248
          %v7551 = vperm.slane %v6774, %v7550
          %vm7552 = vcmask 458112
          %v7553 = vsel %vm7552, %v7551, %v7549
          %v7554 = vadd.s32 %v3657, 4294967240
          %v7555 = vperm.slane %v6776, %v7554
          %vm7556 = vcmask 523712
          %v7557 = vsel %vm7556, %v7555, %v7553
          %v7558 = vadd.s32 %v3657, 4294967232
          %v7559 = vperm.slane %v6778, %v7558
          %vm7560 = vcmask 589312
          %v7561 = vsel %vm7560, %v7559, %v7557
          %v7562 = vadd.s32 %v3657, 4294967224
          %v7563 = vperm.slane %v6780, %v7562
          %vm7564 = vcmask 654912
          %v7565 = vsel %vm7564, %v7563, %v7561
          %v7566 = vadd.s32 %v3657, 4294967216
          %v7567 = vperm.slane %v6782, %v7566
          %vm7568 = vcmask 720512
          %v7569 = vsel %vm7568, %v7567, %v7565
          %v7570 = vadd.s32 %v3657, 4294967208
          %v7571 = vperm.slane %v6784, %v7570
          %vm7572 = vcmask 786112
          %v7573 = vsel %vm7572, %v7571, %v7569
          %v7574 = vadd.s32 %v3657, 4294967200
          %v7575 = vperm.slane %v6786, %v7574
          %vm7576 = vcmask 851712
          %v7577 = vsel %vm7576, %v7575, %v7573
          %v7578 = vadd.s32 %v3657, 4294967192
          %v7579 = vperm.slane %v6788, %v7578
          %vm7580 = vcmask 917312
          %v7581 = vsel %vm7580, %v7579, %v7577
          %v7582 = vadd.s32 %v3657, 4294967184
          %v7583 = vperm.slane %v6790, %v7582
          %vm7584 = vcmask 982912
          %v7585 = vsel %vm7584, %v7583, %v7581
          %v7586 = vadd.s32 %v3657, 4294967176
          %v7587 = vperm.slane %v6792, %v7586
          %vm7588 = vcmask 1048512
          %v7589 = vsel %vm7588, %v7587, %v7585
          %v7590 = vperm.slane %v6794, %v3657
          %v7591 = vperm.slane %v6796, %v7530
          %v7592 = vsel %vm7532, %v7591, %v7590
          %v7593 = vperm.slane %v6798, %v7534
          %v7594 = vsel %vm7536, %v7593, %v7592
          %v7595 = vperm.slane %v6800, %v7538
          %v7596 = vsel %vm7540, %v7595, %v7594
          %v7597 = vperm.slane %v6802, %v7542
          %v7598 = vsel %vm7544, %v7597, %v7596
          %v7599 = vperm.slane %v6804, %v7546
          %v7600 = vsel %vm7548, %v7599, %v7598
          %v7601 = vperm.slane %v6806, %v7550
          %v7602 = vsel %vm7552, %v7601, %v7600
          %v7603 = vperm.slane %v6808, %v7554
          %v7604 = vsel %vm7556, %v7603, %v7602
          %v7605 = vperm.slane %v6810, %v7558
          %v7606 = vsel %vm7560, %v7605, %v7604
          %v7607 = vperm.slane %v6812, %v7562
          %v7608 = vsel %vm7564, %v7607, %v7606
          %v7609 = vperm.slane %v6814, %v7566
          %v7610 = vsel %vm7568, %v7609, %v7608
          %v7611 = vperm.slane %v6816, %v7570
          %v7612 = vsel %vm7572, %v7611, %v7610
          %v7613 = vperm.slane %v6818, %v7574
          %v7614 = vsel %vm7576, %v7613, %v7612
          %v7615 = vperm.slane %v6820, %v7578
          %v7616 = vsel %vm7580, %v7615, %v7614
          %v7617 = vperm.slane %v6822, %v7582
          %v7618 = vsel %vm7584, %v7617, %v7616
          %v7619 = vperm.slane %v6824, %v7586
          %v7620 = vsel %vm7588, %v7619, %v7618
          %v7621 = vperm.slane %v6826, %v3657
          %v7622 = vperm.slane %v6828, %v7530
          %v7623 = vsel %vm7532, %v7622, %v7621
          %v7624 = vperm.slane %v6830, %v7534
          %v7625 = vsel %vm7536, %v7624, %v7623
          %v7626 = vperm.slane %v6832, %v7538
          %v7627 = vsel %vm7540, %v7626, %v7625
          %v7628 = vperm.slane %v6834, %v7542
          %v7629 = vsel %vm7544, %v7628, %v7627
          %v7630 = vperm.slane %v6836, %v7546
          %v7631 = vsel %vm7548, %v7630, %v7629
          %v7632 = vperm.slane %v6838, %v7550
          %v7633 = vsel %vm7552, %v7632, %v7631
          %v7634 = vperm.slane %v6840, %v7554
          %v7635 = vsel %vm7556, %v7634, %v7633
          %v7636 = vperm.slane %v6842, %v7558
          %v7637 = vsel %vm7560, %v7636, %v7635
          %v7638 = vperm.slane %v6844, %v7562
          %v7639 = vsel %vm7564, %v7638, %v7637
          %v7640 = vperm.slane %v6846, %v7566
          %v7641 = vsel %vm7568, %v7640, %v7639
          %v7642 = vperm.slane %v6848, %v7570
          %v7643 = vsel %vm7572, %v7642, %v7641
          %v7644 = vperm.slane %v6850, %v7574
          %v7645 = vsel %vm7576, %v7644, %v7643
          %v7646 = vperm.slane %v6852, %v7578
          %v7647 = vsel %vm7580, %v7646, %v7645
          %v7648 = vperm.slane %v6854, %v7582
          %v7649 = vsel %vm7584, %v7648, %v7647
          %v7650 = vperm.slane %v6856, %v7586
          %v7651 = vsel %vm7588, %v7650, %v7649
          %v7652 = vperm.slane %v6858, %v3657
          %v7653 = vperm.slane %v6860, %v7530
          %v7654 = vsel %vm7532, %v7653, %v7652
          %v7655 = vperm.slane %v6862, %v7534
          %v7656 = vsel %vm7536, %v7655, %v7654
          %v7657 = vperm.slane %v6864, %v7538
          %v7658 = vsel %vm7540, %v7657, %v7656
          %v7659 = vperm.slane %v6866, %v7542
          %v7660 = vsel %vm7544, %v7659, %v7658
          %v7661 = vperm.slane %v6868, %v7546
          %v7662 = vsel %vm7548, %v7661, %v7660
          %v7663 = vperm.slane %v6870, %v7550
          %v7664 = vsel %vm7552, %v7663, %v7662
          %v7665 = vperm.slane %v6872, %v7554
          %v7666 = vsel %vm7556, %v7665, %v7664
          %v7667 = vperm.slane %v6874, %v7558
          %v7668 = vsel %vm7560, %v7667, %v7666
          %v7669 = vperm.slane %v6876, %v7562
          %v7670 = vsel %vm7564, %v7669, %v7668
          %v7671 = vperm.slane %v6878, %v7566
          %v7672 = vsel %vm7568, %v7671, %v7670
          %v7673 = vperm.slane %v6880, %v7570
          %v7674 = vsel %vm7572, %v7673, %v7672
          %v7675 = vperm.slane %v6882, %v7574
          %v7676 = vsel %vm7576, %v7675, %v7674
          %v7677 = vperm.slane %v6884, %v7578
          %v7678 = vsel %vm7580, %v7677, %v7676
          %v7679 = vperm.slane %v6886, %v7582
          %v7680 = vsel %vm7584, %v7679, %v7678
          %v7681 = vperm.slane %v6888, %v7586
          %v7682 = vsel %vm7588, %v7681, %v7680
          %v7683 = vperm.slane %v6890, %v3657
          %v7684 = vperm.slane %v6892, %v7530
          %v7685 = vsel %vm7532, %v7684, %v7683
          %v7686 = vperm.slane %v6894, %v7534
          %v7687 = vsel %vm7536, %v7686, %v7685
          %v7688 = vperm.slane %v6896, %v7538
          %v7689 = vsel %vm7540, %v7688, %v7687
          %v7690 = vperm.slane %v6898, %v7542
          %v7691 = vsel %vm7544, %v7690, %v7689
          %v7692 = vperm.slane %v6900, %v7546
          %v7693 = vsel %vm7548, %v7692, %v7691
          %v7694 = vperm.slane %v6902, %v7550
          %v7695 = vsel %vm7552, %v7694, %v7693
          %v7696 = vperm.slane %v6904, %v7554
          %v7697 = vsel %vm7556, %v7696, %v7695
          %v7698 = vperm.slane %v6906, %v7558
          %v7699 = vsel %vm7560, %v7698, %v7697
          %v7700 = vperm.slane %v6908, %v7562
          %v7701 = vsel %vm7564, %v7700, %v7699
          %v7702 = vperm.slane %v6910, %v7566
          %v7703 = vsel %vm7568, %v7702, %v7701
          %v7704 = vperm.slane %v6912, %v7570
          %v7705 = vsel %vm7572, %v7704, %v7703
          %v7706 = vperm.slane %v6914, %v7574
          %v7707 = vsel %vm7576, %v7706, %v7705
          %v7708 = vperm.slane %v6916, %v7578
          %v7709 = vsel %vm7580, %v7708, %v7707
          %v7710 = vperm.slane %v6918, %v7582
          %v7711 = vsel %vm7584, %v7710, %v7709
          %v7712 = vperm.slane %v6920, %v7586
          %v7713 = vsel %vm7588, %v7712, %v7711
          %v7714 = vperm.slane %v6922, %v3657
          %v7715 = vperm.slane %v6924, %v7530
          %v7716 = vsel %vm7532, %v7715, %v7714
          %v7717 = vperm.slane %v6926, %v7534
          %v7718 = vsel %vm7536, %v7717, %v7716
          %v7719 = vperm.slane %v6928, %v7538
          %v7720 = vsel %vm7540, %v7719, %v7718
          %v7721 = vperm.slane %v6930, %v7542
          %v7722 = vsel %vm7544, %v7721, %v7720
          %v7723 = vperm.slane %v6932, %v7546
          %v7724 = vsel %vm7548, %v7723, %v7722
          %v7725 = vperm.slane %v6934, %v7550
          %v7726 = vsel %vm7552, %v7725, %v7724
          %v7727 = vperm.slane %v6936, %v7554
          %v7728 = vsel %vm7556, %v7727, %v7726
          %v7729 = vperm.slane %v6938, %v7558
          %v7730 = vsel %vm7560, %v7729, %v7728
          %v7731 = vperm.slane %v6940, %v7562
          %v7732 = vsel %vm7564, %v7731, %v7730
          %v7733 = vperm.slane %v6942, %v7566
          %v7734 = vsel %vm7568, %v7733, %v7732
          %v7735 = vperm.slane %v6944, %v7570
          %v7736 = vsel %vm7572, %v7735, %v7734
          %v7737 = vperm.slane %v6946, %v7574
          %v7738 = vsel %vm7576, %v7737, %v7736
          %v7739 = vperm.slane %v6948, %v7578
          %v7740 = vsel %vm7580, %v7739, %v7738
          %v7741 = vperm.slane %v6950, %v7582
          %v7742 = vsel %vm7584, %v7741, %v7740
          %v7743 = vperm.slane %v6952, %v7586
          %v7744 = vsel %vm7588, %v7743, %v7742
          %v7745 = vperm.slane %v6954, %v3657
          %v7746 = vperm.slane %v6956, %v7530
          %v7747 = vsel %vm7532, %v7746, %v7745
          %v7748 = vperm.slane %v6958, %v7534
          %v7749 = vsel %vm7536, %v7748, %v7747
          %v7750 = vperm.slane %v6960, %v7538
          %v7751 = vsel %vm7540, %v7750, %v7749
          %v7752 = vperm.slane %v6962, %v7542
          %v7753 = vsel %vm7544, %v7752, %v7751
          %v7754 = vperm.slane %v6964, %v7546
          %v7755 = vsel %vm7548, %v7754, %v7753
          %v7756 = vperm.slane %v6966, %v7550
          %v7757 = vsel %vm7552, %v7756, %v7755
          %v7758 = vperm.slane %v6968, %v7554
          %v7759 = vsel %vm7556, %v7758, %v7757
          %v7760 = vperm.slane %v6970, %v7558
          %v7761 = vsel %vm7560, %v7760, %v7759
          %v7762 = vperm.slane %v6972, %v7562
          %v7763 = vsel %vm7564, %v7762, %v7761
          %v7764 = vperm.slane %v6974, %v7566
          %v7765 = vsel %vm7568, %v7764, %v7763
          %v7766 = vperm.slane %v6976, %v7570
          %v7767 = vsel %vm7572, %v7766, %v7765
          %v7768 = vperm.slane %v6978, %v7574
          %v7769 = vsel %vm7576, %v7768, %v7767
          %v7770 = vperm.slane %v6980, %v7578
          %v7771 = vsel %vm7580, %v7770, %v7769
          %v7772 = vperm.slane %v6982, %v7582
          %v7773 = vsel %vm7584, %v7772, %v7771
          %v7774 = vperm.slane %v6984, %v7586
          %v7775 = vsel %vm7588, %v7774, %v7773
          %v7776 = vperm.slane %v6986, %v3657
          %v7777 = vperm.slane %v6988, %v7530
          %v7778 = vsel %vm7532, %v7777, %v7776
          %v7779 = vperm.slane %v6990, %v7534
          %v7780 = vsel %vm7536, %v7779, %v7778
          %v7781 = vperm.slane %v6992, %v7538
          %v7782 = vsel %vm7540, %v7781, %v7780
          %v7783 = vperm.slane %v6994, %v7542
          %v7784 = vsel %vm7544, %v7783, %v7782
          %v7785 = vperm.slane %v6996, %v7546
          %v7786 = vsel %vm7548, %v7785, %v7784
          %v7787 = vperm.slane %v6998, %v7550
          %v7788 = vsel %vm7552, %v7787, %v7786
          %v7789 = vperm.slane %v7000, %v7554
          %v7790 = vsel %vm7556, %v7789, %v7788
          %v7791 = vperm.slane %v7002, %v7558
          %v7792 = vsel %vm7560, %v7791, %v7790
          %v7793 = vperm.slane %v7004, %v7562
          %v7794 = vsel %vm7564, %v7793, %v7792
          %v7795 = vperm.slane %v7006, %v7566
          %v7796 = vsel %vm7568, %v7795, %v7794
          %v7797 = vperm.slane %v7008, %v7570
          %v7798 = vsel %vm7572, %v7797, %v7796
          %v7799 = vperm.slane %v7010, %v7574
          %v7800 = vsel %vm7576, %v7799, %v7798
          %v7801 = vperm.slane %v7012, %v7578
          %v7802 = vsel %vm7580, %v7801, %v7800
          %v7803 = vperm.slane %v7014, %v7582
          %v7804 = vsel %vm7584, %v7803, %v7802
          %v7805 = vperm.slane %v7016, %v7586
          %v7806 = vsel %vm7588, %v7805, %v7804
          %v7807 = vperm.slane %v7018, %v3657
          %v7808 = vperm.slane %v7020, %v7530
          %v7809 = vsel %vm7532, %v7808, %v7807
          %v7810 = vperm.slane %v7022, %v7534
          %v7811 = vsel %vm7536, %v7810, %v7809
          %v7812 = vperm.slane %v7024, %v7538
          %v7813 = vsel %vm7540, %v7812, %v7811
          %v7814 = vperm.slane %v7026, %v7542
          %v7815 = vsel %vm7544, %v7814, %v7813
          %v7816 = vperm.slane %v7028, %v7546
          %v7817 = vsel %vm7548, %v7816, %v7815
          %v7818 = vperm.slane %v7030, %v7550
          %v7819 = vsel %vm7552, %v7818, %v7817
          %v7820 = vperm.slane %v7032, %v7554
          %v7821 = vsel %vm7556, %v7820, %v7819
          %v7822 = vperm.slane %v7034, %v7558
          %v7823 = vsel %vm7560, %v7822, %v7821
          %v7824 = vperm.slane %v7036, %v7562
          %v7825 = vsel %vm7564, %v7824, %v7823
          %v7826 = vperm.slane %v7038, %v7566
          %v7827 = vsel %vm7568, %v7826, %v7825
          %v7828 = vperm.slane %v7040, %v7570
          %v7829 = vsel %vm7572, %v7828, %v7827
          %v7830 = vperm.slane %v7042, %v7574
          %v7831 = vsel %vm7576, %v7830, %v7829
          %v7832 = vperm.slane %v7044, %v7578
          %v7833 = vsel %vm7580, %v7832, %v7831
          %v7834 = vperm.slane %v7046, %v7582
          %v7835 = vsel %vm7584, %v7834, %v7833
          %v7836 = vperm.slane %v7048, %v7586
          %v7837 = vsel %vm7588, %v7836, %v7835
          %v7838 = vperm.slane %v7050, %v3657
          %v7839 = vperm.slane %v7052, %v7530
          %v7840 = vsel %vm7532, %v7839, %v7838
          %v7841 = vperm.slane %v7054, %v7534
          %v7842 = vsel %vm7536, %v7841, %v7840
          %v7843 = vperm.slane %v7056, %v7538
          %v7844 = vsel %vm7540, %v7843, %v7842
          %v7845 = vperm.slane %v7058, %v7542
          %v7846 = vsel %vm7544, %v7845, %v7844
          %v7847 = vperm.slane %v7060, %v7546
          %v7848 = vsel %vm7548, %v7847, %v7846
          %v7849 = vperm.slane %v7062, %v7550
          %v7850 = vsel %vm7552, %v7849, %v7848
          %v7851 = vperm.slane %v7064, %v7554
          %v7852 = vsel %vm7556, %v7851, %v7850
          %v7853 = vperm.slane %v7066, %v7558
          %v7854 = vsel %vm7560, %v7853, %v7852
          %v7855 = vperm.slane %v7068, %v7562
          %v7856 = vsel %vm7564, %v7855, %v7854
          %v7857 = vperm.slane %v7070, %v7566
          %v7858 = vsel %vm7568, %v7857, %v7856
          %v7859 = vperm.slane %v7072, %v7570
          %v7860 = vsel %vm7572, %v7859, %v7858
          %v7861 = vperm.slane %v7074, %v7574
          %v7862 = vsel %vm7576, %v7861, %v7860
          %v7863 = vperm.slane %v7076, %v7578
          %v7864 = vsel %vm7580, %v7863, %v7862
          %v7865 = vperm.slane %v7078, %v7582
          %v7866 = vsel %vm7584, %v7865, %v7864
          %v7867 = vperm.slane %v7080, %v7586
          %v7868 = vsel %vm7588, %v7867, %v7866
          %v7869 = vperm.slane %v7082, %v3657
          %v7870 = vperm.slane %v7084, %v7530
          %v7871 = vsel %vm7532, %v7870, %v7869
          %v7872 = vperm.slane %v7086, %v7534
          %v7873 = vsel %vm7536, %v7872, %v7871
          %v7874 = vperm.slane %v7088, %v7538
          %v7875 = vsel %vm7540, %v7874, %v7873
          %v7876 = vperm.slane %v7090, %v7542
          %v7877 = vsel %vm7544, %v7876, %v7875
          %v7878 = vperm.slane %v7092, %v7546
          %v7879 = vsel %vm7548, %v7878, %v7877
          %v7880 = vperm.slane %v7094, %v7550
          %v7881 = vsel %vm7552, %v7880, %v7879
          %v7882 = vperm.slane %v7096, %v7554
          %v7883 = vsel %vm7556, %v7882, %v7881
          %v7884 = vperm.slane %v7098, %v7558
          %v7885 = vsel %vm7560, %v7884, %v7883
          %v7886 = vperm.slane %v7100, %v7562
          %v7887 = vsel %vm7564, %v7886, %v7885
          %v7888 = vperm.slane %v7102, %v7566
          %v7889 = vsel %vm7568, %v7888, %v7887
          %v7890 = vperm.slane %v7104, %v7570
          %v7891 = vsel %vm7572, %v7890, %v7889
          %v7892 = vperm.slane %v7106, %v7574
          %v7893 = vsel %vm7576, %v7892, %v7891
          %v7894 = vperm.slane %v7108, %v7578
          %v7895 = vsel %vm7580, %v7894, %v7893
          %v7896 = vperm.slane %v7110, %v7582
          %v7897 = vsel %vm7584, %v7896, %v7895
          %v7898 = vperm.slane %v7112, %v7586
          %v7899 = vsel %vm7588, %v7898, %v7897
          %v7900 = vperm.slane %v7114, %v3657
          %v7901 = vperm.slane %v7116, %v7530
          %v7902 = vsel %vm7532, %v7901, %v7900
          %v7903 = vperm.slane %v7118, %v7534
          %v7904 = vsel %vm7536, %v7903, %v7902
          %v7905 = vperm.slane %v7120, %v7538
          %v7906 = vsel %vm7540, %v7905, %v7904
          %v7907 = vperm.slane %v7122, %v7542
          %v7908 = vsel %vm7544, %v7907, %v7906
          %v7909 = vperm.slane %v7124, %v7546
          %v7910 = vsel %vm7548, %v7909, %v7908
          %v7911 = vperm.slane %v7126, %v7550
          %v7912 = vsel %vm7552, %v7911, %v7910
          %v7913 = vperm.slane %v7128, %v7554
          %v7914 = vsel %vm7556, %v7913, %v7912
          %v7915 = vperm.slane %v7130, %v7558
          %v7916 = vsel %vm7560, %v7915, %v7914
          %v7917 = vperm.slane %v7132, %v7562
          %v7918 = vsel %vm7564, %v7917, %v7916
          %v7919 = vperm.slane %v7134, %v7566
          %v7920 = vsel %vm7568, %v7919, %v7918
          %v7921 = vperm.slane %v7136, %v7570
          %v7922 = vsel %vm7572, %v7921, %v7920
          %v7923 = vperm.slane %v7138, %v7574
          %v7924 = vsel %vm7576, %v7923, %v7922
          %v7925 = vperm.slane %v7140, %v7578
          %v7926 = vsel %vm7580, %v7925, %v7924
          %v7927 = vperm.slane %v7142, %v7582
          %v7928 = vsel %vm7584, %v7927, %v7926
          %v7929 = vperm.slane %v7144, %v7586
          %v7930 = vsel %vm7588, %v7929, %v7928
          %v7931 = vperm.slane %v7146, %v3657
          %v7932 = vperm.slane %v7148, %v7530
          %v7933 = vsel %vm7532, %v7932, %v7931
          %v7934 = vperm.slane %v7150, %v7534
          %v7935 = vsel %vm7536, %v7934, %v7933
          %v7936 = vperm.slane %v7152, %v7538
          %v7937 = vsel %vm7540, %v7936, %v7935
          %v7938 = vperm.slane %v7154, %v7542
          %v7939 = vsel %vm7544, %v7938, %v7937
          %v7940 = vperm.slane %v7156, %v7546
          %v7941 = vsel %vm7548, %v7940, %v7939
          %v7942 = vperm.slane %v7158, %v7550
          %v7943 = vsel %vm7552, %v7942, %v7941
          %v7944 = vperm.slane %v7160, %v7554
          %v7945 = vsel %vm7556, %v7944, %v7943
          %v7946 = vperm.slane %v7162, %v7558
          %v7947 = vsel %vm7560, %v7946, %v7945
          %v7948 = vperm.slane %v7164, %v7562
          %v7949 = vsel %vm7564, %v7948, %v7947
          %v7950 = vperm.slane %v7166, %v7566
          %v7951 = vsel %vm7568, %v7950, %v7949
          %v7952 = vperm.slane %v7168, %v7570
          %v7953 = vsel %vm7572, %v7952, %v7951
          %v7954 = vperm.slane %v7170, %v7574
          %v7955 = vsel %vm7576, %v7954, %v7953
          %v7956 = vperm.slane %v7172, %v7578
          %v7957 = vsel %vm7580, %v7956, %v7955
          %v7958 = vperm.slane %v7174, %v7582
          %v7959 = vsel %vm7584, %v7958, %v7957
          %v7960 = vperm.slane %v7176, %v7586
          %v7961 = vsel %vm7588, %v7960, %v7959
          %v7962 = vperm.slane %v7178, %v3657
          %v7963 = vperm.slane %v7180, %v7530
          %v7964 = vsel %vm7532, %v7963, %v7962
          %v7965 = vperm.slane %v7182, %v7534
          %v7966 = vsel %vm7536, %v7965, %v7964
          %v7967 = vperm.slane %v7184, %v7538
          %v7968 = vsel %vm7540, %v7967, %v7966
          %v7969 = vperm.slane %v7186, %v7542
          %v7970 = vsel %vm7544, %v7969, %v7968
          %v7971 = vperm.slane %v7188, %v7546
          %v7972 = vsel %vm7548, %v7971, %v7970
          %v7973 = vperm.slane %v7190, %v7550
          %v7974 = vsel %vm7552, %v7973, %v7972
          %v7975 = vperm.slane %v7192, %v7554
          %v7976 = vsel %vm7556, %v7975, %v7974
          %v7977 = vperm.slane %v7194, %v7558
          %v7978 = vsel %vm7560, %v7977, %v7976
          %v7979 = vperm.slane %v7196, %v7562
          %v7980 = vsel %vm7564, %v7979, %v7978
          %v7981 = vperm.slane %v7198, %v7566
          %v7982 = vsel %vm7568, %v7981, %v7980
          %v7983 = vperm.slane %v7200, %v7570
          %v7984 = vsel %vm7572, %v7983, %v7982
          %v7985 = vperm.slane %v7202, %v7574
          %v7986 = vsel %vm7576, %v7985, %v7984
          %v7987 = vperm.slane %v7204, %v7578
          %v7988 = vsel %vm7580, %v7987, %v7986
          %v7989 = vperm.slane %v7206, %v7582
          %v7990 = vsel %vm7584, %v7989, %v7988
          %v7991 = vperm.slane %v7208, %v7586
          %v7992 = vsel %vm7588, %v7991, %v7990
          %v7993 = vperm.slane %v7210, %v3657
          %v7994 = vperm.slane %v7212, %v7530
          %v7995 = vsel %vm7532, %v7994, %v7993
          %v7996 = vperm.slane %v7214, %v7534
          %v7997 = vsel %vm7536, %v7996, %v7995
          %v7998 = vperm.slane %v7216, %v7538
          %v7999 = vsel %vm7540, %v7998, %v7997
          %v8000 = vperm.slane %v7218, %v7542
          %v8001 = vsel %vm7544, %v8000, %v7999
          %v8002 = vperm.slane %v7220, %v7546
          %v8003 = vsel %vm7548, %v8002, %v8001
          %v8004 = vperm.slane %v7222, %v7550
          %v8005 = vsel %vm7552, %v8004, %v8003
          %v8006 = vperm.slane %v7224, %v7554
          %v8007 = vsel %vm7556, %v8006, %v8005
          %v8008 = vperm.slane %v7226, %v7558
          %v8009 = vsel %vm7560, %v8008, %v8007
          %v8010 = vperm.slane %v7228, %v7562
          %v8011 = vsel %vm7564, %v8010, %v8009
          %v8012 = vperm.slane %v7230, %v7566
          %v8013 = vsel %vm7568, %v8012, %v8011
          %v8014 = vperm.slane %v7232, %v7570
          %v8015 = vsel %vm7572, %v8014, %v8013
          %v8016 = vperm.slane %v7234, %v7574
          %v8017 = vsel %vm7576, %v8016, %v8015
          %v8018 = vperm.slane %v7236, %v7578
          %v8019 = vsel %vm7580, %v8018, %v8017
          %v8020 = vperm.slane %v7238, %v7582
          %v8021 = vsel %vm7584, %v8020, %v8019
          %v8022 = vperm.slane %v7240, %v7586
          %v8023 = vsel %vm7588, %v8022, %v8021
          %v8024 = vperm.slane %v7242, %v3657
          %v8025 = vperm.slane %v7244, %v7530
          %v8026 = vsel %vm7532, %v8025, %v8024
          %v8027 = vperm.slane %v7246, %v7534
          %v8028 = vsel %vm7536, %v8027, %v8026
          %v8029 = vperm.slane %v7248, %v7538
          %v8030 = vsel %vm7540, %v8029, %v8028
          %v8031 = vperm.slane %v7250, %v7542
          %v8032 = vsel %vm7544, %v8031, %v8030
          %v8033 = vperm.slane %v7252, %v7546
          %v8034 = vsel %vm7548, %v8033, %v8032
          %v8035 = vperm.slane %v7254, %v7550
          %v8036 = vsel %vm7552, %v8035, %v8034
          %v8037 = vperm.slane %v7256, %v7554
          %v8038 = vsel %vm7556, %v8037, %v8036
          %v8039 = vperm.slane %v7258, %v7558
          %v8040 = vsel %vm7560, %v8039, %v8038
          %v8041 = vperm.slane %v7260, %v7562
          %v8042 = vsel %vm7564, %v8041, %v8040
          %v8043 = vperm.slane %v7262, %v7566
          %v8044 = vsel %vm7568, %v8043, %v8042
          %v8045 = vperm.slane %v7264, %v7570
          %v8046 = vsel %vm7572, %v8045, %v8044
          %v8047 = vperm.slane %v7266, %v7574
          %v8048 = vsel %vm7576, %v8047, %v8046
          %v8049 = vperm.slane %v7268, %v7578
          %v8050 = vsel %vm7580, %v8049, %v8048
          %v8051 = vperm.slane %v7270, %v7582
          %v8052 = vsel %vm7584, %v8051, %v8050
          %v8053 = vperm.slane %v7272, %v7586
          %v8054 = vsel %vm7588, %v8053, %v8052
          %vm8055 = vcmask 1041409
          %v8056 = vsel %vm8055, %v7620, %v7589
          %vm8057 = vcmask 1042434
          %v8058 = vsel %vm8057, %v7651, %v8056
          %vm8059 = vcmask 1043459
          %v8060 = vsel %vm8059, %v7682, %v8058
          %vm8061 = vcmask 1044484
          %v8062 = vsel %vm8061, %v7713, %v8060
          %vm8063 = vcmask 1045509
          %v8064 = vsel %vm8063, %v7744, %v8062
          %vm8065 = vcmask 1046534
          %v8066 = vsel %vm8065, %v7775, %v8064
          %vm8067 = vcmask 1047559
          %v8068 = vsel %vm8067, %v7806, %v8066
          %v8069 = vsel %vm8055, %v7868, %v7837
          %v8070 = vsel %vm8057, %v7899, %v8069
          %v8071 = vsel %vm8059, %v7930, %v8070
          %v8072 = vsel %vm8061, %v7961, %v8071
          %v8073 = vsel %vm8063, %v7992, %v8072
          %v8074 = vsel %vm8065, %v8023, %v8073
          %v8075 = vsel %vm8067, %v8054, %v8074
          %s8078 = scalar_lea.vmem %s266, %s3665 [#allocation3]
          %8079 = vst [vmem:[%s8078] sm:$0xff] %v8068
          %8080 = vst [vmem:[%s8078 + $0x8] sm:$0xff] %v8075
        $region41: #{get_cost_volume.7} parent=31 // loop_footer
          %s3664 = sadd.s32 1, %s3660
        $region42: #{get_cost_volume.7} parent=31 // loop_footer_branch
          %3659 = sbr.rel target = $region38
        $region43: #{get_cost_volume.7} parent=31 // loop_exit
          _
        %s8081 = sand.u32 %s134, 1
        %s8082 = scalar_lea.sflag [#allocation4], %s8081
        %s8083 = sand.u32 %s134, 1
        %s8084 = smul.addr %s8083, 128
        %s8085 = scalar_lea.vmem [#allocation3], %s8084
        // Predicated region
        $region44: #{get_cost_volume.7} parent=31 // pred_check
          %p8086 = pneg %p144
        $region45: #{get_cost_volume.7} parent=31 // pred_check_branch
          %8088 = sbr.rel (%p8086) target = $region47
        $region46: #{get_cost_volume.7} parent=31 // pred_region
          %s8089 = smul.u32 8, %s24
          %s8090 = smul.u32 2, %s23
          %8092 = vsyncadd %s8082, 0
          %s8093 = smul.addr %s8089, 2
          %s8094 = sadd.s32 %s8090, %s8093
          %s8095 = smul.addr %s22, 16
          %s8096 = sadd.s32 %s8094, %s8095
          %s8097 = smul.addr %s8096, 8
          %s8098 = scalar_lea.hbm %s3, %s8097
          %s8099 = sshll.u32 %s8085, 4
          %s8100 = int_to_ptr.vmem [resolvable:$true] %s8099
          %s8101 = sshll.u32 %s8098, 4
          %s8102 = int_to_ptr.hbm [resolvable:$true] %s8101
          %8107 = dma.vmem_to_hbm [thread:$0]  %s8100, 2048, %s8102, %s8082, 128, 128, 8
        $region47: #{get_cost_volume.7} parent=31 // pred_fallthru
          _
      $region32: #{get_cost_volume.7} parent=5 // pred_fallthru
        _
      %p8108 = scmp.le.s32.totalorder 2, %s12
      // Predicated region
      $region48: #{get_cost_volume.7} parent=5 // pred_check
        %p8109 = pneg %p8108
      $region49: #{get_cost_volume.7} parent=5 // pred_check_branch
        %8111 = sbr.rel (%p8109) target = $region51
      $region50: #{get_cost_volume.7} parent=5 // pred_region
        %s8112 = ssub.s32 %s12, 2
        // Predicated region
        $region52: #{get_cost_volume.7} parent=50 // pred_check
          %p8113 = pneg %p150
        $region53: #{get_cost_volume.7} parent=50 // pred_check_branch
          %8115 = sbr.rel (%p8113) target = $region55
        $region54: #{get_cost_volume.7} parent=50 // pred_region
          %s8116 = sand.u32 %s135, 1
          %s8117 = scalar_lea.sflag [#allocation4], %s8116
          %s8118 = sand.u32 %s135, 1
          %s8119 = smul.addr %s8118, 128
          %s8120 = scalar_lea.vmem [#allocation3], %s8119
          %8122 = dma.done %s8117, 2048
        $region55: #{get_cost_volume.7} parent=50 // pred_fallthru
          _
      $region51: #{get_cost_volume.7} parent=5 // pred_fallthru
        _
    $region6: #{get_cost_volume.7} parent=1 // loop_footer
      %s16 = sadd.s32 1, %s12
    $region7: #{get_cost_volume.7} parent=1 // loop_footer_branch
      %11 = sbr.rel target = $region3
    $region8: #{get_cost_volume.7} parent=1 // loop_exit
      _
    %8123 = vsyncpa [#allocation4], 1
    %s8124 = scalar_lea.sflag [#allocation4], 1
    %8125 = vsyncpa %s8124, 1

</llo_original>
